<compile_context>
chip_gen: v7x
topology: tpu7x:2x2x1
jax: 0.10.0
libtpu: 0.0.40
codegen_flags: <defaults>
</compile_context>

<pallas_src>
import functools
import math

import jax
import jax.numpy as jnp
from jax.experimental import pallas as pl
from jax.experimental.pallas import tpu as pltpu


def _round_up(x, m):
    return (x + m - 1) // m * m


def _physical_vmem_bytes(default=128 * 1024 * 1024):
    """Best-effort per-core VMEM capacity (falls back to 128 MiB)."""
    try:
        info = pltpu.get_tpu_info()
        for name in ("vmem_capacity_bytes", "vmem_size_bytes", "vmem_bytes"):
            v = getattr(info, name, None)
            if v:
                return int(v)
    except Exception:
        pass
    return default


def _unet_up_fused_kernel(x1_ref, x2_ref, w1_ref, b1_ref, w2_ref, b2_ref,
                          o_ref, xp, yp):
    """Fused cat + conv3x3(+bias,ReLU) + conv3x3(+bias,ReLU).

    Grid: (N, coutp // tc).  conv1 runs once per image (ct == 0) into the
    persistent VMEM scratch `yp`; every ct step emits one lane-dense tc-wide
    output-channel tile of conv2.

    x1_ref : (1, H, W, C1)            first input (NHWC, compute dtype)
    x2_ref : (1, H, W, C2)            second input
    w1_ref : (3, 3, ccatp, coutp)     conv1 weights (HWIO, Cin = cat(C1,C2) padded)
    b1_ref : (1, coutp)               conv1 bias (fp32)
    w2_ref : (3, 3, coutp, tc)        conv2 weights, one output-channel tile
    b2_ref : (1, tc)                  conv2 bias tile (fp32)
    o_ref  : (1, H, W, tc)            output tile
    xp     : (H+3, wp, ccatp)         zero-halo padded concat input scratch
    yp     : (H+3, wp, coutp)         zero-halo padded conv1 activation scratch
    (wp = round_up(W+2, 8); rows H+1/H+2 and columns 0 / >= W+1 are the halo.)
    """
    ct = pl.program_id(1)
    H, W = o_ref.shape[1], o_ref.shape[2]
    tc = o_ref.shape[3]
    C1, C2 = x1_ref.shape[3], x2_ref.shape[3]
    ccat = C1 + C2
    ccatp = xp.shape[2]
    cmid = yp.shape[2]
    wp = xp.shape[1]
    cdt = xp.dtype

    hs = H + 1          # slab rows: one extra so the +1/+2 shifted adds stay in-bounds
    L = hs * wp         # flattened slab length (matmul M dim), multiple of 8
    M = H * wp          # rows carrying real outputs

    def conv3x3(src, get_w, bias_1xt, tile):
        """SAME 3x3 conv of the zero-padded scratch `src`, one `tile`-wide
        output-channel slab.  dx shifts are applied on the OUTPUT side: each
        dy-slab is flattened once (layout-trivial since wp % 8 == 0) and reused
        by all three dx matmuls; the three fp32 accumulators are then combined
        with two sublane-shifted adds."""
        cin = src.shape[2]
        acc0 = jnp.zeros((L, tile), jnp.float32)
        acc1 = jnp.zeros((L, tile), jnp.float32)
        acc2 = jnp.zeros((L, tile), jnp.float32)
        for dy in range(3):
            s = src[dy:dy + hs, :, :].reshape(L, cin)
            acc0 = acc0 + jnp.dot(s, get_w(dy, 0), preferred_element_type=jnp.float32)
            acc1 = acc1 + jnp.dot(s, get_w(dy, 1), preferred_element_type=jnp.float32)
            acc2 = acc2 + jnp.dot(s, get_w(dy, 2), preferred_element_type=jnp.float32)
        comb = acc0[0:M, :] + acc1[1:M + 1, :] + acc2[2:M + 2, :]
        return jnp.maximum(comb + bias_1xt, 0.0)            # (M, tile) fp32

    @pl.when(ct == 0)
    def _concat_and_conv1():
        # Zero ONLY the halo border (re-done per image so megacore batch
        # splitting stays correct); interiors are fully overwritten below.
        for ref, cc in ((xp, ccatp), (yp, cmid)):
            ref[0:1, :, :] = jnp.zeros((1, wp, cc), cdt)
            ref[H + 1:H + 3, :, :] = jnp.zeros((2, wp, cc), cdt)
            ref[:, 0:1, :] = jnp.zeros((H + 3, 1, cc), cdt)
            ref[:, W + 1:wp, :] = jnp.zeros((H + 3, wp - W - 1, cc), cdt)

        # Fused torch.cat: both inputs land in ONE padded VMEM scratch.
        xp[1:H + 1, 1:W + 1, 0:C1] = x1_ref[0].astype(cdt)
        xp[1:H + 1, 1:W + 1, C1:ccat] = x2_ref[0].astype(cdt)
        if ccatp > ccat:   # static: zero the lane padding of the interior
            xp[1:H + 1, 1:W + 1, ccat:ccatp] = jnp.zeros((H, W, ccatp - ccat), cdt)

        # conv1 + bias + ReLU, tiled over output channels; the activation stays
        # resident in VMEM (no HBM round-trip between the two convs).
        colw = jax.lax.broadcasted_iota(jnp.int32, (1, wp, 1), 1)
        for cs in range(cmid // tc):
            lo = cs * tc
            y = conv3x3(xp,
                        lambda dy, dx, lo=lo: w1_ref[dy, dx, :, lo:lo + tc],
                        b1_ref[:, lo:lo + tc], tc)
            # Mask the junk columns (>= W) so yp's right-halo stays zero.
            y3 = jnp.where(colw < W, y.reshape(H, wp, tc), 0.0)
            yp[1:H + 1, 1:wp, lo:lo + tc] = y3[:, 0:wp - 1, :].astype(cdt)

    # conv2 + bias + ReLU for this tc-wide output-channel tile (every ct step).
    y2 = conv3x3(yp, lambda dy, dx: w2_ref[dy, dx], b2_ref[...], tc)
    o_ref[0] = y2.reshape(H, wp, tc)[:, 0:W, :].astype(o_ref.dtype)


def pack_unet_up_params(params, *, compute_dtype=jnp.bfloat16):
    """One-time weight prep: OIHW -> HWIO, channel padding, compute-dtype cast."""
    out_size, in_size = params["w1"].shape[0], params["w1"].shape[1]
    cinp = _round_up(in_size, 8)
    coutp = _round_up(out_size, 128)
    w1 = jnp.transpose(params["w1"], (2, 3, 1, 0))          # (3,3,in,out) HWIO
    w1 = jnp.pad(w1, ((0, 0), (0, 0), (0, cinp - in_size), (0, coutp - out_size)))
    w2 = jnp.transpose(params["w2"], (2, 3, 1, 0))
    w2 = jnp.pad(w2, ((0, 0), (0, 0), (0, coutp - out_size), (0, coutp - out_size)))
    b1 = jnp.pad(params["b1"], (0, coutp - out_size)).astype(jnp.float32).reshape(1, coutp)
    b2 = jnp.pad(params["b2"], (0, coutp - out_size)).astype(jnp.float32).reshape(1, coutp)
    return {"w1": w1.astype(compute_dtype), "b1": b1,
            "w2": w2.astype(compute_dtype), "b2": b2}


def unet_up_apply(packed, inputs1_nchw, inputs2_nchw, *, out_size,
                  compute_dtype=jnp.bfloat16, cout_tile=None, out_dtype=None):
    """Pallas implementation of unetUp.forward with pre-packed weights."""
    N, C1, H, W = inputs1_nchw.shape
    C2 = inputs2_nchw.shape[1]
    ccat = C1 + C2
    coutp = packed["b1"].shape[1]
    ccatp = packed["w1"].shape[2]
    assert ccatp == _round_up(ccat, 8), "packed params do not match input channels"
    out_dtype = inputs1_nchw.dtype if out_dtype is None else out_dtype

    if cout_tile is None:
        # 256 fills the v6e/v7x MXU N dim; pass cout_tile=128 on v5e.
        tc = 256 if coutp % 256 == 0 else 128
    else:
        tc = math.gcd(coutp, max(128, _round_up(cout_tile, 128)))

    wp = _round_up(W + 2, 8)     # scratch row stride: keeps every flatten layout-trivial

    x1 = jnp.transpose(inputs1_nchw, (0, 2, 3, 1)).astype(compute_dtype)
    x2 = jnp.transpose(inputs2_nchw, (0, 2, 3, 1)).astype(compute_dtype)

    # Rough VMEM budget: double-buffered blocks + scratches + fp32 temporaries.
    bpe = jnp.dtype(compute_dtype).itemsize
    obpe = jnp.dtype(out_dtype).itemsize
    L = (H + 1) * wp
    est = (2 * H * W * ccat * bpe                      # x1/x2 blocks
           + 2 * 9 * ccatp * coutp * bpe               # w1 block (invariant, still 2x)
           + 2 * 9 * coutp * tc * bpe                  # w2 block
           + 4 * coutp * 4                             # biases
           + 2 * H * W * tc * obpe                     # output block
           + (H + 3) * wp * (ccatp + coutp) * bpe      # xp / yp scratch
           + 3 * L * tc * 4                            # per-dx fp32 accumulators
           + L * max(ccatp, coutp) * bpe               # flattened dy slab
           + 2 * H * wp * tc * 4)                      # combine / relu temporaries
    phys = _physical_vmem_bytes()
    vmem_limit = int(min(max(2 * est, 32 * 1024 * 1024), int(phys * 0.9)))

    grid = (N, coutp // tc)
    y = pl.pallas_call(
        _unet_up_fused_kernel,
        out_shape=jax.ShapeDtypeStruct((N, H, W, coutp), out_dtype),
        grid=grid,
        in_specs=[
            pl.BlockSpec((1, H, W, C1), lambda n, c: (n, 0, 0, 0)),
            pl.BlockSpec((1, H, W, C2), lambda n, c: (n, 0, 0, 0)),
            pl.BlockSpec((3, 3, ccatp, coutp), lambda n, c: (0, 0, 0, 0)),
            pl.BlockSpec((1, coutp), lambda n, c: (0, 0)),
            pl.BlockSpec((3, 3, coutp, tc), lambda n, c: (0, 0, 0, c)),
            pl.BlockSpec((1, tc), lambda n, c: (0, c)),
        ],
        out_specs=pl.BlockSpec((1, H, W, tc), lambda n, c: (n, 0, 0, c)),
        scratch_shapes=[
            pltpu.VMEM((H + 3, wp, ccatp), compute_dtype),   # padded concat input
            pltpu.VMEM((H + 3, wp, coutp), compute_dtype),   # padded conv1 activation
        ],
        compiler_params=pltpu.CompilerParams(
            # batch may be split across cores (conv1 + halo init re-run per
            # image); the channel axis must stay "arbitrary" because it reuses
            # the conv1 activation computed at ct == 0.
            dimension_semantics=("parallel", "arbitrary"),
            vmem_limit_bytes=vmem_limit,
        ),
    )(x1, x2, packed["w1"], packed["b1"], packed["w2"], packed["b2"])

    # Drop the channel padding, NHWC -> NCHW.
    return jnp.transpose(y[:, :, :, :out_size], (0, 3, 1, 2))


def unet_up_forward(params, inputs1_nchw, inputs2_nchw, **kwargs):
    """Convenience path: pack (per call) + apply.  Prefer pack once + apply."""
    compute_dtype = kwargs.get("compute_dtype", jnp.bfloat16)
    packed = pack_unet_up_params(params, compute_dtype=compute_dtype)
    return unet_up_apply(packed, inputs1_nchw, inputs2_nchw,
                         out_size=params["b1"].shape[0], **kwargs)


def init_unet_up_params(key, in_size, out_size, dtype=jnp.float32):
    """Deterministic synthetic params, PyTorch conv layout (O, I, kh, kw)."""
    k1, k2, k3, k4 = jax.random.split(key, 4)
    s1 = 1.0 / jnp.sqrt(in_size * 9.0)
    s2 = 1.0 / jnp.sqrt(out_size * 9.0)
    return {
        "w1": jax.random.uniform(k1, (out_size, in_size, 3, 3), dtype, -s1, s1),
        "b1": jax.random.uniform(k2, (out_size,), dtype, -s1, s1),
        "w2": jax.random.uniform(k3, (out_size, out_size, 3, 3), dtype, -s2, s2),
        "b2": jax.random.uniform(k4, (out_size,), dtype, -s2, s2),
    }


def _reference_forward(params, inputs1_nchw, inputs2_nchw):
    """Pure-JAX reference (lax conv, fp32) for correctness checking."""
    x = jnp.concatenate([inputs1_nchw, inputs2_nchw], axis=1)
    x = jnp.transpose(x, (0, 2, 3, 1))

    def conv(x, w_oihw, b):
        w = jnp.transpose(w_oihw, (2, 3, 1, 0))
        y = jax.lax.conv_general_dilated(
            x, w, window_strides=(1, 1), padding="SAME",
            dimension_numbers=("NHWC", "HWIO", "NHWC"))
        return jnp.maximum(y + b[None, None, None, :], 0.0)

    y = conv(x, params["w1"], params["b1"])
    y = conv(y, params["w2"], params["b2"])
    return jnp.transpose(y, (0, 3, 1, 2))


if __name__ == "__main__":
    key = jax.random.PRNGKey(0)
    k_p, k_x1, k_x2 = jax.random.split(key, 3)

    N, C1, C2, H, W = 2, 4, 4, 16, 16
    in_size = C1 + C2      # channels after torch.cat
    out_size = 8

    params = init_unet_up_params(k_p, in_size, out_size)
    inputs1 = jax.random.normal(k_x1, (N, C1, H, W), jnp.float32)
    inputs2 = jax.random.normal(k_x2, (N, C2, H, W), jnp.float32)

    packed = pack_unet_up_params(params)            # one-time weight prep
    fwd = jax.jit(functools.partial(unet_up_apply, out_size=out_size))
    out = jax.block_until_ready(fwd(packed, inputs1, inputs2))

    ref = _reference_forward(params, inputs1, inputs2)
    assert out.shape == (N, out_size, H, W), out.shape
    # bf16 MXU taps with fp32 accumulation: loose-but-safe tolerance vs fp32 ref.
    assert jnp.allclose(out, ref, atol=5e-2, rtol=5e-2), "mismatch vs reference"

    print("KERNEL_OK")
</pallas_src>

<mosaic_0001>
module attributes {stable_mosaic.version = 11 : i64} {
  func.func @_unet_up_fused_kernel(%arg0: i32, %arg1: i32, %arg2: memref<1x16x16x4xbf16, #tpu.memory_space<vmem>>, %arg3: memref<1x16x16x4xbf16, #tpu.memory_space<vmem>>, %arg4: memref<3x3x8x128xbf16, #tpu.memory_space<vmem>>, %arg5: memref<1x128xf32, #tpu.memory_space<vmem>>, %arg6: memref<3x3x128x128xbf16, #tpu.memory_space<vmem>>, %arg7: memref<1x128xf32, #tpu.memory_space<vmem>>, %arg8: memref<1x16x16x128xf32, #tpu.memory_space<vmem>>, %arg9: memref<19x24x8xbf16, #tpu.memory_space<vmem>>, %arg10: memref<19x24x128xbf16, #tpu.memory_space<vmem>>) attributes {dimension_semantics = [#tpu.dimension_semantics<parallel>, #tpu.dimension_semantics<arbitrary>], iteration_bounds = array<i64: 2, 1>, scalar_prefetch = 0 : i64, scratch_operands = 2 : i64, tpu.core_type = #tpu.core_type<tc>, window_params = [{transform_indices = @transform_0, window_bounds = array<i64: 1, 16, 16, 4>}, {transform_indices = @transform_1, window_bounds = array<i64: 1, 16, 16, 4>}, {pipeline_mode = #tpu.pipeline_mode<synchronous>, transform_indices = @transform_2, window_bounds = array<i64: 3, 3, 8, 128>}, {pipeline_mode = #tpu.pipeline_mode<synchronous>, transform_indices = @transform_3, window_bounds = array<i64: 1, 128>}, {transform_indices = @transform_4, window_bounds = array<i64: 3, 3, 128, 128>}, {transform_indices = @transform_5, window_bounds = array<i64: 1, 128>}, {transform_indices = @transform_6, window_bounds = array<i64: 1, 16, 16, 128>}]} {
    %c0_i32 = arith.constant 0 : i32
    %0 = arith.cmpi eq, %arg1, %c0_i32 : i32
    %1 = arith.extui %0 : i1 to i32
    %c0_i32_0 = arith.constant 0 : i32
    %2 = arith.cmpi ne, %1, %c0_i32_0 : i32
    scf.if %2 {
      %cst_61 = arith.constant 0.000000e+00 : bf16
      %63 = vector.broadcast %cst_61 : bf16 to vector<1x24x8xbf16>
      %c0_62 = arith.constant 0 : index
      %c0_63 = arith.constant 0 : index
      %c0_64 = arith.constant 0 : index
      %64 = vector.load %arg9[%c0_62, %c0_63, %c0_64] : memref<19x24x8xbf16, #tpu.memory_space<vmem>>, vector<1x24x8xbf16>
      tpu.vector_store %arg9[%c0_62, %c0_63, %c0_64], %63 {strides = array<i32>} : memref<19x24x8xbf16, #tpu.memory_space<vmem>>, vector<1x24x8xbf16>,
      %cst_65 = arith.constant 0.000000e+00 : bf16
      %65 = vector.broadcast %cst_65 : bf16 to vector<2x24x8xbf16>
      %c17 = arith.constant 17 : index
      %c0_66 = arith.constant 0 : index
      %c0_67 = arith.constant 0 : index
      %66 = vector.load %arg9[%c17, %c0_66, %c0_67] : memref<19x24x8xbf16, #tpu.memory_space<vmem>>, vector<2x24x8xbf16>
      tpu.vector_store %arg9[%c17, %c0_66, %c0_67], %65 {strides = array<i32>} : memref<19x24x8xbf16, #tpu.memory_space<vmem>>, vector<2x24x8xbf16>,
      %cst_68 = arith.constant 0.000000e+00 : bf16
      %67 = vector.broadcast %cst_68 : bf16 to vector<19x1x8xbf16>
      %c0_69 = arith.constant 0 : index
      %c0_70 = arith.constant 0 : index
      %c0_71 = arith.constant 0 : index
      %68 = vector.load %arg9[%c0_69, %c0_70, %c0_71] : memref<19x24x8xbf16, #tpu.memory_space<vmem>>, vector<19x1x8xbf16>
      tpu.vector_store %arg9[%c0_69, %c0_70, %c0_71], %67 {strides = array<i32>} : memref<19x24x8xbf16, #tpu.memory_space<vmem>>, vector<19x1x8xbf16>,
      %cst_72 = arith.constant 0.000000e+00 : bf16
      %69 = vector.broadcast %cst_72 : bf16 to vector<19x7x8xbf16>
      %c0_73 = arith.constant 0 : index
      %c17_74 = arith.constant 17 : index
      %c0_75 = arith.constant 0 : index
      %70 = vector.load %arg9[%c0_73, %c17_74, %c0_75] : memref<19x24x8xbf16, #tpu.memory_space<vmem>>, vector<19x7x8xbf16>
      tpu.vector_store %arg9[%c0_73, %c17_74, %c0_75], %69 {strides = array<i32>} : memref<19x24x8xbf16, #tpu.memory_space<vmem>>, vector<19x7x8xbf16>,
      %cst_76 = arith.constant 0.000000e+00 : bf16
      %71 = vector.broadcast %cst_76 : bf16 to vector<1x24x128xbf16>
      %c0_77 = arith.constant 0 : index
      %c0_78 = arith.constant 0 : index
      %c0_79 = arith.constant 0 : index
      %72 = vector.load %arg10[%c0_77, %c0_78, %c0_79] : memref<19x24x128xbf16, #tpu.memory_space<vmem>>, vector<1x24x128xbf16>
      tpu.vector_store %arg10[%c0_77, %c0_78, %c0_79], %71 {strides = array<i32>} : memref<19x24x128xbf16, #tpu.memory_space<vmem>>, vector<1x24x128xbf16>,
      %cst_80 = arith.constant 0.000000e+00 : bf16
      %73 = vector.broadcast %cst_80 : bf16 to vector<2x24x128xbf16>
      %c17_81 = arith.constant 17 : index
      %c0_82 = arith.constant 0 : index
      %c0_83 = arith.constant 0 : index
      %74 = vector.load %arg10[%c17_81, %c0_82, %c0_83] : memref<19x24x128xbf16, #tpu.memory_space<vmem>>, vector<2x24x128xbf16>
      tpu.vector_store %arg10[%c17_81, %c0_82, %c0_83], %73 {strides = array<i32>} : memref<19x24x128xbf16, #tpu.memory_space<vmem>>, vector<2x24x128xbf16>,
      %cst_84 = arith.constant 0.000000e+00 : bf16
      %75 = vector.broadcast %cst_84 : bf16 to vector<19x1x128xbf16>
      %c0_85 = arith.constant 0 : index
      %c0_86 = arith.constant 0 : index
      %c0_87 = arith.constant 0 : index
      %76 = vector.load %arg10[%c0_85, %c0_86, %c0_87] : memref<19x24x128xbf16, #tpu.memory_space<vmem>>, vector<19x1x128xbf16>
      tpu.vector_store %arg10[%c0_85, %c0_86, %c0_87], %75 {strides = array<i32>} : memref<19x24x128xbf16, #tpu.memory_space<vmem>>, vector<19x1x128xbf16>,
      %cst_88 = arith.constant 0.000000e+00 : bf16
      %77 = vector.broadcast %cst_88 : bf16 to vector<19x7x128xbf16>
      %c0_89 = arith.constant 0 : index
      %c17_90 = arith.constant 17 : index
      %c0_91 = arith.constant 0 : index
      %78 = vector.load %arg10[%c0_89, %c17_90, %c0_91] : memref<19x24x128xbf16, #tpu.memory_space<vmem>>, vector<19x7x128xbf16>
      tpu.vector_store %arg10[%c0_89, %c17_90, %c0_91], %77 {strides = array<i32>} : memref<19x24x128xbf16, #tpu.memory_space<vmem>>, vector<19x7x128xbf16>,
      %c0_92 = arith.constant 0 : index
      %c0_93 = arith.constant 0 : index
      %c0_94 = arith.constant 0 : index
      %c0_95 = arith.constant 0 : index
      %79 = vector.load %arg2[%c0_92, %c0_93, %c0_94, %c0_95] : memref<1x16x16x4xbf16, #tpu.memory_space<vmem>>, vector<1x16x16x4xbf16>
      %80 = vector.shape_cast %79 : vector<1x16x16x4xbf16> to vector<16x16x4xbf16>
      %c1_96 = arith.constant 1 : index
      %c1_97 = arith.constant 1 : index
      %c0_98 = arith.constant 0 : index
      %81 = vector.load %arg9[%c1_96, %c1_97, %c0_98] : memref<19x24x8xbf16, #tpu.memory_space<vmem>>, vector<16x16x4xbf16>
      tpu.vector_store %arg9[%c1_96, %c1_97, %c0_98], %80 {strides = array<i32>} : memref<19x24x8xbf16, #tpu.memory_space<vmem>>, vector<16x16x4xbf16>,
      %c0_99 = arith.constant 0 : index
      %c0_100 = arith.constant 0 : index
      %c0_101 = arith.constant 0 : index
      %c0_102 = arith.constant 0 : index
      %82 = vector.load %arg3[%c0_99, %c0_100, %c0_101, %c0_102] : memref<1x16x16x4xbf16, #tpu.memory_space<vmem>>, vector<1x16x16x4xbf16>
      %83 = vector.shape_cast %82 : vector<1x16x16x4xbf16> to vector<16x16x4xbf16>
      %c1_103 = arith.constant 1 : index
      %c1_104 = arith.constant 1 : index
      %c4 = arith.constant 4 : index
      %84 = vector.load %arg9[%c1_103, %c1_104, %c4] : memref<19x24x8xbf16, #tpu.memory_space<vmem>>, vector<16x16x4xbf16>
      tpu.vector_store %arg9[%c1_103, %c1_104, %c4], %83 {strides = array<i32>} : memref<19x24x8xbf16, #tpu.memory_space<vmem>>, vector<16x16x4xbf16>,
      %85 = tpu.iota {dimensions = array<i32: 1>} : vector<1x24x1xi32>
      %c0_105 = arith.constant 0 : index
      %c0_106 = arith.constant 0 : index
      %86 = vector.load %arg5[%c0_105, %c0_106] : memref<1x128xf32, #tpu.memory_space<vmem>>, vector<1x128xf32>
      %cst_107 = arith.constant 0.000000e+00 : f32
      %87 = vector.broadcast %cst_107 : f32 to vector<408x128xf32>
      %cst_108 = arith.constant 0.000000e+00 : f32
      %88 = vector.broadcast %cst_108 : f32 to vector<408x128xf32>
      %cst_109 = arith.constant 0.000000e+00 : f32
      %89 = vector.broadcast %cst_109 : f32 to vector<408x128xf32>
      %c0_110 = arith.constant 0 : index
      %c0_111 = arith.constant 0 : index
      %c0_112 = arith.constant 0 : index
      %90 = vector.load %arg9[%c0_110, %c0_111, %c0_112] : memref<19x24x8xbf16, #tpu.memory_space<vmem>>, vector<17x24x8xbf16>
      %91 = vector.shape_cast %90 : vector<17x24x8xbf16> to vector<408x8xbf16>
      %c0_113 = arith.constant 0 : index
      %c0_114 = arith.constant 0 : index
      %c0_115 = arith.constant 0 : index
      %c0_116 = arith.constant 0 : index
      %92 = vector.load %arg4[%c0_113, %c0_114, %c0_115, %c0_116] : memref<3x3x8x128xbf16, #tpu.memory_space<vmem>>, vector<1x1x8x128xbf16>
      %93 = vector.shape_cast %92 : vector<1x1x8x128xbf16> to vector<8x128xbf16>
      %cst_117 = arith.constant dense<0.000000e+00> : vector<408x128xf32>
      %94 = tpu.matmul %91, %93, %cst_117 {dimension_numbers = #tpu.dot_dimension_numbers<[1], [0], [0], [1], [0, 0, 1, 1], [], []>} : vector<408x8xbf16>, vector<8x128xbf16>, vector<408x128xf32> -> vector<408x128xf32>
      %95 = arith.addf %87, %94 : vector<408x128xf32>
      %c0_118 = arith.constant 0 : index
      %c1_119 = arith.constant 1 : index
      %c0_120 = arith.constant 0 : index
      %c0_121 = arith.constant 0 : index
      %96 = vector.load %arg4[%c0_118, %c1_119, %c0_120, %c0_121] : memref<3x3x8x128xbf16, #tpu.memory_space<vmem>>, vector<1x1x8x128xbf16>
      %97 = vector.shape_cast %96 : vector<1x1x8x128xbf16> to vector<8x128xbf16>
      %cst_122 = arith.constant dense<0.000000e+00> : vector<408x128xf32>
      %98 = tpu.matmul %91, %97, %cst_122 {dimension_numbers = #tpu.dot_dimension_numbers<[1], [0], [0], [1], [0, 0, 1, 1], [], []>} : vector<408x8xbf16>, vector<8x128xbf16>, vector<408x128xf32> -> vector<408x128xf32>
      %99 = arith.addf %88, %98 : vector<408x128xf32>
      %c0_123 = arith.constant 0 : index
      %c2_124 = arith.constant 2 : index
      %c0_125 = arith.constant 0 : index
      %c0_126 = arith.constant 0 : index
      %100 = vector.load %arg4[%c0_123, %c2_124, %c0_125, %c0_126] : memref<3x3x8x128xbf16, #tpu.memory_space<vmem>>, vector<1x1x8x128xbf16>
      %101 = vector.shape_cast %100 : vector<1x1x8x128xbf16> to vector<8x128xbf16>
      %cst_127 = arith.constant dense<0.000000e+00> : vector<408x128xf32>
      %102 = tpu.matmul %91, %101, %cst_127 {dimension_numbers = #tpu.dot_dimension_numbers<[1], [0], [0], [1], [0, 0, 1, 1], [], []>} : vector<408x8xbf16>, vector<8x128xbf16>, vector<408x128xf32> -> vector<408x128xf32>
      %103 = arith.addf %89, %102 : vector<408x128xf32>
      %c1_128 = arith.constant 1 : index
      %c0_129 = arith.constant 0 : index
      %c0_130 = arith.constant 0 : index
      %104 = vector.load %arg9[%c1_128, %c0_129, %c0_130] : memref<19x24x8xbf16, #tpu.memory_space<vmem>>, vector<17x24x8xbf16>
      %105 = vector.shape_cast %104 : vector<17x24x8xbf16> to vector<408x8xbf16>
      %c1_131 = arith.constant 1 : index
      %c0_132 = arith.constant 0 : index
      %c0_133 = arith.constant 0 : index
      %c0_134 = arith.constant 0 : index
      %106 = vector.load %arg4[%c1_131, %c0_132, %c0_133, %c0_134] : memref<3x3x8x128xbf16, #tpu.memory_space<vmem>>, vector<1x1x8x128xbf16>
      %107 = vector.shape_cast %106 : vector<1x1x8x128xbf16> to vector<8x128xbf16>
      %cst_135 = arith.constant dense<0.000000e+00> : vector<408x128xf32>
      %108 = tpu.matmul %105, %107, %cst_135 {dimension_numbers = #tpu.dot_dimension_numbers<[1], [0], [0], [1], [0, 0, 1, 1], [], []>} : vector<408x8xbf16>, vector<8x128xbf16>, vector<408x128xf32> -> vector<408x128xf32>
      %109 = arith.addf %95, %108 : vector<408x128xf32>
      %c1_136 = arith.constant 1 : index
      %c1_137 = arith.constant 1 : index
      %c0_138 = arith.constant 0 : index
      %c0_139 = arith.constant 0 : index
      %110 = vector.load %arg4[%c1_136, %c1_137, %c0_138, %c0_139] : memref<3x3x8x128xbf16, #tpu.memory_space<vmem>>, vector<1x1x8x128xbf16>
      %111 = vector.shape_cast %110 : vector<1x1x8x128xbf16> to vector<8x128xbf16>
      %cst_140 = arith.constant dense<0.000000e+00> : vector<408x128xf32>
      %112 = tpu.matmul %105, %111, %cst_140 {dimension_numbers = #tpu.dot_dimension_numbers<[1], [0], [0], [1], [0, 0, 1, 1], [], []>} : vector<408x8xbf16>, vector<8x128xbf16>, vector<408x128xf32> -> vector<408x128xf32>
      %113 = arith.addf %99, %112 : vector<408x128xf32>
      %c1_141 = arith.constant 1 : index
      %c2_142 = arith.constant 2 : index
      %c0_143 = arith.constant 0 : index
      %c0_144 = arith.constant 0 : index
      %114 = vector.load %arg4[%c1_141, %c2_142, %c0_143, %c0_144] : memref<3x3x8x128xbf16, #tpu.memory_space<vmem>>, vector<1x1x8x128xbf16>
      %115 = vector.shape_cast %114 : vector<1x1x8x128xbf16> to vector<8x128xbf16>
      %cst_145 = arith.constant dense<0.000000e+00> : vector<408x128xf32>
      %116 = tpu.matmul %105, %115, %cst_145 {dimension_numbers = #tpu.dot_dimension_numbers<[1], [0], [0], [1], [0, 0, 1, 1], [], []>} : vector<408x8xbf16>, vector<8x128xbf16>, vector<408x128xf32> -> vector<408x128xf32>
      %117 = arith.addf %103, %116 : vector<408x128xf32>
      %c2_146 = arith.constant 2 : index
      %c0_147 = arith.constant 0 : index
      %c0_148 = arith.constant 0 : index
      %118 = vector.load %arg9[%c2_146, %c0_147, %c0_148] : memref<19x24x8xbf16, #tpu.memory_space<vmem>>, vector<17x24x8xbf16>
      %119 = vector.shape_cast %118 : vector<17x24x8xbf16> to vector<408x8xbf16>
      %c2_149 = arith.constant 2 : index
      %c0_150 = arith.constant 0 : index
      %c0_151 = arith.constant 0 : index
      %c0_152 = arith.constant 0 : index
      %120 = vector.load %arg4[%c2_149, %c0_150, %c0_151, %c0_152] : memref<3x3x8x128xbf16, #tpu.memory_space<vmem>>, vector<1x1x8x128xbf16>
      %121 = vector.shape_cast %120 : vector<1x1x8x128xbf16> to vector<8x128xbf16>
      %cst_153 = arith.constant dense<0.000000e+00> : vector<408x128xf32>
      %122 = tpu.matmul %119, %121, %cst_153 {dimension_numbers = #tpu.dot_dimension_numbers<[1], [0], [0], [1], [0, 0, 1, 1], [], []>} : vector<408x8xbf16>, vector<8x128xbf16>, vector<408x128xf32> -> vector<408x128xf32>
      %123 = arith.addf %109, %122 : vector<408x128xf32>
      %c2_154 = arith.constant 2 : index
      %c1_155 = arith.constant 1 : index
      %c0_156 = arith.constant 0 : index
      %c0_157 = arith.constant 0 : index
      %124 = vector.load %arg4[%c2_154, %c1_155, %c0_156, %c0_157] : memref<3x3x8x128xbf16, #tpu.memory_space<vmem>>, vector<1x1x8x128xbf16>
      %125 = vector.shape_cast %124 : vector<1x1x8x128xbf16> to vector<8x128xbf16>
      %cst_158 = arith.constant dense<0.000000e+00> : vector<408x128xf32>
      %126 = tpu.matmul %119, %125, %cst_158 {dimension_numbers = #tpu.dot_dimension_numbers<[1], [0], [0], [1], [0, 0, 1, 1], [], []>} : vector<408x8xbf16>, vector<8x128xbf16>, vector<408x128xf32> -> vector<408x128xf32>
      %127 = arith.addf %113, %126 : vector<408x128xf32>
      %c2_159 = arith.constant 2 : index
      %c2_160 = arith.constant 2 : index
      %c0_161 = arith.constant 0 : index
      %c0_162 = arith.constant 0 : index
      %128 = vector.load %arg4[%c2_159, %c2_160, %c0_161, %c0_162] : memref<3x3x8x128xbf16, #tpu.memory_space<vmem>>, vector<1x1x8x128xbf16>
      %129 = vector.shape_cast %128 : vector<1x1x8x128xbf16> to vector<8x128xbf16>
      %cst_163 = arith.constant dense<0.000000e+00> : vector<408x128xf32>
      %130 = tpu.matmul %119, %129, %cst_163 {dimension_numbers = #tpu.dot_dimension_numbers<[1], [0], [0], [1], [0, 0, 1, 1], [], []>} : vector<408x8xbf16>, vector<8x128xbf16>, vector<408x128xf32> -> vector<408x128xf32>
      %131 = arith.addf %117, %130 : vector<408x128xf32>
      %132 = vector.extract_strided_slice %123 {offsets = [0, 0], sizes = [384, 128], strides = [1, 1]} : vector<408x128xf32> to vector<384x128xf32>
      %133 = vector.extract_strided_slice %127 {offsets = [1, 0], sizes = [384, 128], strides = [1, 1]} : vector<408x128xf32> to vector<384x128xf32>
      %134 = arith.addf %132, %133 : vector<384x128xf32>
      %135 = vector.extract_strided_slice %131 {offsets = [2, 0], sizes = [384, 128], strides = [1, 1]} : vector<408x128xf32> to vector<384x128xf32>
      %136 = arith.addf %134, %135 : vector<384x128xf32>
      %137 = vector.broadcast %86 : vector<1x128xf32> to vector<384x128xf32>
      %138 = arith.addf %136, %137 : vector<384x128xf32>
      %cst_164 = arith.constant 0.000000e+00 : f32
      %139 = vector.broadcast %cst_164 : f32 to vector<384x128xf32>
      %140 = arith.maximumf %138, %139 : vector<384x128xf32>
      %c16_i32 = arith.constant 16 : i32
      %141 = vector.broadcast %c16_i32 : i32 to vector<1x24x1xi32>
      %142 = arith.cmpi slt, %85, %141 : vector<1x24x1xi32>
      %143 = vector.shape_cast %140 : vector<384x128xf32> to vector<16x24x128xf32>
      %cst_165 = arith.constant 0.000000e+00 : f32
      %144 = vector.shape_cast %142 : vector<1x24x1xi1> to vector<1x24x1xi1>
      %145 = vector.broadcast %144 : vector<1x24x1xi1> to vector<16x24x128xi1>
      %146 = vector.broadcast %cst_165 : f32 to vector<16x24x128xf32>
      %147 = arith.select %145, %143, %146 : vector<16x24x128xi1>, vector<16x24x128xf32>
      %148 = vector.extract_strided_slice %147 {offsets = [0, 0, 0], sizes = [16, 23, 128], strides = [1, 1, 1]} : vector<16x24x128xf32> to vector<16x23x128xf32>
      %149 = arith.truncf %148 : vector<16x23x128xf32> to vector<16x23x128xbf16>
      %c1_166 = arith.constant 1 : index
      %c1_167 = arith.constant 1 : index
      %c0_168 = arith.constant 0 : index
      %150 = vector.load %arg10[%c1_166, %c1_167, %c0_168] : memref<19x24x128xbf16, #tpu.memory_space<vmem>>, vector<16x23x128xbf16>
      tpu.vector_store %arg10[%c1_166, %c1_167, %c0_168], %149 {strides = array<i32>} : memref<19x24x128xbf16, #tpu.memory_space<vmem>>, vector<16x23x128xbf16>,
    } else {
    }
    %c0 = arith.constant 0 : index
    %c0_1 = arith.constant 0 : index
    %3 = vector.load %arg7[%c0, %c0_1] : memref<1x128xf32, #tpu.memory_space<vmem>>, vector<1x128xf32>
    %cst = arith.constant 0.000000e+00 : f32
    %4 = vector.broadcast %cst : f32 to vector<408x128xf32>
    %cst_2 = arith.constant 0.000000e+00 : f32
    %5 = vector.broadcast %cst_2 : f32 to vector<408x128xf32>
    %cst_3 = arith.constant 0.000000e+00 : f32
    %6 = vector.broadcast %cst_3 : f32 to vector<408x128xf32>
    %c0_4 = arith.constant 0 : index
    %c0_5 = arith.constant 0 : index
    %c0_6 = arith.constant 0 : index
    %7 = vector.load %arg10[%c0_4, %c0_5, %c0_6] : memref<19x24x128xbf16, #tpu.memory_space<vmem>>, vector<17x24x128xbf16>
    %8 = vector.shape_cast %7 : vector<17x24x128xbf16> to vector<408x128xbf16>
    %c0_7 = arith.constant 0 : index
    %c0_8 = arith.constant 0 : index
    %c0_9 = arith.constant 0 : index
    %c0_10 = arith.constant 0 : index
    %9 = vector.load %arg6[%c0_7, %c0_8, %c0_9, %c0_10] : memref<3x3x128x128xbf16, #tpu.memory_space<vmem>>, vector<1x1x128x128xbf16>
    %10 = vector.shape_cast %9 : vector<1x1x128x128xbf16> to vector<128x128xbf16>
    %cst_11 = arith.constant dense<0.000000e+00> : vector<408x128xf32>
    %11 = tpu.matmul %8, %10, %cst_11 {dimension_numbers = #tpu.dot_dimension_numbers<[1], [0], [0], [1], [0, 0, 1, 1], [], []>} : vector<408x128xbf16>, vector<128x128xbf16>, vector<408x128xf32> -> vector<408x128xf32>
    %12 = arith.addf %4, %11 : vector<408x128xf32>
    %c0_12 = arith.constant 0 : index
    %c1 = arith.constant 1 : index
    %c0_13 = arith.constant 0 : index
    %c0_14 = arith.constant 0 : index
    %13 = vector.load %arg6[%c0_12, %c1, %c0_13, %c0_14] : memref<3x3x128x128xbf16, #tpu.memory_space<vmem>>, vector<1x1x128x128xbf16>
    %14 = vector.shape_cast %13 : vector<1x1x128x128xbf16> to vector<128x128xbf16>
    %cst_15 = arith.constant dense<0.000000e+00> : vector<408x128xf32>
    %15 = tpu.matmul %8, %14, %cst_15 {dimension_numbers = #tpu.dot_dimension_numbers<[1], [0], [0], [1], [0, 0, 1, 1], [], []>} : vector<408x128xbf16>, vector<128x128xbf16>, vector<408x128xf32> -> vector<408x128xf32>
    %16 = arith.addf %5, %15 : vector<408x128xf32>
    %c0_16 = arith.constant 0 : index
    %c2 = arith.constant 2 : index
    %c0_17 = arith.constant 0 : index
    %c0_18 = arith.constant 0 : index
    %17 = vector.load %arg6[%c0_16, %c2, %c0_17, %c0_18] : memref<3x3x128x128xbf16, #tpu.memory_space<vmem>>, vector<1x1x128x128xbf16>
    %18 = vector.shape_cast %17 : vector<1x1x128x128xbf16> to vector<128x128xbf16>
    %cst_19 = arith.constant dense<0.000000e+00> : vector<408x128xf32>
    %19 = tpu.matmul %8, %18, %cst_19 {dimension_numbers = #tpu.dot_dimension_numbers<[1], [0], [0], [1], [0, 0, 1, 1], [], []>} : vector<408x128xbf16>, vector<128x128xbf16>, vector<408x128xf32> -> vector<408x128xf32>
    %20 = arith.addf %6, %19 : vector<408x128xf32>
    %c1_20 = arith.constant 1 : index
    %c0_21 = arith.constant 0 : index
    %c0_22 = arith.constant 0 : index
    %21 = vector.load %arg10[%c1_20, %c0_21, %c0_22] : memref<19x24x128xbf16, #tpu.memory_space<vmem>>, vector<17x24x128xbf16>
    %22 = vector.shape_cast %21 : vector<17x24x128xbf16> to vector<408x128xbf16>
    %c1_23 = arith.constant 1 : index
    %c0_24 = arith.constant 0 : index
    %c0_25 = arith.constant 0 : index
    %c0_26 = arith.constant 0 : index
    %23 = vector.load %arg6[%c1_23, %c0_24, %c0_25, %c0_26] : memref<3x3x128x128xbf16, #tpu.memory_space<vmem>>, vector<1x1x128x128xbf16>
    %24 = vector.shape_cast %23 : vector<1x1x128x128xbf16> to vector<128x128xbf16>
    %cst_27 = arith.constant dense<0.000000e+00> : vector<408x128xf32>
    %25 = tpu.matmul %22, %24, %cst_27 {dimension_numbers = #tpu.dot_dimension_numbers<[1], [0], [0], [1], [0, 0, 1, 1], [], []>} : vector<408x128xbf16>, vector<128x128xbf16>, vector<408x128xf32> -> vector<408x128xf32>
    %26 = arith.addf %12, %25 : vector<408x128xf32>
    %c1_28 = arith.constant 1 : index
    %c1_29 = arith.constant 1 : index
    %c0_30 = arith.constant 0 : index
    %c0_31 = arith.constant 0 : index
    %27 = vector.load %arg6[%c1_28, %c1_29, %c0_30, %c0_31] : memref<3x3x128x128xbf16, #tpu.memory_space<vmem>>, vector<1x1x128x128xbf16>
    %28 = vector.shape_cast %27 : vector<1x1x128x128xbf16> to vector<128x128xbf16>
    %cst_32 = arith.constant dense<0.000000e+00> : vector<408x128xf32>
    %29 = tpu.matmul %22, %28, %cst_32 {dimension_numbers = #tpu.dot_dimension_numbers<[1], [0], [0], [1], [0, 0, 1, 1], [], []>} : vector<408x128xbf16>, vector<128x128xbf16>, vector<408x128xf32> -> vector<408x128xf32>
    %30 = arith.addf %16, %29 : vector<408x128xf32>
    %c1_33 = arith.constant 1 : index
    %c2_34 = arith.constant 2 : index
    %c0_35 = arith.constant 0 : index
    %c0_36 = arith.constant 0 : index
    %31 = vector.load %arg6[%c1_33, %c2_34, %c0_35, %c0_36] : memref<3x3x128x128xbf16, #tpu.memory_space<vmem>>, vector<1x1x128x128xbf16>
    %32 = vector.shape_cast %31 : vector<1x1x128x128xbf16> to vector<128x128xbf16>
    %cst_37 = arith.constant dense<0.000000e+00> : vector<408x128xf32>
    %33 = tpu.matmul %22, %32, %cst_37 {dimension_numbers = #tpu.dot_dimension_numbers<[1], [0], [0], [1], [0, 0, 1, 1], [], []>} : vector<408x128xbf16>, vector<128x128xbf16>, vector<408x128xf32> -> vector<408x128xf32>
    %34 = arith.addf %20, %33 : vector<408x128xf32>
    %c2_38 = arith.constant 2 : index
    %c0_39 = arith.constant 0 : index
    %c0_40 = arith.constant 0 : index
    %35 = vector.load %arg10[%c2_38, %c0_39, %c0_40] : memref<19x24x128xbf16, #tpu.memory_space<vmem>>, vector<17x24x128xbf16>
    %36 = vector.shape_cast %35 : vector<17x24x128xbf16> to vector<408x128xbf16>
    %c2_41 = arith.constant 2 : index
    %c0_42 = arith.constant 0 : index
    %c0_43 = arith.constant 0 : index
    %c0_44 = arith.constant 0 : index
    %37 = vector.load %arg6[%c2_41, %c0_42, %c0_43, %c0_44] : memref<3x3x128x128xbf16, #tpu.memory_space<vmem>>, vector<1x1x128x128xbf16>
    %38 = vector.shape_cast %37 : vector<1x1x128x128xbf16> to vector<128x128xbf16>
    %cst_45 = arith.constant dense<0.000000e+00> : vector<408x128xf32>
    %39 = tpu.matmul %36, %38, %cst_45 {dimension_numbers = #tpu.dot_dimension_numbers<[1], [0], [0], [1], [0, 0, 1, 1], [], []>} : vector<408x128xbf16>, vector<128x128xbf16>, vector<408x128xf32> -> vector<408x128xf32>
    %40 = arith.addf %26, %39 : vector<408x128xf32>
    %c2_46 = arith.constant 2 : index
    %c1_47 = arith.constant 1 : index
    %c0_48 = arith.constant 0 : index
    %c0_49 = arith.constant 0 : index
    %41 = vector.load %arg6[%c2_46, %c1_47, %c0_48, %c0_49] : memref<3x3x128x128xbf16, #tpu.memory_space<vmem>>, vector<1x1x128x128xbf16>
    %42 = vector.shape_cast %41 : vector<1x1x128x128xbf16> to vector<128x128xbf16>
    %cst_50 = arith.constant dense<0.000000e+00> : vector<408x128xf32>
    %43 = tpu.matmul %36, %42, %cst_50 {dimension_numbers = #tpu.dot_dimension_numbers<[1], [0], [0], [1], [0, 0, 1, 1], [], []>} : vector<408x128xbf16>, vector<128x128xbf16>, vector<408x128xf32> -> vector<408x128xf32>
    %44 = arith.addf %30, %43 : vector<408x128xf32>
    %c2_51 = arith.constant 2 : index
    %c2_52 = arith.constant 2 : index
    %c0_53 = arith.constant 0 : index
    %c0_54 = arith.constant 0 : index
    %45 = vector.load %arg6[%c2_51, %c2_52, %c0_53, %c0_54] : memref<3x3x128x128xbf16, #tpu.memory_space<vmem>>, vector<1x1x128x128xbf16>
    %46 = vector.shape_cast %45 : vector<1x1x128x128xbf16> to vector<128x128xbf16>
    %cst_55 = arith.constant dense<0.000000e+00> : vector<408x128xf32>
    %47 = tpu.matmul %36, %46, %cst_55 {dimension_numbers = #tpu.dot_dimension_numbers<[1], [0], [0], [1], [0, 0, 1, 1], [], []>} : vector<408x128xbf16>, vector<128x128xbf16>, vector<408x128xf32> -> vector<408x128xf32>
    %48 = arith.addf %34, %47 : vector<408x128xf32>
    %49 = vector.extract_strided_slice %40 {offsets = [0, 0], sizes = [384, 128], strides = [1, 1]} : vector<408x128xf32> to vector<384x128xf32>
    %50 = vector.extract_strided_slice %44 {offsets = [1, 0], sizes = [384, 128], strides = [1, 1]} : vector<408x128xf32> to vector<384x128xf32>
    %51 = arith.addf %49, %50 : vector<384x128xf32>
    %52 = vector.extract_strided_slice %48 {offsets = [2, 0], sizes = [384, 128], strides = [1, 1]} : vector<408x128xf32> to vector<384x128xf32>
    %53 = arith.addf %51, %52 : vector<384x128xf32>
    %54 = vector.broadcast %3 : vector<1x128xf32> to vector<384x128xf32>
    %55 = arith.addf %53, %54 : vector<384x128xf32>
    %cst_56 = arith.constant 0.000000e+00 : f32
    %56 = vector.broadcast %cst_56 : f32 to vector<384x128xf32>
    %57 = arith.maximumf %55, %56 : vector<384x128xf32>
    %58 = vector.shape_cast %57 : vector<384x128xf32> to vector<16x24x128xf32>
    %59 = vector.extract_strided_slice %58 {offsets = [0, 0, 0], sizes = [16, 16, 128], strides = [1, 1, 1]} : vector<16x24x128xf32> to vector<16x16x128xf32>
    %c0_57 = arith.constant 0 : index
    %c0_58 = arith.constant 0 : index
    %c0_59 = arith.constant 0 : index
    %c0_60 = arith.constant 0 : index
    %60 = vector.load %arg8[%c0_57, %c0_58, %c0_59, %c0_60] : memref<1x16x16x128xf32, #tpu.memory_space<vmem>>, vector<1x16x16x128xf32>
    %61 = vector.shape_cast %60 : vector<1x16x16x128xf32> to vector<16x16x128xf32>
    %62 = vector.shape_cast %59 : vector<16x16x128xf32> to vector<1x16x16x128xf32>
    tpu.vector_store %arg8[%c0_57, %c0_58, %c0_59, %c0_60], %62 {strides = array<i32>} : memref<1x16x16x128xf32, #tpu.memory_space<vmem>>, vector<1x16x16x128xf32>,
    return
  }
  func.func @transform_0(%arg0: i32, %arg1: i32) -> (i32, i32, i32, i32) {
    %c0_i32 = arith.constant 0 : i32
    %c0_i32_0 = arith.constant 0 : i32
    %c0_i32_1 = arith.constant 0 : i32
    %c0_i32_2 = arith.constant 0 : i32
    return %arg0, %c0_i32, %c0_i32_0, %c0_i32_1 : i32, i32, i32, i32
  }
  func.func @transform_1(%arg0: i32, %arg1: i32) -> (i32, i32, i32, i32) {
    %c0_i32 = arith.constant 0 : i32
    %c0_i32_0 = arith.constant 0 : i32
    %c0_i32_1 = arith.constant 0 : i32
    %c0_i32_2 = arith.constant 0 : i32
    return %arg0, %c0_i32, %c0_i32_0, %c0_i32_1 : i32, i32, i32, i32
  }
  func.func @transform_2(%arg0: i32, %arg1: i32) -> (i32, i32, i32, i32) {
    %c0_i32 = arith.constant 0 : i32
    %c0_i32_0 = arith.constant 0 : i32
    %c0_i32_1 = arith.constant 0 : i32
    %c0_i32_2 = arith.constant 0 : i32
    %c0_i32_3 = arith.constant 0 : i32
    return %c0_i32, %c0_i32_0, %c0_i32_1, %c0_i32_2 : i32, i32, i32, i32
  }
  func.func @transform_3(%arg0: i32, %arg1: i32) -> (i32, i32) {
    %c0_i32 = arith.constant 0 : i32
    %c0_i32_0 = arith.constant 0 : i32
    %c0_i32_1 = arith.constant 0 : i32
    return %c0_i32, %c0_i32_0 : i32, i32
  }
  func.func @transform_4(%arg0: i32, %arg1: i32) -> (i32, i32, i32, i32) {
    %c0_i32 = arith.constant 0 : i32
    %c0_i32_0 = arith.constant 0 : i32
    %c0_i32_1 = arith.constant 0 : i32
    %c0_i32_2 = arith.constant 0 : i32
    return %c0_i32, %c0_i32_0, %c0_i32_1, %arg1 : i32, i32, i32, i32
  }
  func.func @transform_5(%arg0: i32, %arg1: i32) -> (i32, i32) {
    %c0_i32 = arith.constant 0 : i32
    %c0_i32_0 = arith.constant 0 : i32
    return %c0_i32, %arg1 : i32, i32
  }
  func.func @transform_6(%arg0: i32, %arg1: i32) -> (i32, i32, i32, i32) {
    %c0_i32 = arith.constant 0 : i32
    %c0_i32_0 = arith.constant 0 : i32
    %c0_i32_1 = arith.constant 0 : i32
    return %arg0, %c0_i32, %c0_i32_0, %arg1 : i32, i32, i32, i32
  }
}

</mosaic_0001>

<llo_original>
// kernel: unet_up_apply.1
$region0: #{unet_up_apply.1}
  #allocation0 [shape = 'u32[]', space=smem, size = 0x4, offset = 0x4, fixed_abs, tag = 'smem constant byte address 0x4 - core index']
  #allocation1 [shape = 'u32[144,128]{1,0:T(1,128)}', space=vmem, size = 0x12000, scoped, tag = 'internal scratch']
  #allocation2 [shape = 'bf16[19,24,8]{2,1,0:T(8,128)(2,1)}', space=vmem, size = 0x1c800, scoped, tag = 'scratch operand']
  #allocation3 [shape = 'bf16[19,24,128]{2,1,0:T(8,128)(2,1)}', space=vmem, size = 0x1c800, scoped, tag = 'scratch operand']
  %s0 = inlined_call_operand.vmem [shape: bf16[2,16,16,4], index: 0, kind: input, shape index: {}]
  %s1 = inlined_call_operand.vmem [shape: bf16[2,16,16,4], index: 1, kind: input, shape index: {}]
  %s2 = inlined_call_operand.vmem [shape: bf16[3,3,8,128], index: 2, kind: input, shape index: {}]
  %s3 = inlined_call_operand.vmem [shape: f32[1,128], index: 3, kind: input, shape index: {}]
  %s4 = inlined_call_operand.vmem [shape: bf16[3,3,128,128], index: 4, kind: input, shape index: {}]
  %s5 = inlined_call_operand.vmem [shape: f32[1,128], index: 5, kind: input, shape index: {}]
  %s6 = inlined_call_operand.vmem [shape: f32[2,16,16,128], index: 6, kind: output, shape index: {}]
  %s7 = sld [smem:[#allocation0]]
  $region61: #{unet_up_apply.1} parent=0
    _
  %s9 = ssub.s32 1, %s7
  %s10 = scalar_select 0, %s9, %s7
  loop: start=0, step=1, limit=4
  $region2: #{unet_up_apply.1} parent=0 // loop_pre_header
    _
  $region3: #{unet_up_apply.1} parent=0 // loop_header
    %s12 = sphi 0, %s16
    %p13 = scmp.ge.s32.totalorder %s12, 4
    %s19 = sphi 0, %s31
    %s20 = sphi 0, %s27
    %s21 = sphi 0, %s19
    %s22 = sphi 0, %s20
    %s23 = sphi 0, %s21
    %s24 = sphi 0, %s22
    %s34 = sphi 0, %s36
    %s37 = sphi 0, %s34
    %s38 = sphi 0, %s37
    %s54 = sphi 0, %s38
    %s60 = sphi 0, %s62
    %s63 = sphi 0, %s60
    %s64 = sphi 0, %s63
    %s80 = sphi 0, %s64
    %s84 = sphi 0, %s84
    %s86 = sphi 0, %s84
    %s87 = sphi 0, %s86
    %s101 = sphi 0, %s87
    %s105 = sphi 0, %s105
    %s107 = sphi 0, %s105
    %s108 = sphi 0, %s107
    %s122 = sphi 0, %s108
    %s128 = sphi 0, %s130
    %s131 = sphi 0, %s128
    %s132 = sphi 0, %s131
    %s148 = sphi 0, %s132
    %s154 = sphi 0, %s156
    %s157 = sphi 0, %s154
    %s158 = sphi 0, %s157
    %s174 = sphi 0, %s158
    %s182 = sphi 0, %s184
    %s185 = sphi 0, %s182
    %s186 = sphi 0, %s185
    %s202 = sphi 0, %s186
  $region4: #{unet_up_apply.1} parent=0 // loop_header_branch
    %15 = sbr.rel (%p13) target = $region8
  $region5: #{unet_up_apply.1} parent=0 // loop_body
    %s17 = ssub.s32 %s12, 1
    %s18 = ssub.s32 %s12, 2
    %s25 = sadd.s32 1, %s20
    %p26 = scmp.ge.s32.totalorder %s25, 1
    %s27 = scalar_select %p26, 0, %s25
    %s28 = sadd.s32 1, %s19
    %s29 = scalar_select %p26, %s28, %s19
    %p30 = scmp.ge.s32.totalorder %s29, 2
    %s31 = scalar_select %p30, 0, %s29
    %s32 = ssub.s32 %s19, %s31
    %p33 = scmp.eq.s32.totalorder %s32, 0
    %s35 = sadd.s32 %s34, 1
    %s36 = scalar_select %p33, %s34, %s35
    %p39 = pneg %p33
    %p40 = scmp.eq.s32.totalorder %s12, 1
    %p41 = por %p39, %p40
    %p42 = scmp.ne.s32.totalorder %s34, %s37
    %p43 = scmp.eq.s32.totalorder %s12, 0
    %p44 = por %p42, %p43
    %p45 = scmp.ne.s32.totalorder %s34, %s37
    %p46 = scmp.eq.s32.totalorder %s17, 1
    %p47 = por %p45, %p46
    %p48 = scmp.ne.s32.totalorder %s37, %s38
    %p49 = scmp.eq.s32.totalorder %s17, 0
    %p50 = por %p48, %p49
    %p51 = scmp.ne.s32.totalorder %s37, %s38
    %p52 = scmp.eq.s32.totalorder %s18, 1
    %p53 = por %p51, %p52
    %p55 = scmp.ne.s32.totalorder %s38, %s54
    %p56 = scmp.eq.s32.totalorder %s18, 0
    %p57 = por %p55, %p56
    %s58 = ssub.s32 %s19, %s31
    %p59 = scmp.eq.s32.totalorder %s58, 0
    %s61 = sadd.s32 %s60, 1
    %s62 = scalar_select %p59, %s60, %s61
    %p65 = pneg %p59
    %p66 = scmp.eq.s32.totalorder %s12, 1
    %p67 = por %p65, %p66
    %p68 = scmp.ne.s32.totalorder %s60, %s63
    %p69 = scmp.eq.s32.totalorder %s12, 0
    %p70 = por %p68, %p69
    %p71 = scmp.ne.s32.totalorder %s60, %s63
    %p72 = scmp.eq.s32.totalorder %s17, 1
    %p73 = por %p71, %p72
    %p74 = scmp.ne.s32.totalorder %s63, %s64
    %p75 = scmp.eq.s32.totalorder %s17, 0
    %p76 = por %p74, %p75
    %p77 = scmp.ne.s32.totalorder %s63, %s64
    %p78 = scmp.eq.s32.totalorder %s18, 1
    %p79 = por %p77, %p78
    %p81 = scmp.ne.s32.totalorder %s64, %s80
    %p82 = scmp.eq.s32.totalorder %s18, 0
    %p83 = por %p81, %p82
    %s85 = sadd.s32 %s84, 1
    %p88 = scmp.eq.s32.totalorder %s12, 1
    %p89 = scmp.ne.s32.totalorder %s84, %s86
    %p90 = scmp.eq.s32.totalorder %s12, 0
    %p91 = por %p89, %p90
    %p92 = scmp.ne.s32.totalorder %s84, %s86
    %p93 = scmp.eq.s32.totalorder %s17, 1
    %p94 = por %p92, %p93
    %p95 = scmp.ne.s32.totalorder %s86, %s87
    %p96 = scmp.eq.s32.totalorder %s17, 0
    %p97 = por %p95, %p96
    %p98 = scmp.ne.s32.totalorder %s86, %s87
    %p99 = scmp.eq.s32.totalorder %s18, 1
    %p100 = por %p98, %p99
    %p102 = scmp.ne.s32.totalorder %s87, %s101
    %p103 = scmp.eq.s32.totalorder %s18, 0
    %p104 = por %p102, %p103
    %s106 = sadd.s32 %s105, 1
    %p109 = scmp.eq.s32.totalorder %s12, 1
    %p110 = scmp.ne.s32.totalorder %s105, %s107
    %p111 = scmp.eq.s32.totalorder %s12, 0
    %p112 = por %p110, %p111
    %p113 = scmp.ne.s32.totalorder %s105, %s107
    %p114 = scmp.eq.s32.totalorder %s17, 1
    %p115 = por %p113, %p114
    %p116 = scmp.ne.s32.totalorder %s107, %s108
    %p117 = scmp.eq.s32.totalorder %s17, 0
    %p118 = por %p116, %p117
    %p119 = scmp.ne.s32.totalorder %s107, %s108
    %p120 = scmp.eq.s32.totalorder %s18, 1
    %p121 = por %p119, %p120
    %p123 = scmp.ne.s32.totalorder %s108, %s122
    %p124 = scmp.eq.s32.totalorder %s18, 0
    %p125 = por %p123, %p124
    %s126 = ssub.s32 %s20, %s27
    %p127 = scmp.eq.s32.totalorder %s126, 0
    %s129 = sadd.s32 %s128, 1
    %s130 = scalar_select %p127, %s128, %s129
    %p133 = pneg %p127
    %p134 = scmp.eq.s32.totalorder %s12, 1
    %p135 = por %p133, %p134
    %p136 = scmp.ne.s32.totalorder %s128, %s131
    %p137 = scmp.eq.s32.totalorder %s12, 0
    %p138 = por %p136, %p137
    %p139 = scmp.ne.s32.totalorder %s128, %s131
    %p140 = scmp.eq.s32.totalorder %s17, 1
    %p141 = por %p139, %p140
    %p142 = scmp.ne.s32.totalorder %s131, %s132
    %p143 = scmp.eq.s32.totalorder %s17, 0
    %p144 = por %p142, %p143
    %p145 = scmp.ne.s32.totalorder %s131, %s132
    %p146 = scmp.eq.s32.totalorder %s18, 1
    %p147 = por %p145, %p146
    %p149 = scmp.ne.s32.totalorder %s132, %s148
    %p150 = scmp.eq.s32.totalorder %s18, 0
    %p151 = por %p149, %p150
    %s152 = ssub.s32 %s20, %s27
    %p153 = scmp.eq.s32.totalorder %s152, 0
    %s155 = sadd.s32 %s154, 1
    %s156 = scalar_select %p153, %s154, %s155
    %p159 = pneg %p153
    %p160 = scmp.eq.s32.totalorder %s12, 1
    %p161 = por %p159, %p160
    %p162 = scmp.ne.s32.totalorder %s154, %s157
    %p163 = scmp.eq.s32.totalorder %s12, 0
    %p164 = por %p162, %p163
    %p165 = scmp.ne.s32.totalorder %s154, %s157
    %p166 = scmp.eq.s32.totalorder %s17, 1
    %p167 = por %p165, %p166
    %p168 = scmp.ne.s32.totalorder %s157, %s158
    %p169 = scmp.eq.s32.totalorder %s17, 0
    %p170 = por %p168, %p169
    %p171 = scmp.ne.s32.totalorder %s157, %s158
    %p172 = scmp.eq.s32.totalorder %s18, 1
    %p173 = por %p171, %p172
    %p175 = scmp.ne.s32.totalorder %s158, %s174
    %p176 = scmp.eq.s32.totalorder %s18, 0
    %p177 = por %p175, %p176
    %s178 = ssub.s32 %s19, %s31
    %s179 = ssub.s32 %s20, %s27
    %s180 = sor.u32 %s178, %s179
    %p181 = scmp.eq.s32.totalorder %s180, 0
    %s183 = sadd.s32 %s182, 1
    %s184 = scalar_select %p181, %s182, %s183
    %p187 = pneg %p181
    %p188 = scmp.eq.s32.totalorder %s12, 1
    %p189 = por %p187, %p188
    %p190 = scmp.ne.s32.totalorder %s182, %s185
    %p191 = scmp.eq.s32.totalorder %s12, 0
    %p192 = por %p190, %p191
    %p193 = scmp.ne.s32.totalorder %s182, %s185
    %p194 = scmp.eq.s32.totalorder %s17, 1
    %p195 = por %p193, %p194
    %p196 = scmp.ne.s32.totalorder %s185, %s186
    %p197 = scmp.eq.s32.totalorder %s17, 0
    %p198 = por %p196, %p197
    %p199 = scmp.ne.s32.totalorder %s185, %s186
    %p200 = scmp.eq.s32.totalorder %s18, 1
    %p201 = por %p199, %p200
    %p203 = scmp.ne.s32.totalorder %s186, %s202
    %p204 = scmp.eq.s32.totalorder %s18, 0
    %p205 = por %p203, %p204
    %p206 = scmp.le.s32.totalorder 1, %s12
    %p207 = scmp.lt.s32.totalorder %s12, 3
    %p208 = pnand %p206, %p207
    %p209 = pneg %p208
    // Predicated region
    $region9: #{unet_up_apply.1} parent=5 // pred_check
      _
    $region10: #{unet_up_apply.1} parent=5 // pred_check_branch
      %211 = sbr.rel (%p208) target = $region12
    $region11: #{unet_up_apply.1} parent=5 // pred_region
      %s212 = ssub.s32 %s12, 1
      // Predicated region
      $region13: #{unet_up_apply.1} parent=11 // pred_check
        %p213 = pneg %p97
      $region14: #{unet_up_apply.1} parent=11 // pred_check_branch
        %215 = sbr.rel (%p213) target = $region16
      $region15: #{unet_up_apply.1} parent=11 // pred_region
        _
      $region16: #{unet_up_apply.1} parent=11 // pred_fallthru
        _
      // Predicated region
      $region17: #{unet_up_apply.1} parent=11 // pred_check
        %p216 = pneg %p118
      $region18: #{unet_up_apply.1} parent=11 // pred_check_branch
        %218 = sbr.rel (%p216) target = $region20
      $region19: #{unet_up_apply.1} parent=11 // pred_region
        _
      $region20: #{unet_up_apply.1} parent=11 // pred_fallthru
        _
      // Predicated region
      $region21: #{unet_up_apply.1} parent=11 // pred_check
        %p219 = pneg %p144
      $region22: #{unet_up_apply.1} parent=11 // pred_check_branch
        %221 = sbr.rel (%p219) target = $region24
      $region23: #{unet_up_apply.1} parent=11 // pred_region
        %p222 = scmp.lt.s32.totalorder %s22, 0
        %s223 = scalar_select %p222, %s22, 0
        %s224 = smul.addr %s223, 4
        %s225 = scalar_lea.vmem %s4, %s224
      $region24: #{unet_up_apply.1} parent=11 // pred_fallthru
        _
      // Predicated region
      $region25: #{unet_up_apply.1} parent=11 // pred_check
        %p226 = pneg %p170
      $region26: #{unet_up_apply.1} parent=11 // pred_check_branch
        %228 = sbr.rel (%p226) target = $region28
      $region27: #{unet_up_apply.1} parent=11 // pred_region
        %p229 = scmp.lt.s32.totalorder %s22, 0
        %s230 = scalar_select %p229, %s22, 0
        %s231 = scalar_lea.vmem %s5, %s230
      $region28: #{unet_up_apply.1} parent=11 // pred_fallthru
        _
    $region12: #{unet_up_apply.1} parent=5 // pred_fallthru
      _
    %p232 = scmp.lt.s32.totalorder %s12, 2
    // Predicated region
    $region29: #{unet_up_apply.1} parent=5 // pred_check
      %p233 = pneg %p232
    $region30: #{unet_up_apply.1} parent=5 // pred_check_branch
      %235 = sbr.rel (%p233) target = $region32
    $region31: #{unet_up_apply.1} parent=5 // pred_region
      // Predicated region
      $region33: #{unet_up_apply.1} parent=31 // pred_check
        %p236 = pneg %p44
      $region34: #{unet_up_apply.1} parent=31 // pred_check_branch
        %238 = sbr.rel (%p236) target = $region36
      $region35: #{unet_up_apply.1} parent=31 // pred_region
        %p239 = scmp.lt.s32.totalorder %s19, 1
        %s240 = scalar_select %p239, %s19, 1
        %s241 = smul.addr %s240, 32
        %s242 = smul.addr %s241, 4
        %s243 = scalar_lea.vmem %s0, %s242
      $region36: #{unet_up_apply.1} parent=31 // pred_fallthru
        _
      // Predicated region
      $region37: #{unet_up_apply.1} parent=31 // pred_check
        %p244 = pneg %p70
      $region38: #{unet_up_apply.1} parent=31 // pred_check_branch
        %246 = sbr.rel (%p244) target = $region40
      $region39: #{unet_up_apply.1} parent=31 // pred_region
        %p247 = scmp.lt.s32.totalorder %s19, 1
        %s248 = scalar_select %p247, %s19, 1
        %s249 = smul.addr %s248, 32
        %s250 = smul.addr %s249, 4
        %s251 = scalar_lea.vmem %s1, %s250
      $region40: #{unet_up_apply.1} parent=31 // pred_fallthru
        _
    $region32: #{unet_up_apply.1} parent=5 // pred_fallthru
      _
    %p252 = scmp.le.s32.totalorder 1, %s12
    %p253 = scmp.lt.s32.totalorder %s12, 3
    %p254 = pnand %p252, %p253
    %p255 = pneg %p254
    // Predicated region
    $region41: #{unet_up_apply.1} parent=5 // pred_check
      _
    $region42: #{unet_up_apply.1} parent=5 // pred_check_branch
      %257 = sbr.rel (%p254) target = $region44
    $region43: #{unet_up_apply.1} parent=5 // pred_region
      %s258 = ssub.s32 %s12, 1
      %p259 = scmp.lt.s32.totalorder %s21, 1
      %s260 = scalar_select %p259, %s21, 1
      %s261 = smul.addr %s260, 32
      %s262 = smul.addr %s261, 4
      %s263 = scalar_lea.vmem %s0, %s262
      %p264 = pneg %p50
      %p265 = pneg %p47
      %p266 = scmp.lt.s32.totalorder %s21, 1
      %s267 = scalar_select %p266, %s21, 1
      %s268 = smul.addr %s267, 32
      %s269 = smul.addr %s268, 4
      %s270 = scalar_lea.vmem %s1, %s269
      %p271 = pneg %p76
      %p272 = pneg %p73
      %p273 = pneg %p97
      %p274 = pneg %p94
      %p275 = pneg %p118
      %p276 = pneg %p115
      %p277 = scmp.lt.s32.totalorder %s22, 0
      %s278 = scalar_select %p277, %s22, 0
      %s279 = smul.addr %s278, 4
      %s280 = scalar_lea.vmem %s4, %s279
      %p281 = pneg %p144
      %p282 = pneg %p141
      %p283 = scmp.lt.s32.totalorder %s22, 0
      %s284 = scalar_select %p283, %s22, 0
      %s285 = scalar_lea.vmem %s5, %s284
      %p286 = pneg %p170
      %p287 = pneg %p167
      %p288 = pneg %p198
      %p289 = pneg %p195
      %p290 = scmp.lt.s32.totalorder %s21, 1
      %s291 = scalar_select %p290, %s21, 1
      %p292 = scmp.lt.s32.totalorder %s22, 0
      %s293 = scalar_select %p292, %s22, 0
      %s294 = smul.addr %s291, 32
      %s295 = sadd.s32 %s293, %s294
      %s296 = smul.addr %s295, 8
      %s297 = scalar_lea.vmem %s6, %s296
      %p298 = scmp.lt.s32.totalorder %s21, 1
      %s299 = scalar_select %p298, %s21, 1
      %s300 = smul.addr %s299, 32
      %s301 = smul.addr %s300, 4
      %s302 = scalar_lea.vmem %s0, %s301
      %p303 = scmp.lt.s32.totalorder %s21, 1
      %s304 = scalar_select %p303, %s21, 1
      %s305 = smul.addr %s304, 32
      %s306 = smul.addr %s305, 4
      %s307 = scalar_lea.vmem %s1, %s306
      %p308 = scmp.lt.s32.totalorder %s22, 0
      %s309 = scalar_select %p308, %s22, 0
      %s310 = smul.addr %s309, 4
      %s311 = scalar_lea.vmem %s4, %s310
      %p312 = scmp.lt.s32.totalorder %s22, 0
      %s313 = scalar_select %p312, %s22, 0
      %s314 = scalar_lea.vmem %s5, %s313
      %p315 = scmp.lt.s32.totalorder %s21, 1
      %s316 = scalar_select %p315, %s21, 1
      %p317 = scmp.lt.s32.totalorder %s22, 0
      %s318 = scalar_select %p317, %s22, 0
      %s319 = smul.addr %s316, 32
      %s320 = sadd.s32 %s318, %s319
      %s321 = smul.addr %s320, 8
      %s322 = scalar_lea.vmem %s6, %s321
      %p324 = scmp.eq.s32.totalorder %s22, 0
      // Predicated region
      $region45: #{unet_up_apply.1} parent=43 // pred_check
        %p325 = pneg %p324
      $region46: #{unet_up_apply.1} parent=43 // pred_check_branch
        %327 = sbr.rel (%p325) target = $region48
      $region47: #{unet_up_apply.1} parent=43 // pred_region
        %vm328 = vcmask 60416
        %329 = vst.msk [vmem:[#allocation2] sm:$0xf] %vm328, 0
        %330 = vst.msk [vmem:[#allocation2 + $0x4] sm:$0xf] %vm328, 0
        %331 = vst.msk [vmem:[#allocation2 + $0x8] sm:$0xf] %vm328, 0
        %s332 = scalar_lea.vmem [#allocation2], 204
        %333 = vst.msk [vmem:[%s332] sm:$0xf] %vm328, 0
        %334 = vst.msk [vmem:[%s332 + $0x4] sm:$0xf] %vm328, 0
        %335 = vst.msk [vmem:[%s332 + $0x8] sm:$0xf] %vm328, 0
        %336 = vst.msk [vmem:[%s332 + $0xc] sm:$0xf] %vm328, 0
        %337 = vst.msk [vmem:[%s332 + $0x10] sm:$0xf] %vm328, 0
        %338 = vst.msk [vmem:[%s332 + $0x14] sm:$0xf] %vm328, 0
        %vm339 = vcmask 57344
        %vm340 = vsmask.f32 256
        %vm341 = vmand %vm339, %vm340
        %v342 = vld [vmem:[#allocation2] sm:$0x1]
        %v343 = vsel %vm341, 0, %v342
        %344 = vst [vmem:[#allocation2] sm:$0x1] %v343
        %v345 = vld [vmem:[#allocation2 + $0xc] sm:$0x1]
        %v346 = vsel %vm341, 0, %v345
        %347 = vst [vmem:[#allocation2 + $0xc] sm:$0x1] %v346
        %v348 = vld [vmem:[#allocation2 + $0x18] sm:$0x1]
        %v349 = vsel %vm341, 0, %v348
        %350 = vst [vmem:[#allocation2 + $0x18] sm:$0x1] %v349
        %v351 = vld [vmem:[#allocation2 + $0x24] sm:$0x1]
        %v352 = vsel %vm341, 0, %v351
        %353 = vst [vmem:[#allocation2 + $0x24] sm:$0x1] %v352
        %v354 = vld [vmem:[#allocation2 + $0x30] sm:$0x1]
        %v355 = vsel %vm341, 0, %v354
        %356 = vst [vmem:[#allocation2 + $0x30] sm:$0x1] %v355
        %v357 = vld [vmem:[#allocation2 + $0x3c] sm:$0x1]
        %v358 = vsel %vm341, 0, %v357
        %359 = vst [vmem:[#allocation2 + $0x3c] sm:$0x1] %v358
        %v360 = vld [vmem:[#allocation2 + $0x48] sm:$0x1]
        %v361 = vsel %vm341, 0, %v360
        %362 = vst [vmem:[#allocation2 + $0x48] sm:$0x1] %v361
        %v363 = vld [vmem:[#allocation2 + $0x54] sm:$0x1]
        %v364 = vsel %vm341, 0, %v363
        %365 = vst [vmem:[#allocation2 + $0x54] sm:$0x1] %v364
        %v366 = vld [vmem:[#allocation2 + $0x60] sm:$0x1]
        %v367 = vsel %vm341, 0, %v366
        %368 = vst [vmem:[#allocation2 + $0x60] sm:$0x1] %v367
        %v369 = vld [vmem:[#allocation2 + $0x6c] sm:$0x1]
        %v370 = vsel %vm341, 0, %v369
        %371 = vst [vmem:[#allocation2 + $0x6c] sm:$0x1] %v370
        %v372 = vld [vmem:[#allocation2 + $0x78] sm:$0x1]
        %v373 = vsel %vm341, 0, %v372
        %374 = vst [vmem:[#allocation2 + $0x78] sm:$0x1] %v373
        %v375 = vld [vmem:[#allocation2 + $0x84] sm:$0x1]
        %v376 = vsel %vm341, 0, %v375
        %377 = vst [vmem:[#allocation2 + $0x84] sm:$0x1] %v376
        %v378 = vld [vmem:[#allocation2 + $0x90] sm:$0x1]
        %v379 = vsel %vm341, 0, %v378
        %380 = vst [vmem:[#allocation2 + $0x90] sm:$0x1] %v379
        %v381 = vld [vmem:[#allocation2 + $0x9c] sm:$0x1]
        %v382 = vsel %vm341, 0, %v381
        %383 = vst [vmem:[#allocation2 + $0x9c] sm:$0x1] %v382
        %v384 = vld [vmem:[#allocation2 + $0xa8] sm:$0x1]
        %v385 = vsel %vm341, 0, %v384
        %386 = vst [vmem:[#allocation2 + $0xa8] sm:$0x1] %v385
        %v387 = vld [vmem:[#allocation2 + $0xb4] sm:$0x1]
        %v388 = vsel %vm341, 0, %v387
        %389 = vst [vmem:[#allocation2 + $0xb4] sm:$0x1] %v388
        %v390 = vld [vmem:[#allocation2 + $0xc0] sm:$0x1]
        %v391 = vsel %vm341, 0, %v390
        %392 = vst [vmem:[#allocation2 + $0xc0] sm:$0x1] %v391
        %v393 = vld [vmem:[#allocation2 + $0xcc] sm:$0x1]
        %v394 = vsel %vm341, 0, %v393
        %395 = vst [vmem:[#allocation2 + $0xcc] sm:$0x1] %v394
        %v396 = vld [vmem:[#allocation2 + $0xd8] sm:$0x1]
        %v397 = vsel %vm341, 0, %v396
        %398 = vst [vmem:[#allocation2 + $0xd8] sm:$0x1] %v397
        %vm399 = vcmask 60416
        %vm400 = vsmask.f32 7938
        %vm401 = vmand %vm399, %vm400
        %v402 = vld [vmem:[#allocation2 + $0x8] sm:$0xf]
        %v403 = vsel %vm401, 0, %v402
        %404 = vst [vmem:[#allocation2 + $0x8] sm:$0xf] %v403
        %v405 = vld [vmem:[#allocation2 + $0x14] sm:$0xf]
        %v406 = vsel %vm401, 0, %v405
        %407 = vst [vmem:[#allocation2 + $0x14] sm:$0xf] %v406
        %v408 = vld [vmem:[#allocation2 + $0x20] sm:$0xf]
        %v409 = vsel %vm401, 0, %v408
        %410 = vst [vmem:[#allocation2 + $0x20] sm:$0xf] %v409
        %v411 = vld [vmem:[#allocation2 + $0x2c] sm:$0xf]
        %v412 = vsel %vm401, 0, %v411
        %413 = vst [vmem:[#allocation2 + $0x2c] sm:$0xf] %v412
        %v414 = vld [vmem:[#allocation2 + $0x38] sm:$0xf]
        %v415 = vsel %vm401, 0, %v414
        %416 = vst [vmem:[#allocation2 + $0x38] sm:$0xf] %v415
        %v417 = vld [vmem:[#allocation2 + $0x44] sm:$0xf]
        %v418 = vsel %vm401, 0, %v417
        %419 = vst [vmem:[#allocation2 + $0x44] sm:$0xf] %v418
        %v420 = vld [vmem:[#allocation2 + $0x50] sm:$0xf]
        %v421 = vsel %vm401, 0, %v420
        %422 = vst [vmem:[#allocation2 + $0x50] sm:$0xf] %v421
        %v423 = vld [vmem:[#allocation2 + $0x5c] sm:$0xf]
        %v424 = vsel %vm401, 0, %v423
        %425 = vst [vmem:[#allocation2 + $0x5c] sm:$0xf] %v424
        %v426 = vld [vmem:[#allocation2 + $0x68] sm:$0xf]
        %v427 = vsel %vm401, 0, %v426
        %428 = vst [vmem:[#allocation2 + $0x68] sm:$0xf] %v427
        %v429 = vld [vmem:[#allocation2 + $0x74] sm:$0xf]
        %v430 = vsel %vm401, 0, %v429
        %431 = vst [vmem:[#allocation2 + $0x74] sm:$0xf] %v430
        %v432 = vld [vmem:[#allocation2 + $0x80] sm:$0xf]
        %v433 = vsel %vm401, 0, %v432
        %434 = vst [vmem:[#allocation2 + $0x80] sm:$0xf] %v433
        %v435 = vld [vmem:[#allocation2 + $0x8c] sm:$0xf]
        %v436 = vsel %vm401, 0, %v435
        %437 = vst [vmem:[#allocation2 + $0x8c] sm:$0xf] %v436
        %v438 = vld [vmem:[#allocation2 + $0x98] sm:$0xf]
        %v439 = vsel %vm401, 0, %v438
        %440 = vst [vmem:[#allocation2 + $0x98] sm:$0xf] %v439
        %v441 = vld [vmem:[#allocation2 + $0xa4] sm:$0xf]
        %v442 = vsel %vm401, 0, %v441
        %443 = vst [vmem:[#allocation2 + $0xa4] sm:$0xf] %v442
        %v444 = vld [vmem:[#allocation2 + $0xb0] sm:$0xf]
        %v445 = vsel %vm401, 0, %v444
        %446 = vst [vmem:[#allocation2 + $0xb0] sm:$0xf] %v445
        %v447 = vld [vmem:[#allocation2 + $0xbc] sm:$0xf]
        %v448 = vsel %vm401, 0, %v447
        %449 = vst [vmem:[#allocation2 + $0xbc] sm:$0xf] %v448
        %v450 = vld [vmem:[#allocation2 + $0xc8] sm:$0xf]
        %v451 = vsel %vm401, 0, %v450
        %452 = vst [vmem:[#allocation2 + $0xc8] sm:$0xf] %v451
        %v453 = vld [vmem:[#allocation2 + $0xd4] sm:$0xf]
        %v454 = vsel %vm401, 0, %v453
        %455 = vst [vmem:[#allocation2 + $0xd4] sm:$0xf] %v454
        %v456 = vld [vmem:[#allocation2 + $0xe0] sm:$0xf]
        %v457 = vsel %vm401, 0, %v456
        %458 = vst [vmem:[#allocation2 + $0xe0] sm:$0xf] %v457
        %459 = vst [vmem:[#allocation3] sm:$0xf] 0
        %460 = vst [vmem:[#allocation3 + $0x4] sm:$0xf] 0
        %461 = vst [vmem:[#allocation3 + $0x8] sm:$0xf] 0
        %s462 = scalar_lea.vmem [#allocation3], 204
        %463 = vst [vmem:[%s462] sm:$0xf] 0
        %464 = vst [vmem:[%s462 + $0x4] sm:$0xf] 0
        %465 = vst [vmem:[%s462 + $0x8] sm:$0xf] 0
        %466 = vst [vmem:[%s462 + $0xc] sm:$0xf] 0
        %467 = vst [vmem:[%s462 + $0x10] sm:$0xf] 0
        %468 = vst [vmem:[%s462 + $0x14] sm:$0xf] 0
        %vm469 = vcmask 1040384
        %vm470 = vmand %vm469, %vm340
        %v471 = vld [vmem:[#allocation3] sm:$0x1]
        %v472 = vsel %vm470, 0, %v471
        %473 = vst [vmem:[#allocation3] sm:$0x1] %v472
        %v474 = vld [vmem:[#allocation3 + $0xc] sm:$0x1]
        %v475 = vsel %vm470, 0, %v474
        %476 = vst [vmem:[#allocation3 + $0xc] sm:$0x1] %v475
        %v477 = vld [vmem:[#allocation3 + $0x18] sm:$0x1]
        %v478 = vsel %vm470, 0, %v477
        %479 = vst [vmem:[#allocation3 + $0x18] sm:$0x1] %v478
        %v480 = vld [vmem:[#allocation3 + $0x24] sm:$0x1]
        %v481 = vsel %vm470, 0, %v480
        %482 = vst [vmem:[#allocation3 + $0x24] sm:$0x1] %v481
        %v483 = vld [vmem:[#allocation3 + $0x30] sm:$0x1]
        %v484 = vsel %vm470, 0, %v483
        %485 = vst [vmem:[#allocation3 + $0x30] sm:$0x1] %v484
        %v486 = vld [vmem:[#allocation3 + $0x3c] sm:$0x1]
        %v487 = vsel %vm470, 0, %v486
        %488 = vst [vmem:[#allocation3 + $0x3c] sm:$0x1] %v487
        %v489 = vld [vmem:[#allocation3 + $0x48] sm:$0x1]
        %v490 = vsel %vm470, 0, %v489
        %491 = vst [vmem:[#allocation3 + $0x48] sm:$0x1] %v490
        %v492 = vld [vmem:[#allocation3 + $0x54] sm:$0x1]
        %v493 = vsel %vm470, 0, %v492
        %494 = vst [vmem:[#allocation3 + $0x54] sm:$0x1] %v493
        %v495 = vld [vmem:[#allocation3 + $0x60] sm:$0x1]
        %v496 = vsel %vm470, 0, %v495
        %497 = vst [vmem:[#allocation3 + $0x60] sm:$0x1] %v496
        %v498 = vld [vmem:[#allocation3 + $0x6c] sm:$0x1]
        %v499 = vsel %vm470, 0, %v498
        %500 = vst [vmem:[#allocation3 + $0x6c] sm:$0x1] %v499
        %v501 = vld [vmem:[#allocation3 + $0x78] sm:$0x1]
        %v502 = vsel %vm470, 0, %v501
        %503 = vst [vmem:[#allocation3 + $0x78] sm:$0x1] %v502
        %v504 = vld [vmem:[#allocation3 + $0x84] sm:$0x1]
        %v505 = vsel %vm470, 0, %v504
        %506 = vst [vmem:[#allocation3 + $0x84] sm:$0x1] %v505
        %v507 = vld [vmem:[#allocation3 + $0x90] sm:$0x1]
        %v508 = vsel %vm470, 0, %v507
        %509 = vst [vmem:[#allocation3 + $0x90] sm:$0x1] %v508
        %v510 = vld [vmem:[#allocation3 + $0x9c] sm:$0x1]
        %v511 = vsel %vm470, 0, %v510
        %512 = vst [vmem:[#allocation3 + $0x9c] sm:$0x1] %v511
        %v513 = vld [vmem:[#allocation3 + $0xa8] sm:$0x1]
        %v514 = vsel %vm470, 0, %v513
        %515 = vst [vmem:[#allocation3 + $0xa8] sm:$0x1] %v514
        %v516 = vld [vmem:[#allocation3 + $0xb4] sm:$0x1]
        %v517 = vsel %vm470, 0, %v516
        %518 = vst [vmem:[#allocation3 + $0xb4] sm:$0x1] %v517
        %v519 = vld [vmem:[#allocation3 + $0xc0] sm:$0x1]
        %v520 = vsel %vm470, 0, %v519
        %521 = vst [vmem:[#allocation3 + $0xc0] sm:$0x1] %v520
        %v522 = vld [vmem:[#allocation3 + $0xcc] sm:$0x1]
        %v523 = vsel %vm470, 0, %v522
        %524 = vst [vmem:[#allocation3 + $0xcc] sm:$0x1] %v523
        %v525 = vld [vmem:[#allocation3 + $0xd8] sm:$0x1]
        %v526 = vsel %vm470, 0, %v525
        %527 = vst [vmem:[#allocation3 + $0xd8] sm:$0x1] %v526
        %vm528 = vcmask 1043456
        %vm529 = vmand %vm528, %vm400
        %v530 = vld [vmem:[#allocation3 + $0x8] sm:$0xf]
        %v531 = vsel %vm529, 0, %v530
        %532 = vst [vmem:[#allocation3 + $0x8] sm:$0xf] %v531
        %v533 = vld [vmem:[#allocation3 + $0x14] sm:$0xf]
        %v534 = vsel %vm529, 0, %v533
        %535 = vst [vmem:[#allocation3 + $0x14] sm:$0xf] %v534
        %v536 = vld [vmem:[#allocation3 + $0x20] sm:$0xf]
        %v537 = vsel %vm529, 0, %v536
        %538 = vst [vmem:[#allocation3 + $0x20] sm:$0xf] %v537
        %v539 = vld [vmem:[#allocation3 + $0x2c] sm:$0xf]
        %v540 = vsel %vm529, 0, %v539
        %541 = vst [vmem:[#allocation3 + $0x2c] sm:$0xf] %v540
        %v542 = vld [vmem:[#allocation3 + $0x38] sm:$0xf]
        %v543 = vsel %vm529, 0, %v542
        %544 = vst [vmem:[#allocation3 + $0x38] sm:$0xf] %v543
        %v545 = vld [vmem:[#allocation3 + $0x44] sm:$0xf]
        %v546 = vsel %vm529, 0, %v545
        %547 = vst [vmem:[#allocation3 + $0x44] sm:$0xf] %v546
        %v548 = vld [vmem:[#allocation3 + $0x50] sm:$0xf]
        %v549 = vsel %vm529, 0, %v548
        %550 = vst [vmem:[#allocation3 + $0x50] sm:$0xf] %v549
        %v551 = vld [vmem:[#allocation3 + $0x5c] sm:$0xf]
        %v552 = vsel %vm529, 0, %v551
        %553 = vst [vmem:[#allocation3 + $0x5c] sm:$0xf] %v552
        %v554 = vld [vmem:[#allocation3 + $0x68] sm:$0xf]
        %v555 = vsel %vm529, 0, %v554
        %556 = vst [vmem:[#allocation3 + $0x68] sm:$0xf] %v555
        %v557 = vld [vmem:[#allocation3 + $0x74] sm:$0xf]
        %v558 = vsel %vm529, 0, %v557
        %559 = vst [vmem:[#allocation3 + $0x74] sm:$0xf] %v558
        %v560 = vld [vmem:[#allocation3 + $0x80] sm:$0xf]
        %v561 = vsel %vm529, 0, %v560
        %562 = vst [vmem:[#allocation3 + $0x80] sm:$0xf] %v561
        %v563 = vld [vmem:[#allocation3 + $0x8c] sm:$0xf]
        %v564 = vsel %vm529, 0, %v563
        %565 = vst [vmem:[#allocation3 + $0x8c] sm:$0xf] %v564
        %v566 = vld [vmem:[#allocation3 + $0x98] sm:$0xf]
        %v567 = vsel %vm529, 0, %v566
        %568 = vst [vmem:[#allocation3 + $0x98] sm:$0xf] %v567
        %v569 = vld [vmem:[#allocation3 + $0xa4] sm:$0xf]
        %v570 = vsel %vm529, 0, %v569
        %571 = vst [vmem:[#allocation3 + $0xa4] sm:$0xf] %v570
        %v572 = vld [vmem:[#allocation3 + $0xb0] sm:$0xf]
        %v573 = vsel %vm529, 0, %v572
        %574 = vst [vmem:[#allocation3 + $0xb0] sm:$0xf] %v573
        %v575 = vld [vmem:[#allocation3 + $0xbc] sm:$0xf]
        %v576 = vsel %vm529, 0, %v575
        %577 = vst [vmem:[#allocation3 + $0xbc] sm:$0xf] %v576
        %v578 = vld [vmem:[#allocation3 + $0xc8] sm:$0xf]
        %v579 = vsel %vm529, 0, %v578
        %580 = vst [vmem:[#allocation3 + $0xc8] sm:$0xf] %v579
        %v581 = vld [vmem:[#allocation3 + $0xd4] sm:$0xf]
        %v582 = vsel %vm529, 0, %v581
        %583 = vst [vmem:[#allocation3 + $0xd4] sm:$0xf] %v582
        %v584 = vld [vmem:[#allocation3 + $0xe0] sm:$0xf]
        %v585 = vsel %vm529, 0, %v584
        %586 = vst [vmem:[#allocation3 + $0xe0] sm:$0xf] %v585
        %v587 = vld [vmem:[%s302] sm:$0xf]
        %v588 = vld [vmem:[%s302 + $0x4] sm:$0xf]
        %v589 = vld [vmem:[%s302 + $0x8] sm:$0xf]
        %v590 = vld [vmem:[%s302 + $0xc] sm:$0xf]
        %v591 = vld [vmem:[%s302 + $0x10] sm:$0xf]
        %v592 = vld [vmem:[%s302 + $0x14] sm:$0xf]
        %v593 = vld [vmem:[%s302 + $0x18] sm:$0xf]
        %v594 = vld [vmem:[%s302 + $0x1c] sm:$0xf]
        %v595 = vld [vmem:[%s302 + $0x20] sm:$0xf]
        %v596 = vld [vmem:[%s302 + $0x24] sm:$0xf]
        %v597 = vld [vmem:[%s302 + $0x28] sm:$0xf]
        %v598 = vld [vmem:[%s302 + $0x2c] sm:$0xf]
        %v599 = vld [vmem:[%s302 + $0x30] sm:$0xf]
        %v600 = vld [vmem:[%s302 + $0x34] sm:$0xf]
        %v601 = vld [vmem:[%s302 + $0x38] sm:$0xf]
        %v602 = vld [vmem:[%s302 + $0x3c] sm:$0xf]
        %v603 = vld [vmem:[%s302 + $0x40] sm:$0xf]
        %v604 = vld [vmem:[%s302 + $0x44] sm:$0xf]
        %v605 = vld [vmem:[%s302 + $0x48] sm:$0xf]
        %v606 = vld [vmem:[%s302 + $0x4c] sm:$0xf]
        %v607 = vld [vmem:[%s302 + $0x50] sm:$0xf]
        %v608 = vld [vmem:[%s302 + $0x54] sm:$0xf]
        %v609 = vld [vmem:[%s302 + $0x58] sm:$0xf]
        %v610 = vld [vmem:[%s302 + $0x5c] sm:$0xf]
        %v611 = vld [vmem:[%s302 + $0x60] sm:$0xf]
        %v612 = vld [vmem:[%s302 + $0x64] sm:$0xf]
        %v613 = vld [vmem:[%s302 + $0x68] sm:$0xf]
        %v614 = vld [vmem:[%s302 + $0x6c] sm:$0xf]
        %v615 = vld [vmem:[%s302 + $0x70] sm:$0xf]
        %v616 = vld [vmem:[%s302 + $0x74] sm:$0xf]
        %v617 = vld [vmem:[%s302 + $0x78] sm:$0xf]
        %v618 = vld [vmem:[%s302 + $0x7c] sm:$0xf]
        %vm619 = vsmask.f32 4368
        %vm620 = vmor %vm340, %vm619
        %v622 = vshrl.u32 %v587, 16
        %v624 = vrot.slane %v622, 7
        %v625 = vshll.u32 %v587, 16
        %v627 = vor.u32 %v624, %v625
        %v628 = vrot.slane %v624, 4
        %v630 = vshrl.u32 %v588, 16
        %v632 = vrot.slane %v630, 7
        %v633 = vshll.u32 %v588, 16
        %v635 = vor.u32 %v632, %v633
        %v636 = vsel %vm620, %v628, %v635
        %v637 = vrot.slane %v632, 4
        %v639 = vshrl.u32 %v589, 16
        %v641 = vrot.slane %v639, 7
        %v642 = vshll.u32 %v589, 16
        %v644 = vor.u32 %v641, %v642
        %v645 = vrot.slane %v641, 4
        %v647 = vshrl.u32 %v590, 16
        %v649 = vrot.slane %v647, 7
        %v650 = vshll.u32 %v590, 16
        %v652 = vor.u32 %v649, %v650
        %v653 = vsel %vm620, %v645, %v652
        %v654 = vrot.slane %v649, 4
        %v656 = vshrl.u32 %v591, 16
        %v658 = vrot.slane %v656, 7
        %v659 = vshll.u32 %v591, 16
        %v661 = vor.u32 %v658, %v659
        %v662 = vrot.slane %v658, 4
        %v664 = vshrl.u32 %v592, 16
        %v666 = vrot.slane %v664, 7
        %v667 = vshll.u32 %v592, 16
        %v669 = vor.u32 %v666, %v667
        %v670 = vsel %vm620, %v662, %v669
        %v671 = vrot.slane %v666, 4
        %v673 = vshrl.u32 %v593, 16
        %v675 = vrot.slane %v673, 7
        %v676 = vshll.u32 %v593, 16
        %v678 = vor.u32 %v675, %v676
        %v679 = vrot.slane %v675, 4
        %v681 = vshrl.u32 %v594, 16
        %v683 = vrot.slane %v681, 7
        %v684 = vshll.u32 %v594, 16
        %v686 = vor.u32 %v683, %v684
        %v687 = vsel %vm620, %v679, %v686
        %v688 = vrot.slane %v683, 4
        %v690 = vshrl.u32 %v595, 16
        %v692 = vrot.slane %v690, 7
        %v693 = vshll.u32 %v595, 16
        %v695 = vor.u32 %v692, %v693
        %v696 = vrot.slane %v692, 4
        %v698 = vshrl.u32 %v596, 16
        %v700 = vrot.slane %v698, 7
        %v701 = vshll.u32 %v596, 16
        %v703 = vor.u32 %v700, %v701
        %v704 = vsel %vm620, %v696, %v703
        %v705 = vrot.slane %v700, 4
        %v707 = vshrl.u32 %v597, 16
        %v709 = vrot.slane %v707, 7
        %v710 = vshll.u32 %v597, 16
        %v712 = vor.u32 %v709, %v710
        %v713 = vrot.slane %v709, 4
        %v715 = vshrl.u32 %v598, 16
        %v717 = vrot.slane %v715, 7
        %v718 = vshll.u32 %v598, 16
        %v720 = vor.u32 %v717, %v718
        %v721 = vsel %vm620, %v713, %v720
        %v722 = vrot.slane %v717, 4
        %v724 = vshrl.u32 %v599, 16
        %v726 = vrot.slane %v724, 7
        %v727 = vshll.u32 %v599, 16
        %v729 = vor.u32 %v726, %v727
        %v730 = vrot.slane %v726, 4
        %v732 = vshrl.u32 %v600, 16
        %v734 = vrot.slane %v732, 7
        %v735 = vshll.u32 %v600, 16
        %v737 = vor.u32 %v734, %v735
        %v738 = vsel %vm620, %v730, %v737
        %v739 = vrot.slane %v734, 4
        %v741 = vshrl.u32 %v601, 16
        %v743 = vrot.slane %v741, 7
        %v744 = vshll.u32 %v601, 16
        %v746 = vor.u32 %v743, %v744
        %v747 = vrot.slane %v743, 4
        %v749 = vshrl.u32 %v602, 16
        %v751 = vrot.slane %v749, 7
        %v752 = vshll.u32 %v602, 16
        %v754 = vor.u32 %v751, %v752
        %v755 = vsel %vm620, %v747, %v754
        %v756 = vrot.slane %v751, 4
        %v758 = vshrl.u32 %v603, 16
        %v760 = vrot.slane %v758, 7
        %v761 = vshll.u32 %v603, 16
        %v763 = vor.u32 %v760, %v761
        %v764 = vrot.slane %v760, 4
        %v766 = vshrl.u32 %v604, 16
        %v768 = vrot.slane %v766, 7
        %v769 = vshll.u32 %v604, 16
        %v771 = vor.u32 %v768, %v769
        %v772 = vsel %vm620, %v764, %v771
        %v773 = vrot.slane %v768, 4
        %v775 = vshrl.u32 %v605, 16
        %v777 = vrot.slane %v775, 7
        %v778 = vshll.u32 %v605, 16
        %v780 = vor.u32 %v777, %v778
        %v781 = vrot.slane %v777, 4
        %v783 = vshrl.u32 %v606, 16
        %v785 = vrot.slane %v783, 7
        %v786 = vshll.u32 %v606, 16
        %v788 = vor.u32 %v785, %v786
        %v789 = vsel %vm620, %v781, %v788
        %v790 = vrot.slane %v785, 4
        %v792 = vshrl.u32 %v607, 16
        %v794 = vrot.slane %v792, 7
        %v795 = vshll.u32 %v607, 16
        %v797 = vor.u32 %v794, %v795
        %v798 = vrot.slane %v794, 4
        %v800 = vshrl.u32 %v608, 16
        %v802 = vrot.slane %v800, 7
        %v803 = vshll.u32 %v608, 16
        %v805 = vor.u32 %v802, %v803
        %v806 = vsel %vm620, %v798, %v805
        %v807 = vrot.slane %v802, 4
        %v809 = vshrl.u32 %v609, 16
        %v811 = vrot.slane %v809, 7
        %v812 = vshll.u32 %v609, 16
        %v814 = vor.u32 %v811, %v812
        %v815 = vrot.slane %v811, 4
        %v817 = vshrl.u32 %v610, 16
        %v819 = vrot.slane %v817, 7
        %v820 = vshll.u32 %v610, 16
        %v822 = vor.u32 %v819, %v820
        %v823 = vsel %vm620, %v815, %v822
        %v824 = vrot.slane %v819, 4
        %v826 = vshrl.u32 %v611, 16
        %v828 = vrot.slane %v826, 7
        %v829 = vshll.u32 %v611, 16
        %v831 = vor.u32 %v828, %v829
        %v832 = vrot.slane %v828, 4
        %v834 = vshrl.u32 %v612, 16
        %v836 = vrot.slane %v834, 7
        %v837 = vshll.u32 %v612, 16
        %v839 = vor.u32 %v836, %v837
        %v840 = vsel %vm620, %v832, %v839
        %v841 = vrot.slane %v836, 4
        %v843 = vshrl.u32 %v613, 16
        %v845 = vrot.slane %v843, 7
        %v846 = vshll.u32 %v613, 16
        %v848 = vor.u32 %v845, %v846
        %v849 = vrot.slane %v845, 4
        %v851 = vshrl.u32 %v614, 16
        %v853 = vrot.slane %v851, 7
        %v854 = vshll.u32 %v614, 16
        %v856 = vor.u32 %v853, %v854
        %v857 = vsel %vm620, %v849, %v856
        %v858 = vrot.slane %v853, 4
        %v860 = vshrl.u32 %v615, 16
        %v862 = vrot.slane %v860, 7
        %v863 = vshll.u32 %v615, 16
        %v865 = vor.u32 %v862, %v863
        %v866 = vrot.slane %v862, 4
        %v868 = vshrl.u32 %v616, 16
        %v870 = vrot.slane %v868, 7
        %v871 = vshll.u32 %v616, 16
        %v873 = vor.u32 %v870, %v871
        %v874 = vsel %vm620, %v866, %v873
        %v875 = vrot.slane %v870, 4
        %v877 = vshrl.u32 %v617, 16
        %v879 = vrot.slane %v877, 7
        %v880 = vshll.u32 %v617, 16
        %v882 = vor.u32 %v879, %v880
        %v883 = vrot.slane %v879, 4
        %v885 = vshrl.u32 %v618, 16
        %v887 = vrot.slane %v885, 7
        %v888 = vshll.u32 %v618, 16
        %v890 = vor.u32 %v887, %v888
        %v891 = vsel %vm620, %v883, %v890
        %v892 = vrot.slane %v887, 4
        %s941 = scalar_lea.vmem [#allocation2], 12
        %vm942 = vcmask 27648
        %vm943 = vmand %vm942, %vm400
        %v944 = vld [vmem:[%s941] sm:$0xf]
        %v945 = vsel %vm943, %v627, %v944
        %946 = vst [vmem:[%s941] sm:$0xf] %v945
        %vm947 = vcmask 27648
        %948 = vst.msk [vmem:[%s941 + $0x4] sm:$0xf] %vm947, %v636
        %vm949 = vcmask 24576
        %vm950 = vmand %vm949, %vm340
        %v951 = vld [vmem:[%s941 + $0x8] sm:$0x1]
        %v952 = vsel %vm950, %v637, %v951
        %953 = vst [vmem:[%s941 + $0x8] sm:$0x1] %v952
        %v954 = vld [vmem:[%s941 + $0xc] sm:$0xf]
        %v955 = vsel %vm943, %v644, %v954
        %956 = vst [vmem:[%s941 + $0xc] sm:$0xf] %v955
        %957 = vst.msk [vmem:[%s941 + $0x10] sm:$0xf] %vm947, %v653
        %v958 = vld [vmem:[%s941 + $0x14] sm:$0x1]
        %v959 = vsel %vm950, %v654, %v958
        %960 = vst [vmem:[%s941 + $0x14] sm:$0x1] %v959
        %v961 = vld [vmem:[%s941 + $0x18] sm:$0xf]
        %v962 = vsel %vm943, %v661, %v961
        %963 = vst [vmem:[%s941 + $0x18] sm:$0xf] %v962
        %964 = vst.msk [vmem:[%s941 + $0x1c] sm:$0xf] %vm947, %v670
        %v965 = vld [vmem:[%s941 + $0x20] sm:$0x1]
        %v966 = vsel %vm950, %v671, %v965
        %967 = vst [vmem:[%s941 + $0x20] sm:$0x1] %v966
        %v968 = vld [vmem:[%s941 + $0x24] sm:$0xf]
        %v969 = vsel %vm943, %v678, %v968
        %970 = vst [vmem:[%s941 + $0x24] sm:$0xf] %v969
        %971 = vst.msk [vmem:[%s941 + $0x28] sm:$0xf] %vm947, %v687
        %v972 = vld [vmem:[%s941 + $0x2c] sm:$0x1]
        %v973 = vsel %vm950, %v688, %v972
        %974 = vst [vmem:[%s941 + $0x2c] sm:$0x1] %v973
        %v975 = vld [vmem:[%s941 + $0x30] sm:$0xf]
        %v976 = vsel %vm943, %v695, %v975
        %977 = vst [vmem:[%s941 + $0x30] sm:$0xf] %v976
        %978 = vst.msk [vmem:[%s941 + $0x34] sm:$0xf] %vm947, %v704
        %v979 = vld [vmem:[%s941 + $0x38] sm:$0x1]
        %v980 = vsel %vm950, %v705, %v979
        %981 = vst [vmem:[%s941 + $0x38] sm:$0x1] %v980
        %v982 = vld [vmem:[%s941 + $0x3c] sm:$0xf]
        %v983 = vsel %vm943, %v712, %v982
        %984 = vst [vmem:[%s941 + $0x3c] sm:$0xf] %v983
        %985 = vst.msk [vmem:[%s941 + $0x40] sm:$0xf] %vm947, %v721
        %v986 = vld [vmem:[%s941 + $0x44] sm:$0x1]
        %v987 = vsel %vm950, %v722, %v986
        %988 = vst [vmem:[%s941 + $0x44] sm:$0x1] %v987
        %v989 = vld [vmem:[%s941 + $0x48] sm:$0xf]
        %v990 = vsel %vm943, %v729, %v989
        %991 = vst [vmem:[%s941 + $0x48] sm:$0xf] %v990
        %992 = vst.msk [vmem:[%s941 + $0x4c] sm:$0xf] %vm947, %v738
        %v993 = vld [vmem:[%s941 + $0x50] sm:$0x1]
        %v994 = vsel %vm950, %v739, %v993
        %995 = vst [vmem:[%s941 + $0x50] sm:$0x1] %v994
        %v996 = vld [vmem:[%s941 + $0x54] sm:$0xf]
        %v997 = vsel %vm943, %v746, %v996
        %998 = vst [vmem:[%s941 + $0x54] sm:$0xf] %v997
        %999 = vst.msk [vmem:[%s941 + $0x58] sm:$0xf] %vm947, %v755
        %v1000 = vld [vmem:[%s941 + $0x5c] sm:$0x1]
        %v1001 = vsel %vm950, %v756, %v1000
        %1002 = vst [vmem:[%s941 + $0x5c] sm:$0x1] %v1001
        %v1003 = vld [vmem:[%s941 + $0x60] sm:$0xf]
        %v1004 = vsel %vm943, %v763, %v1003
        %1005 = vst [vmem:[%s941 + $0x60] sm:$0xf] %v1004
        %1006 = vst.msk [vmem:[%s941 + $0x64] sm:$0xf] %vm947, %v772
        %v1007 = vld [vmem:[%s941 + $0x68] sm:$0x1]
        %v1008 = vsel %vm950, %v773, %v1007
        %1009 = vst [vmem:[%s941 + $0x68] sm:$0x1] %v1008
        %v1010 = vld [vmem:[%s941 + $0x6c] sm:$0xf]
        %v1011 = vsel %vm943, %v780, %v1010
        %1012 = vst [vmem:[%s941 + $0x6c] sm:$0xf] %v1011
        %1013 = vst.msk [vmem:[%s941 + $0x70] sm:$0xf] %vm947, %v789
        %v1014 = vld [vmem:[%s941 + $0x74] sm:$0x1]
        %v1015 = vsel %vm950, %v790, %v1014
        %1016 = vst [vmem:[%s941 + $0x74] sm:$0x1] %v1015
        %v1017 = vld [vmem:[%s941 + $0x78] sm:$0xf]
        %v1018 = vsel %vm943, %v797, %v1017
        %1019 = vst [vmem:[%s941 + $0x78] sm:$0xf] %v1018
        %1020 = vst.msk [vmem:[%s941 + $0x7c] sm:$0xf] %vm947, %v806
        %v1021 = vld [vmem:[%s941 + $0x80] sm:$0x1]
        %v1022 = vsel %vm950, %v807, %v1021
        %1023 = vst [vmem:[%s941 + $0x80] sm:$0x1] %v1022
        %v1024 = vld [vmem:[%s941 + $0x84] sm:$0xf]
        %v1025 = vsel %vm943, %v814, %v1024
        %1026 = vst [vmem:[%s941 + $0x84] sm:$0xf] %v1025
        %1027 = vst.msk [vmem:[%s941 + $0x88] sm:$0xf] %vm947, %v823
        %v1028 = vld [vmem:[%s941 + $0x8c] sm:$0x1]
        %v1029 = vsel %vm950, %v824, %v1028
        %1030 = vst [vmem:[%s941 + $0x8c] sm:$0x1] %v1029
        %v1031 = vld [vmem:[%s941 + $0x90] sm:$0xf]
        %v1032 = vsel %vm943, %v831, %v1031
        %1033 = vst [vmem:[%s941 + $0x90] sm:$0xf] %v1032
        %1034 = vst.msk [vmem:[%s941 + $0x94] sm:$0xf] %vm947, %v840
        %v1035 = vld [vmem:[%s941 + $0x98] sm:$0x1]
        %v1036 = vsel %vm950, %v841, %v1035
        %1037 = vst [vmem:[%s941 + $0x98] sm:$0x1] %v1036
        %v1038 = vld [vmem:[%s941 + $0x9c] sm:$0xf]
        %v1039 = vsel %vm943, %v848, %v1038
        %1040 = vst [vmem:[%s941 + $0x9c] sm:$0xf] %v1039
        %1041 = vst.msk [vmem:[%s941 + $0xa0] sm:$0xf] %vm947, %v857
        %v1042 = vld [vmem:[%s941 + $0xa4] sm:$0x1]
        %v1043 = vsel %vm950, %v858, %v1042
        %1044 = vst [vmem:[%s941 + $0xa4] sm:$0x1] %v1043
        %v1045 = vld [vmem:[%s941 + $0xa8] sm:$0xf]
        %v1046 = vsel %vm943, %v865, %v1045
        %1047 = vst [vmem:[%s941 + $0xa8] sm:$0xf] %v1046
        %1048 = vst.msk [vmem:[%s941 + $0xac] sm:$0xf] %vm947, %v874
        %v1049 = vld [vmem:[%s941 + $0xb0] sm:$0x1]
        %v1050 = vsel %vm950, %v875, %v1049
        %1051 = vst [vmem:[%s941 + $0xb0] sm:$0x1] %v1050
        %v1052 = vld [vmem:[%s941 + $0xb4] sm:$0xf]
        %v1053 = vsel %vm943, %v882, %v1052
        %1054 = vst [vmem:[%s941 + $0xb4] sm:$0xf] %v1053
        %1055 = vst.msk [vmem:[%s941 + $0xb8] sm:$0xf] %vm947, %v891
        %v1056 = vld [vmem:[%s941 + $0xbc] sm:$0x1]
        %v1057 = vsel %vm950, %v892, %v1056
        %1058 = vst [vmem:[%s941 + $0xbc] sm:$0x1] %v1057
        %v1059 = vld [vmem:[%s307] sm:$0xf]
        %v1060 = vld [vmem:[%s307 + $0x4] sm:$0xf]
        %v1061 = vld [vmem:[%s307 + $0x8] sm:$0xf]
        %v1062 = vld [vmem:[%s307 + $0xc] sm:$0xf]
        %v1063 = vld [vmem:[%s307 + $0x10] sm:$0xf]
        %v1064 = vld [vmem:[%s307 + $0x14] sm:$0xf]
        %v1065 = vld [vmem:[%s307 + $0x18] sm:$0xf]
        %v1066 = vld [vmem:[%s307 + $0x1c] sm:$0xf]
        %v1067 = vld [vmem:[%s307 + $0x20] sm:$0xf]
        %v1068 = vld [vmem:[%s307 + $0x24] sm:$0xf]
        %v1069 = vld [vmem:[%s307 + $0x28] sm:$0xf]
        %v1070 = vld [vmem:[%s307 + $0x2c] sm:$0xf]
        %v1071 = vld [vmem:[%s307 + $0x30] sm:$0xf]
        %v1072 = vld [vmem:[%s307 + $0x34] sm:$0xf]
        %v1073 = vld [vmem:[%s307 + $0x38] sm:$0xf]
        %v1074 = vld [vmem:[%s307 + $0x3c] sm:$0xf]
        %v1075 = vld [vmem:[%s307 + $0x40] sm:$0xf]
        %v1076 = vld [vmem:[%s307 + $0x44] sm:$0xf]
        %v1077 = vld [vmem:[%s307 + $0x48] sm:$0xf]
        %v1078 = vld [vmem:[%s307 + $0x4c] sm:$0xf]
        %v1079 = vld [vmem:[%s307 + $0x50] sm:$0xf]
        %v1080 = vld [vmem:[%s307 + $0x54] sm:$0xf]
        %v1081 = vld [vmem:[%s307 + $0x58] sm:$0xf]
        %v1082 = vld [vmem:[%s307 + $0x5c] sm:$0xf]
        %v1083 = vld [vmem:[%s307 + $0x60] sm:$0xf]
        %v1084 = vld [vmem:[%s307 + $0x64] sm:$0xf]
        %v1085 = vld [vmem:[%s307 + $0x68] sm:$0xf]
        %v1086 = vld [vmem:[%s307 + $0x6c] sm:$0xf]
        %v1087 = vld [vmem:[%s307 + $0x70] sm:$0xf]
        %v1088 = vld [vmem:[%s307 + $0x74] sm:$0xf]
        %v1089 = vld [vmem:[%s307 + $0x78] sm:$0xf]
        %v1090 = vld [vmem:[%s307 + $0x7c] sm:$0xf]
        %v1092 = vshrl.u32 %v1059, 16
        %v1094 = vrot.slane %v1092, 7
        %v1095 = vshll.u32 %v1059, 16
        %v1097 = vor.u32 %v1094, %v1095
        %v1098 = vrot.slane %v1094, 4
        %v1100 = vshrl.u32 %v1060, 16
        %v1102 = vrot.slane %v1100, 7
        %v1103 = vshll.u32 %v1060, 16
        %v1105 = vor.u32 %v1102, %v1103
        %v1106 = vsel %vm620, %v1098, %v1105
        %v1107 = vrot.slane %v1102, 4
        %v1109 = vshrl.u32 %v1061, 16
        %v1111 = vrot.slane %v1109, 7
        %v1112 = vshll.u32 %v1061, 16
        %v1114 = vor.u32 %v1111, %v1112
        %v1115 = vrot.slane %v1111, 4
        %v1117 = vshrl.u32 %v1062, 16
        %v1119 = vrot.slane %v1117, 7
        %v1120 = vshll.u32 %v1062, 16
        %v1122 = vor.u32 %v1119, %v1120
        %v1123 = vsel %vm620, %v1115, %v1122
        %v1124 = vrot.slane %v1119, 4
        %v1126 = vshrl.u32 %v1063, 16
        %v1128 = vrot.slane %v1126, 7
        %v1129 = vshll.u32 %v1063, 16
        %v1131 = vor.u32 %v1128, %v1129
        %v1132 = vrot.slane %v1128, 4
        %v1134 = vshrl.u32 %v1064, 16
        %v1136 = vrot.slane %v1134, 7
        %v1137 = vshll.u32 %v1064, 16
        %v1139 = vor.u32 %v1136, %v1137
        %v1140 = vsel %vm620, %v1132, %v1139
        %v1141 = vrot.slane %v1136, 4
        %v1143 = vshrl.u32 %v1065, 16
        %v1145 = vrot.slane %v1143, 7
        %v1146 = vshll.u32 %v1065, 16
        %v1148 = vor.u32 %v1145, %v1146
        %v1149 = vrot.slane %v1145, 4
        %v1151 = vshrl.u32 %v1066, 16
        %v1153 = vrot.slane %v1151, 7
        %v1154 = vshll.u32 %v1066, 16
        %v1156 = vor.u32 %v1153, %v1154
        %v1157 = vsel %vm620, %v1149, %v1156
        %v1158 = vrot.slane %v1153, 4
        %v1160 = vshrl.u32 %v1067, 16
        %v1162 = vrot.slane %v1160, 7
        %v1163 = vshll.u32 %v1067, 16
        %v1165 = vor.u32 %v1162, %v1163
        %v1166 = vrot.slane %v1162, 4
        %v1168 = vshrl.u32 %v1068, 16
        %v1170 = vrot.slane %v1168, 7
        %v1171 = vshll.u32 %v1068, 16
        %v1173 = vor.u32 %v1170, %v1171
        %v1174 = vsel %vm620, %v1166, %v1173
        %v1175 = vrot.slane %v1170, 4
        %v1177 = vshrl.u32 %v1069, 16
        %v1179 = vrot.slane %v1177, 7
        %v1180 = vshll.u32 %v1069, 16
        %v1182 = vor.u32 %v1179, %v1180
        %v1183 = vrot.slane %v1179, 4
        %v1185 = vshrl.u32 %v1070, 16
        %v1187 = vrot.slane %v1185, 7
        %v1188 = vshll.u32 %v1070, 16
        %v1190 = vor.u32 %v1187, %v1188
        %v1191 = vsel %vm620, %v1183, %v1190
        %v1192 = vrot.slane %v1187, 4
        %v1194 = vshrl.u32 %v1071, 16
        %v1196 = vrot.slane %v1194, 7
        %v1197 = vshll.u32 %v1071, 16
        %v1199 = vor.u32 %v1196, %v1197
        %v1200 = vrot.slane %v1196, 4
        %v1202 = vshrl.u32 %v1072, 16
        %v1204 = vrot.slane %v1202, 7
        %v1205 = vshll.u32 %v1072, 16
        %v1207 = vor.u32 %v1204, %v1205
        %v1208 = vsel %vm620, %v1200, %v1207
        %v1209 = vrot.slane %v1204, 4
        %v1211 = vshrl.u32 %v1073, 16
        %v1213 = vrot.slane %v1211, 7
        %v1214 = vshll.u32 %v1073, 16
        %v1216 = vor.u32 %v1213, %v1214
        %v1217 = vrot.slane %v1213, 4
        %v1219 = vshrl.u32 %v1074, 16
        %v1221 = vrot.slane %v1219, 7
        %v1222 = vshll.u32 %v1074, 16
        %v1224 = vor.u32 %v1221, %v1222
        %v1225 = vsel %vm620, %v1217, %v1224
        %v1226 = vrot.slane %v1221, 4
        %v1228 = vshrl.u32 %v1075, 16
        %v1230 = vrot.slane %v1228, 7
        %v1231 = vshll.u32 %v1075, 16
        %v1233 = vor.u32 %v1230, %v1231
        %v1234 = vrot.slane %v1230, 4
        %v1236 = vshrl.u32 %v1076, 16
        %v1238 = vrot.slane %v1236, 7
        %v1239 = vshll.u32 %v1076, 16
        %v1241 = vor.u32 %v1238, %v1239
        %v1242 = vsel %vm620, %v1234, %v1241
        %v1243 = vrot.slane %v1238, 4
        %v1245 = vshrl.u32 %v1077, 16
        %v1247 = vrot.slane %v1245, 7
        %v1248 = vshll.u32 %v1077, 16
        %v1250 = vor.u32 %v1247, %v1248
        %v1251 = vrot.slane %v1247, 4
        %v1253 = vshrl.u32 %v1078, 16
        %v1255 = vrot.slane %v1253, 7
        %v1256 = vshll.u32 %v1078, 16
        %v1258 = vor.u32 %v1255, %v1256
        %v1259 = vsel %vm620, %v1251, %v1258
        %v1260 = vrot.slane %v1255, 4
        %v1262 = vshrl.u32 %v1079, 16
        %v1264 = vrot.slane %v1262, 7
        %v1265 = vshll.u32 %v1079, 16
        %v1267 = vor.u32 %v1264, %v1265
        %v1268 = vrot.slane %v1264, 4
        %v1270 = vshrl.u32 %v1080, 16
        %v1272 = vrot.slane %v1270, 7
        %v1273 = vshll.u32 %v1080, 16
        %v1275 = vor.u32 %v1272, %v1273
        %v1276 = vsel %vm620, %v1268, %v1275
        %v1277 = vrot.slane %v1272, 4
        %v1279 = vshrl.u32 %v1081, 16
        %v1281 = vrot.slane %v1279, 7
        %v1282 = vshll.u32 %v1081, 16
        %v1284 = vor.u32 %v1281, %v1282
        %v1285 = vrot.slane %v1281, 4
        %v1287 = vshrl.u32 %v1082, 16
        %v1289 = vrot.slane %v1287, 7
        %v1290 = vshll.u32 %v1082, 16
        %v1292 = vor.u32 %v1289, %v1290
        %v1293 = vsel %vm620, %v1285, %v1292
        %v1294 = vrot.slane %v1289, 4
        %v1296 = vshrl.u32 %v1083, 16
        %v1298 = vrot.slane %v1296, 7
        %v1299 = vshll.u32 %v1083, 16
        %v1301 = vor.u32 %v1298, %v1299
        %v1302 = vrot.slane %v1298, 4
        %v1304 = vshrl.u32 %v1084, 16
        %v1306 = vrot.slane %v1304, 7
        %v1307 = vshll.u32 %v1084, 16
        %v1309 = vor.u32 %v1306, %v1307
        %v1310 = vsel %vm620, %v1302, %v1309
        %v1311 = vrot.slane %v1306, 4
        %v1313 = vshrl.u32 %v1085, 16
        %v1315 = vrot.slane %v1313, 7
        %v1316 = vshll.u32 %v1085, 16
        %v1318 = vor.u32 %v1315, %v1316
        %v1319 = vrot.slane %v1315, 4
        %v1321 = vshrl.u32 %v1086, 16
        %v1323 = vrot.slane %v1321, 7
        %v1324 = vshll.u32 %v1086, 16
        %v1326 = vor.u32 %v1323, %v1324
        %v1327 = vsel %vm620, %v1319, %v1326
        %v1328 = vrot.slane %v1323, 4
        %v1330 = vshrl.u32 %v1087, 16
        %v1332 = vrot.slane %v1330, 7
        %v1333 = vshll.u32 %v1087, 16
        %v1335 = vor.u32 %v1332, %v1333
        %v1336 = vrot.slane %v1332, 4
        %v1338 = vshrl.u32 %v1088, 16
        %v1340 = vrot.slane %v1338, 7
        %v1341 = vshll.u32 %v1088, 16
        %v1343 = vor.u32 %v1340, %v1341
        %v1344 = vsel %vm620, %v1336, %v1343
        %v1345 = vrot.slane %v1340, 4
        %v1347 = vshrl.u32 %v1089, 16
        %v1349 = vrot.slane %v1347, 7
        %v1350 = vshll.u32 %v1089, 16
        %v1352 = vor.u32 %v1349, %v1350
        %v1353 = vrot.slane %v1349, 4
        %v1355 = vshrl.u32 %v1090, 16
        %v1357 = vrot.slane %v1355, 7
        %v1358 = vshll.u32 %v1090, 16
        %v1360 = vor.u32 %v1357, %v1358
        %v1361 = vsel %vm620, %v1353, %v1360
        %v1362 = vrot.slane %v1357, 4
        %1363 = vrot.lane.b32.xlu0 %v1097, 4
        %v1364 = vpop.permute.xlu0 %1363
        %1365 = vrot.lane.b32.xlu0 %v1106, 4
        %v1366 = vpop.permute.xlu0 %1365
        %1367 = vrot.lane.b32.xlu0 %v1107, 4
        %v1368 = vpop.permute.xlu0 %1367
        %1369 = vrot.lane.b32.xlu0 %v1114, 4
        %v1370 = vpop.permute.xlu0 %1369
        %1371 = vrot.lane.b32.xlu0 %v1123, 4
        %v1372 = vpop.permute.xlu0 %1371
        %1373 = vrot.lane.b32.xlu0 %v1124, 4
        %v1374 = vpop.permute.xlu0 %1373
        %1375 = vrot.lane.b32.xlu0 %v1131, 4
        %v1376 = vpop.permute.xlu0 %1375
        %1377 = vrot.lane.b32.xlu0 %v1140, 4
        %v1378 = vpop.permute.xlu0 %1377
        %1379 = vrot.lane.b32.xlu0 %v1141, 4
        %v1380 = vpop.permute.xlu0 %1379
        %1381 = vrot.lane.b32.xlu0 %v1148, 4
        %v1382 = vpop.permute.xlu0 %1381
        %1383 = vrot.lane.b32.xlu0 %v1157, 4
        %v1384 = vpop.permute.xlu0 %1383
        %1385 = vrot.lane.b32.xlu0 %v1158, 4
        %v1386 = vpop.permute.xlu0 %1385
        %1387 = vrot.lane.b32.xlu0 %v1165, 4
        %v1388 = vpop.permute.xlu0 %1387
        %1389 = vrot.lane.b32.xlu0 %v1174, 4
        %v1390 = vpop.permute.xlu0 %1389
        %1391 = vrot.lane.b32.xlu0 %v1175, 4
        %v1392 = vpop.permute.xlu0 %1391
        %1393 = vrot.lane.b32.xlu0 %v1182, 4
        %v1394 = vpop.permute.xlu0 %1393
        %1395 = vrot.lane.b32.xlu0 %v1191, 4
        %v1396 = vpop.permute.xlu0 %1395
        %1397 = vrot.lane.b32.xlu0 %v1192, 4
        %v1398 = vpop.permute.xlu0 %1397
        %1399 = vrot.lane.b32.xlu0 %v1199, 4
        %v1400 = vpop.permute.xlu0 %1399
        %1401 = vrot.lane.b32.xlu0 %v1208, 4
        %v1402 = vpop.permute.xlu0 %1401
        %1403 = vrot.lane.b32.xlu0 %v1209, 4
        %v1404 = vpop.permute.xlu0 %1403
        %1405 = vrot.lane.b32.xlu0 %v1216, 4
        %v1406 = vpop.permute.xlu0 %1405
        %1407 = vrot.lane.b32.xlu0 %v1225, 4
        %v1408 = vpop.permute.xlu0 %1407
        %1409 = vrot.lane.b32.xlu0 %v1226, 4
        %v1410 = vpop.permute.xlu0 %1409
        %1411 = vrot.lane.b32.xlu0 %v1233, 4
        %v1412 = vpop.permute.xlu0 %1411
        %1413 = vrot.lane.b32.xlu0 %v1242, 4
        %v1414 = vpop.permute.xlu0 %1413
        %1415 = vrot.lane.b32.xlu0 %v1243, 4
        %v1416 = vpop.permute.xlu0 %1415
        %1417 = vrot.lane.b32.xlu0 %v1250, 4
        %v1418 = vpop.permute.xlu0 %1417
        %1419 = vrot.lane.b32.xlu0 %v1259, 4
        %v1420 = vpop.permute.xlu0 %1419
        %1421 = vrot.lane.b32.xlu0 %v1260, 4
        %v1422 = vpop.permute.xlu0 %1421
        %1423 = vrot.lane.b32.xlu0 %v1267, 4
        %v1424 = vpop.permute.xlu0 %1423
        %1425 = vrot.lane.b32.xlu0 %v1276, 4
        %v1426 = vpop.permute.xlu0 %1425
        %1427 = vrot.lane.b32.xlu0 %v1277, 4
        %v1428 = vpop.permute.xlu0 %1427
        %1429 = vrot.lane.b32.xlu0 %v1284, 4
        %v1430 = vpop.permute.xlu0 %1429
        %1431 = vrot.lane.b32.xlu0 %v1293, 4
        %v1432 = vpop.permute.xlu0 %1431
        %1433 = vrot.lane.b32.xlu0 %v1294, 4
        %v1434 = vpop.permute.xlu0 %1433
        %1435 = vrot.lane.b32.xlu0 %v1301, 4
        %v1436 = vpop.permute.xlu0 %1435
        %1437 = vrot.lane.b32.xlu0 %v1310, 4
        %v1438 = vpop.permute.xlu0 %1437
        %1439 = vrot.lane.b32.xlu0 %v1311, 4
        %v1440 = vpop.permute.xlu0 %1439
        %1441 = vrot.lane.b32.xlu0 %v1318, 4
        %v1442 = vpop.permute.xlu0 %1441
        %1443 = vrot.lane.b32.xlu0 %v1327, 4
        %v1444 = vpop.permute.xlu0 %1443
        %1445 = vrot.lane.b32.xlu0 %v1328, 4
        %v1446 = vpop.permute.xlu0 %1445
        %1447 = vrot.lane.b32.xlu0 %v1335, 4
        %v1448 = vpop.permute.xlu0 %1447
        %1449 = vrot.lane.b32.xlu0 %v1344, 4
        %v1450 = vpop.permute.xlu0 %1449
        %1451 = vrot.lane.b32.xlu0 %v1345, 4
        %v1452 = vpop.permute.xlu0 %1451
        %1453 = vrot.lane.b32.xlu0 %v1352, 4
        %v1454 = vpop.permute.xlu0 %1453
        %1455 = vrot.lane.b32.xlu0 %v1361, 4
        %v1456 = vpop.permute.xlu0 %1455
        %1457 = vrot.lane.b32.xlu0 %v1362, 4
        %v1458 = vpop.permute.xlu0 %1457
        %vm1507 = vcmask 60448
        %vm1508 = vmand %vm1507, %vm400
        %v1509 = vld [vmem:[%s941] sm:$0xf]
        %v1510 = vsel %vm1508, %v1364, %v1509
        %1511 = vst [vmem:[%s941] sm:$0xf] %v1510
        %vm1512 = vcmask 60448
        %1513 = vst.msk [vmem:[%s941 + $0x4] sm:$0xf] %vm1512, %v1366
        %vm1514 = vcmask 57376
        %vm1515 = vmand %vm1514, %vm340
        %v1516 = vld [vmem:[%s941 + $0x8] sm:$0x1]
        %v1517 = vsel %vm1515, %v1368, %v1516
        %1518 = vst [vmem:[%s941 + $0x8] sm:$0x1] %v1517
        %v1519 = vld [vmem:[%s941 + $0xc] sm:$0xf]
        %v1520 = vsel %vm1508, %v1370, %v1519
        %1521 = vst [vmem:[%s941 + $0xc] sm:$0xf] %v1520
        %1522 = vst.msk [vmem:[%s941 + $0x10] sm:$0xf] %vm1512, %v1372
        %v1523 = vld [vmem:[%s941 + $0x14] sm:$0x1]
        %v1524 = vsel %vm1515, %v1374, %v1523
        %1525 = vst [vmem:[%s941 + $0x14] sm:$0x1] %v1524
        %v1526 = vld [vmem:[%s941 + $0x18] sm:$0xf]
        %v1527 = vsel %vm1508, %v1376, %v1526
        %1528 = vst [vmem:[%s941 + $0x18] sm:$0xf] %v1527
        %1529 = vst.msk [vmem:[%s941 + $0x1c] sm:$0xf] %vm1512, %v1378
        %v1530 = vld [vmem:[%s941 + $0x20] sm:$0x1]
        %v1531 = vsel %vm1515, %v1380, %v1530
        %1532 = vst [vmem:[%s941 + $0x20] sm:$0x1] %v1531
        %v1533 = vld [vmem:[%s941 + $0x24] sm:$0xf]
        %v1534 = vsel %vm1508, %v1382, %v1533
        %1535 = vst [vmem:[%s941 + $0x24] sm:$0xf] %v1534
        %1536 = vst.msk [vmem:[%s941 + $0x28] sm:$0xf] %vm1512, %v1384
        %v1537 = vld [vmem:[%s941 + $0x2c] sm:$0x1]
        %v1538 = vsel %vm1515, %v1386, %v1537
        %1539 = vst [vmem:[%s941 + $0x2c] sm:$0x1] %v1538
        %v1540 = vld [vmem:[%s941 + $0x30] sm:$0xf]
        %v1541 = vsel %vm1508, %v1388, %v1540
        %1542 = vst [vmem:[%s941 + $0x30] sm:$0xf] %v1541
        %1543 = vst.msk [vmem:[%s941 + $0x34] sm:$0xf] %vm1512, %v1390
        %v1544 = vld [vmem:[%s941 + $0x38] sm:$0x1]
        %v1545 = vsel %vm1515, %v1392, %v1544
        %1546 = vst [vmem:[%s941 + $0x38] sm:$0x1] %v1545
        %v1547 = vld [vmem:[%s941 + $0x3c] sm:$0xf]
        %v1548 = vsel %vm1508, %v1394, %v1547
        %1549 = vst [vmem:[%s941 + $0x3c] sm:$0xf] %v1548
        %1550 = vst.msk [vmem:[%s941 + $0x40] sm:$0xf] %vm1512, %v1396
        %v1551 = vld [vmem:[%s941 + $0x44] sm:$0x1]
        %v1552 = vsel %vm1515, %v1398, %v1551
        %1553 = vst [vmem:[%s941 + $0x44] sm:$0x1] %v1552
        %v1554 = vld [vmem:[%s941 + $0x48] sm:$0xf]
        %v1555 = vsel %vm1508, %v1400, %v1554
        %1556 = vst [vmem:[%s941 + $0x48] sm:$0xf] %v1555
        %1557 = vst.msk [vmem:[%s941 + $0x4c] sm:$0xf] %vm1512, %v1402
        %v1558 = vld [vmem:[%s941 + $0x50] sm:$0x1]
        %v1559 = vsel %vm1515, %v1404, %v1558
        %1560 = vst [vmem:[%s941 + $0x50] sm:$0x1] %v1559
        %v1561 = vld [vmem:[%s941 + $0x54] sm:$0xf]
        %v1562 = vsel %vm1508, %v1406, %v1561
        %1563 = vst [vmem:[%s941 + $0x54] sm:$0xf] %v1562
        %1564 = vst.msk [vmem:[%s941 + $0x58] sm:$0xf] %vm1512, %v1408
        %v1565 = vld [vmem:[%s941 + $0x5c] sm:$0x1]
        %v1566 = vsel %vm1515, %v1410, %v1565
        %1567 = vst [vmem:[%s941 + $0x5c] sm:$0x1] %v1566
        %v1568 = vld [vmem:[%s941 + $0x60] sm:$0xf]
        %v1569 = vsel %vm1508, %v1412, %v1568
        %1570 = vst [vmem:[%s941 + $0x60] sm:$0xf] %v1569
        %1571 = vst.msk [vmem:[%s941 + $0x64] sm:$0xf] %vm1512, %v1414
        %v1572 = vld [vmem:[%s941 + $0x68] sm:$0x1]
        %v1573 = vsel %vm1515, %v1416, %v1572
        %1574 = vst [vmem:[%s941 + $0x68] sm:$0x1] %v1573
        %v1575 = vld [vmem:[%s941 + $0x6c] sm:$0xf]
        %v1576 = vsel %vm1508, %v1418, %v1575
        %1577 = vst [vmem:[%s941 + $0x6c] sm:$0xf] %v1576
        %1578 = vst.msk [vmem:[%s941 + $0x70] sm:$0xf] %vm1512, %v1420
        %v1579 = vld [vmem:[%s941 + $0x74] sm:$0x1]
        %v1580 = vsel %vm1515, %v1422, %v1579
        %1581 = vst [vmem:[%s941 + $0x74] sm:$0x1] %v1580
        %v1582 = vld [vmem:[%s941 + $0x78] sm:$0xf]
        %v1583 = vsel %vm1508, %v1424, %v1582
        %1584 = vst [vmem:[%s941 + $0x78] sm:$0xf] %v1583
        %1585 = vst.msk [vmem:[%s941 + $0x7c] sm:$0xf] %vm1512, %v1426
        %v1586 = vld [vmem:[%s941 + $0x80] sm:$0x1]
        %v1587 = vsel %vm1515, %v1428, %v1586
        %1588 = vst [vmem:[%s941 + $0x80] sm:$0x1] %v1587
        %v1589 = vld [vmem:[%s941 + $0x84] sm:$0xf]
        %v1590 = vsel %vm1508, %v1430, %v1589
        %1591 = vst [vmem:[%s941 + $0x84] sm:$0xf] %v1590
        %1592 = vst.msk [vmem:[%s941 + $0x88] sm:$0xf] %vm1512, %v1432
        %v1593 = vld [vmem:[%s941 + $0x8c] sm:$0x1]
        %v1594 = vsel %vm1515, %v1434, %v1593
        %1595 = vst [vmem:[%s941 + $0x8c] sm:$0x1] %v1594
        %v1596 = vld [vmem:[%s941 + $0x90] sm:$0xf]
        %v1597 = vsel %vm1508, %v1436, %v1596
        %1598 = vst [vmem:[%s941 + $0x90] sm:$0xf] %v1597
        %1599 = vst.msk [vmem:[%s941 + $0x94] sm:$0xf] %vm1512, %v1438
        %v1600 = vld [vmem:[%s941 + $0x98] sm:$0x1]
        %v1601 = vsel %vm1515, %v1440, %v1600
        %1602 = vst [vmem:[%s941 + $0x98] sm:$0x1] %v1601
        %v1603 = vld [vmem:[%s941 + $0x9c] sm:$0xf]
        %v1604 = vsel %vm1508, %v1442, %v1603
        %1605 = vst [vmem:[%s941 + $0x9c] sm:$0xf] %v1604
        %1606 = vst.msk [vmem:[%s941 + $0xa0] sm:$0xf] %vm1512, %v1444
        %v1607 = vld [vmem:[%s941 + $0xa4] sm:$0x1]
        %v1608 = vsel %vm1515, %v1446, %v1607
        %1609 = vst [vmem:[%s941 + $0xa4] sm:$0x1] %v1608
        %v1610 = vld [vmem:[%s941 + $0xa8] sm:$0xf]
        %v1611 = vsel %vm1508, %v1448, %v1610
        %1612 = vst [vmem:[%s941 + $0xa8] sm:$0xf] %v1611
        %1613 = vst.msk [vmem:[%s941 + $0xac] sm:$0xf] %vm1512, %v1450
        %v1614 = vld [vmem:[%s941 + $0xb0] sm:$0x1]
        %v1615 = vsel %vm1515, %v1452, %v1614
        %1616 = vst [vmem:[%s941 + $0xb0] sm:$0x1] %v1615
        %v1617 = vld [vmem:[%s941 + $0xb4] sm:$0xf]
        %v1618 = vsel %vm1508, %v1454, %v1617
        %1619 = vst [vmem:[%s941 + $0xb4] sm:$0xf] %v1618
        %1620 = vst.msk [vmem:[%s941 + $0xb8] sm:$0xf] %vm1512, %v1456
        %v1621 = vld [vmem:[%s941 + $0xbc] sm:$0x1]
        %v1622 = vsel %vm1515, %v1458, %v1621
        %1623 = vst [vmem:[%s941 + $0xbc] sm:$0x1] %v1622
        %v1624 = vlaneseq
        %v1625 = vshrl.u32 %v1624, 7
        %v1626 = vadd.s32 %v1625, 8
        %v1627 = vadd.s32 %v1625, 16
        %v1628 = vld [vmem:[%s3] sm:$0x1]
        %v1629 = vld [vmem:[#allocation2] sm:$0xf]
        %v1630 = vld [vmem:[#allocation2 + $0x4] sm:$0xf]
        %v1631 = vld [vmem:[#allocation2 + $0x8] sm:$0xf]
        %v1632 = vld [vmem:[#allocation2 + $0xc] sm:$0xf]
        %v1633 = vld [vmem:[#allocation2 + $0x10] sm:$0xf]
        %v1634 = vld [vmem:[#allocation2 + $0x14] sm:$0xf]
        %v1635 = vld [vmem:[#allocation2 + $0x18] sm:$0xf]
        %v1636 = vld [vmem:[#allocation2 + $0x1c] sm:$0xf]
        %v1637 = vld [vmem:[#allocation2 + $0x20] sm:$0xf]
        %v1638 = vld [vmem:[#allocation2 + $0x24] sm:$0xf]
        %v1639 = vld [vmem:[#allocation2 + $0x28] sm:$0xf]
        %v1640 = vld [vmem:[#allocation2 + $0x2c] sm:$0xf]
        %v1641 = vld [vmem:[#allocation2 + $0x30] sm:$0xf]
        %v1642 = vld [vmem:[#allocation2 + $0x34] sm:$0xf]
        %v1643 = vld [vmem:[#allocation2 + $0x38] sm:$0xf]
        %v1644 = vld [vmem:[#allocation2 + $0x3c] sm:$0xf]
        %v1645 = vld [vmem:[#allocation2 + $0x40] sm:$0xf]
        %v1646 = vld [vmem:[#allocation2 + $0x44] sm:$0xf]
        %v1647 = vld [vmem:[#allocation2 + $0x48] sm:$0xf]
        %v1648 = vld [vmem:[#allocation2 + $0x4c] sm:$0xf]
        %v1649 = vld [vmem:[#allocation2 + $0x50] sm:$0xf]
        %v1650 = vld [vmem:[#allocation2 + $0x54] sm:$0xf]
        %v1651 = vld [vmem:[#allocation2 + $0x58] sm:$0xf]
        %v1652 = vld [vmem:[#allocation2 + $0x5c] sm:$0xf]
        %v1653 = vld [vmem:[#allocation2 + $0x60] sm:$0xf]
        %v1654 = vld [vmem:[#allocation2 + $0x64] sm:$0xf]
        %v1655 = vld [vmem:[#allocation2 + $0x68] sm:$0xf]
        %v1656 = vld [vmem:[#allocation2 + $0x6c] sm:$0xf]
        %v1657 = vld [vmem:[#allocation2 + $0x70] sm:$0xf]
        %v1658 = vld [vmem:[#allocation2 + $0x74] sm:$0xf]
        %v1659 = vld [vmem:[#allocation2 + $0x78] sm:$0xf]
        %v1660 = vld [vmem:[#allocation2 + $0x7c] sm:$0xf]
        %v1661 = vld [vmem:[#allocation2 + $0x80] sm:$0xf]
        %v1662 = vld [vmem:[#allocation2 + $0x84] sm:$0xf]
        %v1663 = vld [vmem:[#allocation2 + $0x88] sm:$0xf]
        %v1664 = vld [vmem:[#allocation2 + $0x8c] sm:$0xf]
        %v1665 = vld [vmem:[#allocation2 + $0x90] sm:$0xf]
        %v1666 = vld [vmem:[#allocation2 + $0x94] sm:$0xf]
        %v1667 = vld [vmem:[#allocation2 + $0x98] sm:$0xf]
        %v1668 = vld [vmem:[#allocation2 + $0x9c] sm:$0xf]
        %v1669 = vld [vmem:[#allocation2 + $0xa0] sm:$0xf]
        %v1670 = vld [vmem:[#allocation2 + $0xa4] sm:$0xf]
        %v1671 = vld [vmem:[#allocation2 + $0xa8] sm:$0xf]
        %v1672 = vld [vmem:[#allocation2 + $0xac] sm:$0xf]
        %v1673 = vld [vmem:[#allocation2 + $0xb0] sm:$0xf]
        %v1674 = vld [vmem:[#allocation2 + $0xb4] sm:$0xf]
        %v1675 = vld [vmem:[#allocation2 + $0xb8] sm:$0xf]
        %v1676 = vld [vmem:[#allocation2 + $0xbc] sm:$0xf]
        %v1677 = vld [vmem:[#allocation2 + $0xc0] sm:$0xf]
        %v1678 = vld [vmem:[#allocation2 + $0xc4] sm:$0xf]
        %v1679 = vld [vmem:[#allocation2 + $0xc8] sm:$0xf]
        %v1680 = vld [vmem:[%s2] sm:$0xf]
        %s1681 = scalar_lea.vmem %s2, 4
        %v1682 = vld [vmem:[%s1681] sm:$0xf]
        %s1683 = scalar_lea.vmem %s2, 8
        %v1684 = vld [vmem:[%s1683] sm:$0xf]
        %v1685 = vld [vmem:[%s941] sm:$0xf]
        %v1686 = vld [vmem:[%s941 + $0x4] sm:$0xf]
        %v1687 = vld [vmem:[%s941 + $0x8] sm:$0xf]
        %v1688 = vld [vmem:[%s941 + $0xc] sm:$0xf]
        %v1689 = vld [vmem:[%s941 + $0x10] sm:$0xf]
        %v1690 = vld [vmem:[%s941 + $0x14] sm:$0xf]
        %v1691 = vld [vmem:[%s941 + $0x18] sm:$0xf]
        %v1692 = vld [vmem:[%s941 + $0x1c] sm:$0xf]
        %v1693 = vld [vmem:[%s941 + $0x20] sm:$0xf]
        %v1694 = vld [vmem:[%s941 + $0x24] sm:$0xf]
        %v1695 = vld [vmem:[%s941 + $0x28] sm:$0xf]
        %v1696 = vld [vmem:[%s941 + $0x2c] sm:$0xf]
        %v1697 = vld [vmem:[%s941 + $0x30] sm:$0xf]
        %v1698 = vld [vmem:[%s941 + $0x34] sm:$0xf]
        %v1699 = vld [vmem:[%s941 + $0x38] sm:$0xf]
        %v1700 = vld [vmem:[%s941 + $0x3c] sm:$0xf]
        %v1701 = vld [vmem:[%s941 + $0x40] sm:$0xf]
        %v1702 = vld [vmem:[%s941 + $0x44] sm:$0xf]
        %v1703 = vld [vmem:[%s941 + $0x48] sm:$0xf]
        %v1704 = vld [vmem:[%s941 + $0x4c] sm:$0xf]
        %v1705 = vld [vmem:[%s941 + $0x50] sm:$0xf]
        %v1706 = vld [vmem:[%s941 + $0x54] sm:$0xf]
        %v1707 = vld [vmem:[%s941 + $0x58] sm:$0xf]
        %v1708 = vld [vmem:[%s941 + $0x5c] sm:$0xf]
        %v1709 = vld [vmem:[%s941 + $0x60] sm:$0xf]
        %v1710 = vld [vmem:[%s941 + $0x64] sm:$0xf]
        %v1711 = vld [vmem:[%s941 + $0x68] sm:$0xf]
        %v1712 = vld [vmem:[%s941 + $0x6c] sm:$0xf]
        %v1713 = vld [vmem:[%s941 + $0x70] sm:$0xf]
        %v1714 = vld [vmem:[%s941 + $0x74] sm:$0xf]
        %v1715 = vld [vmem:[%s941 + $0x78] sm:$0xf]
        %v1716 = vld [vmem:[%s941 + $0x7c] sm:$0xf]
        %v1717 = vld [vmem:[%s941 + $0x80] sm:$0xf]
        %v1718 = vld [vmem:[%s941 + $0x84] sm:$0xf]
        %v1719 = vld [vmem:[%s941 + $0x88] sm:$0xf]
        %v1720 = vld [vmem:[%s941 + $0x8c] sm:$0xf]
        %v1721 = vld [vmem:[%s941 + $0x90] sm:$0xf]
        %v1722 = vld [vmem:[%s941 + $0x94] sm:$0xf]
        %v1723 = vld [vmem:[%s941 + $0x98] sm:$0xf]
        %v1724 = vld [vmem:[%s941 + $0x9c] sm:$0xf]
        %v1725 = vld [vmem:[%s941 + $0xa0] sm:$0xf]
        %v1726 = vld [vmem:[%s941 + $0xa4] sm:$0xf]
        %v1727 = vld [vmem:[%s941 + $0xa8] sm:$0xf]
        %v1728 = vld [vmem:[%s941 + $0xac] sm:$0xf]
        %v1729 = vld [vmem:[%s941 + $0xb0] sm:$0xf]
        %v1730 = vld [vmem:[%s941 + $0xb4] sm:$0xf]
        %v1731 = vld [vmem:[%s941 + $0xb8] sm:$0xf]
        %v1732 = vld [vmem:[%s941 + $0xbc] sm:$0xf]
        %v1733 = vld [vmem:[%s941 + $0xc0] sm:$0xf]
        %v1734 = vld [vmem:[%s941 + $0xc4] sm:$0xf]
        %v1735 = vld [vmem:[%s941 + $0xc8] sm:$0xf]
        %s1736 = scalar_lea.vmem %s2, 12
        %v1737 = vld [vmem:[%s1736] sm:$0xf]
        %v1789 = vunpack.c.l.b16 %v1685
        %v1790 = vunpack.c.l.b16 %v1686
        %v1791 = vunpack.c.l.b16 %v1687
        %v1792 = vunpack.c.l.b16 %v1688
        %v1793 = vunpack.c.l.b16 %v1689
        %v1794 = vunpack.c.l.b16 %v1690
        %v1795 = vunpack.c.l.b16 %v1691
        %v1796 = vunpack.c.l.b16 %v1692
        %v1797 = vunpack.c.l.b16 %v1693
        %v1798 = vunpack.c.l.b16 %v1694
        %v1799 = vunpack.c.l.b16 %v1695
        %v1800 = vunpack.c.l.b16 %v1696
        %v1801 = vunpack.c.l.b16 %v1697
        %v1802 = vunpack.c.l.b16 %v1698
        %v1803 = vunpack.c.l.b16 %v1699
        %v1804 = vunpack.c.l.b16 %v1700
        %v1805 = vunpack.c.l.b16 %v1701
        %v1806 = vunpack.c.l.b16 %v1702
        %v1807 = vunpack.c.l.b16 %v1703
        %v1808 = vunpack.c.l.b16 %v1704
        %v1809 = vunpack.c.l.b16 %v1705
        %v1810 = vunpack.c.l.b16 %v1706
        %v1811 = vunpack.c.l.b16 %v1707
        %v1812 = vunpack.c.l.b16 %v1708
        %v1813 = vunpack.c.l.b16 %v1709
        %v1814 = vunpack.c.l.b16 %v1710
        %v1815 = vunpack.c.l.b16 %v1711
        %v1816 = vunpack.c.l.b16 %v1712
        %v1817 = vunpack.c.l.b16 %v1713
        %v1818 = vunpack.c.l.b16 %v1714
        %v1819 = vunpack.c.l.b16 %v1715
        %v1820 = vunpack.c.l.b16 %v1716
        %v1821 = vunpack.c.l.b16 %v1717
        %v1822 = vunpack.c.l.b16 %v1718
        %v1823 = vunpack.c.l.b16 %v1719
        %v1824 = vunpack.c.l.b16 %v1720
        %v1825 = vunpack.c.l.b16 %v1721
        %v1826 = vunpack.c.l.b16 %v1722
        %v1827 = vunpack.c.l.b16 %v1723
        %v1828 = vunpack.c.l.b16 %v1724
        %v1829 = vunpack.c.l.b16 %v1725
        %v1830 = vunpack.c.l.b16 %v1726
        %v1831 = vunpack.c.l.b16 %v1727
        %v1832 = vunpack.c.l.b16 %v1728
        %v1833 = vunpack.c.l.b16 %v1729
        %v1834 = vunpack.c.l.b16 %v1730
        %v1835 = vunpack.c.l.b16 %v1731
        %v1836 = vunpack.c.l.b16 %v1732
        %v1837 = vunpack.c.l.b16 %v1733
        %v1838 = vunpack.c.l.b16 %v1734
        %v1839 = vunpack.c.l.b16 %v1735
        %v1840 = vpack.c.b16 %v1790, %v1789
        %v1841 = vpack.c.b16 %v1792, %v1791
        %v1842 = vpack.c.b16 %v1794, %v1793
        %v1843 = vpack.c.b16 %v1796, %v1795
        %v1844 = vpack.c.b16 %v1798, %v1797
        %v1845 = vpack.c.b16 %v1800, %v1799
        %v1846 = vpack.c.b16 %v1802, %v1801
        %v1847 = vpack.c.b16 %v1804, %v1803
        %v1848 = vpack.c.b16 %v1806, %v1805
        %v1849 = vpack.c.b16 %v1808, %v1807
        %v1850 = vpack.c.b16 %v1810, %v1809
        %v1851 = vpack.c.b16 %v1812, %v1811
        %v1852 = vpack.c.b16 %v1814, %v1813
        %v1853 = vpack.c.b16 %v1816, %v1815
        %v1854 = vpack.c.b16 %v1818, %v1817
        %v1855 = vpack.c.b16 %v1820, %v1819
        %v1856 = vpack.c.b16 %v1822, %v1821
        %v1857 = vpack.c.b16 %v1824, %v1823
        %v1858 = vpack.c.b16 %v1826, %v1825
        %v1859 = vpack.c.b16 %v1828, %v1827
        %v1860 = vpack.c.b16 %v1830, %v1829
        %v1861 = vpack.c.b16 %v1832, %v1831
        %v1862 = vpack.c.b16 %v1834, %v1833
        %v1863 = vpack.c.b16 %v1836, %v1835
        %v1864 = vpack.c.b16 %v1838, %v1837
        %v1865 = vpack.c.b16 %v1839, %v1839
        %vm1866 = vcmask 64512
        %v1868 = vsel %vm1866, %v1840, 0
        %v1871 = vsel %vm1866, %v1841, 0
        %v1874 = vsel %vm1866, %v1842, 0
        %v1877 = vsel %vm1866, %v1843, 0
        %v1880 = vsel %vm1866, %v1844, 0
        %v1883 = vsel %vm1866, %v1845, 0
        %v1886 = vsel %vm1866, %v1846, 0
        %v1889 = vsel %vm1866, %v1847, 0
        %v1892 = vsel %vm1866, %v1848, 0
        %v1895 = vsel %vm1866, %v1849, 0
        %v1898 = vsel %vm1866, %v1850, 0
        %v1901 = vsel %vm1866, %v1851, 0
        %v1904 = vsel %vm1866, %v1852, 0
        %v1907 = vsel %vm1866, %v1853, 0
        %v1910 = vsel %vm1866, %v1854, 0
        %v1913 = vsel %vm1866, %v1855, 0
        %v1916 = vsel %vm1866, %v1856, 0
        %v1919 = vsel %vm1866, %v1857, 0
        %v1922 = vsel %vm1866, %v1858, 0
        %v1925 = vsel %vm1866, %v1859, 0
        %v1928 = vsel %vm1866, %v1860, 0
        %v1931 = vsel %vm1866, %v1861, 0
        %v1934 = vsel %vm1866, %v1862, 0
        %v1937 = vsel %vm1866, %v1863, 0
        %v1940 = vsel %vm1866, %v1864, 0
        %v1943 = vsel %vm1866, %v1865, 0
        %vm1945 = vcmask 1043456
        %v1947 = vsel %vm1945, %v1737, 0
        %1949 = vmatprep.subr.bf16.mxu0 0
        %1950 = vmatpush1.bf16.msra.mxu0 %v1947
        %1951 = vmatprep.subr.bf16.mxu0 0
        %1952 = vmatpush1.bf16.msra.mxu0 0
        %1953 = vmatprep.subr.bf16.mxu0 0
        %1954 = vmatpush1.bf16.msra.mxu0 0
        %1955 = vmatprep.subr.bf16.mxu0 0
        %1956 = vmatpush1.bf16.msra.mxu0 0
        %1957 = vmatprep.subr.bf16.mxu0 0
        %1958 = vmatpush1.bf16.msra.mxu0 0
        %1959 = vmatprep.subr.bf16.mxu0 0
        %1960 = vmatpush1.bf16.msra.mxu0 0
        %1961 = vmatprep.subr.bf16.mxu0 0
        %1962 = vmatpush1.bf16.msra.mxu0 0
        %1963 = vmatprep.subr.bf16.mxu0 0
        %1964 = vmatpush1.bf16.msra.mxu0 0
        %1965 = vmatprep.subr.bf16.mxu0 0
        %1966 = vmatpush1.bf16.msra.mxu0 0
        %1967 = vmatprep.subr.bf16.mxu0 0
        %1968 = vmatpush1.bf16.msra.mxu0 0
        %1969 = vmatprep.subr.bf16.mxu0 0
        %1970 = vmatpush1.bf16.msra.mxu0 0
        %1971 = vmatprep.subr.bf16.mxu0 0
        %1972 = vmatpush1.bf16.msra.mxu0 0
        %1973 = vmatprep.subr.bf16.mxu0 0
        %1974 = vmatpush1.bf16.msra.mxu0 0
        %1975 = vmatprep.subr.bf16.mxu0 0
        %1976 = vmatpush1.bf16.msra.mxu0 0
        %1977 = vmatprep.subr.bf16.mxu0 0
        %1978 = vmatpush1.bf16.msra.mxu0 0
        %1979 = vmatprep.subr.bf16.mxu0 0
        %1980 = vmatpush1.bf16.msra.mxu0 0
        %1981 = vmatprep.mubr.bf16.mxu0 0
        %1982 = vmatmul.mubr.bf16.gmra.mrb[0].mxu0 %v1868
        %v1983 = vpop.f32.mrb[0].mxu0
        %v1984 = vadd.f32 0.0, %v1983
        %v1985 = vpop.f32.mrb[0].mxu0
        %v1986 = vpop.f32.mrb[0].mxu0
        %v1987 = vadd.f32 0.0, %v1986
        %v1988 = vpop.f32.mrb[0].mxu0
        %1989 = vmatprep.mubr.bf16.mxu0 0
        %1990 = vmatmul.mubr.bf16.gmra.mrb[0].mxu0 %v1871
        %v1991 = vpop.f32.mrb[0].mxu0
        %v1992 = vadd.f32 0.0, %v1991
        %v1993 = vpop.f32.mrb[0].mxu0
        %v1994 = vpop.f32.mrb[0].mxu0
        %v1995 = vadd.f32 0.0, %v1994
        %v1996 = vpop.f32.mrb[0].mxu0
        %1997 = vmatprep.mubr.bf16.mxu0 0
        %1998 = vmatmul.mubr.bf16.gmra.mrb[0].mxu0 %v1874
        %v1999 = vpop.f32.mrb[0].mxu0
        %v2000 = vadd.f32 0.0, %v1999
        %v2001 = vpop.f32.mrb[0].mxu0
        %v2002 = vpop.f32.mrb[0].mxu0
        %v2003 = vadd.f32 0.0, %v2002
        %v2004 = vpop.f32.mrb[0].mxu0
        %2005 = vmatprep.mubr.bf16.mxu0 0
        %2006 = vmatmul.mubr.bf16.gmra.mrb[0].mxu0 %v1877
        %v2007 = vpop.f32.mrb[0].mxu0
        %v2008 = vadd.f32 0.0, %v2007
        %v2009 = vpop.f32.mrb[0].mxu0
        %v2010 = vpop.f32.mrb[0].mxu0
        %v2011 = vadd.f32 0.0, %v2010
        %v2012 = vpop.f32.mrb[0].mxu0
        %2013 = vmatprep.mubr.bf16.mxu0 0
        %2014 = vmatmul.mubr.bf16.gmra.mrb[0].mxu0 %v1880
        %v2015 = vpop.f32.mrb[0].mxu0
        %v2016 = vadd.f32 0.0, %v2015
        %v2017 = vpop.f32.mrb[0].mxu0
        %v2018 = vpop.f32.mrb[0].mxu0
        %v2019 = vadd.f32 0.0, %v2018
        %v2020 = vpop.f32.mrb[0].mxu0
        %2021 = vmatprep.mubr.bf16.mxu0 0
        %2022 = vmatmul.mubr.bf16.gmra.mrb[0].mxu0 %v1883
        %v2023 = vpop.f32.mrb[0].mxu0
        %v2024 = vadd.f32 0.0, %v2023
        %v2025 = vpop.f32.mrb[0].mxu0
        %v2026 = vpop.f32.mrb[0].mxu0
        %v2027 = vadd.f32 0.0, %v2026
        %v2028 = vpop.f32.mrb[0].mxu0
        %2029 = vmatprep.mubr.bf16.mxu0 0
        %2030 = vmatmul.mubr.bf16.gmra.mrb[0].mxu0 %v1886
        %v2031 = vpop.f32.mrb[0].mxu0
        %v2032 = vadd.f32 0.0, %v2031
        %v2033 = vpop.f32.mrb[0].mxu0
        %v2034 = vpop.f32.mrb[0].mxu0
        %v2035 = vadd.f32 0.0, %v2034
        %v2036 = vpop.f32.mrb[0].mxu0
        %2037 = vmatprep.mubr.bf16.mxu0 0
        %2038 = vmatmul.mubr.bf16.gmra.mrb[0].mxu0 %v1889
        %v2039 = vpop.f32.mrb[0].mxu0
        %v2040 = vadd.f32 0.0, %v2039
        %v2041 = vpop.f32.mrb[0].mxu0
        %v2042 = vpop.f32.mrb[0].mxu0
        %v2043 = vadd.f32 0.0, %v2042
        %v2044 = vpop.f32.mrb[0].mxu0
        %2045 = vmatprep.mubr.bf16.mxu0 0
        %2046 = vmatmul.mubr.bf16.gmra.mrb[0].mxu0 %v1892
        %v2047 = vpop.f32.mrb[0].mxu0
        %v2048 = vadd.f32 0.0, %v2047
        %v2049 = vpop.f32.mrb[0].mxu0
        %v2050 = vpop.f32.mrb[0].mxu0
        %v2051 = vadd.f32 0.0, %v2050
        %v2052 = vpop.f32.mrb[0].mxu0
        %2053 = vmatprep.mubr.bf16.mxu0 0
        %2054 = vmatmul.mubr.bf16.gmra.mrb[0].mxu0 %v1895
        %v2055 = vpop.f32.mrb[0].mxu0
        %v2056 = vadd.f32 0.0, %v2055
        %v2057 = vpop.f32.mrb[0].mxu0
        %v2058 = vpop.f32.mrb[0].mxu0
        %v2059 = vadd.f32 0.0, %v2058
        %v2060 = vpop.f32.mrb[0].mxu0
        %2061 = vmatprep.mubr.bf16.mxu0 0
        %2062 = vmatmul.mubr.bf16.gmra.mrb[0].mxu0 %v1898
        %v2063 = vpop.f32.mrb[0].mxu0
        %v2064 = vadd.f32 0.0, %v2063
        %v2065 = vpop.f32.mrb[0].mxu0
        %v2066 = vpop.f32.mrb[0].mxu0
        %v2067 = vadd.f32 0.0, %v2066
        %v2068 = vpop.f32.mrb[0].mxu0
        %2069 = vmatprep.mubr.bf16.mxu0 0
        %2070 = vmatmul.mubr.bf16.gmra.mrb[0].mxu0 %v1901
        %v2071 = vpop.f32.mrb[0].mxu0
        %v2072 = vadd.f32 0.0, %v2071
        %v2073 = vpop.f32.mrb[0].mxu0
        %v2074 = vpop.f32.mrb[0].mxu0
        %v2075 = vadd.f32 0.0, %v2074
        %v2076 = vpop.f32.mrb[0].mxu0
        %2077 = vmatprep.mubr.bf16.mxu0 0
        %2078 = vmatmul.mubr.bf16.gmra.mrb[0].mxu0 %v1904
        %v2079 = vpop.f32.mrb[0].mxu0
        %v2080 = vadd.f32 0.0, %v2079
        %v2081 = vpop.f32.mrb[0].mxu0
        %v2082 = vpop.f32.mrb[0].mxu0
        %v2083 = vadd.f32 0.0, %v2082
        %v2084 = vpop.f32.mrb[0].mxu0
        %2085 = vmatprep.mubr.bf16.mxu0 0
        %2086 = vmatmul.mubr.bf16.gmra.mrb[0].mxu0 %v1907
        %v2087 = vpop.f32.mrb[0].mxu0
        %v2088 = vadd.f32 0.0, %v2087
        %v2089 = vpop.f32.mrb[0].mxu0
        %v2090 = vpop.f32.mrb[0].mxu0
        %v2091 = vadd.f32 0.0, %v2090
        %v2092 = vpop.f32.mrb[0].mxu0
        %2093 = vmatprep.mubr.bf16.mxu0 0
        %2094 = vmatmul.mubr.bf16.gmra.mrb[0].mxu0 %v1910
        %v2095 = vpop.f32.mrb[0].mxu0
        %v2096 = vadd.f32 0.0, %v2095
        %v2097 = vpop.f32.mrb[0].mxu0
        %v2098 = vpop.f32.mrb[0].mxu0
        %v2099 = vadd.f32 0.0, %v2098
        %v2100 = vpop.f32.mrb[0].mxu0
        %2101 = vmatprep.mubr.bf16.mxu0 0
        %2102 = vmatmul.mubr.bf16.gmra.mrb[0].mxu0 %v1913
        %v2103 = vpop.f32.mrb[0].mxu0
        %v2104 = vadd.f32 0.0, %v2103
        %v2105 = vpop.f32.mrb[0].mxu0
        %v2106 = vpop.f32.mrb[0].mxu0
        %v2107 = vadd.f32 0.0, %v2106
        %v2108 = vpop.f32.mrb[0].mxu0
        %2109 = vmatprep.mubr.bf16.mxu0 0
        %2110 = vmatmul.mubr.bf16.gmra.mrb[0].mxu0 %v1916
        %v2111 = vpop.f32.mrb[0].mxu0
        %v2112 = vadd.f32 0.0, %v2111
        %v2113 = vpop.f32.mrb[0].mxu0
        %v2114 = vpop.f32.mrb[0].mxu0
        %v2115 = vadd.f32 0.0, %v2114
        %v2116 = vpop.f32.mrb[0].mxu0
        %2117 = vmatprep.mubr.bf16.mxu0 0
        %2118 = vmatmul.mubr.bf16.gmra.mrb[0].mxu0 %v1919
        %v2119 = vpop.f32.mrb[0].mxu0
        %v2120 = vadd.f32 0.0, %v2119
        %v2121 = vpop.f32.mrb[0].mxu0
        %v2122 = vpop.f32.mrb[0].mxu0
        %v2123 = vadd.f32 0.0, %v2122
        %v2124 = vpop.f32.mrb[0].mxu0
        %2125 = vmatprep.mubr.bf16.mxu0 0
        %2126 = vmatmul.mubr.bf16.gmra.mrb[0].mxu0 %v1922
        %v2127 = vpop.f32.mrb[0].mxu0
        %v2128 = vadd.f32 0.0, %v2127
        %v2129 = vpop.f32.mrb[0].mxu0
        %v2130 = vpop.f32.mrb[0].mxu0
        %v2131 = vadd.f32 0.0, %v2130
        %v2132 = vpop.f32.mrb[0].mxu0
        %2133 = vmatprep.mubr.bf16.mxu0 0
        %2134 = vmatmul.mubr.bf16.gmra.mrb[0].mxu0 %v1925
        %v2135 = vpop.f32.mrb[0].mxu0
        %v2136 = vadd.f32 0.0, %v2135
        %v2137 = vpop.f32.mrb[0].mxu0
        %v2138 = vpop.f32.mrb[0].mxu0
        %v2139 = vadd.f32 0.0, %v2138
        %v2140 = vpop.f32.mrb[0].mxu0
        %2141 = vmatprep.mubr.bf16.mxu0 0
        %2142 = vmatmul.mubr.bf16.gmra.mrb[0].mxu0 %v1928
        %v2143 = vpop.f32.mrb[0].mxu0
        %v2144 = vadd.f32 0.0, %v2143
        %v2145 = vpop.f32.mrb[0].mxu0
        %v2146 = vpop.f32.mrb[0].mxu0
        %v2147 = vadd.f32 0.0, %v2146
        %v2148 = vpop.f32.mrb[0].mxu0
        %2149 = vmatprep.mubr.bf16.mxu0 0
        %2150 = vmatmul.mubr.bf16.gmra.mrb[0].mxu0 %v1931
        %v2151 = vpop.f32.mrb[0].mxu0
        %v2152 = vadd.f32 0.0, %v2151
        %v2153 = vpop.f32.mrb[0].mxu0
        %v2154 = vpop.f32.mrb[0].mxu0
        %v2155 = vadd.f32 0.0, %v2154
        %v2156 = vpop.f32.mrb[0].mxu0
        %2157 = vmatprep.mubr.bf16.mxu0 0
        %2158 = vmatmul.mubr.bf16.gmra.mrb[0].mxu0 %v1934
        %v2159 = vpop.f32.mrb[0].mxu0
        %v2160 = vadd.f32 0.0, %v2159
        %v2161 = vpop.f32.mrb[0].mxu0
        %v2162 = vpop.f32.mrb[0].mxu0
        %v2163 = vadd.f32 0.0, %v2162
        %v2164 = vpop.f32.mrb[0].mxu0
        %2165 = vmatprep.mubr.bf16.mxu0 0
        %2166 = vmatmul.mubr.bf16.gmra.mrb[0].mxu0 %v1937
        %v2167 = vpop.f32.mrb[0].mxu0
        %v2168 = vadd.f32 0.0, %v2167
        %v2169 = vpop.f32.mrb[0].mxu0
        %v2170 = vpop.f32.mrb[0].mxu0
        %v2171 = vadd.f32 0.0, %v2170
        %v2172 = vpop.f32.mrb[0].mxu0
        %2173 = vmatprep.mubr.bf16.mxu0 0
        %2174 = vmatmul.mubr.bf16.gmra.mrb[0].mxu0 %v1940
        %v2175 = vpop.f32.mrb[0].mxu0
        %v2176 = vpop.f32.mrb[0].mxu0
        %v2177 = vpop.f32.mrb[0].mxu0
        %v2178 = vpop.f32.mrb[0].mxu0
        %2179 = vmatprep.mubr.bf16.mxu0 0
        %2180 = vmatmul.mubr.bf16.gmra.mrb[0].mxu0 %v1943
        %v2181 = vpop.f32.mrb[0].mxu0
        %v2182 = vpop.f32.mrb[0].mxu0
        %v2183 = vpop.f32.mrb[0].mxu0
        %v2184 = vpop.f32.mrb[0].mxu0
        %2185 = vdwg.mxu0
        %v2237 = vunpack.c.l.b16 %v1629
        %v2238 = vunpack.c.l.b16 %v1630
        %v2239 = vunpack.c.l.b16 %v1631
        %v2240 = vunpack.c.l.b16 %v1632
        %v2241 = vunpack.c.l.b16 %v1633
        %v2242 = vunpack.c.l.b16 %v1634
        %v2243 = vunpack.c.l.b16 %v1635
        %v2244 = vunpack.c.l.b16 %v1636
        %v2245 = vunpack.c.l.b16 %v1637
        %v2246 = vunpack.c.l.b16 %v1638
        %v2247 = vunpack.c.l.b16 %v1639
        %v2248 = vunpack.c.l.b16 %v1640
        %v2249 = vunpack.c.l.b16 %v1641
        %v2250 = vunpack.c.l.b16 %v1642
        %v2251 = vunpack.c.l.b16 %v1643
        %v2252 = vunpack.c.l.b16 %v1644
        %v2253 = vunpack.c.l.b16 %v1645
        %v2254 = vunpack.c.l.b16 %v1646
        %v2255 = vunpack.c.l.b16 %v1647
        %v2256 = vunpack.c.l.b16 %v1648
        %v2257 = vunpack.c.l.b16 %v1649
        %v2258 = vunpack.c.l.b16 %v1650
        %v2259 = vunpack.c.l.b16 %v1651
        %v2260 = vunpack.c.l.b16 %v1652
        %v2261 = vunpack.c.l.b16 %v1653
        %v2262 = vunpack.c.l.b16 %v1654
        %v2263 = vunpack.c.l.b16 %v1655
        %v2264 = vunpack.c.l.b16 %v1656
        %v2265 = vunpack.c.l.b16 %v1657
        %v2266 = vunpack.c.l.b16 %v1658
        %v2267 = vunpack.c.l.b16 %v1659
        %v2268 = vunpack.c.l.b16 %v1660
        %v2269 = vunpack.c.l.b16 %v1661
        %v2270 = vunpack.c.l.b16 %v1662
        %v2271 = vunpack.c.l.b16 %v1663
        %v2272 = vunpack.c.l.b16 %v1664
        %v2273 = vunpack.c.l.b16 %v1665
        %v2274 = vunpack.c.l.b16 %v1666
        %v2275 = vunpack.c.l.b16 %v1667
        %v2276 = vunpack.c.l.b16 %v1668
        %v2277 = vunpack.c.l.b16 %v1669
        %v2278 = vunpack.c.l.b16 %v1670
        %v2279 = vunpack.c.l.b16 %v1671
        %v2280 = vunpack.c.l.b16 %v1672
        %v2281 = vunpack.c.l.b16 %v1673
        %v2282 = vunpack.c.l.b16 %v1674
        %v2283 = vunpack.c.l.b16 %v1675
        %v2284 = vunpack.c.l.b16 %v1676
        %v2285 = vunpack.c.l.b16 %v1677
        %v2286 = vunpack.c.l.b16 %v1678
        %v2287 = vunpack.c.l.b16 %v1679
        %v2288 = vpack.c.b16 %v2238, %v2237
        %v2289 = vpack.c.b16 %v2240, %v2239
        %v2290 = vpack.c.b16 %v2242, %v2241
        %v2291 = vpack.c.b16 %v2244, %v2243
        %v2292 = vpack.c.b16 %v2246, %v2245
        %v2293 = vpack.c.b16 %v2248, %v2247
        %v2294 = vpack.c.b16 %v2250, %v2249
        %v2295 = vpack.c.b16 %v2252, %v2251
        %v2296 = vpack.c.b16 %v2254, %v2253
        %v2297 = vpack.c.b16 %v2256, %v2255
        %v2298 = vpack.c.b16 %v2258, %v2257
        %v2299 = vpack.c.b16 %v2260, %v2259
        %v2300 = vpack.c.b16 %v2262, %v2261
        %v2301 = vpack.c.b16 %v2264, %v2263
        %v2302 = vpack.c.b16 %v2266, %v2265
        %v2303 = vpack.c.b16 %v2268, %v2267
        %v2304 = vpack.c.b16 %v2270, %v2269
        %v2305 = vpack.c.b16 %v2272, %v2271
        %v2306 = vpack.c.b16 %v2274, %v2273
        %v2307 = vpack.c.b16 %v2276, %v2275
        %v2308 = vpack.c.b16 %v2278, %v2277
        %v2309 = vpack.c.b16 %v2280, %v2279
        %v2310 = vpack.c.b16 %v2282, %v2281
        %v2311 = vpack.c.b16 %v2284, %v2283
        %v2312 = vpack.c.b16 %v2286, %v2285
        %v2313 = vpack.c.b16 %v2287, %v2287
        %v2315 = vsel %vm1866, %v2288, 0
        %v2318 = vsel %vm1866, %v2289, 0
        %v2321 = vsel %vm1866, %v2290, 0
        %v2324 = vsel %vm1866, %v2291, 0
        %v2327 = vsel %vm1866, %v2292, 0
        %v2330 = vsel %vm1866, %v2293, 0
        %v2333 = vsel %vm1866, %v2294, 0
        %v2336 = vsel %vm1866, %v2295, 0
        %v2339 = vsel %vm1866, %v2296, 0
        %v2342 = vsel %vm1866, %v2297, 0
        %v2345 = vsel %vm1866, %v2298, 0
        %v2348 = vsel %vm1866, %v2299, 0
        %v2351 = vsel %vm1866, %v2300, 0
        %v2354 = vsel %vm1866, %v2301, 0
        %v2357 = vsel %vm1866, %v2302, 0
        %v2360 = vsel %vm1866, %v2303, 0
        %v2363 = vsel %vm1866, %v2304, 0
        %v2366 = vsel %vm1866, %v2305, 0
        %v2369 = vsel %vm1866, %v2306, 0
        %v2372 = vsel %vm1866, %v2307, 0
        %v2375 = vsel %vm1866, %v2308, 0
        %v2378 = vsel %vm1866, %v2309, 0
        %v2381 = vsel %vm1866, %v2310, 0
        %v2384 = vsel %vm1866, %v2311, 0
        %v2387 = vsel %vm1866, %v2312, 0
        %v2390 = vsel %vm1866, %v2313, 0
        %v2393 = vsel %vm1945, %v1680, 0
        %2395 = vmatprep.subr.bf16.mxu0 0
        %2396 = vmatpush1.bf16.msra.mxu0 %v2393
        %2397 = vmatprep.subr.bf16.mxu0 0
        %2398 = vmatpush1.bf16.msra.mxu0 0
        %2399 = vmatprep.subr.bf16.mxu0 0
        %2400 = vmatpush1.bf16.msra.mxu0 0
        %2401 = vmatprep.subr.bf16.mxu0 0
        %2402 = vmatpush1.bf16.msra.mxu0 0
        %2403 = vmatprep.subr.bf16.mxu0 0
        %2404 = vmatpush1.bf16.msra.mxu0 0
        %2405 = vmatprep.subr.bf16.mxu0 0
        %2406 = vmatpush1.bf16.msra.mxu0 0
        %2407 = vmatprep.subr.bf16.mxu0 0
        %2408 = vmatpush1.bf16.msra.mxu0 0
        %2409 = vmatprep.subr.bf16.mxu0 0
        %2410 = vmatpush1.bf16.msra.mxu0 0
        %2411 = vmatprep.subr.bf16.mxu0 0
        %2412 = vmatpush1.bf16.msra.mxu0 0
        %2413 = vmatprep.subr.bf16.mxu0 0
        %2414 = vmatpush1.bf16.msra.mxu0 0
        %2415 = vmatprep.subr.bf16.mxu0 0
        %2416 = vmatpush1.bf16.msra.mxu0 0
        %2417 = vmatprep.subr.bf16.mxu0 0
        %2418 = vmatpush1.bf16.msra.mxu0 0
        %2419 = vmatprep.subr.bf16.mxu0 0
        %2420 = vmatpush1.bf16.msra.mxu0 0
        %2421 = vmatprep.subr.bf16.mxu0 0
        %2422 = vmatpush1.bf16.msra.mxu0 0
        %2423 = vmatprep.subr.bf16.mxu0 0
        %2424 = vmatpush1.bf16.msra.mxu0 0
        %2425 = vmatprep.subr.bf16.mxu0 0
        %2426 = vmatpush1.bf16.msra.mxu0 0
        %2427 = vmatprep.mubr.bf16.mxu0 0
        %2428 = vmatmul.mubr.bf16.gmra.mrb[0].mxu0 %v2315
        %v2429 = vpop.f32.mrb[0].mxu0
        %v2430 = vadd.f32 %v1984, %v2429
        %v2431 = vpop.f32.mrb[0].mxu0
        %v2432 = vpop.f32.mrb[0].mxu0
        %v2433 = vadd.f32 %v1987, %v2432
        %v2434 = vpop.f32.mrb[0].mxu0
        %2435 = vmatprep.mubr.bf16.mxu0 0
        %2436 = vmatmul.mubr.bf16.gmra.mrb[0].mxu0 %v2318
        %v2437 = vpop.f32.mrb[0].mxu0
        %v2438 = vadd.f32 %v1992, %v2437
        %v2439 = vpop.f32.mrb[0].mxu0
        %v2440 = vpop.f32.mrb[0].mxu0
        %v2441 = vadd.f32 %v1995, %v2440
        %v2442 = vpop.f32.mrb[0].mxu0
        %2443 = vmatprep.mubr.bf16.mxu0 0
        %2444 = vmatmul.mubr.bf16.gmra.mrb[0].mxu0 %v2321
        %v2445 = vpop.f32.mrb[0].mxu0
        %v2446 = vadd.f32 %v2000, %v2445
        %v2447 = vpop.f32.mrb[0].mxu0
        %v2448 = vpop.f32.mrb[0].mxu0
        %v2449 = vadd.f32 %v2003, %v2448
        %v2450 = vpop.f32.mrb[0].mxu0
        %2451 = vmatprep.mubr.bf16.mxu0 0
        %2452 = vmatmul.mubr.bf16.gmra.mrb[0].mxu0 %v2324
        %v2453 = vpop.f32.mrb[0].mxu0
        %v2454 = vadd.f32 %v2008, %v2453
        %v2455 = vpop.f32.mrb[0].mxu0
        %v2456 = vpop.f32.mrb[0].mxu0
        %v2457 = vadd.f32 %v2011, %v2456
        %v2458 = vpop.f32.mrb[0].mxu0
        %2459 = vmatprep.mubr.bf16.mxu0 0
        %2460 = vmatmul.mubr.bf16.gmra.mrb[0].mxu0 %v2327
        %v2461 = vpop.f32.mrb[0].mxu0
        %v2462 = vadd.f32 %v2016, %v2461
        %v2463 = vpop.f32.mrb[0].mxu0
        %v2464 = vpop.f32.mrb[0].mxu0
        %v2465 = vadd.f32 %v2019, %v2464
        %v2466 = vpop.f32.mrb[0].mxu0
        %2467 = vmatprep.mubr.bf16.mxu0 0
        %2468 = vmatmul.mubr.bf16.gmra.mrb[0].mxu0 %v2330
        %v2469 = vpop.f32.mrb[0].mxu0
        %v2470 = vadd.f32 %v2024, %v2469
        %v2471 = vpop.f32.mrb[0].mxu0
        %v2472 = vpop.f32.mrb[0].mxu0
        %v2473 = vadd.f32 %v2027, %v2472
        %v2474 = vpop.f32.mrb[0].mxu0
        %2475 = vmatprep.mubr.bf16.mxu0 0
        %2476 = vmatmul.mubr.bf16.gmra.mrb[0].mxu0 %v2333
        %v2477 = vpop.f32.mrb[0].mxu0
        %v2478 = vadd.f32 %v2032, %v2477
        %v2479 = vpop.f32.mrb[0].mxu0
        %v2480 = vpop.f32.mrb[0].mxu0
        %v2481 = vadd.f32 %v2035, %v2480
        %v2482 = vpop.f32.mrb[0].mxu0
        %2483 = vmatprep.mubr.bf16.mxu0 0
        %2484 = vmatmul.mubr.bf16.gmra.mrb[0].mxu0 %v2336
        %v2485 = vpop.f32.mrb[0].mxu0
        %v2486 = vadd.f32 %v2040, %v2485
        %v2487 = vpop.f32.mrb[0].mxu0
        %v2488 = vpop.f32.mrb[0].mxu0
        %v2489 = vadd.f32 %v2043, %v2488
        %v2490 = vpop.f32.mrb[0].mxu0
        %2491 = vmatprep.mubr.bf16.mxu0 0
        %2492 = vmatmul.mubr.bf16.gmra.mrb[0].mxu0 %v2339
        %v2493 = vpop.f32.mrb[0].mxu0
        %v2494 = vadd.f32 %v2048, %v2493
        %v2495 = vpop.f32.mrb[0].mxu0
        %v2496 = vpop.f32.mrb[0].mxu0
        %v2497 = vadd.f32 %v2051, %v2496
        %v2498 = vpop.f32.mrb[0].mxu0
        %2499 = vmatprep.mubr.bf16.mxu0 0
        %2500 = vmatmul.mubr.bf16.gmra.mrb[0].mxu0 %v2342
        %v2501 = vpop.f32.mrb[0].mxu0
        %v2502 = vadd.f32 %v2056, %v2501
        %v2503 = vpop.f32.mrb[0].mxu0
        %v2504 = vpop.f32.mrb[0].mxu0
        %v2505 = vadd.f32 %v2059, %v2504
        %v2506 = vpop.f32.mrb[0].mxu0
        %2507 = vmatprep.mubr.bf16.mxu0 0
        %2508 = vmatmul.mubr.bf16.gmra.mrb[0].mxu0 %v2345
        %v2509 = vpop.f32.mrb[0].mxu0
        %v2510 = vadd.f32 %v2064, %v2509
        %v2511 = vpop.f32.mrb[0].mxu0
        %v2512 = vpop.f32.mrb[0].mxu0
        %v2513 = vadd.f32 %v2067, %v2512
        %v2514 = vpop.f32.mrb[0].mxu0
        %2515 = vmatprep.mubr.bf16.mxu0 0
        %2516 = vmatmul.mubr.bf16.gmra.mrb[0].mxu0 %v2348
        %v2517 = vpop.f32.mrb[0].mxu0
        %v2518 = vadd.f32 %v2072, %v2517
        %v2519 = vpop.f32.mrb[0].mxu0
        %v2520 = vpop.f32.mrb[0].mxu0
        %v2521 = vadd.f32 %v2075, %v2520
        %v2522 = vpop.f32.mrb[0].mxu0
        %2523 = vmatprep.mubr.bf16.mxu0 0
        %2524 = vmatmul.mubr.bf16.gmra.mrb[0].mxu0 %v2351
        %v2525 = vpop.f32.mrb[0].mxu0
        %v2526 = vadd.f32 %v2080, %v2525
        %v2527 = vpop.f32.mrb[0].mxu0
        %v2528 = vpop.f32.mrb[0].mxu0
        %v2529 = vadd.f32 %v2083, %v2528
        %v2530 = vpop.f32.mrb[0].mxu0
        %2531 = vmatprep.mubr.bf16.mxu0 0
        %2532 = vmatmul.mubr.bf16.gmra.mrb[0].mxu0 %v2354
        %v2533 = vpop.f32.mrb[0].mxu0
        %v2534 = vadd.f32 %v2088, %v2533
        %v2535 = vpop.f32.mrb[0].mxu0
        %v2536 = vpop.f32.mrb[0].mxu0
        %v2537 = vadd.f32 %v2091, %v2536
        %v2538 = vpop.f32.mrb[0].mxu0
        %2539 = vmatprep.mubr.bf16.mxu0 0
        %2540 = vmatmul.mubr.bf16.gmra.mrb[0].mxu0 %v2357
        %v2541 = vpop.f32.mrb[0].mxu0
        %v2542 = vadd.f32 %v2096, %v2541
        %v2543 = vpop.f32.mrb[0].mxu0
        %v2544 = vpop.f32.mrb[0].mxu0
        %v2545 = vadd.f32 %v2099, %v2544
        %v2546 = vpop.f32.mrb[0].mxu0
        %2547 = vmatprep.mubr.bf16.mxu0 0
        %2548 = vmatmul.mubr.bf16.gmra.mrb[0].mxu0 %v2360
        %v2549 = vpop.f32.mrb[0].mxu0
        %v2550 = vadd.f32 %v2104, %v2549
        %v2551 = vpop.f32.mrb[0].mxu0
        %v2552 = vpop.f32.mrb[0].mxu0
        %v2553 = vadd.f32 %v2107, %v2552
        %v2554 = vpop.f32.mrb[0].mxu0
        %2555 = vmatprep.mubr.bf16.mxu0 0
        %2556 = vmatmul.mubr.bf16.gmra.mrb[0].mxu0 %v2363
        %v2557 = vpop.f32.mrb[0].mxu0
        %v2558 = vadd.f32 %v2112, %v2557
        %v2559 = vpop.f32.mrb[0].mxu0
        %v2560 = vpop.f32.mrb[0].mxu0
        %v2561 = vadd.f32 %v2115, %v2560
        %v2562 = vpop.f32.mrb[0].mxu0
        %2563 = vmatprep.mubr.bf16.mxu0 0
        %2564 = vmatmul.mubr.bf16.gmra.mrb[0].mxu0 %v2366
        %v2565 = vpop.f32.mrb[0].mxu0
        %v2566 = vadd.f32 %v2120, %v2565
        %v2567 = vpop.f32.mrb[0].mxu0
        %v2568 = vpop.f32.mrb[0].mxu0
        %v2569 = vadd.f32 %v2123, %v2568
        %v2570 = vpop.f32.mrb[0].mxu0
        %2571 = vmatprep.mubr.bf16.mxu0 0
        %2572 = vmatmul.mubr.bf16.gmra.mrb[0].mxu0 %v2369
        %v2573 = vpop.f32.mrb[0].mxu0
        %v2574 = vadd.f32 %v2128, %v2573
        %v2575 = vpop.f32.mrb[0].mxu0
        %v2576 = vpop.f32.mrb[0].mxu0
        %v2577 = vadd.f32 %v2131, %v2576
        %v2578 = vpop.f32.mrb[0].mxu0
        %2579 = vmatprep.mubr.bf16.mxu0 0
        %2580 = vmatmul.mubr.bf16.gmra.mrb[0].mxu0 %v2372
        %v2581 = vpop.f32.mrb[0].mxu0
        %v2582 = vadd.f32 %v2136, %v2581
        %v2583 = vpop.f32.mrb[0].mxu0
        %v2584 = vpop.f32.mrb[0].mxu0
        %v2585 = vadd.f32 %v2139, %v2584
        %v2586 = vpop.f32.mrb[0].mxu0
        %2587 = vmatprep.mubr.bf16.mxu0 0
        %2588 = vmatmul.mubr.bf16.gmra.mrb[0].mxu0 %v2375
        %v2589 = vpop.f32.mrb[0].mxu0
        %v2590 = vadd.f32 %v2144, %v2589
        %v2591 = vpop.f32.mrb[0].mxu0
        %v2592 = vpop.f32.mrb[0].mxu0
        %v2593 = vadd.f32 %v2147, %v2592
        %v2594 = vpop.f32.mrb[0].mxu0
        %2595 = vmatprep.mubr.bf16.mxu0 0
        %2596 = vmatmul.mubr.bf16.gmra.mrb[0].mxu0 %v2378
        %v2597 = vpop.f32.mrb[0].mxu0
        %v2598 = vadd.f32 %v2152, %v2597
        %v2599 = vpop.f32.mrb[0].mxu0
        %v2600 = vpop.f32.mrb[0].mxu0
        %v2601 = vadd.f32 %v2155, %v2600
        %v2602 = vpop.f32.mrb[0].mxu0
        %2603 = vmatprep.mubr.bf16.mxu0 0
        %2604 = vmatmul.mubr.bf16.gmra.mrb[0].mxu0 %v2381
        %v2605 = vpop.f32.mrb[0].mxu0
        %v2606 = vadd.f32 %v2160, %v2605
        %v2607 = vpop.f32.mrb[0].mxu0
        %v2608 = vpop.f32.mrb[0].mxu0
        %v2609 = vadd.f32 %v2163, %v2608
        %v2610 = vpop.f32.mrb[0].mxu0
        %2611 = vmatprep.mubr.bf16.mxu0 0
        %2612 = vmatmul.mubr.bf16.gmra.mrb[0].mxu0 %v2384
        %v2613 = vpop.f32.mrb[0].mxu0
        %v2614 = vadd.f32 %v2168, %v2613
        %v2615 = vpop.f32.mrb[0].mxu0
        %v2616 = vpop.f32.mrb[0].mxu0
        %v2617 = vadd.f32 %v2171, %v2616
        %v2618 = vpop.f32.mrb[0].mxu0
        %2619 = vmatprep.mubr.bf16.mxu0 0
        %2620 = vmatmul.mubr.bf16.gmra.mrb[0].mxu0 %v2387
        %v2621 = vpop.f32.mrb[0].mxu0
        %v2622 = vpop.f32.mrb[0].mxu0
        %v2623 = vpop.f32.mrb[0].mxu0
        %v2624 = vpop.f32.mrb[0].mxu0
        %2625 = vmatprep.mubr.bf16.mxu0 0
        %2626 = vmatmul.mubr.bf16.gmra.mrb[0].mxu0 %v2390
        %v2627 = vpop.f32.mrb[0].mxu0
        %v2628 = vpop.f32.mrb[0].mxu0
        %v2629 = vpop.f32.mrb[0].mxu0
        %v2630 = vpop.f32.mrb[0].mxu0
        %2631 = vdwg.mxu0
        %s2632 = scalar_lea.vmem %s2, 16
        %v2633 = vld [vmem:[%s2632] sm:$0xf]
        %v2635 = vsel %vm1945, %v2633, 0
        %2637 = vmatprep.subr.bf16.mxu0 0
        %2638 = vmatpush1.bf16.msra.mxu0 %v2635
        %2639 = vmatprep.subr.bf16.mxu0 0
        %2640 = vmatpush1.bf16.msra.mxu0 0
        %2641 = vmatprep.subr.bf16.mxu0 0
        %2642 = vmatpush1.bf16.msra.mxu0 0
        %2643 = vmatprep.subr.bf16.mxu0 0
        %2644 = vmatpush1.bf16.msra.mxu0 0
        %2645 = vmatprep.subr.bf16.mxu0 0
        %2646 = vmatpush1.bf16.msra.mxu0 0
        %2647 = vmatprep.subr.bf16.mxu0 0
        %2648 = vmatpush1.bf16.msra.mxu0 0
        %2649 = vmatprep.subr.bf16.mxu0 0
        %2650 = vmatpush1.bf16.msra.mxu0 0
        %2651 = vmatprep.subr.bf16.mxu0 0
        %2652 = vmatpush1.bf16.msra.mxu0 0
        %2653 = vmatprep.subr.bf16.mxu0 0
        %2654 = vmatpush1.bf16.msra.mxu0 0
        %2655 = vmatprep.subr.bf16.mxu0 0
        %2656 = vmatpush1.bf16.msra.mxu0 0
        %2657 = vmatprep.subr.bf16.mxu0 0
        %2658 = vmatpush1.bf16.msra.mxu0 0
        %2659 = vmatprep.subr.bf16.mxu0 0
        %2660 = vmatpush1.bf16.msra.mxu0 0
        %2661 = vmatprep.subr.bf16.mxu0 0
        %2662 = vmatpush1.bf16.msra.mxu0 0
        %2663 = vmatprep.subr.bf16.mxu0 0
        %2664 = vmatpush1.bf16.msra.mxu0 0
        %2665 = vmatprep.subr.bf16.mxu0 0
        %2666 = vmatpush1.bf16.msra.mxu0 0
        %2667 = vmatprep.subr.bf16.mxu0 0
        %2668 = vmatpush1.bf16.msra.mxu0 0
        %2669 = vmatprep.mubr.bf16.mxu0 0
        %2670 = vmatmul.mubr.bf16.gmra.mrb[0].mxu0 %v1868
        %v2671 = vpop.f32.mrb[0].mxu0
        %v2672 = vadd.f32 0.0, %v2671
        %v2673 = vpop.f32.mrb[0].mxu0
        %v2674 = vpop.f32.mrb[0].mxu0
        %v2675 = vadd.f32 0.0, %v2674
        %v2676 = vpop.f32.mrb[0].mxu0
        %2677 = vmatprep.mubr.bf16.mxu0 0
        %2678 = vmatmul.mubr.bf16.gmra.mrb[0].mxu0 %v1871
        %v2679 = vpop.f32.mrb[0].mxu0
        %v2680 = vadd.f32 0.0, %v2679
        %v2681 = vpop.f32.mrb[0].mxu0
        %v2682 = vpop.f32.mrb[0].mxu0
        %v2683 = vadd.f32 0.0, %v2682
        %v2684 = vpop.f32.mrb[0].mxu0
        %2685 = vmatprep.mubr.bf16.mxu0 0
        %2686 = vmatmul.mubr.bf16.gmra.mrb[0].mxu0 %v1874
        %v2687 = vpop.f32.mrb[0].mxu0
        %v2688 = vadd.f32 0.0, %v2687
        %v2689 = vpop.f32.mrb[0].mxu0
        %v2690 = vpop.f32.mrb[0].mxu0
        %v2691 = vadd.f32 0.0, %v2690
        %v2692 = vpop.f32.mrb[0].mxu0
        %2693 = vmatprep.mubr.bf16.mxu0 0
        %2694 = vmatmul.mubr.bf16.gmra.mrb[0].mxu0 %v1877
        %v2695 = vpop.f32.mrb[0].mxu0
        %v2696 = vadd.f32 0.0, %v2695
        %v2697 = vpop.f32.mrb[0].mxu0
        %v2698 = vpop.f32.mrb[0].mxu0
        %v2699 = vadd.f32 0.0, %v2698
        %v2700 = vpop.f32.mrb[0].mxu0
        %2701 = vmatprep.mubr.bf16.mxu0 0
        %2702 = vmatmul.mubr.bf16.gmra.mrb[0].mxu0 %v1880
        %v2703 = vpop.f32.mrb[0].mxu0
        %v2704 = vadd.f32 0.0, %v2703
        %v2705 = vpop.f32.mrb[0].mxu0
        %v2706 = vpop.f32.mrb[0].mxu0
        %v2707 = vadd.f32 0.0, %v2706
        %v2708 = vpop.f32.mrb[0].mxu0
        %2709 = vmatprep.mubr.bf16.mxu0 0
        %2710 = vmatmul.mubr.bf16.gmra.mrb[0].mxu0 %v1883
        %v2711 = vpop.f32.mrb[0].mxu0
        %v2712 = vadd.f32 0.0, %v2711
        %v2713 = vpop.f32.mrb[0].mxu0
        %v2714 = vpop.f32.mrb[0].mxu0
        %v2715 = vadd.f32 0.0, %v2714
        %v2716 = vpop.f32.mrb[0].mxu0
        %2717 = vmatprep.mubr.bf16.mxu0 0
        %2718 = vmatmul.mubr.bf16.gmra.mrb[0].mxu0 %v1886
        %v2719 = vpop.f32.mrb[0].mxu0
        %v2720 = vadd.f32 0.0, %v2719
        %v2721 = vpop.f32.mrb[0].mxu0
        %v2722 = vpop.f32.mrb[0].mxu0
        %v2723 = vadd.f32 0.0, %v2722
        %v2724 = vpop.f32.mrb[0].mxu0
        %2725 = vmatprep.mubr.bf16.mxu0 0
        %2726 = vmatmul.mubr.bf16.gmra.mrb[0].mxu0 %v1889
        %v2727 = vpop.f32.mrb[0].mxu0
        %v2728 = vadd.f32 0.0, %v2727
        %v2729 = vpop.f32.mrb[0].mxu0
        %v2730 = vpop.f32.mrb[0].mxu0
        %v2731 = vadd.f32 0.0, %v2730
        %v2732 = vpop.f32.mrb[0].mxu0
        %2733 = vmatprep.mubr.bf16.mxu0 0
        %2734 = vmatmul.mubr.bf16.gmra.mrb[0].mxu0 %v1892
        %v2735 = vpop.f32.mrb[0].mxu0
        %v2736 = vadd.f32 0.0, %v2735
        %v2737 = vpop.f32.mrb[0].mxu0
        %v2738 = vpop.f32.mrb[0].mxu0
        %v2739 = vadd.f32 0.0, %v2738
        %v2740 = vpop.f32.mrb[0].mxu0
        %2741 = vmatprep.mubr.bf16.mxu0 0
        %2742 = vmatmul.mubr.bf16.gmra.mrb[0].mxu0 %v1895
        %v2743 = vpop.f32.mrb[0].mxu0
        %v2744 = vadd.f32 0.0, %v2743
        %v2745 = vpop.f32.mrb[0].mxu0
        %v2746 = vpop.f32.mrb[0].mxu0
        %v2747 = vadd.f32 0.0, %v2746
        %v2748 = vpop.f32.mrb[0].mxu0
        %2749 = vmatprep.mubr.bf16.mxu0 0
        %2750 = vmatmul.mubr.bf16.gmra.mrb[0].mxu0 %v1898
        %v2751 = vpop.f32.mrb[0].mxu0
        %v2752 = vadd.f32 0.0, %v2751
        %v2753 = vpop.f32.mrb[0].mxu0
        %v2754 = vpop.f32.mrb[0].mxu0
        %v2755 = vadd.f32 0.0, %v2754
        %v2756 = vpop.f32.mrb[0].mxu0
        %2757 = vmatprep.mubr.bf16.mxu0 0
        %2758 = vmatmul.mubr.bf16.gmra.mrb[0].mxu0 %v1901
        %v2759 = vpop.f32.mrb[0].mxu0
        %v2760 = vadd.f32 0.0, %v2759
        %v2761 = vpop.f32.mrb[0].mxu0
        %v2762 = vpop.f32.mrb[0].mxu0
        %v2763 = vadd.f32 0.0, %v2762
        %v2764 = vpop.f32.mrb[0].mxu0
        %2765 = vmatprep.mubr.bf16.mxu0 0
        %2766 = vmatmul.mubr.bf16.gmra.mrb[0].mxu0 %v1904
        %v2767 = vpop.f32.mrb[0].mxu0
        %v2768 = vadd.f32 0.0, %v2767
        %v2769 = vpop.f32.mrb[0].mxu0
        %v2770 = vpop.f32.mrb[0].mxu0
        %v2771 = vadd.f32 0.0, %v2770
        %v2772 = vpop.f32.mrb[0].mxu0
        %2773 = vmatprep.mubr.bf16.mxu0 0
        %2774 = vmatmul.mubr.bf16.gmra.mrb[0].mxu0 %v1907
        %v2775 = vpop.f32.mrb[0].mxu0
        %v2776 = vadd.f32 0.0, %v2775
        %v2777 = vpop.f32.mrb[0].mxu0
        %v2778 = vpop.f32.mrb[0].mxu0
        %v2779 = vadd.f32 0.0, %v2778
        %v2780 = vpop.f32.mrb[0].mxu0
        %2781 = vmatprep.mubr.bf16.mxu0 0
        %2782 = vmatmul.mubr.bf16.gmra.mrb[0].mxu0 %v1910
        %v2783 = vpop.f32.mrb[0].mxu0
        %v2784 = vadd.f32 0.0, %v2783
        %v2785 = vpop.f32.mrb[0].mxu0
        %v2786 = vpop.f32.mrb[0].mxu0
        %v2787 = vadd.f32 0.0, %v2786
        %v2788 = vpop.f32.mrb[0].mxu0
        %2789 = vmatprep.mubr.bf16.mxu0 0
        %2790 = vmatmul.mubr.bf16.gmra.mrb[0].mxu0 %v1913
        %v2791 = vpop.f32.mrb[0].mxu0
        %v2792 = vadd.f32 0.0, %v2791
        %v2793 = vpop.f32.mrb[0].mxu0
        %v2794 = vpop.f32.mrb[0].mxu0
        %v2795 = vadd.f32 0.0, %v2794
        %v2796 = vpop.f32.mrb[0].mxu0
        %2797 = vmatprep.mubr.bf16.mxu0 0
        %2798 = vmatmul.mubr.bf16.gmra.mrb[0].mxu0 %v1916
        %v2799 = vpop.f32.mrb[0].mxu0
        %v2800 = vadd.f32 0.0, %v2799
        %v2801 = vpop.f32.mrb[0].mxu0
        %v2802 = vpop.f32.mrb[0].mxu0
        %v2803 = vadd.f32 0.0, %v2802
        %v2804 = vpop.f32.mrb[0].mxu0
        %2805 = vmatprep.mubr.bf16.mxu0 0
        %2806 = vmatmul.mubr.bf16.gmra.mrb[0].mxu0 %v1919
        %v2807 = vpop.f32.mrb[0].mxu0
        %v2808 = vadd.f32 0.0, %v2807
        %v2809 = vpop.f32.mrb[0].mxu0
        %v2810 = vpop.f32.mrb[0].mxu0
        %v2811 = vadd.f32 0.0, %v2810
        %v2812 = vpop.f32.mrb[0].mxu0
        %2813 = vmatprep.mubr.bf16.mxu0 0
        %2814 = vmatmul.mubr.bf16.gmra.mrb[0].mxu0 %v1922
        %v2815 = vpop.f32.mrb[0].mxu0
        %v2816 = vadd.f32 0.0, %v2815
        %v2817 = vpop.f32.mrb[0].mxu0
        %v2818 = vpop.f32.mrb[0].mxu0
        %v2819 = vadd.f32 0.0, %v2818
        %v2820 = vpop.f32.mrb[0].mxu0
        %2821 = vmatprep.mubr.bf16.mxu0 0
        %2822 = vmatmul.mubr.bf16.gmra.mrb[0].mxu0 %v1925
        %v2823 = vpop.f32.mrb[0].mxu0
        %v2824 = vadd.f32 0.0, %v2823
        %v2825 = vpop.f32.mrb[0].mxu0
        %v2826 = vpop.f32.mrb[0].mxu0
        %v2827 = vadd.f32 0.0, %v2826
        %v2828 = vpop.f32.mrb[0].mxu0
        %2829 = vmatprep.mubr.bf16.mxu0 0
        %2830 = vmatmul.mubr.bf16.gmra.mrb[0].mxu0 %v1928
        %v2831 = vpop.f32.mrb[0].mxu0
        %v2832 = vadd.f32 0.0, %v2831
        %v2833 = vpop.f32.mrb[0].mxu0
        %v2834 = vpop.f32.mrb[0].mxu0
        %v2835 = vadd.f32 0.0, %v2834
        %v2836 = vpop.f32.mrb[0].mxu0
        %2837 = vmatprep.mubr.bf16.mxu0 0
        %2838 = vmatmul.mubr.bf16.gmra.mrb[0].mxu0 %v1931
        %v2839 = vpop.f32.mrb[0].mxu0
        %v2840 = vadd.f32 0.0, %v2839
        %v2841 = vpop.f32.mrb[0].mxu0
        %v2842 = vpop.f32.mrb[0].mxu0
        %v2843 = vadd.f32 0.0, %v2842
        %v2844 = vpop.f32.mrb[0].mxu0
        %2845 = vmatprep.mubr.bf16.mxu0 0
        %2846 = vmatmul.mubr.bf16.gmra.mrb[0].mxu0 %v1934
        %v2847 = vpop.f32.mrb[0].mxu0
        %v2848 = vadd.f32 0.0, %v2847
        %v2849 = vpop.f32.mrb[0].mxu0
        %v2850 = vpop.f32.mrb[0].mxu0
        %v2851 = vadd.f32 0.0, %v2850
        %v2852 = vpop.f32.mrb[0].mxu0
        %2853 = vmatprep.mubr.bf16.mxu0 0
        %2854 = vmatmul.mubr.bf16.gmra.mrb[0].mxu0 %v1937
        %v2855 = vpop.f32.mrb[0].mxu0
        %v2856 = vadd.f32 0.0, %v2855
        %v2857 = vpop.f32.mrb[0].mxu0
        %v2858 = vpop.f32.mrb[0].mxu0
        %v2859 = vadd.f32 0.0, %v2858
        %v2860 = vpop.f32.mrb[0].mxu0
        %2861 = vmatprep.mubr.bf16.mxu0 0
        %2862 = vmatmul.mubr.bf16.gmra.mrb[0].mxu0 %v1940
        %v2863 = vpop.f32.mrb[0].mxu0
        %v2864 = vadd.f32 0.0, %v2863
        %v2865 = vpop.f32.mrb[0].mxu0
        %v2866 = vpop.f32.mrb[0].mxu0
        %v2867 = vpop.f32.mrb[0].mxu0
        %2868 = vmatprep.mubr.bf16.mxu0 0
        %2869 = vmatmul.mubr.bf16.gmra.mrb[0].mxu0 %v1943
        %v2870 = vpop.f32.mrb[0].mxu0
        %v2871 = vpop.f32.mrb[0].mxu0
        %v2872 = vpop.f32.mrb[0].mxu0
        %v2873 = vpop.f32.mrb[0].mxu0
        %2874 = vdwg.mxu0
        %v2876 = vsel %vm1945, %v1682, 0
        %2878 = vmatprep.subr.bf16.mxu0 0
        %2879 = vmatpush1.bf16.msra.mxu0 %v2876
        %2880 = vmatprep.subr.bf16.mxu0 0
        %2881 = vmatpush1.bf16.msra.mxu0 0
        %2882 = vmatprep.subr.bf16.mxu0 0
        %2883 = vmatpush1.bf16.msra.mxu0 0
        %2884 = vmatprep.subr.bf16.mxu0 0
        %2885 = vmatpush1.bf16.msra.mxu0 0
        %2886 = vmatprep.subr.bf16.mxu0 0
        %2887 = vmatpush1.bf16.msra.mxu0 0
        %2888 = vmatprep.subr.bf16.mxu0 0
        %2889 = vmatpush1.bf16.msra.mxu0 0
        %2890 = vmatprep.subr.bf16.mxu0 0
        %2891 = vmatpush1.bf16.msra.mxu0 0
        %2892 = vmatprep.subr.bf16.mxu0 0
        %2893 = vmatpush1.bf16.msra.mxu0 0
        %2894 = vmatprep.subr.bf16.mxu0 0
        %2895 = vmatpush1.bf16.msra.mxu0 0
        %2896 = vmatprep.subr.bf16.mxu0 0
        %2897 = vmatpush1.bf16.msra.mxu0 0
        %2898 = vmatprep.subr.bf16.mxu0 0
        %2899 = vmatpush1.bf16.msra.mxu0 0
        %2900 = vmatprep.subr.bf16.mxu0 0
        %2901 = vmatpush1.bf16.msra.mxu0 0
        %2902 = vmatprep.subr.bf16.mxu0 0
        %2903 = vmatpush1.bf16.msra.mxu0 0
        %2904 = vmatprep.subr.bf16.mxu0 0
        %2905 = vmatpush1.bf16.msra.mxu0 0
        %2906 = vmatprep.subr.bf16.mxu0 0
        %2907 = vmatpush1.bf16.msra.mxu0 0
        %2908 = vmatprep.subr.bf16.mxu0 0
        %2909 = vmatpush1.bf16.msra.mxu0 0
        %2910 = vmatprep.mubr.bf16.mxu0 0
        %2911 = vmatmul.mubr.bf16.gmra.mrb[0].mxu0 %v2315
        %v2912 = vpop.f32.mrb[0].mxu0
        %v2913 = vadd.f32 %v2672, %v2912
        %v2914 = vpop.f32.mrb[0].mxu0
        %v2915 = vpop.f32.mrb[0].mxu0
        %v2916 = vadd.f32 %v2675, %v2915
        %v2917 = vpop.f32.mrb[0].mxu0
        %2918 = vmatprep.mubr.bf16.mxu0 0
        %2919 = vmatmul.mubr.bf16.gmra.mrb[0].mxu0 %v2318
        %v2920 = vpop.f32.mrb[0].mxu0
        %v2921 = vadd.f32 %v2680, %v2920
        %v2922 = vpop.f32.mrb[0].mxu0
        %v2923 = vpop.f32.mrb[0].mxu0
        %v2924 = vadd.f32 %v2683, %v2923
        %v2925 = vpop.f32.mrb[0].mxu0
        %2926 = vmatprep.mubr.bf16.mxu0 0
        %2927 = vmatmul.mubr.bf16.gmra.mrb[0].mxu0 %v2321
        %v2928 = vpop.f32.mrb[0].mxu0
        %v2929 = vadd.f32 %v2688, %v2928
        %v2930 = vpop.f32.mrb[0].mxu0
        %v2931 = vpop.f32.mrb[0].mxu0
        %v2932 = vadd.f32 %v2691, %v2931
        %v2933 = vpop.f32.mrb[0].mxu0
        %2934 = vmatprep.mubr.bf16.mxu0 0
        %2935 = vmatmul.mubr.bf16.gmra.mrb[0].mxu0 %v2324
        %v2936 = vpop.f32.mrb[0].mxu0
        %v2937 = vadd.f32 %v2696, %v2936
        %v2938 = vpop.f32.mrb[0].mxu0
        %v2939 = vpop.f32.mrb[0].mxu0
        %v2940 = vadd.f32 %v2699, %v2939
        %v2941 = vpop.f32.mrb[0].mxu0
        %2942 = vmatprep.mubr.bf16.mxu0 0
        %2943 = vmatmul.mubr.bf16.gmra.mrb[0].mxu0 %v2327
        %v2944 = vpop.f32.mrb[0].mxu0
        %v2945 = vadd.f32 %v2704, %v2944
        %v2946 = vpop.f32.mrb[0].mxu0
        %v2947 = vpop.f32.mrb[0].mxu0
        %v2948 = vadd.f32 %v2707, %v2947
        %v2949 = vpop.f32.mrb[0].mxu0
        %2950 = vmatprep.mubr.bf16.mxu0 0
        %2951 = vmatmul.mubr.bf16.gmra.mrb[0].mxu0 %v2330
        %v2952 = vpop.f32.mrb[0].mxu0
        %v2953 = vadd.f32 %v2712, %v2952
        %v2954 = vpop.f32.mrb[0].mxu0
        %v2955 = vpop.f32.mrb[0].mxu0
        %v2956 = vadd.f32 %v2715, %v2955
        %v2957 = vpop.f32.mrb[0].mxu0
        %2958 = vmatprep.mubr.bf16.mxu0 0
        %2959 = vmatmul.mubr.bf16.gmra.mrb[0].mxu0 %v2333
        %v2960 = vpop.f32.mrb[0].mxu0
        %v2961 = vadd.f32 %v2720, %v2960
        %v2962 = vpop.f32.mrb[0].mxu0
        %v2963 = vpop.f32.mrb[0].mxu0
        %v2964 = vadd.f32 %v2723, %v2963
        %v2965 = vpop.f32.mrb[0].mxu0
        %2966 = vmatprep.mubr.bf16.mxu0 0
        %2967 = vmatmul.mubr.bf16.gmra.mrb[0].mxu0 %v2336
        %v2968 = vpop.f32.mrb[0].mxu0
        %v2969 = vadd.f32 %v2728, %v2968
        %v2970 = vpop.f32.mrb[0].mxu0
        %v2971 = vpop.f32.mrb[0].mxu0
        %v2972 = vadd.f32 %v2731, %v2971
        %v2973 = vpop.f32.mrb[0].mxu0
        %2974 = vmatprep.mubr.bf16.mxu0 0
        %2975 = vmatmul.mubr.bf16.gmra.mrb[0].mxu0 %v2339
        %v2976 = vpop.f32.mrb[0].mxu0
        %v2977 = vadd.f32 %v2736, %v2976
        %v2978 = vpop.f32.mrb[0].mxu0
        %v2979 = vpop.f32.mrb[0].mxu0
        %v2980 = vadd.f32 %v2739, %v2979
        %v2981 = vpop.f32.mrb[0].mxu0
        %2982 = vmatprep.mubr.bf16.mxu0 0
        %2983 = vmatmul.mubr.bf16.gmra.mrb[0].mxu0 %v2342
        %v2984 = vpop.f32.mrb[0].mxu0
        %v2985 = vadd.f32 %v2744, %v2984
        %v2986 = vpop.f32.mrb[0].mxu0
        %v2987 = vpop.f32.mrb[0].mxu0
        %v2988 = vadd.f32 %v2747, %v2987
        %v2989 = vpop.f32.mrb[0].mxu0
        %2990 = vmatprep.mubr.bf16.mxu0 0
        %2991 = vmatmul.mubr.bf16.gmra.mrb[0].mxu0 %v2345
        %v2992 = vpop.f32.mrb[0].mxu0
        %v2993 = vadd.f32 %v2752, %v2992
        %v2994 = vpop.f32.mrb[0].mxu0
        %v2995 = vpop.f32.mrb[0].mxu0
        %v2996 = vadd.f32 %v2755, %v2995
        %v2997 = vpop.f32.mrb[0].mxu0
        %2998 = vmatprep.mubr.bf16.mxu0 0
        %2999 = vmatmul.mubr.bf16.gmra.mrb[0].mxu0 %v2348
        %v3000 = vpop.f32.mrb[0].mxu0
        %v3001 = vadd.f32 %v2760, %v3000
        %v3002 = vpop.f32.mrb[0].mxu0
        %v3003 = vpop.f32.mrb[0].mxu0
        %v3004 = vadd.f32 %v2763, %v3003
        %v3005 = vpop.f32.mrb[0].mxu0
        %3006 = vmatprep.mubr.bf16.mxu0 0
        %3007 = vmatmul.mubr.bf16.gmra.mrb[0].mxu0 %v2351
        %v3008 = vpop.f32.mrb[0].mxu0
        %v3009 = vadd.f32 %v2768, %v3008
        %v3010 = vpop.f32.mrb[0].mxu0
        %v3011 = vpop.f32.mrb[0].mxu0
        %v3012 = vadd.f32 %v2771, %v3011
        %v3013 = vpop.f32.mrb[0].mxu0
        %3014 = vmatprep.mubr.bf16.mxu0 0
        %3015 = vmatmul.mubr.bf16.gmra.mrb[0].mxu0 %v2354
        %v3016 = vpop.f32.mrb[0].mxu0
        %v3017 = vadd.f32 %v2776, %v3016
        %v3018 = vpop.f32.mrb[0].mxu0
        %v3019 = vpop.f32.mrb[0].mxu0
        %v3020 = vadd.f32 %v2779, %v3019
        %v3021 = vpop.f32.mrb[0].mxu0
        %3022 = vmatprep.mubr.bf16.mxu0 0
        %3023 = vmatmul.mubr.bf16.gmra.mrb[0].mxu0 %v2357
        %v3024 = vpop.f32.mrb[0].mxu0
        %v3025 = vadd.f32 %v2784, %v3024
        %v3026 = vpop.f32.mrb[0].mxu0
        %v3027 = vpop.f32.mrb[0].mxu0
        %v3028 = vadd.f32 %v2787, %v3027
        %v3029 = vpop.f32.mrb[0].mxu0
        %3030 = vmatprep.mubr.bf16.mxu0 0
        %3031 = vmatmul.mubr.bf16.gmra.mrb[0].mxu0 %v2360
        %v3032 = vpop.f32.mrb[0].mxu0
        %v3033 = vadd.f32 %v2792, %v3032
        %v3034 = vpop.f32.mrb[0].mxu0
        %v3035 = vpop.f32.mrb[0].mxu0
        %v3036 = vadd.f32 %v2795, %v3035
        %v3037 = vpop.f32.mrb[0].mxu0
        %3038 = vmatprep.mubr.bf16.mxu0 0
        %3039 = vmatmul.mubr.bf16.gmra.mrb[0].mxu0 %v2363
        %v3040 = vpop.f32.mrb[0].mxu0
        %v3041 = vadd.f32 %v2800, %v3040
        %v3042 = vpop.f32.mrb[0].mxu0
        %v3043 = vpop.f32.mrb[0].mxu0
        %v3044 = vadd.f32 %v2803, %v3043
        %v3045 = vpop.f32.mrb[0].mxu0
        %3046 = vmatprep.mubr.bf16.mxu0 0
        %3047 = vmatmul.mubr.bf16.gmra.mrb[0].mxu0 %v2366
        %v3048 = vpop.f32.mrb[0].mxu0
        %v3049 = vadd.f32 %v2808, %v3048
        %v3050 = vpop.f32.mrb[0].mxu0
        %v3051 = vpop.f32.mrb[0].mxu0
        %v3052 = vadd.f32 %v2811, %v3051
        %v3053 = vpop.f32.mrb[0].mxu0
        %3054 = vmatprep.mubr.bf16.mxu0 0
        %3055 = vmatmul.mubr.bf16.gmra.mrb[0].mxu0 %v2369
        %v3056 = vpop.f32.mrb[0].mxu0
        %v3057 = vadd.f32 %v2816, %v3056
        %v3058 = vpop.f32.mrb[0].mxu0
        %v3059 = vpop.f32.mrb[0].mxu0
        %v3060 = vadd.f32 %v2819, %v3059
        %v3061 = vpop.f32.mrb[0].mxu0
        %3062 = vmatprep.mubr.bf16.mxu0 0
        %3063 = vmatmul.mubr.bf16.gmra.mrb[0].mxu0 %v2372
        %v3064 = vpop.f32.mrb[0].mxu0
        %v3065 = vadd.f32 %v2824, %v3064
        %v3066 = vpop.f32.mrb[0].mxu0
        %v3067 = vpop.f32.mrb[0].mxu0
        %v3068 = vadd.f32 %v2827, %v3067
        %v3069 = vpop.f32.mrb[0].mxu0
        %3070 = vmatprep.mubr.bf16.mxu0 0
        %3071 = vmatmul.mubr.bf16.gmra.mrb[0].mxu0 %v2375
        %v3072 = vpop.f32.mrb[0].mxu0
        %v3073 = vadd.f32 %v2832, %v3072
        %v3074 = vpop.f32.mrb[0].mxu0
        %v3075 = vpop.f32.mrb[0].mxu0
        %v3076 = vadd.f32 %v2835, %v3075
        %v3077 = vpop.f32.mrb[0].mxu0
        %3078 = vmatprep.mubr.bf16.mxu0 0
        %3079 = vmatmul.mubr.bf16.gmra.mrb[0].mxu0 %v2378
        %v3080 = vpop.f32.mrb[0].mxu0
        %v3081 = vadd.f32 %v2840, %v3080
        %v3082 = vpop.f32.mrb[0].mxu0
        %v3083 = vpop.f32.mrb[0].mxu0
        %v3084 = vadd.f32 %v2843, %v3083
        %v3085 = vpop.f32.mrb[0].mxu0
        %3086 = vmatprep.mubr.bf16.mxu0 0
        %3087 = vmatmul.mubr.bf16.gmra.mrb[0].mxu0 %v2381
        %v3088 = vpop.f32.mrb[0].mxu0
        %v3089 = vadd.f32 %v2848, %v3088
        %v3090 = vpop.f32.mrb[0].mxu0
        %v3091 = vpop.f32.mrb[0].mxu0
        %v3092 = vadd.f32 %v2851, %v3091
        %v3093 = vpop.f32.mrb[0].mxu0
        %3094 = vmatprep.mubr.bf16.mxu0 0
        %3095 = vmatmul.mubr.bf16.gmra.mrb[0].mxu0 %v2384
        %v3096 = vpop.f32.mrb[0].mxu0
        %v3097 = vadd.f32 %v2856, %v3096
        %v3098 = vpop.f32.mrb[0].mxu0
        %v3099 = vpop.f32.mrb[0].mxu0
        %v3100 = vadd.f32 %v2859, %v3099
        %v3101 = vpop.f32.mrb[0].mxu0
        %3102 = vmatprep.mubr.bf16.mxu0 0
        %3103 = vmatmul.mubr.bf16.gmra.mrb[0].mxu0 %v2387
        %v3104 = vpop.f32.mrb[0].mxu0
        %v3105 = vadd.f32 %v2864, %v3104
        %v3106 = vpop.f32.mrb[0].mxu0
        %v3107 = vpop.f32.mrb[0].mxu0
        %v3108 = vpop.f32.mrb[0].mxu0
        %3109 = vmatprep.mubr.bf16.mxu0 0
        %3110 = vmatmul.mubr.bf16.gmra.mrb[0].mxu0 %v2390
        %v3111 = vpop.f32.mrb[0].mxu0
        %v3112 = vpop.f32.mrb[0].mxu0
        %v3113 = vpop.f32.mrb[0].mxu0
        %v3114 = vpop.f32.mrb[0].mxu0
        %3115 = vdwg.mxu0
        %s3116 = scalar_lea.vmem %s2, 20
        %v3117 = vld [vmem:[%s3116] sm:$0xf]
        %v3119 = vsel %vm1945, %v3117, 0
        %3121 = vmatprep.subr.bf16.mxu0 0
        %3122 = vmatpush1.bf16.msra.mxu0 %v3119
        %3123 = vmatprep.subr.bf16.mxu0 0
        %3124 = vmatpush1.bf16.msra.mxu0 0
        %3125 = vmatprep.subr.bf16.mxu0 0
        %3126 = vmatpush1.bf16.msra.mxu0 0
        %3127 = vmatprep.subr.bf16.mxu0 0
        %3128 = vmatpush1.bf16.msra.mxu0 0
        %3129 = vmatprep.subr.bf16.mxu0 0
        %3130 = vmatpush1.bf16.msra.mxu0 0
        %3131 = vmatprep.subr.bf16.mxu0 0
        %3132 = vmatpush1.bf16.msra.mxu0 0
        %3133 = vmatprep.subr.bf16.mxu0 0
        %3134 = vmatpush1.bf16.msra.mxu0 0
        %3135 = vmatprep.subr.bf16.mxu0 0
        %3136 = vmatpush1.bf16.msra.mxu0 0
        %3137 = vmatprep.subr.bf16.mxu0 0
        %3138 = vmatpush1.bf16.msra.mxu0 0
        %3139 = vmatprep.subr.bf16.mxu0 0
        %3140 = vmatpush1.bf16.msra.mxu0 0
        %3141 = vmatprep.subr.bf16.mxu0 0
        %3142 = vmatpush1.bf16.msra.mxu0 0
        %3143 = vmatprep.subr.bf16.mxu0 0
        %3144 = vmatpush1.bf16.msra.mxu0 0
        %3145 = vmatprep.subr.bf16.mxu0 0
        %3146 = vmatpush1.bf16.msra.mxu0 0
        %3147 = vmatprep.subr.bf16.mxu0 0
        %3148 = vmatpush1.bf16.msra.mxu0 0
        %3149 = vmatprep.subr.bf16.mxu0 0
        %3150 = vmatpush1.bf16.msra.mxu0 0
        %3151 = vmatprep.subr.bf16.mxu0 0
        %3152 = vmatpush1.bf16.msra.mxu0 0
        %3153 = vmatprep.mubr.bf16.mxu0 0
        %3154 = vmatmul.mubr.bf16.gmra.mrb[0].mxu0 %v1868
        %v3155 = vpop.f32.mrb[0].mxu0
        %v3156 = vadd.f32 0.0, %v3155
        %v3157 = vpop.f32.mrb[0].mxu0
        %v3158 = vpop.f32.mrb[0].mxu0
        %v3159 = vadd.f32 0.0, %v3158
        %v3160 = vpop.f32.mrb[0].mxu0
        %3161 = vmatprep.mubr.bf16.mxu0 0
        %3162 = vmatmul.mubr.bf16.gmra.mrb[0].mxu0 %v1871
        %v3163 = vpop.f32.mrb[0].mxu0
        %v3164 = vadd.f32 0.0, %v3163
        %v3165 = vpop.f32.mrb[0].mxu0
        %v3166 = vpop.f32.mrb[0].mxu0
        %v3167 = vadd.f32 0.0, %v3166
        %v3168 = vpop.f32.mrb[0].mxu0
        %3169 = vmatprep.mubr.bf16.mxu0 0
        %3170 = vmatmul.mubr.bf16.gmra.mrb[0].mxu0 %v1874
        %v3171 = vpop.f32.mrb[0].mxu0
        %v3172 = vadd.f32 0.0, %v3171
        %v3173 = vpop.f32.mrb[0].mxu0
        %v3174 = vpop.f32.mrb[0].mxu0
        %v3175 = vadd.f32 0.0, %v3174
        %v3176 = vpop.f32.mrb[0].mxu0
        %3177 = vmatprep.mubr.bf16.mxu0 0
        %3178 = vmatmul.mubr.bf16.gmra.mrb[0].mxu0 %v1877
        %v3179 = vpop.f32.mrb[0].mxu0
        %v3180 = vadd.f32 0.0, %v3179
        %v3181 = vpop.f32.mrb[0].mxu0
        %v3182 = vpop.f32.mrb[0].mxu0
        %v3183 = vadd.f32 0.0, %v3182
        %v3184 = vpop.f32.mrb[0].mxu0
        %3185 = vmatprep.mubr.bf16.mxu0 0
        %3186 = vmatmul.mubr.bf16.gmra.mrb[0].mxu0 %v1880
        %v3187 = vpop.f32.mrb[0].mxu0
        %v3188 = vadd.f32 0.0, %v3187
        %v3189 = vpop.f32.mrb[0].mxu0
        %v3190 = vpop.f32.mrb[0].mxu0
        %v3191 = vadd.f32 0.0, %v3190
        %v3192 = vpop.f32.mrb[0].mxu0
        %3193 = vmatprep.mubr.bf16.mxu0 0
        %3194 = vmatmul.mubr.bf16.gmra.mrb[0].mxu0 %v1883
        %v3195 = vpop.f32.mrb[0].mxu0
        %v3196 = vadd.f32 0.0, %v3195
        %v3197 = vpop.f32.mrb[0].mxu0
        %v3198 = vpop.f32.mrb[0].mxu0
        %v3199 = vadd.f32 0.0, %v3198
        %v3200 = vpop.f32.mrb[0].mxu0
        %3201 = vmatprep.mubr.bf16.mxu0 0
        %3202 = vmatmul.mubr.bf16.gmra.mrb[0].mxu0 %v1886
        %v3203 = vpop.f32.mrb[0].mxu0
        %v3204 = vadd.f32 0.0, %v3203
        %v3205 = vpop.f32.mrb[0].mxu0
        %v3206 = vpop.f32.mrb[0].mxu0
        %v3207 = vadd.f32 0.0, %v3206
        %v3208 = vpop.f32.mrb[0].mxu0
        %3209 = vmatprep.mubr.bf16.mxu0 0
        %3210 = vmatmul.mubr.bf16.gmra.mrb[0].mxu0 %v1889
        %v3211 = vpop.f32.mrb[0].mxu0
        %v3212 = vadd.f32 0.0, %v3211
        %v3213 = vpop.f32.mrb[0].mxu0
        %v3214 = vpop.f32.mrb[0].mxu0
        %v3215 = vadd.f32 0.0, %v3214
        %v3216 = vpop.f32.mrb[0].mxu0
        %3217 = vmatprep.mubr.bf16.mxu0 0
        %3218 = vmatmul.mubr.bf16.gmra.mrb[0].mxu0 %v1892
        %v3219 = vpop.f32.mrb[0].mxu0
        %v3220 = vadd.f32 0.0, %v3219
        %v3221 = vpop.f32.mrb[0].mxu0
        %v3222 = vpop.f32.mrb[0].mxu0
        %v3223 = vadd.f32 0.0, %v3222
        %v3224 = vpop.f32.mrb[0].mxu0
        %3225 = vmatprep.mubr.bf16.mxu0 0
        %3226 = vmatmul.mubr.bf16.gmra.mrb[0].mxu0 %v1895
        %v3227 = vpop.f32.mrb[0].mxu0
        %v3228 = vadd.f32 0.0, %v3227
        %v3229 = vpop.f32.mrb[0].mxu0
        %v3230 = vpop.f32.mrb[0].mxu0
        %v3231 = vadd.f32 0.0, %v3230
        %v3232 = vpop.f32.mrb[0].mxu0
        %3233 = vmatprep.mubr.bf16.mxu0 0
        %3234 = vmatmul.mubr.bf16.gmra.mrb[0].mxu0 %v1898
        %v3235 = vpop.f32.mrb[0].mxu0
        %v3236 = vadd.f32 0.0, %v3235
        %v3237 = vpop.f32.mrb[0].mxu0
        %v3238 = vpop.f32.mrb[0].mxu0
        %v3239 = vadd.f32 0.0, %v3238
        %v3240 = vpop.f32.mrb[0].mxu0
        %3241 = vmatprep.mubr.bf16.mxu0 0
        %3242 = vmatmul.mubr.bf16.gmra.mrb[0].mxu0 %v1901
        %v3243 = vpop.f32.mrb[0].mxu0
        %v3244 = vadd.f32 0.0, %v3243
        %v3245 = vpop.f32.mrb[0].mxu0
        %v3246 = vpop.f32.mrb[0].mxu0
        %v3247 = vadd.f32 0.0, %v3246
        %v3248 = vpop.f32.mrb[0].mxu0
        %3249 = vmatprep.mubr.bf16.mxu0 0
        %3250 = vmatmul.mubr.bf16.gmra.mrb[0].mxu0 %v1904
        %v3251 = vpop.f32.mrb[0].mxu0
        %v3252 = vadd.f32 0.0, %v3251
        %v3253 = vpop.f32.mrb[0].mxu0
        %v3254 = vpop.f32.mrb[0].mxu0
        %v3255 = vadd.f32 0.0, %v3254
        %v3256 = vpop.f32.mrb[0].mxu0
        %3257 = vmatprep.mubr.bf16.mxu0 0
        %3258 = vmatmul.mubr.bf16.gmra.mrb[0].mxu0 %v1907
        %v3259 = vpop.f32.mrb[0].mxu0
        %v3260 = vadd.f32 0.0, %v3259
        %v3261 = vpop.f32.mrb[0].mxu0
        %v3262 = vpop.f32.mrb[0].mxu0
        %v3263 = vadd.f32 0.0, %v3262
        %v3264 = vpop.f32.mrb[0].mxu0
        %3265 = vmatprep.mubr.bf16.mxu0 0
        %3266 = vmatmul.mubr.bf16.gmra.mrb[0].mxu0 %v1910
        %v3267 = vpop.f32.mrb[0].mxu0
        %v3268 = vadd.f32 0.0, %v3267
        %v3269 = vpop.f32.mrb[0].mxu0
        %v3270 = vpop.f32.mrb[0].mxu0
        %v3271 = vadd.f32 0.0, %v3270
        %v3272 = vpop.f32.mrb[0].mxu0
        %3273 = vmatprep.mubr.bf16.mxu0 0
        %3274 = vmatmul.mubr.bf16.gmra.mrb[0].mxu0 %v1913
        %v3275 = vpop.f32.mrb[0].mxu0
        %v3276 = vadd.f32 0.0, %v3275
        %v3277 = vpop.f32.mrb[0].mxu0
        %v3278 = vpop.f32.mrb[0].mxu0
        %v3279 = vadd.f32 0.0, %v3278
        %v3280 = vpop.f32.mrb[0].mxu0
        %3281 = vmatprep.mubr.bf16.mxu0 0
        %3282 = vmatmul.mubr.bf16.gmra.mrb[0].mxu0 %v1916
        %v3283 = vpop.f32.mrb[0].mxu0
        %v3284 = vadd.f32 0.0, %v3283
        %v3285 = vpop.f32.mrb[0].mxu0
        %v3286 = vpop.f32.mrb[0].mxu0
        %v3287 = vadd.f32 0.0, %v3286
        %v3288 = vpop.f32.mrb[0].mxu0
        %3289 = vmatprep.mubr.bf16.mxu0 0
        %3290 = vmatmul.mubr.bf16.gmra.mrb[0].mxu0 %v1919
        %v3291 = vpop.f32.mrb[0].mxu0
        %v3292 = vadd.f32 0.0, %v3291
        %v3293 = vpop.f32.mrb[0].mxu0
        %v3294 = vpop.f32.mrb[0].mxu0
        %v3295 = vadd.f32 0.0, %v3294
        %v3296 = vpop.f32.mrb[0].mxu0
        %3297 = vmatprep.mubr.bf16.mxu0 0
        %3298 = vmatmul.mubr.bf16.gmra.mrb[0].mxu0 %v1922
        %v3299 = vpop.f32.mrb[0].mxu0
        %v3300 = vadd.f32 0.0, %v3299
        %v3301 = vpop.f32.mrb[0].mxu0
        %v3302 = vpop.f32.mrb[0].mxu0
        %v3303 = vadd.f32 0.0, %v3302
        %v3304 = vpop.f32.mrb[0].mxu0
        %3305 = vmatprep.mubr.bf16.mxu0 0
        %3306 = vmatmul.mubr.bf16.gmra.mrb[0].mxu0 %v1925
        %v3307 = vpop.f32.mrb[0].mxu0
        %v3308 = vadd.f32 0.0, %v3307
        %v3309 = vpop.f32.mrb[0].mxu0
        %v3310 = vpop.f32.mrb[0].mxu0
        %v3311 = vadd.f32 0.0, %v3310
        %v3312 = vpop.f32.mrb[0].mxu0
        %3313 = vmatprep.mubr.bf16.mxu0 0
        %3314 = vmatmul.mubr.bf16.gmra.mrb[0].mxu0 %v1928
        %v3315 = vpop.f32.mrb[0].mxu0
        %v3316 = vadd.f32 0.0, %v3315
        %v3317 = vpop.f32.mrb[0].mxu0
        %v3318 = vpop.f32.mrb[0].mxu0
        %v3319 = vadd.f32 0.0, %v3318
        %v3320 = vpop.f32.mrb[0].mxu0
        %3321 = vmatprep.mubr.bf16.mxu0 0
        %3322 = vmatmul.mubr.bf16.gmra.mrb[0].mxu0 %v1931
        %v3323 = vpop.f32.mrb[0].mxu0
        %v3324 = vadd.f32 0.0, %v3323
        %v3325 = vpop.f32.mrb[0].mxu0
        %v3326 = vpop.f32.mrb[0].mxu0
        %v3327 = vadd.f32 0.0, %v3326
        %v3328 = vpop.f32.mrb[0].mxu0
        %3329 = vmatprep.mubr.bf16.mxu0 0
        %3330 = vmatmul.mubr.bf16.gmra.mrb[0].mxu0 %v1934
        %v3331 = vpop.f32.mrb[0].mxu0
        %v3332 = vadd.f32 0.0, %v3331
        %v3333 = vpop.f32.mrb[0].mxu0
        %v3334 = vpop.f32.mrb[0].mxu0
        %v3335 = vadd.f32 0.0, %v3334
        %v3336 = vpop.f32.mrb[0].mxu0
        %3337 = vmatprep.mubr.bf16.mxu0 0
        %3338 = vmatmul.mubr.bf16.gmra.mrb[0].mxu0 %v1937
        %v3339 = vpop.f32.mrb[0].mxu0
        %v3340 = vadd.f32 0.0, %v3339
        %v3341 = vpop.f32.mrb[0].mxu0
        %v3342 = vpop.f32.mrb[0].mxu0
        %v3343 = vadd.f32 0.0, %v3342
        %v3344 = vpop.f32.mrb[0].mxu0
        %3345 = vmatprep.mubr.bf16.mxu0 0
        %3346 = vmatmul.mubr.bf16.gmra.mrb[0].mxu0 %v1940
        %v3347 = vpop.f32.mrb[0].mxu0
        %v3348 = vadd.f32 0.0, %v3347
        %v3349 = vpop.f32.mrb[0].mxu0
        %v3350 = vpop.f32.mrb[0].mxu0
        %v3351 = vpop.f32.mrb[0].mxu0
        %3352 = vmatprep.mubr.bf16.mxu0 0
        %3353 = vmatmul.mubr.bf16.gmra.mrb[0].mxu0 %v1943
        %v3354 = vpop.f32.mrb[0].mxu0
        %v3355 = vpop.f32.mrb[0].mxu0
        %v3356 = vpop.f32.mrb[0].mxu0
        %v3357 = vpop.f32.mrb[0].mxu0
        %3358 = vdwg.mxu0
        %v3360 = vsel %vm1945, %v1684, 0
        %3362 = vmatprep.subr.bf16.mxu0 0
        %3363 = vmatpush1.bf16.msra.mxu0 %v3360
        %3364 = vmatprep.subr.bf16.mxu0 0
        %3365 = vmatpush1.bf16.msra.mxu0 0
        %3366 = vmatprep.subr.bf16.mxu0 0
        %3367 = vmatpush1.bf16.msra.mxu0 0
        %3368 = vmatprep.subr.bf16.mxu0 0
        %3369 = vmatpush1.bf16.msra.mxu0 0
        %3370 = vmatprep.subr.bf16.mxu0 0
        %3371 = vmatpush1.bf16.msra.mxu0 0
        %3372 = vmatprep.subr.bf16.mxu0 0
        %3373 = vmatpush1.bf16.msra.mxu0 0
        %3374 = vmatprep.subr.bf16.mxu0 0
        %3375 = vmatpush1.bf16.msra.mxu0 0
        %3376 = vmatprep.subr.bf16.mxu0 0
        %3377 = vmatpush1.bf16.msra.mxu0 0
        %3378 = vmatprep.subr.bf16.mxu0 0
        %3379 = vmatpush1.bf16.msra.mxu0 0
        %3380 = vmatprep.subr.bf16.mxu0 0
        %3381 = vmatpush1.bf16.msra.mxu0 0
        %3382 = vmatprep.subr.bf16.mxu0 0
        %3383 = vmatpush1.bf16.msra.mxu0 0
        %3384 = vmatprep.subr.bf16.mxu0 0
        %3385 = vmatpush1.bf16.msra.mxu0 0
        %3386 = vmatprep.subr.bf16.mxu0 0
        %3387 = vmatpush1.bf16.msra.mxu0 0
        %3388 = vmatprep.subr.bf16.mxu0 0
        %3389 = vmatpush1.bf16.msra.mxu0 0
        %3390 = vmatprep.subr.bf16.mxu0 0
        %3391 = vmatpush1.bf16.msra.mxu0 0
        %3392 = vmatprep.subr.bf16.mxu0 0
        %3393 = vmatpush1.bf16.msra.mxu0 0
        %3394 = vmatprep.mubr.bf16.mxu0 0
        %3395 = vmatmul.mubr.bf16.gmra.mrb[0].mxu0 %v2315
        %v3396 = vpop.f32.mrb[0].mxu0
        %v3397 = vadd.f32 %v3156, %v3396
        %v3398 = vpop.f32.mrb[0].mxu0
        %v3399 = vpop.f32.mrb[0].mxu0
        %v3400 = vadd.f32 %v3159, %v3399
        %v3401 = vpop.f32.mrb[0].mxu0
        %3402 = vmatprep.mubr.bf16.mxu0 0
        %3403 = vmatmul.mubr.bf16.gmra.mrb[0].mxu0 %v2318
        %v3404 = vpop.f32.mrb[0].mxu0
        %v3405 = vadd.f32 %v3164, %v3404
        %v3406 = vpop.f32.mrb[0].mxu0
        %v3407 = vpop.f32.mrb[0].mxu0
        %v3408 = vadd.f32 %v3167, %v3407
        %v3409 = vpop.f32.mrb[0].mxu0
        %3410 = vmatprep.mubr.bf16.mxu0 0
        %3411 = vmatmul.mubr.bf16.gmra.mrb[0].mxu0 %v2321
        %v3412 = vpop.f32.mrb[0].mxu0
        %v3413 = vadd.f32 %v3172, %v3412
        %v3414 = vpop.f32.mrb[0].mxu0
        %v3415 = vpop.f32.mrb[0].mxu0
        %v3416 = vadd.f32 %v3175, %v3415
        %v3417 = vpop.f32.mrb[0].mxu0
        %3418 = vmatprep.mubr.bf16.mxu0 0
        %3419 = vmatmul.mubr.bf16.gmra.mrb[0].mxu0 %v2324
        %v3420 = vpop.f32.mrb[0].mxu0
        %v3421 = vadd.f32 %v3180, %v3420
        %v3422 = vpop.f32.mrb[0].mxu0
        %v3423 = vpop.f32.mrb[0].mxu0
        %v3424 = vadd.f32 %v3183, %v3423
        %v3425 = vpop.f32.mrb[0].mxu0
        %3426 = vmatprep.mubr.bf16.mxu0 0
        %3427 = vmatmul.mubr.bf16.gmra.mrb[0].mxu0 %v2327
        %v3428 = vpop.f32.mrb[0].mxu0
        %v3429 = vadd.f32 %v3188, %v3428
        %v3430 = vpop.f32.mrb[0].mxu0
        %v3431 = vpop.f32.mrb[0].mxu0
        %v3432 = vadd.f32 %v3191, %v3431
        %v3433 = vpop.f32.mrb[0].mxu0
        %3434 = vmatprep.mubr.bf16.mxu0 0
        %3435 = vmatmul.mubr.bf16.gmra.mrb[0].mxu0 %v2330
        %v3436 = vpop.f32.mrb[0].mxu0
        %v3437 = vadd.f32 %v3196, %v3436
        %v3438 = vpop.f32.mrb[0].mxu0
        %v3439 = vpop.f32.mrb[0].mxu0
        %v3440 = vadd.f32 %v3199, %v3439
        %v3441 = vpop.f32.mrb[0].mxu0
        %3442 = vmatprep.mubr.bf16.mxu0 0
        %3443 = vmatmul.mubr.bf16.gmra.mrb[0].mxu0 %v2333
        %v3444 = vpop.f32.mrb[0].mxu0
        %v3445 = vadd.f32 %v3204, %v3444
        %v3446 = vpop.f32.mrb[0].mxu0
        %v3447 = vpop.f32.mrb[0].mxu0
        %v3448 = vadd.f32 %v3207, %v3447
        %v3449 = vpop.f32.mrb[0].mxu0
        %3450 = vmatprep.mubr.bf16.mxu0 0
        %3451 = vmatmul.mubr.bf16.gmra.mrb[0].mxu0 %v2336
        %v3452 = vpop.f32.mrb[0].mxu0
        %v3453 = vadd.f32 %v3212, %v3452
        %v3454 = vpop.f32.mrb[0].mxu0
        %v3455 = vpop.f32.mrb[0].mxu0
        %v3456 = vadd.f32 %v3215, %v3455
        %v3457 = vpop.f32.mrb[0].mxu0
        %3458 = vmatprep.mubr.bf16.mxu0 0
        %3459 = vmatmul.mubr.bf16.gmra.mrb[0].mxu0 %v2339
        %v3460 = vpop.f32.mrb[0].mxu0
        %v3461 = vadd.f32 %v3220, %v3460
        %v3462 = vpop.f32.mrb[0].mxu0
        %v3463 = vpop.f32.mrb[0].mxu0
        %v3464 = vadd.f32 %v3223, %v3463
        %v3465 = vpop.f32.mrb[0].mxu0
        %3466 = vmatprep.mubr.bf16.mxu0 0
        %3467 = vmatmul.mubr.bf16.gmra.mrb[0].mxu0 %v2342
        %v3468 = vpop.f32.mrb[0].mxu0
        %v3469 = vadd.f32 %v3228, %v3468
        %v3470 = vpop.f32.mrb[0].mxu0
        %v3471 = vpop.f32.mrb[0].mxu0
        %v3472 = vadd.f32 %v3231, %v3471
        %v3473 = vpop.f32.mrb[0].mxu0
        %3474 = vmatprep.mubr.bf16.mxu0 0
        %3475 = vmatmul.mubr.bf16.gmra.mrb[0].mxu0 %v2345
        %v3476 = vpop.f32.mrb[0].mxu0
        %v3477 = vadd.f32 %v3236, %v3476
        %v3478 = vpop.f32.mrb[0].mxu0
        %v3479 = vpop.f32.mrb[0].mxu0
        %v3480 = vadd.f32 %v3239, %v3479
        %v3481 = vpop.f32.mrb[0].mxu0
        %3482 = vmatprep.mubr.bf16.mxu0 0
        %3483 = vmatmul.mubr.bf16.gmra.mrb[0].mxu0 %v2348
        %v3484 = vpop.f32.mrb[0].mxu0
        %v3485 = vadd.f32 %v3244, %v3484
        %v3486 = vpop.f32.mrb[0].mxu0
        %v3487 = vpop.f32.mrb[0].mxu0
        %v3488 = vadd.f32 %v3247, %v3487
        %v3489 = vpop.f32.mrb[0].mxu0
        %3490 = vmatprep.mubr.bf16.mxu0 0
        %3491 = vmatmul.mubr.bf16.gmra.mrb[0].mxu0 %v2351
        %v3492 = vpop.f32.mrb[0].mxu0
        %v3493 = vadd.f32 %v3252, %v3492
        %v3494 = vpop.f32.mrb[0].mxu0
        %v3495 = vpop.f32.mrb[0].mxu0
        %v3496 = vadd.f32 %v3255, %v3495
        %v3497 = vpop.f32.mrb[0].mxu0
        %3498 = vmatprep.mubr.bf16.mxu0 0
        %3499 = vmatmul.mubr.bf16.gmra.mrb[0].mxu0 %v2354
        %v3500 = vpop.f32.mrb[0].mxu0
        %v3501 = vadd.f32 %v3260, %v3500
        %v3502 = vpop.f32.mrb[0].mxu0
        %v3503 = vpop.f32.mrb[0].mxu0
        %v3504 = vadd.f32 %v3263, %v3503
        %v3505 = vpop.f32.mrb[0].mxu0
        %3506 = vmatprep.mubr.bf16.mxu0 0
        %3507 = vmatmul.mubr.bf16.gmra.mrb[0].mxu0 %v2357
        %v3508 = vpop.f32.mrb[0].mxu0
        %v3509 = vadd.f32 %v3268, %v3508
        %v3510 = vpop.f32.mrb[0].mxu0
        %v3511 = vpop.f32.mrb[0].mxu0
        %v3512 = vadd.f32 %v3271, %v3511
        %v3513 = vpop.f32.mrb[0].mxu0
        %3514 = vmatprep.mubr.bf16.mxu0 0
        %3515 = vmatmul.mubr.bf16.gmra.mrb[0].mxu0 %v2360
        %v3516 = vpop.f32.mrb[0].mxu0
        %v3517 = vadd.f32 %v3276, %v3516
        %v3518 = vpop.f32.mrb[0].mxu0
        %v3519 = vpop.f32.mrb[0].mxu0
        %v3520 = vadd.f32 %v3279, %v3519
        %v3521 = vpop.f32.mrb[0].mxu0
        %3522 = vmatprep.mubr.bf16.mxu0 0
        %3523 = vmatmul.mubr.bf16.gmra.mrb[0].mxu0 %v2363
        %v3524 = vpop.f32.mrb[0].mxu0
        %v3525 = vadd.f32 %v3284, %v3524
        %v3526 = vpop.f32.mrb[0].mxu0
        %v3527 = vpop.f32.mrb[0].mxu0
        %v3528 = vadd.f32 %v3287, %v3527
        %v3529 = vpop.f32.mrb[0].mxu0
        %3530 = vmatprep.mubr.bf16.mxu0 0
        %3531 = vmatmul.mubr.bf16.gmra.mrb[0].mxu0 %v2366
        %v3532 = vpop.f32.mrb[0].mxu0
        %v3533 = vadd.f32 %v3292, %v3532
        %v3534 = vpop.f32.mrb[0].mxu0
        %v3535 = vpop.f32.mrb[0].mxu0
        %v3536 = vadd.f32 %v3295, %v3535
        %v3537 = vpop.f32.mrb[0].mxu0
        %3538 = vmatprep.mubr.bf16.mxu0 0
        %3539 = vmatmul.mubr.bf16.gmra.mrb[0].mxu0 %v2369
        %v3540 = vpop.f32.mrb[0].mxu0
        %v3541 = vadd.f32 %v3300, %v3540
        %v3542 = vpop.f32.mrb[0].mxu0
        %v3543 = vpop.f32.mrb[0].mxu0
        %v3544 = vadd.f32 %v3303, %v3543
        %v3545 = vpop.f32.mrb[0].mxu0
        %3546 = vmatprep.mubr.bf16.mxu0 0
        %3547 = vmatmul.mubr.bf16.gmra.mrb[0].mxu0 %v2372
        %v3548 = vpop.f32.mrb[0].mxu0
        %v3549 = vadd.f32 %v3308, %v3548
        %v3550 = vpop.f32.mrb[0].mxu0
        %v3551 = vpop.f32.mrb[0].mxu0
        %v3552 = vadd.f32 %v3311, %v3551
        %v3553 = vpop.f32.mrb[0].mxu0
        %3554 = vmatprep.mubr.bf16.mxu0 0
        %3555 = vmatmul.mubr.bf16.gmra.mrb[0].mxu0 %v2375
        %v3556 = vpop.f32.mrb[0].mxu0
        %v3557 = vadd.f32 %v3316, %v3556
        %v3558 = vpop.f32.mrb[0].mxu0
        %v3559 = vpop.f32.mrb[0].mxu0
        %v3560 = vadd.f32 %v3319, %v3559
        %v3561 = vpop.f32.mrb[0].mxu0
        %3562 = vmatprep.mubr.bf16.mxu0 0
        %3563 = vmatmul.mubr.bf16.gmra.mrb[0].mxu0 %v2378
        %v3564 = vpop.f32.mrb[0].mxu0
        %v3565 = vadd.f32 %v3324, %v3564
        %v3566 = vpop.f32.mrb[0].mxu0
        %v3567 = vpop.f32.mrb[0].mxu0
        %v3568 = vadd.f32 %v3327, %v3567
        %v3569 = vpop.f32.mrb[0].mxu0
        %3570 = vmatprep.mubr.bf16.mxu0 0
        %3571 = vmatmul.mubr.bf16.gmra.mrb[0].mxu0 %v2381
        %v3572 = vpop.f32.mrb[0].mxu0
        %v3573 = vadd.f32 %v3332, %v3572
        %v3574 = vpop.f32.mrb[0].mxu0
        %v3575 = vpop.f32.mrb[0].mxu0
        %v3576 = vadd.f32 %v3335, %v3575
        %v3577 = vpop.f32.mrb[0].mxu0
        %3578 = vmatprep.mubr.bf16.mxu0 0
        %3579 = vmatmul.mubr.bf16.gmra.mrb[0].mxu0 %v2384
        %v3580 = vpop.f32.mrb[0].mxu0
        %v3581 = vadd.f32 %v3340, %v3580
        %v3582 = vpop.f32.mrb[0].mxu0
        %v3583 = vpop.f32.mrb[0].mxu0
        %v3584 = vadd.f32 %v3343, %v3583
        %v3585 = vpop.f32.mrb[0].mxu0
        %3586 = vmatprep.mubr.bf16.mxu0 0
        %3587 = vmatmul.mubr.bf16.gmra.mrb[0].mxu0 %v2387
        %v3588 = vpop.f32.mrb[0].mxu0
        %v3589 = vadd.f32 %v3348, %v3588
        %v3590 = vpop.f32.mrb[0].mxu0
        %v3591 = vpop.f32.mrb[0].mxu0
        %v3592 = vpop.f32.mrb[0].mxu0
        %3593 = vmatprep.mubr.bf16.mxu0 0
        %3594 = vmatmul.mubr.bf16.gmra.mrb[0].mxu0 %v2390
        %v3595 = vpop.f32.mrb[0].mxu0
        %v3596 = vpop.f32.mrb[0].mxu0
        %v3597 = vpop.f32.mrb[0].mxu0
        %v3598 = vpop.f32.mrb[0].mxu0
        %3599 = vdwg.mxu0
        %s3600 = scalar_lea.vmem [#allocation2], 24
        %v3601 = vld [vmem:[%s3600] sm:$0xf]
        %v3602 = vld [vmem:[%s3600 + $0x4] sm:$0xf]
        %v3603 = vld [vmem:[%s3600 + $0x8] sm:$0xf]
        %v3604 = vld [vmem:[%s3600 + $0xc] sm:$0xf]
        %v3605 = vld [vmem:[%s3600 + $0x10] sm:$0xf]
        %v3606 = vld [vmem:[%s3600 + $0x14] sm:$0xf]
        %v3607 = vld [vmem:[%s3600 + $0x18] sm:$0xf]
        %v3608 = vld [vmem:[%s3600 + $0x1c] sm:$0xf]
        %v3609 = vld [vmem:[%s3600 + $0x20] sm:$0xf]
        %v3610 = vld [vmem:[%s3600 + $0x24] sm:$0xf]
        %v3611 = vld [vmem:[%s3600 + $0x28] sm:$0xf]
        %v3612 = vld [vmem:[%s3600 + $0x2c] sm:$0xf]
        %v3613 = vld [vmem:[%s3600 + $0x30] sm:$0xf]
        %v3614 = vld [vmem:[%s3600 + $0x34] sm:$0xf]
        %v3615 = vld [vmem:[%s3600 + $0x38] sm:$0xf]
        %v3616 = vld [vmem:[%s3600 + $0x3c] sm:$0xf]
        %v3617 = vld [vmem:[%s3600 + $0x40] sm:$0xf]
        %v3618 = vld [vmem:[%s3600 + $0x44] sm:$0xf]
        %v3619 = vld [vmem:[%s3600 + $0x48] sm:$0xf]
        %v3620 = vld [vmem:[%s3600 + $0x4c] sm:$0xf]
        %v3621 = vld [vmem:[%s3600 + $0x50] sm:$0xf]
        %v3622 = vld [vmem:[%s3600 + $0x54] sm:$0xf]
        %v3623 = vld [vmem:[%s3600 + $0x58] sm:$0xf]
        %v3624 = vld [vmem:[%s3600 + $0x5c] sm:$0xf]
        %v3625 = vld [vmem:[%s3600 + $0x60] sm:$0xf]
        %v3626 = vld [vmem:[%s3600 + $0x64] sm:$0xf]
        %v3627 = vld [vmem:[%s3600 + $0x68] sm:$0xf]
        %v3628 = vld [vmem:[%s3600 + $0x6c] sm:$0xf]
        %v3629 = vld [vmem:[%s3600 + $0x70] sm:$0xf]
        %v3630 = vld [vmem:[%s3600 + $0x74] sm:$0xf]
        %v3631 = vld [vmem:[%s3600 + $0x78] sm:$0xf]
        %v3632 = vld [vmem:[%s3600 + $0x7c] sm:$0xf]
        %v3633 = vld [vmem:[%s3600 + $0x80] sm:$0xf]
        %v3634 = vld [vmem:[%s3600 + $0x84] sm:$0xf]
        %v3635 = vld [vmem:[%s3600 + $0x88] sm:$0xf]
        %v3636 = vld [vmem:[%s3600 + $0x8c] sm:$0xf]
        %v3637 = vld [vmem:[%s3600 + $0x90] sm:$0xf]
        %v3638 = vld [vmem:[%s3600 + $0x94] sm:$0xf]
        %v3639 = vld [vmem:[%s3600 + $0x98] sm:$0xf]
        %v3640 = vld [vmem:[%s3600 + $0x9c] sm:$0xf]
        %v3641 = vld [vmem:[%s3600 + $0xa0] sm:$0xf]
        %v3642 = vld [vmem:[%s3600 + $0xa4] sm:$0xf]
        %v3643 = vld [vmem:[%s3600 + $0xa8] sm:$0xf]
        %v3644 = vld [vmem:[%s3600 + $0xac] sm:$0xf]
        %v3645 = vld [vmem:[%s3600 + $0xb0] sm:$0xf]
        %v3646 = vld [vmem:[%s3600 + $0xb4] sm:$0xf]
        %v3647 = vld [vmem:[%s3600 + $0xb8] sm:$0xf]
        %v3648 = vld [vmem:[%s3600 + $0xbc] sm:$0xf]
        %v3649 = vld [vmem:[%s3600 + $0xc0] sm:$0xf]
        %v3650 = vld [vmem:[%s3600 + $0xc4] sm:$0xf]
        %v3651 = vld [vmem:[%s3600 + $0xc8] sm:$0xf]
        %s3652 = scalar_lea.vmem %s2, 24
        %v3653 = vld [vmem:[%s3652] sm:$0xf]
        %v3705 = vunpack.c.l.b16 %v3601
        %v3706 = vunpack.c.l.b16 %v3602
        %v3707 = vunpack.c.l.b16 %v3603
        %v3708 = vunpack.c.l.b16 %v3604
        %v3709 = vunpack.c.l.b16 %v3605
        %v3710 = vunpack.c.l.b16 %v3606
        %v3711 = vunpack.c.l.b16 %v3607
        %v3712 = vunpack.c.l.b16 %v3608
        %v3713 = vunpack.c.l.b16 %v3609
        %v3714 = vunpack.c.l.b16 %v3610
        %v3715 = vunpack.c.l.b16 %v3611
        %v3716 = vunpack.c.l.b16 %v3612
        %v3717 = vunpack.c.l.b16 %v3613
        %v3718 = vunpack.c.l.b16 %v3614
        %v3719 = vunpack.c.l.b16 %v3615
        %v3720 = vunpack.c.l.b16 %v3616
        %v3721 = vunpack.c.l.b16 %v3617
        %v3722 = vunpack.c.l.b16 %v3618
        %v3723 = vunpack.c.l.b16 %v3619
        %v3724 = vunpack.c.l.b16 %v3620
        %v3725 = vunpack.c.l.b16 %v3621
        %v3726 = vunpack.c.l.b16 %v3622
        %v3727 = vunpack.c.l.b16 %v3623
        %v3728 = vunpack.c.l.b16 %v3624
        %v3729 = vunpack.c.l.b16 %v3625
        %v3730 = vunpack.c.l.b16 %v3626
        %v3731 = vunpack.c.l.b16 %v3627
        %v3732 = vunpack.c.l.b16 %v3628
        %v3733 = vunpack.c.l.b16 %v3629
        %v3734 = vunpack.c.l.b16 %v3630
        %v3735 = vunpack.c.l.b16 %v3631
        %v3736 = vunpack.c.l.b16 %v3632
        %v3737 = vunpack.c.l.b16 %v3633
        %v3738 = vunpack.c.l.b16 %v3634
        %v3739 = vunpack.c.l.b16 %v3635
        %v3740 = vunpack.c.l.b16 %v3636
        %v3741 = vunpack.c.l.b16 %v3637
        %v3742 = vunpack.c.l.b16 %v3638
        %v3743 = vunpack.c.l.b16 %v3639
        %v3744 = vunpack.c.l.b16 %v3640
        %v3745 = vunpack.c.l.b16 %v3641
        %v3746 = vunpack.c.l.b16 %v3642
        %v3747 = vunpack.c.l.b16 %v3643
        %v3748 = vunpack.c.l.b16 %v3644
        %v3749 = vunpack.c.l.b16 %v3645
        %v3750 = vunpack.c.l.b16 %v3646
        %v3751 = vunpack.c.l.b16 %v3647
        %v3752 = vunpack.c.l.b16 %v3648
        %v3753 = vunpack.c.l.b16 %v3649
        %v3754 = vunpack.c.l.b16 %v3650
        %v3755 = vunpack.c.l.b16 %v3651
        %v3756 = vpack.c.b16 %v3706, %v3705
        %v3757 = vpack.c.b16 %v3708, %v3707
        %v3758 = vpack.c.b16 %v3710, %v3709
        %v3759 = vpack.c.b16 %v3712, %v3711
        %v3760 = vpack.c.b16 %v3714, %v3713
        %v3761 = vpack.c.b16 %v3716, %v3715
        %v3762 = vpack.c.b16 %v3718, %v3717
        %v3763 = vpack.c.b16 %v3720, %v3719
        %v3764 = vpack.c.b16 %v3722, %v3721
        %v3765 = vpack.c.b16 %v3724, %v3723
        %v3766 = vpack.c.b16 %v3726, %v3725
        %v3767 = vpack.c.b16 %v3728, %v3727
        %v3768 = vpack.c.b16 %v3730, %v3729
        %v3769 = vpack.c.b16 %v3732, %v3731
        %v3770 = vpack.c.b16 %v3734, %v3733
        %v3771 = vpack.c.b16 %v3736, %v3735
        %v3772 = vpack.c.b16 %v3738, %v3737
        %v3773 = vpack.c.b16 %v3740, %v3739
        %v3774 = vpack.c.b16 %v3742, %v3741
        %v3775 = vpack.c.b16 %v3744, %v3743
        %v3776 = vpack.c.b16 %v3746, %v3745
        %v3777 = vpack.c.b16 %v3748, %v3747
        %v3778 = vpack.c.b16 %v3750, %v3749
        %v3779 = vpack.c.b16 %v3752, %v3751
        %v3780 = vpack.c.b16 %v3754, %v3753
        %v3781 = vpack.c.b16 %v3755, %v3755
        %v3783 = vsel %vm1866, %v3756, 0
        %v3786 = vsel %vm1866, %v3757, 0
        %v3789 = vsel %vm1866, %v3758, 0
        %v3792 = vsel %vm1866, %v3759, 0
        %v3795 = vsel %vm1866, %v3760, 0
        %v3798 = vsel %vm1866, %v3761, 0
        %v3801 = vsel %vm1866, %v3762, 0
        %v3804 = vsel %vm1866, %v3763, 0
        %v3807 = vsel %vm1866, %v3764, 0
        %v3810 = vsel %vm1866, %v3765, 0
        %v3813 = vsel %vm1866, %v3766, 0
        %v3816 = vsel %vm1866, %v3767, 0
        %v3819 = vsel %vm1866, %v3768, 0
        %v3822 = vsel %vm1866, %v3769, 0
        %v3825 = vsel %vm1866, %v3770, 0
        %v3828 = vsel %vm1866, %v3771, 0
        %v3831 = vsel %vm1866, %v3772, 0
        %v3834 = vsel %vm1866, %v3773, 0
        %v3837 = vsel %vm1866, %v3774, 0
        %v3840 = vsel %vm1866, %v3775, 0
        %v3843 = vsel %vm1866, %v3776, 0
        %v3846 = vsel %vm1866, %v3777, 0
        %v3849 = vsel %vm1866, %v3778, 0
        %v3852 = vsel %vm1866, %v3779, 0
        %v3855 = vsel %vm1866, %v3780, 0
        %v3858 = vsel %vm1866, %v3781, 0
        %v3861 = vsel %vm1945, %v3653, 0
        %3863 = vmatprep.subr.bf16.mxu0 0
        %3864 = vmatpush1.bf16.msra.mxu0 %v3861
        %3865 = vmatprep.subr.bf16.mxu0 0
        %3866 = vmatpush1.bf16.msra.mxu0 0
        %3867 = vmatprep.subr.bf16.mxu0 0
        %3868 = vmatpush1.bf16.msra.mxu0 0
        %3869 = vmatprep.subr.bf16.mxu0 0
        %3870 = vmatpush1.bf16.msra.mxu0 0
        %3871 = vmatprep.subr.bf16.mxu0 0
        %3872 = vmatpush1.bf16.msra.mxu0 0
        %3873 = vmatprep.subr.bf16.mxu0 0
        %3874 = vmatpush1.bf16.msra.mxu0 0
        %3875 = vmatprep.subr.bf16.mxu0 0
        %3876 = vmatpush1.bf16.msra.mxu0 0
        %3877 = vmatprep.subr.bf16.mxu0 0
        %3878 = vmatpush1.bf16.msra.mxu0 0
        %3879 = vmatprep.subr.bf16.mxu0 0
        %3880 = vmatpush1.bf16.msra.mxu0 0
        %3881 = vmatprep.subr.bf16.mxu0 0
        %3882 = vmatpush1.bf16.msra.mxu0 0
        %3883 = vmatprep.subr.bf16.mxu0 0
        %3884 = vmatpush1.bf16.msra.mxu0 0
        %3885 = vmatprep.subr.bf16.mxu0 0
        %3886 = vmatpush1.bf16.msra.mxu0 0
        %3887 = vmatprep.subr.bf16.mxu0 0
        %3888 = vmatpush1.bf16.msra.mxu0 0
        %3889 = vmatprep.subr.bf16.mxu0 0
        %3890 = vmatpush1.bf16.msra.mxu0 0
        %3891 = vmatprep.subr.bf16.mxu0 0
        %3892 = vmatpush1.bf16.msra.mxu0 0
        %3893 = vmatprep.subr.bf16.mxu0 0
        %3894 = vmatpush1.bf16.msra.mxu0 0
        %3895 = vmatprep.mubr.bf16.mxu0 0
        %3896 = vmatmul.mubr.bf16.gmra.mrb[0].mxu0 %v3783
        %v3897 = vpop.f32.mrb[0].mxu0
        %v3898 = vadd.f32 0.0, %v3897
        %v3899 = vpop.f32.mrb[0].mxu0
        %v3900 = vpop.f32.mrb[0].mxu0
        %v3901 = vadd.f32 0.0, %v3900
        %v3902 = vpop.f32.mrb[0].mxu0
        %3903 = vmatprep.mubr.bf16.mxu0 0
        %3904 = vmatmul.mubr.bf16.gmra.mrb[0].mxu0 %v3786
        %v3905 = vpop.f32.mrb[0].mxu0
        %v3906 = vadd.f32 0.0, %v3905
        %v3907 = vpop.f32.mrb[0].mxu0
        %v3908 = vpop.f32.mrb[0].mxu0
        %v3909 = vadd.f32 0.0, %v3908
        %v3910 = vpop.f32.mrb[0].mxu0
        %3911 = vmatprep.mubr.bf16.mxu0 0
        %3912 = vmatmul.mubr.bf16.gmra.mrb[0].mxu0 %v3789
        %v3913 = vpop.f32.mrb[0].mxu0
        %v3914 = vadd.f32 0.0, %v3913
        %v3915 = vpop.f32.mrb[0].mxu0
        %v3916 = vpop.f32.mrb[0].mxu0
        %v3917 = vadd.f32 0.0, %v3916
        %v3918 = vpop.f32.mrb[0].mxu0
        %3919 = vmatprep.mubr.bf16.mxu0 0
        %3920 = vmatmul.mubr.bf16.gmra.mrb[0].mxu0 %v3792
        %v3921 = vpop.f32.mrb[0].mxu0
        %v3922 = vadd.f32 0.0, %v3921
        %v3923 = vpop.f32.mrb[0].mxu0
        %v3924 = vpop.f32.mrb[0].mxu0
        %v3925 = vadd.f32 0.0, %v3924
        %v3926 = vpop.f32.mrb[0].mxu0
        %3927 = vmatprep.mubr.bf16.mxu0 0
        %3928 = vmatmul.mubr.bf16.gmra.mrb[0].mxu0 %v3795
        %v3929 = vpop.f32.mrb[0].mxu0
        %v3930 = vadd.f32 0.0, %v3929
        %v3931 = vpop.f32.mrb[0].mxu0
        %v3932 = vpop.f32.mrb[0].mxu0
        %v3933 = vadd.f32 0.0, %v3932
        %v3934 = vpop.f32.mrb[0].mxu0
        %3935 = vmatprep.mubr.bf16.mxu0 0
        %3936 = vmatmul.mubr.bf16.gmra.mrb[0].mxu0 %v3798
        %v3937 = vpop.f32.mrb[0].mxu0
        %v3938 = vadd.f32 0.0, %v3937
        %v3939 = vpop.f32.mrb[0].mxu0
        %v3940 = vpop.f32.mrb[0].mxu0
        %v3941 = vadd.f32 0.0, %v3940
        %v3942 = vpop.f32.mrb[0].mxu0
        %3943 = vmatprep.mubr.bf16.mxu0 0
        %3944 = vmatmul.mubr.bf16.gmra.mrb[0].mxu0 %v3801
        %v3945 = vpop.f32.mrb[0].mxu0
        %v3946 = vadd.f32 0.0, %v3945
        %v3947 = vpop.f32.mrb[0].mxu0
        %v3948 = vpop.f32.mrb[0].mxu0
        %v3949 = vadd.f32 0.0, %v3948
        %v3950 = vpop.f32.mrb[0].mxu0
        %3951 = vmatprep.mubr.bf16.mxu0 0
        %3952 = vmatmul.mubr.bf16.gmra.mrb[0].mxu0 %v3804
        %v3953 = vpop.f32.mrb[0].mxu0
        %v3954 = vadd.f32 0.0, %v3953
        %v3955 = vpop.f32.mrb[0].mxu0
        %v3956 = vpop.f32.mrb[0].mxu0
        %v3957 = vadd.f32 0.0, %v3956
        %v3958 = vpop.f32.mrb[0].mxu0
        %3959 = vmatprep.mubr.bf16.mxu0 0
        %3960 = vmatmul.mubr.bf16.gmra.mrb[0].mxu0 %v3807
        %v3961 = vpop.f32.mrb[0].mxu0
        %v3962 = vadd.f32 0.0, %v3961
        %v3963 = vpop.f32.mrb[0].mxu0
        %v3964 = vpop.f32.mrb[0].mxu0
        %v3965 = vadd.f32 0.0, %v3964
        %v3966 = vpop.f32.mrb[0].mxu0
        %3967 = vmatprep.mubr.bf16.mxu0 0
        %3968 = vmatmul.mubr.bf16.gmra.mrb[0].mxu0 %v3810
        %v3969 = vpop.f32.mrb[0].mxu0
        %v3970 = vadd.f32 0.0, %v3969
        %v3971 = vpop.f32.mrb[0].mxu0
        %v3972 = vpop.f32.mrb[0].mxu0
        %v3973 = vadd.f32 0.0, %v3972
        %v3974 = vpop.f32.mrb[0].mxu0
        %3975 = vmatprep.mubr.bf16.mxu0 0
        %3976 = vmatmul.mubr.bf16.gmra.mrb[0].mxu0 %v3813
        %v3977 = vpop.f32.mrb[0].mxu0
        %v3978 = vadd.f32 0.0, %v3977
        %v3979 = vpop.f32.mrb[0].mxu0
        %v3980 = vpop.f32.mrb[0].mxu0
        %v3981 = vadd.f32 0.0, %v3980
        %v3982 = vpop.f32.mrb[0].mxu0
        %3983 = vmatprep.mubr.bf16.mxu0 0
        %3984 = vmatmul.mubr.bf16.gmra.mrb[0].mxu0 %v3816
        %v3985 = vpop.f32.mrb[0].mxu0
        %v3986 = vadd.f32 0.0, %v3985
        %v3987 = vpop.f32.mrb[0].mxu0
        %v3988 = vpop.f32.mrb[0].mxu0
        %v3989 = vadd.f32 0.0, %v3988
        %v3990 = vpop.f32.mrb[0].mxu0
        %3991 = vmatprep.mubr.bf16.mxu0 0
        %3992 = vmatmul.mubr.bf16.gmra.mrb[0].mxu0 %v3819
        %v3993 = vpop.f32.mrb[0].mxu0
        %v3994 = vadd.f32 0.0, %v3993
        %v3995 = vpop.f32.mrb[0].mxu0
        %v3996 = vpop.f32.mrb[0].mxu0
        %v3997 = vadd.f32 0.0, %v3996
        %v3998 = vpop.f32.mrb[0].mxu0
        %3999 = vmatprep.mubr.bf16.mxu0 0
        %4000 = vmatmul.mubr.bf16.gmra.mrb[0].mxu0 %v3822
        %v4001 = vpop.f32.mrb[0].mxu0
        %v4002 = vadd.f32 0.0, %v4001
        %v4003 = vpop.f32.mrb[0].mxu0
        %v4004 = vpop.f32.mrb[0].mxu0
        %v4005 = vadd.f32 0.0, %v4004
        %v4006 = vpop.f32.mrb[0].mxu0
        %4007 = vmatprep.mubr.bf16.mxu0 0
        %4008 = vmatmul.mubr.bf16.gmra.mrb[0].mxu0 %v3825
        %v4009 = vpop.f32.mrb[0].mxu0
        %v4010 = vadd.f32 0.0, %v4009
        %v4011 = vpop.f32.mrb[0].mxu0
        %v4012 = vpop.f32.mrb[0].mxu0
        %v4013 = vadd.f32 0.0, %v4012
        %v4014 = vpop.f32.mrb[0].mxu0
        %4015 = vmatprep.mubr.bf16.mxu0 0
        %4016 = vmatmul.mubr.bf16.gmra.mrb[0].mxu0 %v3828
        %v4017 = vpop.f32.mrb[0].mxu0
        %v4018 = vadd.f32 0.0, %v4017
        %v4019 = vpop.f32.mrb[0].mxu0
        %v4020 = vpop.f32.mrb[0].mxu0
        %v4021 = vadd.f32 0.0, %v4020
        %v4022 = vpop.f32.mrb[0].mxu0
        %4023 = vmatprep.mubr.bf16.mxu0 0
        %4024 = vmatmul.mubr.bf16.gmra.mrb[0].mxu0 %v3831
        %v4025 = vpop.f32.mrb[0].mxu0
        %v4026 = vadd.f32 0.0, %v4025
        %v4027 = vpop.f32.mrb[0].mxu0
        %v4028 = vpop.f32.mrb[0].mxu0
        %v4029 = vadd.f32 0.0, %v4028
        %v4030 = vpop.f32.mrb[0].mxu0
        %4031 = vmatprep.mubr.bf16.mxu0 0
        %4032 = vmatmul.mubr.bf16.gmra.mrb[0].mxu0 %v3834
        %v4033 = vpop.f32.mrb[0].mxu0
        %v4034 = vadd.f32 0.0, %v4033
        %v4035 = vpop.f32.mrb[0].mxu0
        %v4036 = vpop.f32.mrb[0].mxu0
        %v4037 = vadd.f32 0.0, %v4036
        %v4038 = vpop.f32.mrb[0].mxu0
        %4039 = vmatprep.mubr.bf16.mxu0 0
        %4040 = vmatmul.mubr.bf16.gmra.mrb[0].mxu0 %v3837
        %v4041 = vpop.f32.mrb[0].mxu0
        %v4042 = vadd.f32 0.0, %v4041
        %v4043 = vpop.f32.mrb[0].mxu0
        %v4044 = vpop.f32.mrb[0].mxu0
        %v4045 = vadd.f32 0.0, %v4044
        %v4046 = vpop.f32.mrb[0].mxu0
        %4047 = vmatprep.mubr.bf16.mxu0 0
        %4048 = vmatmul.mubr.bf16.gmra.mrb[0].mxu0 %v3840
        %v4049 = vpop.f32.mrb[0].mxu0
        %v4050 = vadd.f32 0.0, %v4049
        %v4051 = vpop.f32.mrb[0].mxu0
        %v4052 = vpop.f32.mrb[0].mxu0
        %v4053 = vadd.f32 0.0, %v4052
        %v4054 = vpop.f32.mrb[0].mxu0
        %4055 = vmatprep.mubr.bf16.mxu0 0
        %4056 = vmatmul.mubr.bf16.gmra.mrb[0].mxu0 %v3843
        %v4057 = vpop.f32.mrb[0].mxu0
        %v4058 = vadd.f32 0.0, %v4057
        %v4059 = vpop.f32.mrb[0].mxu0
        %v4060 = vpop.f32.mrb[0].mxu0
        %v4061 = vadd.f32 0.0, %v4060
        %v4062 = vpop.f32.mrb[0].mxu0
        %4063 = vmatprep.mubr.bf16.mxu0 0
        %4064 = vmatmul.mubr.bf16.gmra.mrb[0].mxu0 %v3846
        %v4065 = vpop.f32.mrb[0].mxu0
        %v4066 = vadd.f32 0.0, %v4065
        %v4067 = vpop.f32.mrb[0].mxu0
        %v4068 = vpop.f32.mrb[0].mxu0
        %v4069 = vadd.f32 0.0, %v4068
        %v4070 = vpop.f32.mrb[0].mxu0
        %4071 = vmatprep.mubr.bf16.mxu0 0
        %4072 = vmatmul.mubr.bf16.gmra.mrb[0].mxu0 %v3849
        %v4073 = vpop.f32.mrb[0].mxu0
        %v4074 = vadd.f32 0.0, %v4073
        %v4075 = vpop.f32.mrb[0].mxu0
        %v4076 = vpop.f32.mrb[0].mxu0
        %v4077 = vadd.f32 0.0, %v4076
        %v4078 = vpop.f32.mrb[0].mxu0
        %4079 = vmatprep.mubr.bf16.mxu0 0
        %4080 = vmatmul.mubr.bf16.gmra.mrb[0].mxu0 %v3852
        %v4081 = vpop.f32.mrb[0].mxu0
        %v4082 = vadd.f32 0.0, %v4081
        %v4083 = vpop.f32.mrb[0].mxu0
        %v4084 = vpop.f32.mrb[0].mxu0
        %v4085 = vadd.f32 0.0, %v4084
        %v4086 = vpop.f32.mrb[0].mxu0
        %4087 = vmatprep.mubr.bf16.mxu0 0
        %4088 = vmatmul.mubr.bf16.gmra.mrb[0].mxu0 %v3855
        %v4089 = vpop.f32.mrb[0].mxu0
        %v4090 = vpop.f32.mrb[0].mxu0
        %v4091 = vpop.f32.mrb[0].mxu0
        %v4092 = vpop.f32.mrb[0].mxu0
        %4093 = vmatprep.mubr.bf16.mxu0 0
        %4094 = vmatmul.mubr.bf16.gmra.mrb[0].mxu0 %v3858
        %v4095 = vpop.f32.mrb[0].mxu0
        %v4096 = vpop.f32.mrb[0].mxu0
        %v4097 = vpop.f32.mrb[0].mxu0
        %v4098 = vpop.f32.mrb[0].mxu0
        %4099 = vdwg.mxu0
        %v4100 = vadd.f32 %v2430, %v3898
        %v4101 = vadd.f32 %v2433, %v3901
        %v4102 = vadd.f32 %v2438, %v3906
        %v4103 = vadd.f32 %v2441, %v3909
        %v4104 = vadd.f32 %v2446, %v3914
        %v4105 = vadd.f32 %v2449, %v3917
        %v4106 = vadd.f32 %v2454, %v3922
        %v4107 = vadd.f32 %v2457, %v3925
        %v4108 = vadd.f32 %v2462, %v3930
        %v4109 = vadd.f32 %v2465, %v3933
        %v4110 = vadd.f32 %v2470, %v3938
        %v4111 = vadd.f32 %v2473, %v3941
        %v4112 = vadd.f32 %v2478, %v3946
        %v4113 = vadd.f32 %v2481, %v3949
        %v4114 = vadd.f32 %v2486, %v3954
        %v4115 = vadd.f32 %v2489, %v3957
        %v4116 = vadd.f32 %v2494, %v3962
        %v4117 = vadd.f32 %v2497, %v3965
        %v4118 = vadd.f32 %v2502, %v3970
        %v4119 = vadd.f32 %v2505, %v3973
        %v4120 = vadd.f32 %v2510, %v3978
        %v4121 = vadd.f32 %v2513, %v3981
        %v4122 = vadd.f32 %v2518, %v3986
        %v4123 = vadd.f32 %v2521, %v3989
        %v4124 = vadd.f32 %v2526, %v3994
        %v4125 = vadd.f32 %v2529, %v3997
        %v4126 = vadd.f32 %v2534, %v4002
        %v4127 = vadd.f32 %v2537, %v4005
        %v4128 = vadd.f32 %v2542, %v4010
        %v4129 = vadd.f32 %v2545, %v4013
        %v4130 = vadd.f32 %v2550, %v4018
        %v4131 = vadd.f32 %v2553, %v4021
        %v4132 = vadd.f32 %v2558, %v4026
        %v4133 = vadd.f32 %v2561, %v4029
        %v4134 = vadd.f32 %v2566, %v4034
        %v4135 = vadd.f32 %v2569, %v4037
        %v4136 = vadd.f32 %v2574, %v4042
        %v4137 = vadd.f32 %v2577, %v4045
        %v4138 = vadd.f32 %v2582, %v4050
        %v4139 = vadd.f32 %v2585, %v4053
        %v4140 = vadd.f32 %v2590, %v4058
        %v4141 = vadd.f32 %v2593, %v4061
        %v4142 = vadd.f32 %v2598, %v4066
        %v4143 = vadd.f32 %v2601, %v4069
        %v4144 = vadd.f32 %v2606, %v4074
        %v4145 = vadd.f32 %v2609, %v4077
        %v4146 = vadd.f32 %v2614, %v4082
        %v4147 = vadd.f32 %v2617, %v4085
        %s4148 = scalar_lea.vmem %s2, 28
        %v4149 = vld [vmem:[%s4148] sm:$0xf]
        %v4151 = vsel %vm1945, %v4149, 0
        %4153 = vmatprep.subr.bf16.mxu0 0
        %4154 = vmatpush1.bf16.msra.mxu0 %v4151
        %4155 = vmatprep.subr.bf16.mxu0 0
        %4156 = vmatpush1.bf16.msra.mxu0 0
        %4157 = vmatprep.subr.bf16.mxu0 0
        %4158 = vmatpush1.bf16.msra.mxu0 0
        %4159 = vmatprep.subr.bf16.mxu0 0
        %4160 = vmatpush1.bf16.msra.mxu0 0
        %4161 = vmatprep.subr.bf16.mxu0 0
        %4162 = vmatpush1.bf16.msra.mxu0 0
        %4163 = vmatprep.subr.bf16.mxu0 0
        %4164 = vmatpush1.bf16.msra.mxu0 0
        %4165 = vmatprep.subr.bf16.mxu0 0
        %4166 = vmatpush1.bf16.msra.mxu0 0
        %4167 = vmatprep.subr.bf16.mxu0 0
        %4168 = vmatpush1.bf16.msra.mxu0 0
        %4169 = vmatprep.subr.bf16.mxu0 0
        %4170 = vmatpush1.bf16.msra.mxu0 0
        %4171 = vmatprep.subr.bf16.mxu0 0
        %4172 = vmatpush1.bf16.msra.mxu0 0
        %4173 = vmatprep.subr.bf16.mxu0 0
        %4174 = vmatpush1.bf16.msra.mxu0 0
        %4175 = vmatprep.subr.bf16.mxu0 0
        %4176 = vmatpush1.bf16.msra.mxu0 0
        %4177 = vmatprep.subr.bf16.mxu0 0
        %4178 = vmatpush1.bf16.msra.mxu0 0
        %4179 = vmatprep.subr.bf16.mxu0 0
        %4180 = vmatpush1.bf16.msra.mxu0 0
        %4181 = vmatprep.subr.bf16.mxu0 0
        %4182 = vmatpush1.bf16.msra.mxu0 0
        %4183 = vmatprep.subr.bf16.mxu0 0
        %4184 = vmatpush1.bf16.msra.mxu0 0
        %4185 = vmatprep.mubr.bf16.mxu0 0
        %4186 = vmatmul.mubr.bf16.gmra.mrb[0].mxu0 %v3783
        %v4187 = vpop.f32.mrb[0].mxu0
        %v4188 = vadd.f32 0.0, %v4187
        %v4189 = vpop.f32.mrb[0].mxu0
        %v4190 = vpop.f32.mrb[0].mxu0
        %v4191 = vadd.f32 0.0, %v4190
        %v4192 = vpop.f32.mrb[0].mxu0
        %4193 = vmatprep.mubr.bf16.mxu0 0
        %4194 = vmatmul.mubr.bf16.gmra.mrb[0].mxu0 %v3786
        %v4195 = vpop.f32.mrb[0].mxu0
        %v4196 = vadd.f32 0.0, %v4195
        %v4197 = vpop.f32.mrb[0].mxu0
        %v4198 = vpop.f32.mrb[0].mxu0
        %v4199 = vadd.f32 0.0, %v4198
        %v4200 = vpop.f32.mrb[0].mxu0
        %4201 = vmatprep.mubr.bf16.mxu0 0
        %4202 = vmatmul.mubr.bf16.gmra.mrb[0].mxu0 %v3789
        %v4203 = vpop.f32.mrb[0].mxu0
        %v4204 = vadd.f32 0.0, %v4203
        %v4205 = vpop.f32.mrb[0].mxu0
        %v4206 = vpop.f32.mrb[0].mxu0
        %v4207 = vadd.f32 0.0, %v4206
        %v4208 = vpop.f32.mrb[0].mxu0
        %4209 = vmatprep.mubr.bf16.mxu0 0
        %4210 = vmatmul.mubr.bf16.gmra.mrb[0].mxu0 %v3792
        %v4211 = vpop.f32.mrb[0].mxu0
        %v4212 = vadd.f32 0.0, %v4211
        %v4213 = vpop.f32.mrb[0].mxu0
        %v4214 = vpop.f32.mrb[0].mxu0
        %v4215 = vadd.f32 0.0, %v4214
        %v4216 = vpop.f32.mrb[0].mxu0
        %4217 = vmatprep.mubr.bf16.mxu0 0
        %4218 = vmatmul.mubr.bf16.gmra.mrb[0].mxu0 %v3795
        %v4219 = vpop.f32.mrb[0].mxu0
        %v4220 = vadd.f32 0.0, %v4219
        %v4221 = vpop.f32.mrb[0].mxu0
        %v4222 = vpop.f32.mrb[0].mxu0
        %v4223 = vadd.f32 0.0, %v4222
        %v4224 = vpop.f32.mrb[0].mxu0
        %4225 = vmatprep.mubr.bf16.mxu0 0
        %4226 = vmatmul.mubr.bf16.gmra.mrb[0].mxu0 %v3798
        %v4227 = vpop.f32.mrb[0].mxu0
        %v4228 = vadd.f32 0.0, %v4227
        %v4229 = vpop.f32.mrb[0].mxu0
        %v4230 = vpop.f32.mrb[0].mxu0
        %v4231 = vadd.f32 0.0, %v4230
        %v4232 = vpop.f32.mrb[0].mxu0
        %4233 = vmatprep.mubr.bf16.mxu0 0
        %4234 = vmatmul.mubr.bf16.gmra.mrb[0].mxu0 %v3801
        %v4235 = vpop.f32.mrb[0].mxu0
        %v4236 = vadd.f32 0.0, %v4235
        %v4237 = vpop.f32.mrb[0].mxu0
        %v4238 = vpop.f32.mrb[0].mxu0
        %v4239 = vadd.f32 0.0, %v4238
        %v4240 = vpop.f32.mrb[0].mxu0
        %4241 = vmatprep.mubr.bf16.mxu0 0
        %4242 = vmatmul.mubr.bf16.gmra.mrb[0].mxu0 %v3804
        %v4243 = vpop.f32.mrb[0].mxu0
        %v4244 = vadd.f32 0.0, %v4243
        %v4245 = vpop.f32.mrb[0].mxu0
        %v4246 = vpop.f32.mrb[0].mxu0
        %v4247 = vadd.f32 0.0, %v4246
        %v4248 = vpop.f32.mrb[0].mxu0
        %4249 = vmatprep.mubr.bf16.mxu0 0
        %4250 = vmatmul.mubr.bf16.gmra.mrb[0].mxu0 %v3807
        %v4251 = vpop.f32.mrb[0].mxu0
        %v4252 = vadd.f32 0.0, %v4251
        %v4253 = vpop.f32.mrb[0].mxu0
        %v4254 = vpop.f32.mrb[0].mxu0
        %v4255 = vadd.f32 0.0, %v4254
        %v4256 = vpop.f32.mrb[0].mxu0
        %4257 = vmatprep.mubr.bf16.mxu0 0
        %4258 = vmatmul.mubr.bf16.gmra.mrb[0].mxu0 %v3810
        %v4259 = vpop.f32.mrb[0].mxu0
        %v4260 = vadd.f32 0.0, %v4259
        %v4261 = vpop.f32.mrb[0].mxu0
        %v4262 = vpop.f32.mrb[0].mxu0
        %v4263 = vadd.f32 0.0, %v4262
        %v4264 = vpop.f32.mrb[0].mxu0
        %4265 = vmatprep.mubr.bf16.mxu0 0
        %4266 = vmatmul.mubr.bf16.gmra.mrb[0].mxu0 %v3813
        %v4267 = vpop.f32.mrb[0].mxu0
        %v4268 = vadd.f32 0.0, %v4267
        %v4269 = vpop.f32.mrb[0].mxu0
        %v4270 = vpop.f32.mrb[0].mxu0
        %v4271 = vadd.f32 0.0, %v4270
        %v4272 = vpop.f32.mrb[0].mxu0
        %4273 = vmatprep.mubr.bf16.mxu0 0
        %4274 = vmatmul.mubr.bf16.gmra.mrb[0].mxu0 %v3816
        %v4275 = vpop.f32.mrb[0].mxu0
        %v4276 = vadd.f32 0.0, %v4275
        %v4277 = vpop.f32.mrb[0].mxu0
        %v4278 = vpop.f32.mrb[0].mxu0
        %v4279 = vadd.f32 0.0, %v4278
        %v4280 = vpop.f32.mrb[0].mxu0
        %4281 = vmatprep.mubr.bf16.mxu0 0
        %4282 = vmatmul.mubr.bf16.gmra.mrb[0].mxu0 %v3819
        %v4283 = vpop.f32.mrb[0].mxu0
        %v4284 = vadd.f32 0.0, %v4283
        %v4285 = vpop.f32.mrb[0].mxu0
        %v4286 = vpop.f32.mrb[0].mxu0
        %v4287 = vadd.f32 0.0, %v4286
        %v4288 = vpop.f32.mrb[0].mxu0
        %4289 = vmatprep.mubr.bf16.mxu0 0
        %4290 = vmatmul.mubr.bf16.gmra.mrb[0].mxu0 %v3822
        %v4291 = vpop.f32.mrb[0].mxu0
        %v4292 = vadd.f32 0.0, %v4291
        %v4293 = vpop.f32.mrb[0].mxu0
        %v4294 = vpop.f32.mrb[0].mxu0
        %v4295 = vadd.f32 0.0, %v4294
        %v4296 = vpop.f32.mrb[0].mxu0
        %4297 = vmatprep.mubr.bf16.mxu0 0
        %4298 = vmatmul.mubr.bf16.gmra.mrb[0].mxu0 %v3825
        %v4299 = vpop.f32.mrb[0].mxu0
        %v4300 = vadd.f32 0.0, %v4299
        %v4301 = vpop.f32.mrb[0].mxu0
        %v4302 = vpop.f32.mrb[0].mxu0
        %v4303 = vadd.f32 0.0, %v4302
        %v4304 = vpop.f32.mrb[0].mxu0
        %4305 = vmatprep.mubr.bf16.mxu0 0
        %4306 = vmatmul.mubr.bf16.gmra.mrb[0].mxu0 %v3828
        %v4307 = vpop.f32.mrb[0].mxu0
        %v4308 = vadd.f32 0.0, %v4307
        %v4309 = vpop.f32.mrb[0].mxu0
        %v4310 = vpop.f32.mrb[0].mxu0
        %v4311 = vadd.f32 0.0, %v4310
        %v4312 = vpop.f32.mrb[0].mxu0
        %4313 = vmatprep.mubr.bf16.mxu0 0
        %4314 = vmatmul.mubr.bf16.gmra.mrb[0].mxu0 %v3831
        %v4315 = vpop.f32.mrb[0].mxu0
        %v4316 = vadd.f32 0.0, %v4315
        %v4317 = vpop.f32.mrb[0].mxu0
        %v4318 = vpop.f32.mrb[0].mxu0
        %v4319 = vadd.f32 0.0, %v4318
        %v4320 = vpop.f32.mrb[0].mxu0
        %4321 = vmatprep.mubr.bf16.mxu0 0
        %4322 = vmatmul.mubr.bf16.gmra.mrb[0].mxu0 %v3834
        %v4323 = vpop.f32.mrb[0].mxu0
        %v4324 = vadd.f32 0.0, %v4323
        %v4325 = vpop.f32.mrb[0].mxu0
        %v4326 = vpop.f32.mrb[0].mxu0
        %v4327 = vadd.f32 0.0, %v4326
        %v4328 = vpop.f32.mrb[0].mxu0
        %4329 = vmatprep.mubr.bf16.mxu0 0
        %4330 = vmatmul.mubr.bf16.gmra.mrb[0].mxu0 %v3837
        %v4331 = vpop.f32.mrb[0].mxu0
        %v4332 = vadd.f32 0.0, %v4331
        %v4333 = vpop.f32.mrb[0].mxu0
        %v4334 = vpop.f32.mrb[0].mxu0
        %v4335 = vadd.f32 0.0, %v4334
        %v4336 = vpop.f32.mrb[0].mxu0
        %4337 = vmatprep.mubr.bf16.mxu0 0
        %4338 = vmatmul.mubr.bf16.gmra.mrb[0].mxu0 %v3840
        %v4339 = vpop.f32.mrb[0].mxu0
        %v4340 = vadd.f32 0.0, %v4339
        %v4341 = vpop.f32.mrb[0].mxu0
        %v4342 = vpop.f32.mrb[0].mxu0
        %v4343 = vadd.f32 0.0, %v4342
        %v4344 = vpop.f32.mrb[0].mxu0
        %4345 = vmatprep.mubr.bf16.mxu0 0
        %4346 = vmatmul.mubr.bf16.gmra.mrb[0].mxu0 %v3843
        %v4347 = vpop.f32.mrb[0].mxu0
        %v4348 = vadd.f32 0.0, %v4347
        %v4349 = vpop.f32.mrb[0].mxu0
        %v4350 = vpop.f32.mrb[0].mxu0
        %v4351 = vadd.f32 0.0, %v4350
        %v4352 = vpop.f32.mrb[0].mxu0
        %4353 = vmatprep.mubr.bf16.mxu0 0
        %4354 = vmatmul.mubr.bf16.gmra.mrb[0].mxu0 %v3846
        %v4355 = vpop.f32.mrb[0].mxu0
        %v4356 = vadd.f32 0.0, %v4355
        %v4357 = vpop.f32.mrb[0].mxu0
        %v4358 = vpop.f32.mrb[0].mxu0
        %v4359 = vadd.f32 0.0, %v4358
        %v4360 = vpop.f32.mrb[0].mxu0
        %4361 = vmatprep.mubr.bf16.mxu0 0
        %4362 = vmatmul.mubr.bf16.gmra.mrb[0].mxu0 %v3849
        %v4363 = vpop.f32.mrb[0].mxu0
        %v4364 = vadd.f32 0.0, %v4363
        %v4365 = vpop.f32.mrb[0].mxu0
        %v4366 = vpop.f32.mrb[0].mxu0
        %v4367 = vadd.f32 0.0, %v4366
        %v4368 = vpop.f32.mrb[0].mxu0
        %4369 = vmatprep.mubr.bf16.mxu0 0
        %4370 = vmatmul.mubr.bf16.gmra.mrb[0].mxu0 %v3852
        %v4371 = vpop.f32.mrb[0].mxu0
        %v4372 = vadd.f32 0.0, %v4371
        %v4373 = vpop.f32.mrb[0].mxu0
        %v4374 = vpop.f32.mrb[0].mxu0
        %v4375 = vadd.f32 0.0, %v4374
        %v4376 = vpop.f32.mrb[0].mxu0
        %4377 = vmatprep.mubr.bf16.mxu0 0
        %4378 = vmatmul.mubr.bf16.gmra.mrb[0].mxu0 %v3855
        %v4379 = vpop.f32.mrb[0].mxu0
        %v4380 = vadd.f32 0.0, %v4379
        %v4381 = vpop.f32.mrb[0].mxu0
        %v4382 = vpop.f32.mrb[0].mxu0
        %v4383 = vpop.f32.mrb[0].mxu0
        %4384 = vmatprep.mubr.bf16.mxu0 0
        %4385 = vmatmul.mubr.bf16.gmra.mrb[0].mxu0 %v3858
        %v4386 = vpop.f32.mrb[0].mxu0
        %v4387 = vpop.f32.mrb[0].mxu0
        %v4388 = vpop.f32.mrb[0].mxu0
        %v4389 = vpop.f32.mrb[0].mxu0
        %4390 = vdwg.mxu0
        %v4391 = vadd.f32 %v2913, %v4188
        %v4392 = vadd.f32 %v2916, %v4191
        %v4393 = vadd.f32 %v2921, %v4196
        %v4394 = vadd.f32 %v2924, %v4199
        %v4395 = vadd.f32 %v2929, %v4204
        %v4396 = vadd.f32 %v2932, %v4207
        %v4397 = vadd.f32 %v2937, %v4212
        %v4398 = vadd.f32 %v2940, %v4215
        %v4399 = vadd.f32 %v2945, %v4220
        %v4400 = vadd.f32 %v2948, %v4223
        %v4401 = vadd.f32 %v2953, %v4228
        %v4402 = vadd.f32 %v2956, %v4231
        %v4403 = vadd.f32 %v2961, %v4236
        %v4404 = vadd.f32 %v2964, %v4239
        %v4405 = vadd.f32 %v2969, %v4244
        %v4406 = vadd.f32 %v2972, %v4247
        %v4407 = vadd.f32 %v2977, %v4252
        %v4408 = vadd.f32 %v2980, %v4255
        %v4409 = vadd.f32 %v2985, %v4260
        %v4410 = vadd.f32 %v2988, %v4263
        %v4411 = vadd.f32 %v2993, %v4268
        %v4412 = vadd.f32 %v2996, %v4271
        %v4413 = vadd.f32 %v3001, %v4276
        %v4414 = vadd.f32 %v3004, %v4279
        %v4415 = vadd.f32 %v3009, %v4284
        %v4416 = vadd.f32 %v3012, %v4287
        %v4417 = vadd.f32 %v3017, %v4292
        %v4418 = vadd.f32 %v3020, %v4295
        %v4419 = vadd.f32 %v3025, %v4300
        %v4420 = vadd.f32 %v3028, %v4303
        %v4421 = vadd.f32 %v3033, %v4308
        %v4422 = vadd.f32 %v3036, %v4311
        %v4423 = vadd.f32 %v3041, %v4316
        %v4424 = vadd.f32 %v3044, %v4319
        %v4425 = vadd.f32 %v3049, %v4324
        %v4426 = vadd.f32 %v3052, %v4327
        %v4427 = vadd.f32 %v3057, %v4332
        %v4428 = vadd.f32 %v3060, %v4335
        %v4429 = vadd.f32 %v3065, %v4340
        %v4430 = vadd.f32 %v3068, %v4343
        %v4431 = vadd.f32 %v3073, %v4348
        %v4432 = vadd.f32 %v3076, %v4351
        %v4433 = vadd.f32 %v3081, %v4356
        %v4434 = vadd.f32 %v3084, %v4359
        %v4435 = vadd.f32 %v3089, %v4364
        %v4436 = vadd.f32 %v3092, %v4367
        %v4437 = vadd.f32 %v3097, %v4372
        %v4438 = vadd.f32 %v3100, %v4375
        %v4439 = vadd.f32 %v3105, %v4380
        %s4440 = scalar_lea.vmem %s2, 32
        %v4441 = vld [vmem:[%s4440] sm:$0xf]
        %v4443 = vsel %vm1945, %v4441, 0
        %4445 = vmatprep.subr.bf16.mxu0 0
        %4446 = vmatpush1.bf16.msra.mxu0 %v4443
        %4447 = vmatprep.subr.bf16.mxu0 0
        %4448 = vmatpush1.bf16.msra.mxu0 0
        %4449 = vmatprep.subr.bf16.mxu0 0
        %4450 = vmatpush1.bf16.msra.mxu0 0
        %4451 = vmatprep.subr.bf16.mxu0 0
        %4452 = vmatpush1.bf16.msra.mxu0 0
        %4453 = vmatprep.subr.bf16.mxu0 0
        %4454 = vmatpush1.bf16.msra.mxu0 0
        %4455 = vmatprep.subr.bf16.mxu0 0
        %4456 = vmatpush1.bf16.msra.mxu0 0
        %4457 = vmatprep.subr.bf16.mxu0 0
        %4458 = vmatpush1.bf16.msra.mxu0 0
        %4459 = vmatprep.subr.bf16.mxu0 0
        %4460 = vmatpush1.bf16.msra.mxu0 0
        %4461 = vmatprep.subr.bf16.mxu0 0
        %4462 = vmatpush1.bf16.msra.mxu0 0
        %4463 = vmatprep.subr.bf16.mxu0 0
        %4464 = vmatpush1.bf16.msra.mxu0 0
        %4465 = vmatprep.subr.bf16.mxu0 0
        %4466 = vmatpush1.bf16.msra.mxu0 0
        %4467 = vmatprep.subr.bf16.mxu0 0
        %4468 = vmatpush1.bf16.msra.mxu0 0
        %4469 = vmatprep.subr.bf16.mxu0 0
        %4470 = vmatpush1.bf16.msra.mxu0 0
        %4471 = vmatprep.subr.bf16.mxu0 0
        %4472 = vmatpush1.bf16.msra.mxu0 0
        %4473 = vmatprep.subr.bf16.mxu0 0
        %4474 = vmatpush1.bf16.msra.mxu0 0
        %4475 = vmatprep.subr.bf16.mxu0 0
        %4476 = vmatpush1.bf16.msra.mxu0 0
        %4477 = vmatprep.mubr.bf16.mxu0 0
        %4478 = vmatmul.mubr.bf16.gmra.mrb[0].mxu0 %v3783
        %v4479 = vpop.f32.mrb[0].mxu0
        %v4480 = vadd.f32 0.0, %v4479
        %v4481 = vpop.f32.mrb[0].mxu0
        %v4482 = vpop.f32.mrb[0].mxu0
        %v4483 = vadd.f32 0.0, %v4482
        %v4484 = vpop.f32.mrb[0].mxu0
        %4485 = vmatprep.mubr.bf16.mxu0 0
        %4486 = vmatmul.mubr.bf16.gmra.mrb[0].mxu0 %v3786
        %v4487 = vpop.f32.mrb[0].mxu0
        %v4488 = vadd.f32 0.0, %v4487
        %v4489 = vpop.f32.mrb[0].mxu0
        %v4490 = vpop.f32.mrb[0].mxu0
        %v4491 = vadd.f32 0.0, %v4490
        %v4492 = vpop.f32.mrb[0].mxu0
        %4493 = vmatprep.mubr.bf16.mxu0 0
        %4494 = vmatmul.mubr.bf16.gmra.mrb[0].mxu0 %v3789
        %v4495 = vpop.f32.mrb[0].mxu0
        %v4496 = vadd.f32 0.0, %v4495
        %v4497 = vpop.f32.mrb[0].mxu0
        %v4498 = vpop.f32.mrb[0].mxu0
        %v4499 = vadd.f32 0.0, %v4498
        %v4500 = vpop.f32.mrb[0].mxu0
        %4501 = vmatprep.mubr.bf16.mxu0 0
        %4502 = vmatmul.mubr.bf16.gmra.mrb[0].mxu0 %v3792
        %v4503 = vpop.f32.mrb[0].mxu0
        %v4504 = vadd.f32 0.0, %v4503
        %v4505 = vpop.f32.mrb[0].mxu0
        %v4506 = vpop.f32.mrb[0].mxu0
        %v4507 = vadd.f32 0.0, %v4506
        %v4508 = vpop.f32.mrb[0].mxu0
        %4509 = vmatprep.mubr.bf16.mxu0 0
        %4510 = vmatmul.mubr.bf16.gmra.mrb[0].mxu0 %v3795
        %v4511 = vpop.f32.mrb[0].mxu0
        %v4512 = vadd.f32 0.0, %v4511
        %v4513 = vpop.f32.mrb[0].mxu0
        %v4514 = vpop.f32.mrb[0].mxu0
        %v4515 = vadd.f32 0.0, %v4514
        %v4516 = vpop.f32.mrb[0].mxu0
        %4517 = vmatprep.mubr.bf16.mxu0 0
        %4518 = vmatmul.mubr.bf16.gmra.mrb[0].mxu0 %v3798
        %v4519 = vpop.f32.mrb[0].mxu0
        %v4520 = vadd.f32 0.0, %v4519
        %v4521 = vpop.f32.mrb[0].mxu0
        %v4522 = vpop.f32.mrb[0].mxu0
        %v4523 = vadd.f32 0.0, %v4522
        %v4524 = vpop.f32.mrb[0].mxu0
        %4525 = vmatprep.mubr.bf16.mxu0 0
        %4526 = vmatmul.mubr.bf16.gmra.mrb[0].mxu0 %v3801
        %v4527 = vpop.f32.mrb[0].mxu0
        %v4528 = vadd.f32 0.0, %v4527
        %v4529 = vpop.f32.mrb[0].mxu0
        %v4530 = vpop.f32.mrb[0].mxu0
        %v4531 = vadd.f32 0.0, %v4530
        %v4532 = vpop.f32.mrb[0].mxu0
        %4533 = vmatprep.mubr.bf16.mxu0 0
        %4534 = vmatmul.mubr.bf16.gmra.mrb[0].mxu0 %v3804
        %v4535 = vpop.f32.mrb[0].mxu0
        %v4536 = vadd.f32 0.0, %v4535
        %v4537 = vpop.f32.mrb[0].mxu0
        %v4538 = vpop.f32.mrb[0].mxu0
        %v4539 = vadd.f32 0.0, %v4538
        %v4540 = vpop.f32.mrb[0].mxu0
        %4541 = vmatprep.mubr.bf16.mxu0 0
        %4542 = vmatmul.mubr.bf16.gmra.mrb[0].mxu0 %v3807
        %v4543 = vpop.f32.mrb[0].mxu0
        %v4544 = vadd.f32 0.0, %v4543
        %v4545 = vpop.f32.mrb[0].mxu0
        %v4546 = vpop.f32.mrb[0].mxu0
        %v4547 = vadd.f32 0.0, %v4546
        %v4548 = vpop.f32.mrb[0].mxu0
        %4549 = vmatprep.mubr.bf16.mxu0 0
        %4550 = vmatmul.mubr.bf16.gmra.mrb[0].mxu0 %v3810
        %v4551 = vpop.f32.mrb[0].mxu0
        %v4552 = vadd.f32 0.0, %v4551
        %v4553 = vpop.f32.mrb[0].mxu0
        %v4554 = vpop.f32.mrb[0].mxu0
        %v4555 = vadd.f32 0.0, %v4554
        %v4556 = vpop.f32.mrb[0].mxu0
        %4557 = vmatprep.mubr.bf16.mxu0 0
        %4558 = vmatmul.mubr.bf16.gmra.mrb[0].mxu0 %v3813
        %v4559 = vpop.f32.mrb[0].mxu0
        %v4560 = vadd.f32 0.0, %v4559
        %v4561 = vpop.f32.mrb[0].mxu0
        %v4562 = vpop.f32.mrb[0].mxu0
        %v4563 = vadd.f32 0.0, %v4562
        %v4564 = vpop.f32.mrb[0].mxu0
        %4565 = vmatprep.mubr.bf16.mxu0 0
        %4566 = vmatmul.mubr.bf16.gmra.mrb[0].mxu0 %v3816
        %v4567 = vpop.f32.mrb[0].mxu0
        %v4568 = vadd.f32 0.0, %v4567
        %v4569 = vpop.f32.mrb[0].mxu0
        %v4570 = vpop.f32.mrb[0].mxu0
        %v4571 = vadd.f32 0.0, %v4570
        %v4572 = vpop.f32.mrb[0].mxu0
        %4573 = vmatprep.mubr.bf16.mxu0 0
        %4574 = vmatmul.mubr.bf16.gmra.mrb[0].mxu0 %v3819
        %v4575 = vpop.f32.mrb[0].mxu0
        %v4576 = vadd.f32 0.0, %v4575
        %v4577 = vpop.f32.mrb[0].mxu0
        %v4578 = vpop.f32.mrb[0].mxu0
        %v4579 = vadd.f32 0.0, %v4578
        %v4580 = vpop.f32.mrb[0].mxu0
        %4581 = vmatprep.mubr.bf16.mxu0 0
        %4582 = vmatmul.mubr.bf16.gmra.mrb[0].mxu0 %v3822
        %v4583 = vpop.f32.mrb[0].mxu0
        %v4584 = vadd.f32 0.0, %v4583
        %v4585 = vpop.f32.mrb[0].mxu0
        %v4586 = vpop.f32.mrb[0].mxu0
        %v4587 = vadd.f32 0.0, %v4586
        %v4588 = vpop.f32.mrb[0].mxu0
        %4589 = vmatprep.mubr.bf16.mxu0 0
        %4590 = vmatmul.mubr.bf16.gmra.mrb[0].mxu0 %v3825
        %v4591 = vpop.f32.mrb[0].mxu0
        %v4592 = vadd.f32 0.0, %v4591
        %v4593 = vpop.f32.mrb[0].mxu0
        %v4594 = vpop.f32.mrb[0].mxu0
        %v4595 = vadd.f32 0.0, %v4594
        %v4596 = vpop.f32.mrb[0].mxu0
        %4597 = vmatprep.mubr.bf16.mxu0 0
        %4598 = vmatmul.mubr.bf16.gmra.mrb[0].mxu0 %v3828
        %v4599 = vpop.f32.mrb[0].mxu0
        %v4600 = vadd.f32 0.0, %v4599
        %v4601 = vpop.f32.mrb[0].mxu0
        %v4602 = vpop.f32.mrb[0].mxu0
        %v4603 = vadd.f32 0.0, %v4602
        %v4604 = vpop.f32.mrb[0].mxu0
        %4605 = vmatprep.mubr.bf16.mxu0 0
        %4606 = vmatmul.mubr.bf16.gmra.mrb[0].mxu0 %v3831
        %v4607 = vpop.f32.mrb[0].mxu0
        %v4608 = vadd.f32 0.0, %v4607
        %v4609 = vpop.f32.mrb[0].mxu0
        %v4610 = vpop.f32.mrb[0].mxu0
        %v4611 = vadd.f32 0.0, %v4610
        %v4612 = vpop.f32.mrb[0].mxu0
        %4613 = vmatprep.mubr.bf16.mxu0 0
        %4614 = vmatmul.mubr.bf16.gmra.mrb[0].mxu0 %v3834
        %v4615 = vpop.f32.mrb[0].mxu0
        %v4616 = vadd.f32 0.0, %v4615
        %v4617 = vpop.f32.mrb[0].mxu0
        %v4618 = vpop.f32.mrb[0].mxu0
        %v4619 = vadd.f32 0.0, %v4618
        %v4620 = vpop.f32.mrb[0].mxu0
        %4621 = vmatprep.mubr.bf16.mxu0 0
        %4622 = vmatmul.mubr.bf16.gmra.mrb[0].mxu0 %v3837
        %v4623 = vpop.f32.mrb[0].mxu0
        %v4624 = vadd.f32 0.0, %v4623
        %v4625 = vpop.f32.mrb[0].mxu0
        %v4626 = vpop.f32.mrb[0].mxu0
        %v4627 = vadd.f32 0.0, %v4626
        %v4628 = vpop.f32.mrb[0].mxu0
        %4629 = vmatprep.mubr.bf16.mxu0 0
        %4630 = vmatmul.mubr.bf16.gmra.mrb[0].mxu0 %v3840
        %v4631 = vpop.f32.mrb[0].mxu0
        %v4632 = vadd.f32 0.0, %v4631
        %v4633 = vpop.f32.mrb[0].mxu0
        %v4634 = vpop.f32.mrb[0].mxu0
        %v4635 = vadd.f32 0.0, %v4634
        %v4636 = vpop.f32.mrb[0].mxu0
        %4637 = vmatprep.mubr.bf16.mxu0 0
        %4638 = vmatmul.mubr.bf16.gmra.mrb[0].mxu0 %v3843
        %v4639 = vpop.f32.mrb[0].mxu0
        %v4640 = vadd.f32 0.0, %v4639
        %v4641 = vpop.f32.mrb[0].mxu0
        %v4642 = vpop.f32.mrb[0].mxu0
        %v4643 = vadd.f32 0.0, %v4642
        %v4644 = vpop.f32.mrb[0].mxu0
        %4645 = vmatprep.mubr.bf16.mxu0 0
        %4646 = vmatmul.mubr.bf16.gmra.mrb[0].mxu0 %v3846
        %v4647 = vpop.f32.mrb[0].mxu0
        %v4648 = vadd.f32 0.0, %v4647
        %v4649 = vpop.f32.mrb[0].mxu0
        %v4650 = vpop.f32.mrb[0].mxu0
        %v4651 = vadd.f32 0.0, %v4650
        %v4652 = vpop.f32.mrb[0].mxu0
        %4653 = vmatprep.mubr.bf16.mxu0 0
        %4654 = vmatmul.mubr.bf16.gmra.mrb[0].mxu0 %v3849
        %v4655 = vpop.f32.mrb[0].mxu0
        %v4656 = vadd.f32 0.0, %v4655
        %v4657 = vpop.f32.mrb[0].mxu0
        %v4658 = vpop.f32.mrb[0].mxu0
        %v4659 = vadd.f32 0.0, %v4658
        %v4660 = vpop.f32.mrb[0].mxu0
        %4661 = vmatprep.mubr.bf16.mxu0 0
        %4662 = vmatmul.mubr.bf16.gmra.mrb[0].mxu0 %v3852
        %v4663 = vpop.f32.mrb[0].mxu0
        %v4664 = vadd.f32 0.0, %v4663
        %v4665 = vpop.f32.mrb[0].mxu0
        %v4666 = vpop.f32.mrb[0].mxu0
        %v4667 = vadd.f32 0.0, %v4666
        %v4668 = vpop.f32.mrb[0].mxu0
        %4669 = vmatprep.mubr.bf16.mxu0 0
        %4670 = vmatmul.mubr.bf16.gmra.mrb[0].mxu0 %v3855
        %v4671 = vpop.f32.mrb[0].mxu0
        %v4672 = vadd.f32 0.0, %v4671
        %v4673 = vpop.f32.mrb[0].mxu0
        %v4674 = vpop.f32.mrb[0].mxu0
        %v4675 = vpop.f32.mrb[0].mxu0
        %4676 = vmatprep.mubr.bf16.mxu0 0
        %4677 = vmatmul.mubr.bf16.gmra.mrb[0].mxu0 %v3858
        %v4678 = vpop.f32.mrb[0].mxu0
        %v4679 = vpop.f32.mrb[0].mxu0
        %v4680 = vpop.f32.mrb[0].mxu0
        %v4681 = vpop.f32.mrb[0].mxu0
        %4682 = vdwg.mxu0
        %v4683 = vadd.f32 %v3397, %v4480
        %v4684 = vadd.f32 %v3400, %v4483
        %v4685 = vadd.f32 %v3405, %v4488
        %v4686 = vadd.f32 %v3408, %v4491
        %v4687 = vadd.f32 %v3413, %v4496
        %v4688 = vadd.f32 %v3416, %v4499
        %v4689 = vadd.f32 %v3421, %v4504
        %v4690 = vadd.f32 %v3424, %v4507
        %v4691 = vadd.f32 %v3429, %v4512
        %v4692 = vadd.f32 %v3432, %v4515
        %v4693 = vadd.f32 %v3437, %v4520
        %v4694 = vadd.f32 %v3440, %v4523
        %v4695 = vadd.f32 %v3445, %v4528
        %v4696 = vadd.f32 %v3448, %v4531
        %v4697 = vadd.f32 %v3453, %v4536
        %v4698 = vadd.f32 %v3456, %v4539
        %v4699 = vadd.f32 %v3461, %v4544
        %v4700 = vadd.f32 %v3464, %v4547
        %v4701 = vadd.f32 %v3469, %v4552
        %v4702 = vadd.f32 %v3472, %v4555
        %v4703 = vadd.f32 %v3477, %v4560
        %v4704 = vadd.f32 %v3480, %v4563
        %v4705 = vadd.f32 %v3485, %v4568
        %v4706 = vadd.f32 %v3488, %v4571
        %v4707 = vadd.f32 %v3493, %v4576
        %v4708 = vadd.f32 %v3496, %v4579
        %v4709 = vadd.f32 %v3501, %v4584
        %v4710 = vadd.f32 %v3504, %v4587
        %v4711 = vadd.f32 %v3509, %v4592
        %v4712 = vadd.f32 %v3512, %v4595
        %v4713 = vadd.f32 %v3517, %v4600
        %v4714 = vadd.f32 %v3520, %v4603
        %v4715 = vadd.f32 %v3525, %v4608
        %v4716 = vadd.f32 %v3528, %v4611
        %v4717 = vadd.f32 %v3533, %v4616
        %v4718 = vadd.f32 %v3536, %v4619
        %v4719 = vadd.f32 %v3541, %v4624
        %v4720 = vadd.f32 %v3544, %v4627
        %v4721 = vadd.f32 %v3549, %v4632
        %v4722 = vadd.f32 %v3552, %v4635
        %v4723 = vadd.f32 %v3557, %v4640
        %v4724 = vadd.f32 %v3560, %v4643
        %v4725 = vadd.f32 %v3565, %v4648
        %v4726 = vadd.f32 %v3568, %v4651
        %v4727 = vadd.f32 %v3573, %v4656
        %v4728 = vadd.f32 %v3576, %v4659
        %v4729 = vadd.f32 %v3581, %v4664
        %v4730 = vadd.f32 %v3584, %v4667
        %v4731 = vadd.f32 %v3589, %v4672
        %vm4781 = vcmask 1046528
        %v4782 = vrot.slane %v4391, 1
        %v4783 = vrot.slane %v4392, 1
        %v4784 = vsel %vm4781, %v4782, %v4783
        %v4785 = vrot.slane %v4393, 1
        %v4786 = vsel %vm4781, %v4783, %v4785
        %v4787 = vrot.slane %v4394, 1
        %v4788 = vsel %vm4781, %v4785, %v4787
        %v4789 = vrot.slane %v4395, 1
        %v4790 = vsel %vm4781, %v4787, %v4789
        %v4791 = vrot.slane %v4396, 1
        %v4792 = vsel %vm4781, %v4789, %v4791
        %v4793 = vrot.slane %v4397, 1
        %v4794 = vsel %vm4781, %v4791, %v4793
        %v4795 = vrot.slane %v4398, 1
        %v4796 = vsel %vm4781, %v4793, %v4795
        %v4797 = vrot.slane %v4399, 1
        %v4798 = vsel %vm4781, %v4795, %v4797
        %v4799 = vrot.slane %v4400, 1
        %v4800 = vsel %vm4781, %v4797, %v4799
        %v4801 = vrot.slane %v4401, 1
        %v4802 = vsel %vm4781, %v4799, %v4801
        %v4803 = vrot.slane %v4402, 1
        %v4804 = vsel %vm4781, %v4801, %v4803
        %v4805 = vrot.slane %v4403, 1
        %v4806 = vsel %vm4781, %v4803, %v4805
        %v4807 = vrot.slane %v4404, 1
        %v4808 = vsel %vm4781, %v4805, %v4807
        %v4809 = vrot.slane %v4405, 1
        %v4810 = vsel %vm4781, %v4807, %v4809
        %v4811 = vrot.slane %v4406, 1
        %v4812 = vsel %vm4781, %v4809, %v4811
        %v4813 = vrot.slane %v4407, 1
        %v4814 = vsel %vm4781, %v4811, %v4813
        %v4815 = vrot.slane %v4408, 1
        %v4816 = vsel %vm4781, %v4813, %v4815
        %v4817 = vrot.slane %v4409, 1
        %v4818 = vsel %vm4781, %v4815, %v4817
        %v4819 = vrot.slane %v4410, 1
        %v4820 = vsel %vm4781, %v4817, %v4819
        %v4821 = vrot.slane %v4411, 1
        %v4822 = vsel %vm4781, %v4819, %v4821
        %v4823 = vrot.slane %v4412, 1
        %v4824 = vsel %vm4781, %v4821, %v4823
        %v4825 = vrot.slane %v4413, 1
        %v4826 = vsel %vm4781, %v4823, %v4825
        %v4827 = vrot.slane %v4414, 1
        %v4828 = vsel %vm4781, %v4825, %v4827
        %v4829 = vrot.slane %v4415, 1
        %v4830 = vsel %vm4781, %v4827, %v4829
        %v4831 = vrot.slane %v4416, 1
        %v4832 = vsel %vm4781, %v4829, %v4831
        %v4833 = vrot.slane %v4417, 1
        %v4834 = vsel %vm4781, %v4831, %v4833
        %v4835 = vrot.slane %v4418, 1
        %v4836 = vsel %vm4781, %v4833, %v4835
        %v4837 = vrot.slane %v4419, 1
        %v4838 = vsel %vm4781, %v4835, %v4837
        %v4839 = vrot.slane %v4420, 1
        %v4840 = vsel %vm4781, %v4837, %v4839
        %v4841 = vrot.slane %v4421, 1
        %v4842 = vsel %vm4781, %v4839, %v4841
        %v4843 = vrot.slane %v4422, 1
        %v4844 = vsel %vm4781, %v4841, %v4843
        %v4845 = vrot.slane %v4423, 1
        %v4846 = vsel %vm4781, %v4843, %v4845
        %v4847 = vrot.slane %v4424, 1
        %v4848 = vsel %vm4781, %v4845, %v4847
        %v4849 = vrot.slane %v4425, 1
        %v4850 = vsel %vm4781, %v4847, %v4849
        %v4851 = vrot.slane %v4426, 1
        %v4852 = vsel %vm4781, %v4849, %v4851
        %v4853 = vrot.slane %v4427, 1
        %v4854 = vsel %vm4781, %v4851, %v4853
        %v4855 = vrot.slane %v4428, 1
        %v4856 = vsel %vm4781, %v4853, %v4855
        %v4857 = vrot.slane %v4429, 1
        %v4858 = vsel %vm4781, %v4855, %v4857
        %v4859 = vrot.slane %v4430, 1
        %v4860 = vsel %vm4781, %v4857, %v4859
        %v4861 = vrot.slane %v4431, 1
        %v4862 = vsel %vm4781, %v4859, %v4861
        %v4863 = vrot.slane %v4432, 1
        %v4864 = vsel %vm4781, %v4861, %v4863
        %v4865 = vrot.slane %v4433, 1
        %v4866 = vsel %vm4781, %v4863, %v4865
        %v4867 = vrot.slane %v4434, 1
        %v4868 = vsel %vm4781, %v4865, %v4867
        %v4869 = vrot.slane %v4435, 1
        %v4870 = vsel %vm4781, %v4867, %v4869
        %v4871 = vrot.slane %v4436, 1
        %v4872 = vsel %vm4781, %v4869, %v4871
        %v4873 = vrot.slane %v4437, 1
        %v4874 = vsel %vm4781, %v4871, %v4873
        %v4875 = vrot.slane %v4438, 1
        %v4876 = vsel %vm4781, %v4873, %v4875
        %v4877 = vrot.slane %v4439, 1
        %v4878 = vsel %vm4781, %v4875, %v4877
        %v4927 = vadd.f32 %v4100, %v4784
        %v4928 = vadd.f32 %v4101, %v4786
        %v4929 = vadd.f32 %v4102, %v4788
        %v4930 = vadd.f32 %v4103, %v4790
        %v4931 = vadd.f32 %v4104, %v4792
        %v4932 = vadd.f32 %v4105, %v4794
        %v4933 = vadd.f32 %v4106, %v4796
        %v4934 = vadd.f32 %v4107, %v4798
        %v4935 = vadd.f32 %v4108, %v4800
        %v4936 = vadd.f32 %v4109, %v4802
        %v4937 = vadd.f32 %v4110, %v4804
        %v4938 = vadd.f32 %v4111, %v4806
        %v4939 = vadd.f32 %v4112, %v4808
        %v4940 = vadd.f32 %v4113, %v4810
        %v4941 = vadd.f32 %v4114, %v4812
        %v4942 = vadd.f32 %v4115, %v4814
        %v4943 = vadd.f32 %v4116, %v4816
        %v4944 = vadd.f32 %v4117, %v4818
        %v4945 = vadd.f32 %v4118, %v4820
        %v4946 = vadd.f32 %v4119, %v4822
        %v4947 = vadd.f32 %v4120, %v4824
        %v4948 = vadd.f32 %v4121, %v4826
        %v4949 = vadd.f32 %v4122, %v4828
        %v4950 = vadd.f32 %v4123, %v4830
        %v4951 = vadd.f32 %v4124, %v4832
        %v4952 = vadd.f32 %v4125, %v4834
        %v4953 = vadd.f32 %v4126, %v4836
        %v4954 = vadd.f32 %v4127, %v4838
        %v4955 = vadd.f32 %v4128, %v4840
        %v4956 = vadd.f32 %v4129, %v4842
        %v4957 = vadd.f32 %v4130, %v4844
        %v4958 = vadd.f32 %v4131, %v4846
        %v4959 = vadd.f32 %v4132, %v4848
        %v4960 = vadd.f32 %v4133, %v4850
        %v4961 = vadd.f32 %v4134, %v4852
        %v4962 = vadd.f32 %v4135, %v4854
        %v4963 = vadd.f32 %v4136, %v4856
        %v4964 = vadd.f32 %v4137, %v4858
        %v4965 = vadd.f32 %v4138, %v4860
        %v4966 = vadd.f32 %v4139, %v4862
        %v4967 = vadd.f32 %v4140, %v4864
        %v4968 = vadd.f32 %v4141, %v4866
        %v4969 = vadd.f32 %v4142, %v4868
        %v4970 = vadd.f32 %v4143, %v4870
        %v4971 = vadd.f32 %v4144, %v4872
        %v4972 = vadd.f32 %v4145, %v4874
        %v4973 = vadd.f32 %v4146, %v4876
        %v4974 = vadd.f32 %v4147, %v4878
        %vm5024 = vcmask 1045504
        %v5025 = vrot.slane %v4683, 2
        %v5026 = vrot.slane %v4684, 2
        %v5027 = vsel %vm5024, %v5025, %v5026
        %v5028 = vrot.slane %v4685, 2
        %v5029 = vsel %vm5024, %v5026, %v5028
        %v5030 = vrot.slane %v4686, 2
        %v5031 = vsel %vm5024, %v5028, %v5030
        %v5032 = vrot.slane %v4687, 2
        %v5033 = vsel %vm5024, %v5030, %v5032
        %v5034 = vrot.slane %v4688, 2
        %v5035 = vsel %vm5024, %v5032, %v5034
        %v5036 = vrot.slane %v4689, 2
        %v5037 = vsel %vm5024, %v5034, %v5036
        %v5038 = vrot.slane %v4690, 2
        %v5039 = vsel %vm5024, %v5036, %v5038
        %v5040 = vrot.slane %v4691, 2
        %v5041 = vsel %vm5024, %v5038, %v5040
        %v5042 = vrot.slane %v4692, 2
        %v5043 = vsel %vm5024, %v5040, %v5042
        %v5044 = vrot.slane %v4693, 2
        %v5045 = vsel %vm5024, %v5042, %v5044
        %v5046 = vrot.slane %v4694, 2
        %v5047 = vsel %vm5024, %v5044, %v5046
        %v5048 = vrot.slane %v4695, 2
        %v5049 = vsel %vm5024, %v5046, %v5048
        %v5050 = vrot.slane %v4696, 2
        %v5051 = vsel %vm5024, %v5048, %v5050
        %v5052 = vrot.slane %v4697, 2
        %v5053 = vsel %vm5024, %v5050, %v5052
        %v5054 = vrot.slane %v4698, 2
        %v5055 = vsel %vm5024, %v5052, %v5054
        %v5056 = vrot.slane %v4699, 2
        %v5057 = vsel %vm5024, %v5054, %v5056
        %v5058 = vrot.slane %v4700, 2
        %v5059 = vsel %vm5024, %v5056, %v5058
        %v5060 = vrot.slane %v4701, 2
        %v5061 = vsel %vm5024, %v5058, %v5060
        %v5062 = vrot.slane %v4702, 2
        %v5063 = vsel %vm5024, %v5060, %v5062
        %v5064 = vrot.slane %v4703, 2
        %v5065 = vsel %vm5024, %v5062, %v5064
        %v5066 = vrot.slane %v4704, 2
        %v5067 = vsel %vm5024, %v5064, %v5066
        %v5068 = vrot.slane %v4705, 2
        %v5069 = vsel %vm5024, %v5066, %v5068
        %v5070 = vrot.slane %v4706, 2
        %v5071 = vsel %vm5024, %v5068, %v5070
        %v5072 = vrot.slane %v4707, 2
        %v5073 = vsel %vm5024, %v5070, %v5072
        %v5074 = vrot.slane %v4708, 2
        %v5075 = vsel %vm5024, %v5072, %v5074
        %v5076 = vrot.slane %v4709, 2
        %v5077 = vsel %vm5024, %v5074, %v5076
        %v5078 = vrot.slane %v4710, 2
        %v5079 = vsel %vm5024, %v5076, %v5078
        %v5080 = vrot.slane %v4711, 2
        %v5081 = vsel %vm5024, %v5078, %v5080
        %v5082 = vrot.slane %v4712, 2
        %v5083 = vsel %vm5024, %v5080, %v5082
        %v5084 = vrot.slane %v4713, 2
        %v5085 = vsel %vm5024, %v5082, %v5084
        %v5086 = vrot.slane %v4714, 2
        %v5087 = vsel %vm5024, %v5084, %v5086
        %v5088 = vrot.slane %v4715, 2
        %v5089 = vsel %vm5024, %v5086, %v5088
        %v5090 = vrot.slane %v4716, 2
        %v5091 = vsel %vm5024, %v5088, %v5090
        %v5092 = vrot.slane %v4717, 2
        %v5093 = vsel %vm5024, %v5090, %v5092
        %v5094 = vrot.slane %v4718, 2
        %v5095 = vsel %vm5024, %v5092, %v5094
        %v5096 = vrot.slane %v4719, 2
        %v5097 = vsel %vm5024, %v5094, %v5096
        %v5098 = vrot.slane %v4720, 2
        %v5099 = vsel %vm5024, %v5096, %v5098
        %v5100 = vrot.slane %v4721, 2
        %v5101 = vsel %vm5024, %v5098, %v5100
        %v5102 = vrot.slane %v4722, 2
        %v5103 = vsel %vm5024, %v5100, %v5102
        %v5104 = vrot.slane %v4723, 2
        %v5105 = vsel %vm5024, %v5102, %v5104
        %v5106 = vrot.slane %v4724, 2
        %v5107 = vsel %vm5024, %v5104, %v5106
        %v5108 = vrot.slane %v4725, 2
        %v5109 = vsel %vm5024, %v5106, %v5108
        %v5110 = vrot.slane %v4726, 2
        %v5111 = vsel %vm5024, %v5108, %v5110
        %v5112 = vrot.slane %v4727, 2
        %v5113 = vsel %vm5024, %v5110, %v5112
        %v5114 = vrot.slane %v4728, 2
        %v5115 = vsel %vm5024, %v5112, %v5114
        %v5116 = vrot.slane %v4729, 2
        %v5117 = vsel %vm5024, %v5114, %v5116
        %v5118 = vrot.slane %v4730, 2
        %v5119 = vsel %vm5024, %v5116, %v5118
        %v5120 = vrot.slane %v4731, 2
        %v5121 = vsel %vm5024, %v5118, %v5120
        %v5170 = vadd.f32 %v4927, %v5027
        %v5171 = vadd.f32 %v4928, %v5029
        %v5172 = vadd.f32 %v4929, %v5031
        %v5173 = vadd.f32 %v4930, %v5033
        %v5174 = vadd.f32 %v4931, %v5035
        %v5175 = vadd.f32 %v4932, %v5037
        %v5176 = vadd.f32 %v4933, %v5039
        %v5177 = vadd.f32 %v4934, %v5041
        %v5178 = vadd.f32 %v4935, %v5043
        %v5179 = vadd.f32 %v4936, %v5045
        %v5180 = vadd.f32 %v4937, %v5047
        %v5181 = vadd.f32 %v4938, %v5049
        %v5182 = vadd.f32 %v4939, %v5051
        %v5183 = vadd.f32 %v4940, %v5053
        %v5184 = vadd.f32 %v4941, %v5055
        %v5185 = vadd.f32 %v4942, %v5057
        %v5186 = vadd.f32 %v4943, %v5059
        %v5187 = vadd.f32 %v4944, %v5061
        %v5188 = vadd.f32 %v4945, %v5063
        %v5189 = vadd.f32 %v4946, %v5065
        %v5190 = vadd.f32 %v4947, %v5067
        %v5191 = vadd.f32 %v4948, %v5069
        %v5192 = vadd.f32 %v4949, %v5071
        %v5193 = vadd.f32 %v4950, %v5073
        %v5194 = vadd.f32 %v4951, %v5075
        %v5195 = vadd.f32 %v4952, %v5077
        %v5196 = vadd.f32 %v4953, %v5079
        %v5197 = vadd.f32 %v4954, %v5081
        %v5198 = vadd.f32 %v4955, %v5083
        %v5199 = vadd.f32 %v4956, %v5085
        %v5200 = vadd.f32 %v4957, %v5087
        %v5201 = vadd.f32 %v4958, %v5089
        %v5202 = vadd.f32 %v4959, %v5091
        %v5203 = vadd.f32 %v4960, %v5093
        %v5204 = vadd.f32 %v4961, %v5095
        %v5205 = vadd.f32 %v4962, %v5097
        %v5206 = vadd.f32 %v4963, %v5099
        %v5207 = vadd.f32 %v4964, %v5101
        %v5208 = vadd.f32 %v4965, %v5103
        %v5209 = vadd.f32 %v4966, %v5105
        %v5210 = vadd.f32 %v4967, %v5107
        %v5211 = vadd.f32 %v4968, %v5109
        %v5212 = vadd.f32 %v4969, %v5111
        %v5213 = vadd.f32 %v4970, %v5113
        %v5214 = vadd.f32 %v4971, %v5115
        %v5215 = vadd.f32 %v4972, %v5117
        %v5216 = vadd.f32 %v4973, %v5119
        %v5217 = vadd.f32 %v4974, %v5121
        %v5219 = vlaneseq
        %v5220 = vshrl.u32 %v5219, 7
        %v5221 = vsub.s32 0, %v5220
        %v5222 = vrot.slane %v1628, %v5221
        %v5224 = vadd.f32 %v5170, %v5222
        %v5225 = vadd.f32 %v5171, %v5222
        %v5226 = vadd.f32 %v5172, %v5222
        %v5227 = vadd.f32 %v5173, %v5222
        %v5228 = vadd.f32 %v5174, %v5222
        %v5229 = vadd.f32 %v5175, %v5222
        %v5230 = vadd.f32 %v5176, %v5222
        %v5231 = vadd.f32 %v5177, %v5222
        %v5232 = vadd.f32 %v5178, %v5222
        %v5233 = vadd.f32 %v5179, %v5222
        %v5234 = vadd.f32 %v5180, %v5222
        %v5235 = vadd.f32 %v5181, %v5222
        %v5236 = vadd.f32 %v5182, %v5222
        %v5237 = vadd.f32 %v5183, %v5222
        %v5238 = vadd.f32 %v5184, %v5222
        %v5239 = vadd.f32 %v5185, %v5222
        %v5240 = vadd.f32 %v5186, %v5222
        %v5241 = vadd.f32 %v5187, %v5222
        %v5242 = vadd.f32 %v5188, %v5222
        %v5243 = vadd.f32 %v5189, %v5222
        %v5244 = vadd.f32 %v5190, %v5222
        %v5245 = vadd.f32 %v5191, %v5222
        %v5246 = vadd.f32 %v5192, %v5222
        %v5247 = vadd.f32 %v5193, %v5222
        %v5248 = vadd.f32 %v5194, %v5222
        %v5249 = vadd.f32 %v5195, %v5222
        %v5250 = vadd.f32 %v5196, %v5222
        %v5251 = vadd.f32 %v5197, %v5222
        %v5252 = vadd.f32 %v5198, %v5222
        %v5253 = vadd.f32 %v5199, %v5222
        %v5254 = vadd.f32 %v5200, %v5222
        %v5255 = vadd.f32 %v5201, %v5222
        %v5256 = vadd.f32 %v5202, %v5222
        %v5257 = vadd.f32 %v5203, %v5222
        %v5258 = vadd.f32 %v5204, %v5222
        %v5259 = vadd.f32 %v5205, %v5222
        %v5260 = vadd.f32 %v5206, %v5222
        %v5261 = vadd.f32 %v5207, %v5222
        %v5262 = vadd.f32 %v5208, %v5222
        %v5263 = vadd.f32 %v5209, %v5222
        %v5264 = vadd.f32 %v5210, %v5222
        %v5265 = vadd.f32 %v5211, %v5222
        %v5266 = vadd.f32 %v5212, %v5222
        %v5267 = vadd.f32 %v5213, %v5222
        %v5268 = vadd.f32 %v5214, %v5222
        %v5269 = vadd.f32 %v5215, %v5222
        %v5270 = vadd.f32 %v5216, %v5222
        %v5271 = vadd.f32 %v5217, %v5222
        %v5272 = vmax.f32 %v5224, 0.0
        %v5273 = vmax.f32 %v5225, 0.0
        %v5274 = vmax.f32 %v5226, 0.0
        %v5275 = vmax.f32 %v5227, 0.0
        %v5276 = vmax.f32 %v5228, 0.0
        %v5277 = vmax.f32 %v5229, 0.0
        %v5278 = vmax.f32 %v5230, 0.0
        %v5279 = vmax.f32 %v5231, 0.0
        %v5280 = vmax.f32 %v5232, 0.0
        %v5281 = vmax.f32 %v5233, 0.0
        %v5282 = vmax.f32 %v5234, 0.0
        %v5283 = vmax.f32 %v5235, 0.0
        %v5284 = vmax.f32 %v5236, 0.0
        %v5285 = vmax.f32 %v5237, 0.0
        %v5286 = vmax.f32 %v5238, 0.0
        %v5287 = vmax.f32 %v5239, 0.0
        %v5288 = vmax.f32 %v5240, 0.0
        %v5289 = vmax.f32 %v5241, 0.0
        %v5290 = vmax.f32 %v5242, 0.0
        %v5291 = vmax.f32 %v5243, 0.0
        %v5292 = vmax.f32 %v5244, 0.0
        %v5293 = vmax.f32 %v5245, 0.0
        %v5294 = vmax.f32 %v5246, 0.0
        %v5295 = vmax.f32 %v5247, 0.0
        %v5296 = vmax.f32 %v5248, 0.0
        %v5297 = vmax.f32 %v5249, 0.0
        %v5298 = vmax.f32 %v5250, 0.0
        %v5299 = vmax.f32 %v5251, 0.0
        %v5300 = vmax.f32 %v5252, 0.0
        %v5301 = vmax.f32 %v5253, 0.0
        %v5302 = vmax.f32 %v5254, 0.0
        %v5303 = vmax.f32 %v5255, 0.0
        %v5304 = vmax.f32 %v5256, 0.0
        %v5305 = vmax.f32 %v5257, 0.0
        %v5306 = vmax.f32 %v5258, 0.0
        %v5307 = vmax.f32 %v5259, 0.0
        %v5308 = vmax.f32 %v5260, 0.0
        %v5309 = vmax.f32 %v5261, 0.0
        %v5310 = vmax.f32 %v5262, 0.0
        %v5311 = vmax.f32 %v5263, 0.0
        %v5312 = vmax.f32 %v5264, 0.0
        %v5313 = vmax.f32 %v5265, 0.0
        %v5314 = vmax.f32 %v5266, 0.0
        %v5315 = vmax.f32 %v5267, 0.0
        %v5316 = vmax.f32 %v5268, 0.0
        %v5317 = vmax.f32 %v5269, 0.0
        %v5318 = vmax.f32 %v5270, 0.0
        %v5319 = vmax.f32 %v5271, 0.0
        %vm5320 = vcmp.lt.s32.totalorder %v1625, 16
        %vm5321 = vcmp.lt.s32.totalorder %v1626, 16
        %vm5322 = vcmp.lt.s32.totalorder %v1627, 16
        %v5323 = vsel %vm5320, 1, 0
        %v5324 = vsel %vm5321, 1, 0
        %v5325 = vsel %vm5322, 1, 0
        %vm5326 = vcmp.eq.s32.totalorder %v5323, 1
        %vm5327 = vcmp.eq.s32.totalorder %v5324, 1
        %vm5328 = vcmp.eq.s32.totalorder %v5325, 1
        %v5329 = vsel %vm5326, %v5272, 0.0
        %v5330 = vsel %vm5327, %v5273, 0.0
        %v5331 = vsel %vm5328, %v5274, 0.0
        %v5332 = vsel %vm5326, %v5275, 0.0
        %v5333 = vsel %vm5327, %v5276, 0.0
        %v5334 = vsel %vm5328, %v5277, 0.0
        %v5335 = vsel %vm5326, %v5278, 0.0
        %v5336 = vsel %vm5327, %v5279, 0.0
        %v5337 = vsel %vm5328, %v5280, 0.0
        %v5338 = vsel %vm5326, %v5281, 0.0
        %v5339 = vsel %vm5327, %v5282, 0.0
        %v5340 = vsel %vm5328, %v5283, 0.0
        %v5341 = vsel %vm5326, %v5284, 0.0
        %v5342 = vsel %vm5327, %v5285, 0.0
        %v5343 = vsel %vm5328, %v5286, 0.0
        %v5344 = vsel %vm5326, %v5287, 0.0
        %v5345 = vsel %vm5327, %v5288, 0.0
        %v5346 = vsel %vm5328, %v5289, 0.0
        %v5347 = vsel %vm5326, %v5290, 0.0
        %v5348 = vsel %vm5327, %v5291, 0.0
        %v5349 = vsel %vm5328, %v5292, 0.0
        %v5350 = vsel %vm5326, %v5293, 0.0
        %v5351 = vsel %vm5327, %v5294, 0.0
        %v5352 = vsel %vm5328, %v5295, 0.0
        %v5353 = vsel %vm5326, %v5296, 0.0
        %v5354 = vsel %vm5327, %v5297, 0.0
        %v5355 = vsel %vm5328, %v5298, 0.0
        %v5356 = vsel %vm5326, %v5299, 0.0
        %v5357 = vsel %vm5327, %v5300, 0.0
        %v5358 = vsel %vm5328, %v5301, 0.0
        %v5359 = vsel %vm5326, %v5302, 0.0
        %v5360 = vsel %vm5327, %v5303, 0.0
        %v5361 = vsel %vm5328, %v5304, 0.0
        %v5362 = vsel %vm5326, %v5305, 0.0
        %v5363 = vsel %vm5327, %v5306, 0.0
        %v5364 = vsel %vm5328, %v5307, 0.0
        %v5365 = vsel %vm5326, %v5308, 0.0
        %v5366 = vsel %vm5327, %v5309, 0.0
        %v5367 = vsel %vm5328, %v5310, 0.0
        %v5368 = vsel %vm5326, %v5311, 0.0
        %v5369 = vsel %vm5327, %v5312, 0.0
        %v5370 = vsel %vm5328, %v5313, 0.0
        %v5371 = vsel %vm5326, %v5314, 0.0
        %v5372 = vsel %vm5327, %v5315, 0.0
        %v5373 = vsel %vm5328, %v5316, 0.0
        %v5374 = vsel %vm5326, %v5317, 0.0
        %v5375 = vsel %vm5327, %v5318, 0.0
        %v5376 = vsel %vm5328, %v5319, 0.0
        %v5377 = vpack.c.bf16 %v5330, %v5329
        %v5378 = vpack.c.bf16 %v5331, %v5331
        %v5379 = vpack.c.bf16 %v5333, %v5332
        %v5380 = vpack.c.bf16 %v5334, %v5334
        %v5381 = vpack.c.bf16 %v5336, %v5335
        %v5382 = vpack.c.bf16 %v5337, %v5337
        %v5383 = vpack.c.bf16 %v5339, %v5338
        %v5384 = vpack.c.bf16 %v5340, %v5340
        %v5385 = vpack.c.bf16 %v5342, %v5341
        %v5386 = vpack.c.bf16 %v5343, %v5343
        %v5387 = vpack.c.bf16 %v5345, %v5344
        %v5388 = vpack.c.bf16 %v5346, %v5346
        %v5389 = vpack.c.bf16 %v5348, %v5347
        %v5390 = vpack.c.bf16 %v5349, %v5349
        %v5391 = vpack.c.bf16 %v5351, %v5350
        %v5392 = vpack.c.bf16 %v5352, %v5352
        %v5393 = vpack.c.bf16 %v5354, %v5353
        %v5394 = vpack.c.bf16 %v5355, %v5355
        %v5395 = vpack.c.bf16 %v5357, %v5356
        %v5396 = vpack.c.bf16 %v5358, %v5358
        %v5397 = vpack.c.bf16 %v5360, %v5359
        %v5398 = vpack.c.bf16 %v5361, %v5361
        %v5399 = vpack.c.bf16 %v5363, %v5362
        %v5400 = vpack.c.bf16 %v5364, %v5364
        %v5401 = vpack.c.bf16 %v5366, %v5365
        %v5402 = vpack.c.bf16 %v5367, %v5367
        %v5403 = vpack.c.bf16 %v5369, %v5368
        %v5404 = vpack.c.bf16 %v5370, %v5370
        %v5405 = vpack.c.bf16 %v5372, %v5371
        %v5406 = vpack.c.bf16 %v5373, %v5373
        %v5407 = vpack.c.bf16 %v5375, %v5374
        %v5408 = vpack.c.bf16 %v5376, %v5376
        %v5441 = vunpack.c.l.b16 %v5377
        %v5442 = vunpack.c.h.b16 %v5377
        %v5443 = vunpack.c.l.b16 %v5378
        %v5444 = vunpack.c.l.b16 %v5379
        %v5445 = vunpack.c.h.b16 %v5379
        %v5446 = vunpack.c.l.b16 %v5380
        %v5447 = vunpack.c.l.b16 %v5381
        %v5448 = vunpack.c.h.b16 %v5381
        %v5449 = vunpack.c.l.b16 %v5382
        %v5450 = vunpack.c.l.b16 %v5383
        %v5451 = vunpack.c.h.b16 %v5383
        %v5452 = vunpack.c.l.b16 %v5384
        %v5453 = vunpack.c.l.b16 %v5385
        %v5454 = vunpack.c.h.b16 %v5385
        %v5455 = vunpack.c.l.b16 %v5386
        %v5456 = vunpack.c.l.b16 %v5387
        %v5457 = vunpack.c.h.b16 %v5387
        %v5458 = vunpack.c.l.b16 %v5388
        %v5459 = vunpack.c.l.b16 %v5389
        %v5460 = vunpack.c.h.b16 %v5389
        %v5461 = vunpack.c.l.b16 %v5390
        %v5462 = vunpack.c.l.b16 %v5391
        %v5463 = vunpack.c.h.b16 %v5391
        %v5464 = vunpack.c.l.b16 %v5392
        %v5465 = vunpack.c.l.b16 %v5393
        %v5466 = vunpack.c.h.b16 %v5393
        %v5467 = vunpack.c.l.b16 %v5394
        %v5468 = vunpack.c.l.b16 %v5395
        %v5469 = vunpack.c.h.b16 %v5395
        %v5470 = vunpack.c.l.b16 %v5396
        %v5471 = vunpack.c.l.b16 %v5397
        %v5472 = vunpack.c.h.b16 %v5397
        %v5473 = vunpack.c.l.b16 %v5398
        %v5474 = vunpack.c.l.b16 %v5399
        %v5475 = vunpack.c.h.b16 %v5399
        %v5476 = vunpack.c.l.b16 %v5400
        %v5477 = vunpack.c.l.b16 %v5401
        %v5478 = vunpack.c.h.b16 %v5401
        %v5479 = vunpack.c.l.b16 %v5402
        %v5480 = vunpack.c.l.b16 %v5403
        %v5481 = vunpack.c.h.b16 %v5403
        %v5482 = vunpack.c.l.b16 %v5404
        %v5483 = vunpack.c.l.b16 %v5405
        %v5484 = vunpack.c.h.b16 %v5405
        %v5485 = vunpack.c.l.b16 %v5406
        %v5486 = vunpack.c.l.b16 %v5407
        %v5487 = vunpack.c.h.b16 %v5407
        %v5488 = vunpack.c.l.b16 %v5408
        %v5489 = vpack.c.b16 %v5441, %v5441
        %v5490 = vpack.c.b16 %v5442, %v5442
        %v5491 = vpack.c.b16 %v5443, %v5443
        %v5492 = vpack.c.b16 %v5444, %v5444
        %v5493 = vpack.c.b16 %v5445, %v5445
        %v5494 = vpack.c.b16 %v5446, %v5446
        %v5495 = vpack.c.b16 %v5447, %v5447
        %v5496 = vpack.c.b16 %v5448, %v5448
        %v5497 = vpack.c.b16 %v5449, %v5449
        %v5498 = vpack.c.b16 %v5450, %v5450
        %v5499 = vpack.c.b16 %v5451, %v5451
        %v5500 = vpack.c.b16 %v5452, %v5452
        %v5501 = vpack.c.b16 %v5453, %v5453
        %v5502 = vpack.c.b16 %v5454, %v5454
        %v5503 = vpack.c.b16 %v5455, %v5455
        %v5504 = vpack.c.b16 %v5456, %v5456
        %v5505 = vpack.c.b16 %v5457, %v5457
        %v5506 = vpack.c.b16 %v5458, %v5458
        %v5507 = vpack.c.b16 %v5459, %v5459
        %v5508 = vpack.c.b16 %v5460, %v5460
        %v5509 = vpack.c.b16 %v5461, %v5461
        %v5510 = vpack.c.b16 %v5462, %v5462
        %v5511 = vpack.c.b16 %v5463, %v5463
        %v5512 = vpack.c.b16 %v5464, %v5464
        %v5513 = vpack.c.b16 %v5465, %v5465
        %v5514 = vpack.c.b16 %v5466, %v5466
        %v5515 = vpack.c.b16 %v5467, %v5467
        %v5516 = vpack.c.b16 %v5468, %v5468
        %v5517 = vpack.c.b16 %v5469, %v5469
        %v5518 = vpack.c.b16 %v5470, %v5470
        %v5519 = vpack.c.b16 %v5471, %v5471
        %v5520 = vpack.c.b16 %v5472, %v5472
        %v5521 = vpack.c.b16 %v5473, %v5473
        %v5522 = vpack.c.b16 %v5474, %v5474
        %v5523 = vpack.c.b16 %v5475, %v5475
        %v5524 = vpack.c.b16 %v5476, %v5476
        %v5525 = vpack.c.b16 %v5477, %v5477
        %v5526 = vpack.c.b16 %v5478, %v5478
        %v5527 = vpack.c.b16 %v5479, %v5479
        %v5528 = vpack.c.b16 %v5480, %v5480
        %v5529 = vpack.c.b16 %v5481, %v5481
        %v5530 = vpack.c.b16 %v5482, %v5482
        %v5531 = vpack.c.b16 %v5483, %v5483
        %v5532 = vpack.c.b16 %v5484, %v5484
        %v5533 = vpack.c.b16 %v5485, %v5485
        %v5534 = vpack.c.b16 %v5486, %v5486
        %v5535 = vpack.c.b16 %v5487, %v5487
        %v5536 = vpack.c.b16 %v5488, %v5488
        %v5538 = vshrl.u32 %v5489, 16
        %v5540 = vrot.slane %v5538, 7
        %v5541 = vshll.u32 %v5489, 16
        %v5543 = vor.u32 %v5540, %v5541
        %v5544 = vrot.slane %v5540, 4
        %v5546 = vshrl.u32 %v5490, 16
        %v5548 = vrot.slane %v5546, 7
        %v5549 = vshll.u32 %v5490, 16
        %v5551 = vor.u32 %v5548, %v5549
        %v5552 = vsel %vm620, %v5544, %v5551
        %v5553 = vrot.slane %v5548, 4
        %v5555 = vshrl.u32 %v5491, 16
        %v5557 = vrot.slane %v5555, 7
        %v5558 = vshll.u32 %v5491, 16
        %v5560 = vor.u32 %v5557, %v5558
        %v5561 = vsel %vm620, %v5553, %v5560
        %v5563 = vshrl.u32 %v5492, 16
        %v5565 = vrot.slane %v5563, 7
        %v5566 = vshll.u32 %v5492, 16
        %v5568 = vor.u32 %v5565, %v5566
        %v5569 = vrot.slane %v5565, 4
        %v5571 = vshrl.u32 %v5493, 16
        %v5573 = vrot.slane %v5571, 7
        %v5574 = vshll.u32 %v5493, 16
        %v5576 = vor.u32 %v5573, %v5574
        %v5577 = vsel %vm620, %v5569, %v5576
        %v5578 = vrot.slane %v5573, 4
        %v5580 = vshrl.u32 %v5494, 16
        %v5582 = vrot.slane %v5580, 7
        %v5583 = vshll.u32 %v5494, 16
        %v5585 = vor.u32 %v5582, %v5583
        %v5586 = vsel %vm620, %v5578, %v5585
        %v5588 = vshrl.u32 %v5495, 16
        %v5590 = vrot.slane %v5588, 7
        %v5591 = vshll.u32 %v5495, 16
        %v5593 = vor.u32 %v5590, %v5591
        %v5594 = vrot.slane %v5590, 4
        %v5596 = vshrl.u32 %v5496, 16
        %v5598 = vrot.slane %v5596, 7
        %v5599 = vshll.u32 %v5496, 16
        %v5601 = vor.u32 %v5598, %v5599
        %v5602 = vsel %vm620, %v5594, %v5601
        %v5603 = vrot.slane %v5598, 4
        %v5605 = vshrl.u32 %v5497, 16
        %v5607 = vrot.slane %v5605, 7
        %v5608 = vshll.u32 %v5497, 16
        %v5610 = vor.u32 %v5607, %v5608
        %v5611 = vsel %vm620, %v5603, %v5610
        %v5613 = vshrl.u32 %v5498, 16
        %v5615 = vrot.slane %v5613, 7
        %v5616 = vshll.u32 %v5498, 16
        %v5618 = vor.u32 %v5615, %v5616
        %v5619 = vrot.slane %v5615, 4
        %v5621 = vshrl.u32 %v5499, 16
        %v5623 = vrot.slane %v5621, 7
        %v5624 = vshll.u32 %v5499, 16
        %v5626 = vor.u32 %v5623, %v5624
        %v5627 = vsel %vm620, %v5619, %v5626
        %v5628 = vrot.slane %v5623, 4
        %v5630 = vshrl.u32 %v5500, 16
        %v5632 = vrot.slane %v5630, 7
        %v5633 = vshll.u32 %v5500, 16
        %v5635 = vor.u32 %v5632, %v5633
        %v5636 = vsel %vm620, %v5628, %v5635
        %v5638 = vshrl.u32 %v5501, 16
        %v5640 = vrot.slane %v5638, 7
        %v5641 = vshll.u32 %v5501, 16
        %v5643 = vor.u32 %v5640, %v5641
        %v5644 = vrot.slane %v5640, 4
        %v5646 = vshrl.u32 %v5502, 16
        %v5648 = vrot.slane %v5646, 7
        %v5649 = vshll.u32 %v5502, 16
        %v5651 = vor.u32 %v5648, %v5649
        %v5652 = vsel %vm620, %v5644, %v5651
        %v5653 = vrot.slane %v5648, 4
        %v5655 = vshrl.u32 %v5503, 16
        %v5657 = vrot.slane %v5655, 7
        %v5658 = vshll.u32 %v5503, 16
        %v5660 = vor.u32 %v5657, %v5658
        %v5661 = vsel %vm620, %v5653, %v5660
        %v5663 = vshrl.u32 %v5504, 16
        %v5665 = vrot.slane %v5663, 7
        %v5666 = vshll.u32 %v5504, 16
        %v5668 = vor.u32 %v5665, %v5666
        %v5669 = vrot.slane %v5665, 4
        %v5671 = vshrl.u32 %v5505, 16
        %v5673 = vrot.slane %v5671, 7
        %v5674 = vshll.u32 %v5505, 16
        %v5676 = vor.u32 %v5673, %v5674
        %v5677 = vsel %vm620, %v5669, %v5676
        %v5678 = vrot.slane %v5673, 4
        %v5680 = vshrl.u32 %v5506, 16
        %v5682 = vrot.slane %v5680, 7
        %v5683 = vshll.u32 %v5506, 16
        %v5685 = vor.u32 %v5682, %v5683
        %v5686 = vsel %vm620, %v5678, %v5685
        %v5688 = vshrl.u32 %v5507, 16
        %v5690 = vrot.slane %v5688, 7
        %v5691 = vshll.u32 %v5507, 16
        %v5693 = vor.u32 %v5690, %v5691
        %v5694 = vrot.slane %v5690, 4
        %v5696 = vshrl.u32 %v5508, 16
        %v5698 = vrot.slane %v5696, 7
        %v5699 = vshll.u32 %v5508, 16
        %v5701 = vor.u32 %v5698, %v5699
        %v5702 = vsel %vm620, %v5694, %v5701
        %v5703 = vrot.slane %v5698, 4
        %v5705 = vshrl.u32 %v5509, 16
        %v5707 = vrot.slane %v5705, 7
        %v5708 = vshll.u32 %v5509, 16
        %v5710 = vor.u32 %v5707, %v5708
        %v5711 = vsel %vm620, %v5703, %v5710
        %v5713 = vshrl.u32 %v5510, 16
        %v5715 = vrot.slane %v5713, 7
        %v5716 = vshll.u32 %v5510, 16
        %v5718 = vor.u32 %v5715, %v5716
        %v5719 = vrot.slane %v5715, 4
        %v5721 = vshrl.u32 %v5511, 16
        %v5723 = vrot.slane %v5721, 7
        %v5724 = vshll.u32 %v5511, 16
        %v5726 = vor.u32 %v5723, %v5724
        %v5727 = vsel %vm620, %v5719, %v5726
        %v5728 = vrot.slane %v5723, 4
        %v5730 = vshrl.u32 %v5512, 16
        %v5732 = vrot.slane %v5730, 7
        %v5733 = vshll.u32 %v5512, 16
        %v5735 = vor.u32 %v5732, %v5733
        %v5736 = vsel %vm620, %v5728, %v5735
        %v5738 = vshrl.u32 %v5513, 16
        %v5740 = vrot.slane %v5738, 7
        %v5741 = vshll.u32 %v5513, 16
        %v5743 = vor.u32 %v5740, %v5741
        %v5744 = vrot.slane %v5740, 4
        %v5746 = vshrl.u32 %v5514, 16
        %v5748 = vrot.slane %v5746, 7
        %v5749 = vshll.u32 %v5514, 16
        %v5751 = vor.u32 %v5748, %v5749
        %v5752 = vsel %vm620, %v5744, %v5751
        %v5753 = vrot.slane %v5748, 4
        %v5755 = vshrl.u32 %v5515, 16
        %v5757 = vrot.slane %v5755, 7
        %v5758 = vshll.u32 %v5515, 16
        %v5760 = vor.u32 %v5757, %v5758
        %v5761 = vsel %vm620, %v5753, %v5760
        %v5763 = vshrl.u32 %v5516, 16
        %v5765 = vrot.slane %v5763, 7
        %v5766 = vshll.u32 %v5516, 16
        %v5768 = vor.u32 %v5765, %v5766
        %v5769 = vrot.slane %v5765, 4
        %v5771 = vshrl.u32 %v5517, 16
        %v5773 = vrot.slane %v5771, 7
        %v5774 = vshll.u32 %v5517, 16
        %v5776 = vor.u32 %v5773, %v5774
        %v5777 = vsel %vm620, %v5769, %v5776
        %v5778 = vrot.slane %v5773, 4
        %v5780 = vshrl.u32 %v5518, 16
        %v5782 = vrot.slane %v5780, 7
        %v5783 = vshll.u32 %v5518, 16
        %v5785 = vor.u32 %v5782, %v5783
        %v5786 = vsel %vm620, %v5778, %v5785
        %v5788 = vshrl.u32 %v5519, 16
        %v5790 = vrot.slane %v5788, 7
        %v5791 = vshll.u32 %v5519, 16
        %v5793 = vor.u32 %v5790, %v5791
        %v5794 = vrot.slane %v5790, 4
        %v5796 = vshrl.u32 %v5520, 16
        %v5798 = vrot.slane %v5796, 7
        %v5799 = vshll.u32 %v5520, 16
        %v5801 = vor.u32 %v5798, %v5799
        %v5802 = vsel %vm620, %v5794, %v5801
        %v5803 = vrot.slane %v5798, 4
        %v5805 = vshrl.u32 %v5521, 16
        %v5807 = vrot.slane %v5805, 7
        %v5808 = vshll.u32 %v5521, 16
        %v5810 = vor.u32 %v5807, %v5808
        %v5811 = vsel %vm620, %v5803, %v5810
        %v5813 = vshrl.u32 %v5522, 16
        %v5815 = vrot.slane %v5813, 7
        %v5816 = vshll.u32 %v5522, 16
        %v5818 = vor.u32 %v5815, %v5816
        %v5819 = vrot.slane %v5815, 4
        %v5821 = vshrl.u32 %v5523, 16
        %v5823 = vrot.slane %v5821, 7
        %v5824 = vshll.u32 %v5523, 16
        %v5826 = vor.u32 %v5823, %v5824
        %v5827 = vsel %vm620, %v5819, %v5826
        %v5828 = vrot.slane %v5823, 4
        %v5830 = vshrl.u32 %v5524, 16
        %v5832 = vrot.slane %v5830, 7
        %v5833 = vshll.u32 %v5524, 16
        %v5835 = vor.u32 %v5832, %v5833
        %v5836 = vsel %vm620, %v5828, %v5835
        %v5838 = vshrl.u32 %v5525, 16
        %v5840 = vrot.slane %v5838, 7
        %v5841 = vshll.u32 %v5525, 16
        %v5843 = vor.u32 %v5840, %v5841
        %v5844 = vrot.slane %v5840, 4
        %v5846 = vshrl.u32 %v5526, 16
        %v5848 = vrot.slane %v5846, 7
        %v5849 = vshll.u32 %v5526, 16
        %v5851 = vor.u32 %v5848, %v5849
        %v5852 = vsel %vm620, %v5844, %v5851
        %v5853 = vrot.slane %v5848, 4
        %v5855 = vshrl.u32 %v5527, 16
        %v5857 = vrot.slane %v5855, 7
        %v5858 = vshll.u32 %v5527, 16
        %v5860 = vor.u32 %v5857, %v5858
        %v5861 = vsel %vm620, %v5853, %v5860
        %v5863 = vshrl.u32 %v5528, 16
        %v5865 = vrot.slane %v5863, 7
        %v5866 = vshll.u32 %v5528, 16
        %v5868 = vor.u32 %v5865, %v5866
        %v5869 = vrot.slane %v5865, 4
        %v5871 = vshrl.u32 %v5529, 16
        %v5873 = vrot.slane %v5871, 7
        %v5874 = vshll.u32 %v5529, 16
        %v5876 = vor.u32 %v5873, %v5874
        %v5877 = vsel %vm620, %v5869, %v5876
        %v5878 = vrot.slane %v5873, 4
        %v5880 = vshrl.u32 %v5530, 16
        %v5882 = vrot.slane %v5880, 7
        %v5883 = vshll.u32 %v5530, 16
        %v5885 = vor.u32 %v5882, %v5883
        %v5886 = vsel %vm620, %v5878, %v5885
        %v5888 = vshrl.u32 %v5531, 16
        %v5890 = vrot.slane %v5888, 7
        %v5891 = vshll.u32 %v5531, 16
        %v5893 = vor.u32 %v5890, %v5891
        %v5894 = vrot.slane %v5890, 4
        %v5896 = vshrl.u32 %v5532, 16
        %v5898 = vrot.slane %v5896, 7
        %v5899 = vshll.u32 %v5532, 16
        %v5901 = vor.u32 %v5898, %v5899
        %v5902 = vsel %vm620, %v5894, %v5901
        %v5903 = vrot.slane %v5898, 4
        %v5905 = vshrl.u32 %v5533, 16
        %v5907 = vrot.slane %v5905, 7
        %v5908 = vshll.u32 %v5533, 16
        %v5910 = vor.u32 %v5907, %v5908
        %v5911 = vsel %vm620, %v5903, %v5910
        %v5913 = vshrl.u32 %v5534, 16
        %v5915 = vrot.slane %v5913, 7
        %v5916 = vshll.u32 %v5534, 16
        %v5918 = vor.u32 %v5915, %v5916
        %v5919 = vrot.slane %v5915, 4
        %v5921 = vshrl.u32 %v5535, 16
        %v5923 = vrot.slane %v5921, 7
        %v5924 = vshll.u32 %v5535, 16
        %v5926 = vor.u32 %v5923, %v5924
        %v5927 = vsel %vm620, %v5919, %v5926
        %v5928 = vrot.slane %v5923, 4
        %v5930 = vshrl.u32 %v5536, 16
        %v5932 = vrot.slane %v5930, 7
        %v5933 = vshll.u32 %v5536, 16
        %v5935 = vor.u32 %v5932, %v5933
        %v5936 = vsel %vm620, %v5928, %v5935
        %s5985 = scalar_lea.vmem [#allocation3], 12
        %v5986 = vld [vmem:[%s5985] sm:$0xf]
        %v5987 = vsel %vm529, %v5543, %v5986
        %5988 = vst [vmem:[%s5985] sm:$0xf] %v5987
        %5989 = vst [vmem:[%s5985 + $0x4] sm:$0xf] %v5552
        %5990 = vst [vmem:[%s5985 + $0x8] sm:$0xf] %v5561
        %v5991 = vld [vmem:[%s5985 + $0xc] sm:$0xf]
        %v5992 = vsel %vm529, %v5568, %v5991
        %5993 = vst [vmem:[%s5985 + $0xc] sm:$0xf] %v5992
        %5994 = vst [vmem:[%s5985 + $0x10] sm:$0xf] %v5577
        %5995 = vst [vmem:[%s5985 + $0x14] sm:$0xf] %v5586
        %v5996 = vld [vmem:[%s5985 + $0x18] sm:$0xf]
        %v5997 = vsel %vm529, %v5593, %v5996
        %5998 = vst [vmem:[%s5985 + $0x18] sm:$0xf] %v5997
        %5999 = vst [vmem:[%s5985 + $0x1c] sm:$0xf] %v5602
        %6000 = vst [vmem:[%s5985 + $0x20] sm:$0xf] %v5611
        %v6001 = vld [vmem:[%s5985 + $0x24] sm:$0xf]
        %v6002 = vsel %vm529, %v5618, %v6001
        %6003 = vst [vmem:[%s5985 + $0x24] sm:$0xf] %v6002
        %6004 = vst [vmem:[%s5985 + $0x28] sm:$0xf] %v5627
        %6005 = vst [vmem:[%s5985 + $0x2c] sm:$0xf] %v5636
        %v6006 = vld [vmem:[%s5985 + $0x30] sm:$0xf]
        %v6007 = vsel %vm529, %v5643, %v6006
        %6008 = vst [vmem:[%s5985 + $0x30] sm:$0xf] %v6007
        %6009 = vst [vmem:[%s5985 + $0x34] sm:$0xf] %v5652
        %6010 = vst [vmem:[%s5985 + $0x38] sm:$0xf] %v5661
        %v6011 = vld [vmem:[%s5985 + $0x3c] sm:$0xf]
        %v6012 = vsel %vm529, %v5668, %v6011
        %6013 = vst [vmem:[%s5985 + $0x3c] sm:$0xf] %v6012
        %6014 = vst [vmem:[%s5985 + $0x40] sm:$0xf] %v5677
        %6015 = vst [vmem:[%s5985 + $0x44] sm:$0xf] %v5686
        %v6016 = vld [vmem:[%s5985 + $0x48] sm:$0xf]
        %v6017 = vsel %vm529, %v5693, %v6016
        %6018 = vst [vmem:[%s5985 + $0x48] sm:$0xf] %v6017
        %6019 = vst [vmem:[%s5985 + $0x4c] sm:$0xf] %v5702
        %6020 = vst [vmem:[%s5985 + $0x50] sm:$0xf] %v5711
        %v6021 = vld [vmem:[%s5985 + $0x54] sm:$0xf]
        %v6022 = vsel %vm529, %v5718, %v6021
        %6023 = vst [vmem:[%s5985 + $0x54] sm:$0xf] %v6022
        %6024 = vst [vmem:[%s5985 + $0x58] sm:$0xf] %v5727
        %6025 = vst [vmem:[%s5985 + $0x5c] sm:$0xf] %v5736
        %v6026 = vld [vmem:[%s5985 + $0x60] sm:$0xf]
        %v6027 = vsel %vm529, %v5743, %v6026
        %6028 = vst [vmem:[%s5985 + $0x60] sm:$0xf] %v6027
        %6029 = vst [vmem:[%s5985 + $0x64] sm:$0xf] %v5752
        %6030 = vst [vmem:[%s5985 + $0x68] sm:$0xf] %v5761
        %v6031 = vld [vmem:[%s5985 + $0x6c] sm:$0xf]
        %v6032 = vsel %vm529, %v5768, %v6031
        %6033 = vst [vmem:[%s5985 + $0x6c] sm:$0xf] %v6032
        %6034 = vst [vmem:[%s5985 + $0x70] sm:$0xf] %v5777
        %6035 = vst [vmem:[%s5985 + $0x74] sm:$0xf] %v5786
        %v6036 = vld [vmem:[%s5985 + $0x78] sm:$0xf]
        %v6037 = vsel %vm529, %v5793, %v6036
        %6038 = vst [vmem:[%s5985 + $0x78] sm:$0xf] %v6037
        %6039 = vst [vmem:[%s5985 + $0x7c] sm:$0xf] %v5802
        %6040 = vst [vmem:[%s5985 + $0x80] sm:$0xf] %v5811
        %v6041 = vld [vmem:[%s5985 + $0x84] sm:$0xf]
        %v6042 = vsel %vm529, %v5818, %v6041
        %6043 = vst [vmem:[%s5985 + $0x84] sm:$0xf] %v6042
        %6044 = vst [vmem:[%s5985 + $0x88] sm:$0xf] %v5827
        %6045 = vst [vmem:[%s5985 + $0x8c] sm:$0xf] %v5836
        %v6046 = vld [vmem:[%s5985 + $0x90] sm:$0xf]
        %v6047 = vsel %vm529, %v5843, %v6046
        %6048 = vst [vmem:[%s5985 + $0x90] sm:$0xf] %v6047
        %6049 = vst [vmem:[%s5985 + $0x94] sm:$0xf] %v5852
        %6050 = vst [vmem:[%s5985 + $0x98] sm:$0xf] %v5861
        %v6051 = vld [vmem:[%s5985 + $0x9c] sm:$0xf]
        %v6052 = vsel %vm529, %v5868, %v6051
        %6053 = vst [vmem:[%s5985 + $0x9c] sm:$0xf] %v6052
        %6054 = vst [vmem:[%s5985 + $0xa0] sm:$0xf] %v5877
        %6055 = vst [vmem:[%s5985 + $0xa4] sm:$0xf] %v5886
        %v6056 = vld [vmem:[%s5985 + $0xa8] sm:$0xf]
        %v6057 = vsel %vm529, %v5893, %v6056
        %6058 = vst [vmem:[%s5985 + $0xa8] sm:$0xf] %v6057
        %6059 = vst [vmem:[%s5985 + $0xac] sm:$0xf] %v5902
        %6060 = vst [vmem:[%s5985 + $0xb0] sm:$0xf] %v5911
        %v6061 = vld [vmem:[%s5985 + $0xb4] sm:$0xf]
        %v6062 = vsel %vm529, %v5918, %v6061
        %6063 = vst [vmem:[%s5985 + $0xb4] sm:$0xf] %v6062
        %6064 = vst [vmem:[%s5985 + $0xb8] sm:$0xf] %v5927
        %6065 = vst [vmem:[%s5985 + $0xbc] sm:$0xf] %v5936
      $region48: #{unet_up_apply.1} parent=43 // pred_fallthru
        _
      %v6066 = vld [vmem:[%s314] sm:$0x1]
      %v6067 = vld [vmem:[#allocation3] sm:$0xf]
      %v6068 = vld [vmem:[#allocation3 + $0x4] sm:$0xf]
      %v6069 = vld [vmem:[#allocation3 + $0x8] sm:$0xf]
      %v6070 = vld [vmem:[#allocation3 + $0xc] sm:$0xf]
      %v6071 = vld [vmem:[#allocation3 + $0x10] sm:$0xf]
      %v6072 = vld [vmem:[#allocation3 + $0x14] sm:$0xf]
      %v6073 = vld [vmem:[#allocation3 + $0x18] sm:$0xf]
      %v6074 = vld [vmem:[#allocation3 + $0x1c] sm:$0xf]
      %v6075 = vld [vmem:[#allocation3 + $0x20] sm:$0xf]
      %v6076 = vld [vmem:[#allocation3 + $0x24] sm:$0xf]
      %v6077 = vld [vmem:[#allocation3 + $0x28] sm:$0xf]
      %v6078 = vld [vmem:[#allocation3 + $0x2c] sm:$0xf]
      %v6079 = vld [vmem:[#allocation3 + $0x30] sm:$0xf]
      %v6080 = vld [vmem:[#allocation3 + $0x34] sm:$0xf]
      %v6081 = vld [vmem:[#allocation3 + $0x38] sm:$0xf]
      %v6082 = vld [vmem:[#allocation3 + $0x3c] sm:$0xf]
      %v6083 = vld [vmem:[#allocation3 + $0x40] sm:$0xf]
      %v6084 = vld [vmem:[#allocation3 + $0x44] sm:$0xf]
      %v6085 = vld [vmem:[#allocation3 + $0x48] sm:$0xf]
      %v6086 = vld [vmem:[#allocation3 + $0x4c] sm:$0xf]
      %v6087 = vld [vmem:[#allocation3 + $0x50] sm:$0xf]
      %v6088 = vld [vmem:[#allocation3 + $0x54] sm:$0xf]
      %v6089 = vld [vmem:[#allocation3 + $0x58] sm:$0xf]
      %v6090 = vld [vmem:[#allocation3 + $0x5c] sm:$0xf]
      %v6091 = vld [vmem:[#allocation3 + $0x60] sm:$0xf]
      %v6092 = vld [vmem:[#allocation3 + $0x64] sm:$0xf]
      %v6093 = vld [vmem:[#allocation3 + $0x68] sm:$0xf]
      %v6094 = vld [vmem:[#allocation3 + $0x6c] sm:$0xf]
      %v6095 = vld [vmem:[#allocation3 + $0x70] sm:$0xf]
      %v6096 = vld [vmem:[#allocation3 + $0x74] sm:$0xf]
      %v6097 = vld [vmem:[#allocation3 + $0x78] sm:$0xf]
      %v6098 = vld [vmem:[#allocation3 + $0x7c] sm:$0xf]
      %v6099 = vld [vmem:[#allocation3 + $0x80] sm:$0xf]
      %v6100 = vld [vmem:[#allocation3 + $0x84] sm:$0xf]
      %v6101 = vld [vmem:[#allocation3 + $0x88] sm:$0xf]
      %v6102 = vld [vmem:[#allocation3 + $0x8c] sm:$0xf]
      %v6103 = vld [vmem:[#allocation3 + $0x90] sm:$0xf]
      %v6104 = vld [vmem:[#allocation3 + $0x94] sm:$0xf]
      %v6105 = vld [vmem:[#allocation3 + $0x98] sm:$0xf]
      %v6106 = vld [vmem:[#allocation3 + $0x9c] sm:$0xf]
      %v6107 = vld [vmem:[#allocation3 + $0xa0] sm:$0xf]
      %v6108 = vld [vmem:[#allocation3 + $0xa4] sm:$0xf]
      %v6109 = vld [vmem:[#allocation3 + $0xa8] sm:$0xf]
      %v6110 = vld [vmem:[#allocation3 + $0xac] sm:$0xf]
      %v6111 = vld [vmem:[#allocation3 + $0xb0] sm:$0xf]
      %v6112 = vld [vmem:[#allocation3 + $0xb4] sm:$0xf]
      %v6113 = vld [vmem:[#allocation3 + $0xb8] sm:$0xf]
      %v6114 = vld [vmem:[#allocation3 + $0xbc] sm:$0xf]
      %v6115 = vld [vmem:[#allocation3 + $0xc0] sm:$0xf]
      %v6116 = vld [vmem:[#allocation3 + $0xc4] sm:$0xf]
      %v6117 = vld [vmem:[#allocation3 + $0xc8] sm:$0xf]
      %v6118 = vld [vmem:[%s311] sm:$0xf]
      %v6119 = vld [vmem:[%s311 + $0x4] sm:$0xf]
      %v6120 = vld [vmem:[%s311 + $0x8] sm:$0xf]
      %v6121 = vld [vmem:[%s311 + $0xc] sm:$0xf]
      %v6122 = vld [vmem:[%s311 + $0x10] sm:$0xf]
      %v6123 = vld [vmem:[%s311 + $0x14] sm:$0xf]
      %v6124 = vld [vmem:[%s311 + $0x18] sm:$0xf]
      %v6125 = vld [vmem:[%s311 + $0x1c] sm:$0xf]
      %v6126 = vld [vmem:[%s311 + $0x20] sm:$0xf]
      %v6127 = vld [vmem:[%s311 + $0x24] sm:$0xf]
      %v6128 = vld [vmem:[%s311 + $0x28] sm:$0xf]
      %v6129 = vld [vmem:[%s311 + $0x2c] sm:$0xf]
      %v6130 = vld [vmem:[%s311 + $0x30] sm:$0xf]
      %v6131 = vld [vmem:[%s311 + $0x34] sm:$0xf]
      %v6132 = vld [vmem:[%s311 + $0x38] sm:$0xf]
      %v6133 = vld [vmem:[%s311 + $0x3c] sm:$0xf]
      %s6134 = scalar_lea.vmem %s311, 64
      %v6135 = vld [vmem:[%s6134] sm:$0xf]
      %v6136 = vld [vmem:[%s6134 + $0x4] sm:$0xf]
      %v6137 = vld [vmem:[%s6134 + $0x8] sm:$0xf]
      %v6138 = vld [vmem:[%s6134 + $0xc] sm:$0xf]
      %v6139 = vld [vmem:[%s6134 + $0x10] sm:$0xf]
      %v6140 = vld [vmem:[%s6134 + $0x14] sm:$0xf]
      %v6141 = vld [vmem:[%s6134 + $0x18] sm:$0xf]
      %v6142 = vld [vmem:[%s6134 + $0x1c] sm:$0xf]
      %v6143 = vld [vmem:[%s6134 + $0x20] sm:$0xf]
      %v6144 = vld [vmem:[%s6134 + $0x24] sm:$0xf]
      %v6145 = vld [vmem:[%s6134 + $0x28] sm:$0xf]
      %v6146 = vld [vmem:[%s6134 + $0x2c] sm:$0xf]
      %v6147 = vld [vmem:[%s6134 + $0x30] sm:$0xf]
      %v6148 = vld [vmem:[%s6134 + $0x34] sm:$0xf]
      %v6149 = vld [vmem:[%s6134 + $0x38] sm:$0xf]
      %v6150 = vld [vmem:[%s6134 + $0x3c] sm:$0xf]
      %s6151 = scalar_lea.vmem %s311, 128
      %v6152 = vld [vmem:[%s6151] sm:$0xf]
      %v6153 = vld [vmem:[%s6151 + $0x4] sm:$0xf]
      %v6154 = vld [vmem:[%s6151 + $0x8] sm:$0xf]
      %v6155 = vld [vmem:[%s6151 + $0xc] sm:$0xf]
      %v6156 = vld [vmem:[%s6151 + $0x10] sm:$0xf]
      %v6157 = vld [vmem:[%s6151 + $0x14] sm:$0xf]
      %v6158 = vld [vmem:[%s6151 + $0x18] sm:$0xf]
      %v6159 = vld [vmem:[%s6151 + $0x1c] sm:$0xf]
      %v6160 = vld [vmem:[%s6151 + $0x20] sm:$0xf]
      %v6161 = vld [vmem:[%s6151 + $0x24] sm:$0xf]
      %v6162 = vld [vmem:[%s6151 + $0x28] sm:$0xf]
      %v6163 = vld [vmem:[%s6151 + $0x2c] sm:$0xf]
      %v6164 = vld [vmem:[%s6151 + $0x30] sm:$0xf]
      %v6165 = vld [vmem:[%s6151 + $0x34] sm:$0xf]
      %v6166 = vld [vmem:[%s6151 + $0x38] sm:$0xf]
      %v6167 = vld [vmem:[%s6151 + $0x3c] sm:$0xf]
      %s6168 = scalar_lea.vmem [#allocation3], 12
      %v6169 = vld [vmem:[%s6168] sm:$0xf]
      %v6170 = vld [vmem:[%s6168 + $0x4] sm:$0xf]
      %v6171 = vld [vmem:[%s6168 + $0x8] sm:$0xf]
      %v6172 = vld [vmem:[%s6168 + $0xc] sm:$0xf]
      %v6173 = vld [vmem:[%s6168 + $0x10] sm:$0xf]
      %v6174 = vld [vmem:[%s6168 + $0x14] sm:$0xf]
      %v6175 = vld [vmem:[%s6168 + $0x18] sm:$0xf]
      %v6176 = vld [vmem:[%s6168 + $0x1c] sm:$0xf]
      %v6177 = vld [vmem:[%s6168 + $0x20] sm:$0xf]
      %v6178 = vld [vmem:[%s6168 + $0x24] sm:$0xf]
      %v6179 = vld [vmem:[%s6168 + $0x28] sm:$0xf]
      %v6180 = vld [vmem:[%s6168 + $0x2c] sm:$0xf]
      %v6181 = vld [vmem:[%s6168 + $0x30] sm:$0xf]
      %v6182 = vld [vmem:[%s6168 + $0x34] sm:$0xf]
      %v6183 = vld [vmem:[%s6168 + $0x38] sm:$0xf]
      %v6184 = vld [vmem:[%s6168 + $0x3c] sm:$0xf]
      %v6185 = vld [vmem:[%s6168 + $0x40] sm:$0xf]
      %v6186 = vld [vmem:[%s6168 + $0x44] sm:$0xf]
      %v6187 = vld [vmem:[%s6168 + $0x48] sm:$0xf]
      %v6188 = vld [vmem:[%s6168 + $0x4c] sm:$0xf]
      %v6189 = vld [vmem:[%s6168 + $0x50] sm:$0xf]
      %v6190 = vld [vmem:[%s6168 + $0x54] sm:$0xf]
      %v6191 = vld [vmem:[%s6168 + $0x58] sm:$0xf]
      %v6192 = vld [vmem:[%s6168 + $0x5c] sm:$0xf]
      %v6193 = vld [vmem:[%s6168 + $0x60] sm:$0xf]
      %v6194 = vld [vmem:[%s6168 + $0x64] sm:$0xf]
      %v6195 = vld [vmem:[%s6168 + $0x68] sm:$0xf]
      %v6196 = vld [vmem:[%s6168 + $0x6c] sm:$0xf]
      %v6197 = vld [vmem:[%s6168 + $0x70] sm:$0xf]
      %v6198 = vld [vmem:[%s6168 + $0x74] sm:$0xf]
      %v6199 = vld [vmem:[%s6168 + $0x78] sm:$0xf]
      %v6200 = vld [vmem:[%s6168 + $0x7c] sm:$0xf]
      %v6201 = vld [vmem:[%s6168 + $0x80] sm:$0xf]
      %v6202 = vld [vmem:[%s6168 + $0x84] sm:$0xf]
      %v6203 = vld [vmem:[%s6168 + $0x88] sm:$0xf]
      %v6204 = vld [vmem:[%s6168 + $0x8c] sm:$0xf]
      %v6205 = vld [vmem:[%s6168 + $0x90] sm:$0xf]
      %v6206 = vld [vmem:[%s6168 + $0x94] sm:$0xf]
      %v6207 = vld [vmem:[%s6168 + $0x98] sm:$0xf]
      %v6208 = vld [vmem:[%s6168 + $0x9c] sm:$0xf]
      %v6209 = vld [vmem:[%s6168 + $0xa0] sm:$0xf]
      %v6210 = vld [vmem:[%s6168 + $0xa4] sm:$0xf]
      %v6211 = vld [vmem:[%s6168 + $0xa8] sm:$0xf]
      %v6212 = vld [vmem:[%s6168 + $0xac] sm:$0xf]
      %v6213 = vld [vmem:[%s6168 + $0xb0] sm:$0xf]
      %v6214 = vld [vmem:[%s6168 + $0xb4] sm:$0xf]
      %v6215 = vld [vmem:[%s6168 + $0xb8] sm:$0xf]
      %v6216 = vld [vmem:[%s6168 + $0xbc] sm:$0xf]
      %v6217 = vld [vmem:[%s6168 + $0xc0] sm:$0xf]
      %v6218 = vld [vmem:[%s6168 + $0xc4] sm:$0xf]
      %v6219 = vld [vmem:[%s6168 + $0xc8] sm:$0xf]
      %s6220 = scalar_lea.vmem %s311, 192
      %v6221 = vld [vmem:[%s6220] sm:$0xf]
      %v6222 = vld [vmem:[%s6220 + $0x4] sm:$0xf]
      %v6223 = vld [vmem:[%s6220 + $0x8] sm:$0xf]
      %v6224 = vld [vmem:[%s6220 + $0xc] sm:$0xf]
      %v6225 = vld [vmem:[%s6220 + $0x10] sm:$0xf]
      %v6226 = vld [vmem:[%s6220 + $0x14] sm:$0xf]
      %v6227 = vld [vmem:[%s6220 + $0x18] sm:$0xf]
      %v6228 = vld [vmem:[%s6220 + $0x1c] sm:$0xf]
      %v6229 = vld [vmem:[%s6220 + $0x20] sm:$0xf]
      %v6230 = vld [vmem:[%s6220 + $0x24] sm:$0xf]
      %v6231 = vld [vmem:[%s6220 + $0x28] sm:$0xf]
      %v6232 = vld [vmem:[%s6220 + $0x2c] sm:$0xf]
      %v6233 = vld [vmem:[%s6220 + $0x30] sm:$0xf]
      %v6234 = vld [vmem:[%s6220 + $0x34] sm:$0xf]
      %v6235 = vld [vmem:[%s6220 + $0x38] sm:$0xf]
      %v6236 = vld [vmem:[%s6220 + $0x3c] sm:$0xf]
      %v6288 = vunpack.c.l.b16 %v6169
      %v6289 = vunpack.c.l.b16 %v6170
      %v6290 = vunpack.c.l.b16 %v6171
      %v6291 = vunpack.c.l.b16 %v6172
      %v6292 = vunpack.c.l.b16 %v6173
      %v6293 = vunpack.c.l.b16 %v6174
      %v6294 = vunpack.c.l.b16 %v6175
      %v6295 = vunpack.c.l.b16 %v6176
      %v6296 = vunpack.c.l.b16 %v6177
      %v6297 = vunpack.c.l.b16 %v6178
      %v6298 = vunpack.c.l.b16 %v6179
      %v6299 = vunpack.c.l.b16 %v6180
      %v6300 = vunpack.c.l.b16 %v6181
      %v6301 = vunpack.c.l.b16 %v6182
      %v6302 = vunpack.c.l.b16 %v6183
      %v6303 = vunpack.c.l.b16 %v6184
      %v6304 = vunpack.c.l.b16 %v6185
      %v6305 = vunpack.c.l.b16 %v6186
      %v6306 = vunpack.c.l.b16 %v6187
      %v6307 = vunpack.c.l.b16 %v6188
      %v6308 = vunpack.c.l.b16 %v6189
      %v6309 = vunpack.c.l.b16 %v6190
      %v6310 = vunpack.c.l.b16 %v6191
      %v6311 = vunpack.c.l.b16 %v6192
      %v6312 = vunpack.c.l.b16 %v6193
      %v6313 = vunpack.c.l.b16 %v6194
      %v6314 = vunpack.c.l.b16 %v6195
      %v6315 = vunpack.c.l.b16 %v6196
      %v6316 = vunpack.c.l.b16 %v6197
      %v6317 = vunpack.c.l.b16 %v6198
      %v6318 = vunpack.c.l.b16 %v6199
      %v6319 = vunpack.c.l.b16 %v6200
      %v6320 = vunpack.c.l.b16 %v6201
      %v6321 = vunpack.c.l.b16 %v6202
      %v6322 = vunpack.c.l.b16 %v6203
      %v6323 = vunpack.c.l.b16 %v6204
      %v6324 = vunpack.c.l.b16 %v6205
      %v6325 = vunpack.c.l.b16 %v6206
      %v6326 = vunpack.c.l.b16 %v6207
      %v6327 = vunpack.c.l.b16 %v6208
      %v6328 = vunpack.c.l.b16 %v6209
      %v6329 = vunpack.c.l.b16 %v6210
      %v6330 = vunpack.c.l.b16 %v6211
      %v6331 = vunpack.c.l.b16 %v6212
      %v6332 = vunpack.c.l.b16 %v6213
      %v6333 = vunpack.c.l.b16 %v6214
      %v6334 = vunpack.c.l.b16 %v6215
      %v6335 = vunpack.c.l.b16 %v6216
      %v6336 = vunpack.c.l.b16 %v6217
      %v6337 = vunpack.c.l.b16 %v6218
      %v6338 = vunpack.c.l.b16 %v6219
      %v6339 = vpack.c.b16 %v6289, %v6288
      %v6340 = vpack.c.b16 %v6291, %v6290
      %v6341 = vpack.c.b16 %v6293, %v6292
      %v6342 = vpack.c.b16 %v6295, %v6294
      %v6343 = vpack.c.b16 %v6297, %v6296
      %v6344 = vpack.c.b16 %v6299, %v6298
      %v6345 = vpack.c.b16 %v6301, %v6300
      %v6346 = vpack.c.b16 %v6303, %v6302
      %v6347 = vpack.c.b16 %v6305, %v6304
      %v6348 = vpack.c.b16 %v6307, %v6306
      %v6349 = vpack.c.b16 %v6309, %v6308
      %v6350 = vpack.c.b16 %v6311, %v6310
      %v6351 = vpack.c.b16 %v6313, %v6312
      %v6352 = vpack.c.b16 %v6315, %v6314
      %v6353 = vpack.c.b16 %v6317, %v6316
      %v6354 = vpack.c.b16 %v6319, %v6318
      %v6355 = vpack.c.b16 %v6321, %v6320
      %v6356 = vpack.c.b16 %v6323, %v6322
      %v6357 = vpack.c.b16 %v6325, %v6324
      %v6358 = vpack.c.b16 %v6327, %v6326
      %v6359 = vpack.c.b16 %v6329, %v6328
      %v6360 = vpack.c.b16 %v6331, %v6330
      %v6361 = vpack.c.b16 %v6333, %v6332
      %v6362 = vpack.c.b16 %v6335, %v6334
      %v6363 = vpack.c.b16 %v6337, %v6336
      %v6364 = vpack.c.b16 %v6338, %v6338
      %v6407 = vunpack.c.l.b16 %v6221
      %v6408 = vunpack.c.l.b16 %v6222
      %v6409 = vunpack.c.l.b16 %v6223
      %v6410 = vunpack.c.l.b16 %v6224
      %v6411 = vunpack.c.l.b16 %v6225
      %v6412 = vunpack.c.l.b16 %v6226
      %v6413 = vunpack.c.l.b16 %v6227
      %v6414 = vunpack.c.l.b16 %v6228
      %v6415 = vunpack.c.l.b16 %v6229
      %v6416 = vunpack.c.l.b16 %v6230
      %v6417 = vunpack.c.l.b16 %v6231
      %v6418 = vunpack.c.l.b16 %v6232
      %v6419 = vunpack.c.l.b16 %v6233
      %v6420 = vunpack.c.l.b16 %v6234
      %v6421 = vunpack.c.l.b16 %v6235
      %v6422 = vunpack.c.l.b16 %v6236
      %v6423 = vpack.c.b16 %v6408, %v6407
      %v6424 = vpack.c.b16 %v6410, %v6409
      %v6425 = vpack.c.b16 %v6412, %v6411
      %v6426 = vpack.c.b16 %v6414, %v6413
      %v6427 = vpack.c.b16 %v6416, %v6415
      %v6428 = vpack.c.b16 %v6418, %v6417
      %v6429 = vpack.c.b16 %v6420, %v6419
      %v6430 = vpack.c.b16 %v6422, %v6421
      %6439 = vmatprep.subr.bf16.mxu0 0
      %6440 = vmatpush1.bf16.msra.mxu0 %v6423
      %6441 = vmatprep.subr.bf16.mxu0 0
      %6442 = vmatpush1.bf16.msra.mxu0 %v6424
      %6443 = vmatprep.subr.bf16.mxu0 0
      %6444 = vmatpush1.bf16.msra.mxu0 %v6425
      %6445 = vmatprep.subr.bf16.mxu0 0
      %6446 = vmatpush1.bf16.msra.mxu0 %v6426
      %6447 = vmatprep.subr.bf16.mxu0 0
      %6448 = vmatpush1.bf16.msra.mxu0 %v6427
      %6449 = vmatprep.subr.bf16.mxu0 0
      %6450 = vmatpush1.bf16.msra.mxu0 %v6428
      %6451 = vmatprep.subr.bf16.mxu0 0
      %6452 = vmatpush1.bf16.msra.mxu0 %v6429
      %6453 = vmatprep.subr.bf16.mxu0 0
      %6454 = vmatpush1.bf16.msra.mxu0 %v6430
      %6455 = vmatprep.subr.bf16.mxu0 0
      %6456 = vmatpush1.bf16.msra.mxu0 0
      %6457 = vmatprep.subr.bf16.mxu0 0
      %6458 = vmatpush1.bf16.msra.mxu0 0
      %6459 = vmatprep.subr.bf16.mxu0 0
      %6460 = vmatpush1.bf16.msra.mxu0 0
      %6461 = vmatprep.subr.bf16.mxu0 0
      %6462 = vmatpush1.bf16.msra.mxu0 0
      %6463 = vmatprep.subr.bf16.mxu0 0
      %6464 = vmatpush1.bf16.msra.mxu0 0
      %6465 = vmatprep.subr.bf16.mxu0 0
      %6466 = vmatpush1.bf16.msra.mxu0 0
      %6467 = vmatprep.subr.bf16.mxu0 0
      %6468 = vmatpush1.bf16.msra.mxu0 0
      %6469 = vmatprep.subr.bf16.mxu0 0
      %6470 = vmatpush1.bf16.msra.mxu0 0
      %6471 = vmatprep.mubr.bf16.mxu0 0
      %6472 = vmatmul.mubr.bf16.gmra.mrb[0].mxu0 %v6339
      %v6473 = vpop.f32.mrb[0].mxu0
      %v6474 = vadd.f32 0.0, %v6473
      %v6475 = vpop.f32.mrb[0].mxu0
      %v6476 = vpop.f32.mrb[0].mxu0
      %v6477 = vadd.f32 0.0, %v6476
      %v6478 = vpop.f32.mrb[0].mxu0
      %6479 = vmatprep.mubr.bf16.mxu0 0
      %6480 = vmatmul.mubr.bf16.gmra.mrb[0].mxu0 %v6340
      %v6481 = vpop.f32.mrb[0].mxu0
      %v6482 = vpop.f32.mrb[0].mxu0
      %v6483 = vpop.f32.mrb[0].mxu0
      %v6484 = vadd.f32 0.0, %v6483
      %v6485 = vpop.f32.mrb[0].mxu0
      %6486 = vmatprep.mubr.bf16.mxu0 0
      %6487 = vmatmul.mubr.bf16.gmra.mrb[0].mxu0 %v6341
      %v6488 = vpop.f32.mrb[0].mxu0
      %v6489 = vadd.f32 0.0, %v6488
      %v6490 = vpop.f32.mrb[0].mxu0
      %v6491 = vpop.f32.mrb[0].mxu0
      %v6492 = vpop.f32.mrb[0].mxu0
      %6493 = vmatprep.mubr.bf16.mxu0 0
      %6494 = vmatmul.mubr.bf16.gmra.mrb[0].mxu0 %v6342
      %v6495 = vpop.f32.mrb[0].mxu0
      %v6496 = vadd.f32 0.0, %v6495
      %v6497 = vpop.f32.mrb[0].mxu0
      %v6498 = vpop.f32.mrb[0].mxu0
      %v6499 = vadd.f32 0.0, %v6498
      %v6500 = vpop.f32.mrb[0].mxu0
      %6501 = vmatprep.mubr.bf16.mxu0 0
      %6502 = vmatmul.mubr.bf16.gmra.mrb[0].mxu0 %v6343
      %v6503 = vpop.f32.mrb[0].mxu0
      %v6504 = vpop.f32.mrb[0].mxu0
      %v6505 = vpop.f32.mrb[0].mxu0
      %v6506 = vadd.f32 0.0, %v6505
      %v6507 = vpop.f32.mrb[0].mxu0
      %6508 = vmatprep.mubr.bf16.mxu0 0
      %6509 = vmatmul.mubr.bf16.gmra.mrb[0].mxu0 %v6344
      %v6510 = vpop.f32.mrb[0].mxu0
      %v6511 = vadd.f32 0.0, %v6510
      %v6512 = vpop.f32.mrb[0].mxu0
      %v6513 = vpop.f32.mrb[0].mxu0
      %v6514 = vpop.f32.mrb[0].mxu0
      %6515 = vmatprep.mubr.bf16.mxu0 0
      %6516 = vmatmul.mubr.bf16.gmra.mrb[0].mxu0 %v6345
      %v6517 = vpop.f32.mrb[0].mxu0
      %v6518 = vadd.f32 0.0, %v6517
      %v6519 = vpop.f32.mrb[0].mxu0
      %v6520 = vpop.f32.mrb[0].mxu0
      %v6521 = vadd.f32 0.0, %v6520
      %v6522 = vpop.f32.mrb[0].mxu0
      %6523 = vmatprep.mubr.bf16.mxu0 0
      %6524 = vmatmul.mubr.bf16.gmra.mrb[0].mxu0 %v6346
      %v6525 = vpop.f32.mrb[0].mxu0
      %v6526 = vpop.f32.mrb[0].mxu0
      %v6527 = vpop.f32.mrb[0].mxu0
      %v6528 = vadd.f32 0.0, %v6527
      %v6529 = vpop.f32.mrb[0].mxu0
      %6530 = vmatprep.mubr.bf16.mxu0 0
      %6531 = vmatmul.mubr.bf16.gmra.mrb[0].mxu0 %v6347
      %v6532 = vpop.f32.mrb[0].mxu0
      %v6533 = vadd.f32 0.0, %v6532
      %v6534 = vpop.f32.mrb[0].mxu0
      %v6535 = vpop.f32.mrb[0].mxu0
      %v6536 = vpop.f32.mrb[0].mxu0
      %6537 = vmatprep.mubr.bf16.mxu0 0
      %6538 = vmatmul.mubr.bf16.gmra.mrb[0].mxu0 %v6348
      %v6539 = vpop.f32.mrb[0].mxu0
      %v6540 = vadd.f32 0.0, %v6539
      %v6541 = vpop.f32.mrb[0].mxu0
      %v6542 = vpop.f32.mrb[0].mxu0
      %v6543 = vadd.f32 0.0, %v6542
      %v6544 = vpop.f32.mrb[0].mxu0
      %6545 = vmatprep.mubr.bf16.mxu0 0
      %6546 = vmatmul.mubr.bf16.gmra.mrb[0].mxu0 %v6349
      %v6547 = vpop.f32.mrb[0].mxu0
      %v6548 = vpop.f32.mrb[0].mxu0
      %v6549 = vpop.f32.mrb[0].mxu0
      %v6550 = vadd.f32 0.0, %v6549
      %v6551 = vpop.f32.mrb[0].mxu0
      %6552 = vmatprep.mubr.bf16.mxu0 0
      %6553 = vmatmul.mubr.bf16.gmra.mrb[0].mxu0 %v6350
      %v6554 = vpop.f32.mrb[0].mxu0
      %v6555 = vadd.f32 0.0, %v6554
      %v6556 = vpop.f32.mrb[0].mxu0
      %v6557 = vpop.f32.mrb[0].mxu0
      %v6558 = vpop.f32.mrb[0].mxu0
      %6559 = vmatprep.mubr.bf16.mxu0 0
      %6560 = vmatmul.mubr.bf16.gmra.mrb[0].mxu0 %v6351
      %v6561 = vpop.f32.mrb[0].mxu0
      %v6562 = vadd.f32 0.0, %v6561
      %v6563 = vpop.f32.mrb[0].mxu0
      %v6564 = vpop.f32.mrb[0].mxu0
      %v6565 = vadd.f32 0.0, %v6564
      %v6566 = vpop.f32.mrb[0].mxu0
      %6567 = vmatprep.mubr.bf16.mxu0 0
      %6568 = vmatmul.mubr.bf16.gmra.mrb[0].mxu0 %v6352
      %v6569 = vpop.f32.mrb[0].mxu0
      %v6570 = vpop.f32.mrb[0].mxu0
      %v6571 = vpop.f32.mrb[0].mxu0
      %v6572 = vadd.f32 0.0, %v6571
      %v6573 = vpop.f32.mrb[0].mxu0
      %6574 = vmatprep.mubr.bf16.mxu0 0
      %6575 = vmatmul.mubr.bf16.gmra.mrb[0].mxu0 %v6353
      %v6576 = vpop.f32.mrb[0].mxu0
      %v6577 = vadd.f32 0.0, %v6576
      %v6578 = vpop.f32.mrb[0].mxu0
      %v6579 = vpop.f32.mrb[0].mxu0
      %v6580 = vpop.f32.mrb[0].mxu0
      %6581 = vmatprep.mubr.bf16.mxu0 0
      %6582 = vmatmul.mubr.bf16.gmra.mrb[0].mxu0 %v6354
      %v6583 = vpop.f32.mrb[0].mxu0
      %v6584 = vadd.f32 0.0, %v6583
      %v6585 = vpop.f32.mrb[0].mxu0
      %v6586 = vpop.f32.mrb[0].mxu0
      %v6587 = vadd.f32 0.0, %v6586
      %v6588 = vpop.f32.mrb[0].mxu0
      %6589 = vmatprep.mubr.bf16.mxu0 0
      %6590 = vmatmul.mubr.bf16.gmra.mrb[0].mxu0 %v6355
      %v6591 = vpop.f32.mrb[0].mxu0
      %v6592 = vpop.f32.mrb[0].mxu0
      %v6593 = vpop.f32.mrb[0].mxu0
      %v6594 = vadd.f32 0.0, %v6593
      %v6595 = vpop.f32.mrb[0].mxu0
      %6596 = vmatprep.mubr.bf16.mxu0 0
      %6597 = vmatmul.mubr.bf16.gmra.mrb[0].mxu0 %v6356
      %v6598 = vpop.f32.mrb[0].mxu0
      %v6599 = vadd.f32 0.0, %v6598
      %v6600 = vpop.f32.mrb[0].mxu0
      %v6601 = vpop.f32.mrb[0].mxu0
      %v6602 = vpop.f32.mrb[0].mxu0
      %6603 = vmatprep.mubr.bf16.mxu0 0
      %6604 = vmatmul.mubr.bf16.gmra.mrb[0].mxu0 %v6357
      %v6605 = vpop.f32.mrb[0].mxu0
      %v6606 = vadd.f32 0.0, %v6605
      %v6607 = vpop.f32.mrb[0].mxu0
      %v6608 = vpop.f32.mrb[0].mxu0
      %v6609 = vadd.f32 0.0, %v6608
      %v6610 = vpop.f32.mrb[0].mxu0
      %6611 = vmatprep.mubr.bf16.mxu0 0
      %6612 = vmatmul.mubr.bf16.gmra.mrb[0].mxu0 %v6358
      %v6613 = vpop.f32.mrb[0].mxu0
      %v6614 = vpop.f32.mrb[0].mxu0
      %v6615 = vpop.f32.mrb[0].mxu0
      %v6616 = vadd.f32 0.0, %v6615
      %v6617 = vpop.f32.mrb[0].mxu0
      %6618 = vmatprep.mubr.bf16.mxu0 0
      %6619 = vmatmul.mubr.bf16.gmra.mrb[0].mxu0 %v6359
      %v6620 = vpop.f32.mrb[0].mxu0
      %v6621 = vadd.f32 0.0, %v6620
      %v6622 = vpop.f32.mrb[0].mxu0
      %v6623 = vpop.f32.mrb[0].mxu0
      %v6624 = vpop.f32.mrb[0].mxu0
      %6625 = vmatprep.mubr.bf16.mxu0 0
      %6626 = vmatmul.mubr.bf16.gmra.mrb[0].mxu0 %v6360
      %v6627 = vpop.f32.mrb[0].mxu0
      %v6628 = vadd.f32 0.0, %v6627
      %v6629 = vpop.f32.mrb[0].mxu0
      %v6630 = vpop.f32.mrb[0].mxu0
      %v6631 = vadd.f32 0.0, %v6630
      %v6632 = vpop.f32.mrb[0].mxu0
      %6633 = vmatprep.mubr.bf16.mxu0 0
      %6634 = vmatmul.mubr.bf16.gmra.mrb[0].mxu0 %v6361
      %v6635 = vpop.f32.mrb[0].mxu0
      %v6636 = vpop.f32.mrb[0].mxu0
      %v6637 = vpop.f32.mrb[0].mxu0
      %v6638 = vadd.f32 0.0, %v6637
      %v6639 = vpop.f32.mrb[0].mxu0
      %6640 = vmatprep.mubr.bf16.mxu0 0
      %6641 = vmatmul.mubr.bf16.gmra.mrb[0].mxu0 %v6362
      %v6642 = vpop.f32.mrb[0].mxu0
      %v6643 = vadd.f32 0.0, %v6642
      %v6644 = vpop.f32.mrb[0].mxu0
      %v6645 = vpop.f32.mrb[0].mxu0
      %v6646 = vpop.f32.mrb[0].mxu0
      %6647 = vmatprep.mubr.bf16.mxu0 0
      %6648 = vmatmul.mubr.bf16.gmra.mrb[0].mxu0 %v6363
      %v6649 = vpop.f32.mrb[0].mxu0
      %v6650 = vpop.f32.mrb[0].mxu0
      %v6651 = vpop.f32.mrb[0].mxu0
      %v6652 = vpop.f32.mrb[0].mxu0
      %6653 = vmatprep.mubr.bf16.mxu0 0
      %6654 = vmatmul.mubr.bf16.gmra.mrb[0].mxu0 %v6364
      %v6655 = vpop.f32.mrb[0].mxu0
      %v6656 = vpop.f32.mrb[0].mxu0
      %v6657 = vpop.f32.mrb[0].mxu0
      %v6658 = vpop.f32.mrb[0].mxu0
      %6659 = vdwg.mxu0
      %v6711 = vunpack.c.l.b16 %v6067
      %v6712 = vunpack.c.l.b16 %v6068
      %v6713 = vunpack.c.l.b16 %v6069
      %v6714 = vunpack.c.l.b16 %v6070
      %v6715 = vunpack.c.l.b16 %v6071
      %v6716 = vunpack.c.l.b16 %v6072
      %v6717 = vunpack.c.l.b16 %v6073
      %v6718 = vunpack.c.l.b16 %v6074
      %v6719 = vunpack.c.l.b16 %v6075
      %v6720 = vunpack.c.l.b16 %v6076
      %v6721 = vunpack.c.l.b16 %v6077
      %v6722 = vunpack.c.l.b16 %v6078
      %v6723 = vunpack.c.l.b16 %v6079
      %v6724 = vunpack.c.l.b16 %v6080
      %v6725 = vunpack.c.l.b16 %v6081
      %v6726 = vunpack.c.l.b16 %v6082
      %v6727 = vunpack.c.l.b16 %v6083
      %v6728 = vunpack.c.l.b16 %v6084
      %v6729 = vunpack.c.l.b16 %v6085
      %v6730 = vunpack.c.l.b16 %v6086
      %v6731 = vunpack.c.l.b16 %v6087
      %v6732 = vunpack.c.l.b16 %v6088
      %v6733 = vunpack.c.l.b16 %v6089
      %v6734 = vunpack.c.l.b16 %v6090
      %v6735 = vunpack.c.l.b16 %v6091
      %v6736 = vunpack.c.l.b16 %v6092
      %v6737 = vunpack.c.l.b16 %v6093
      %v6738 = vunpack.c.l.b16 %v6094
      %v6739 = vunpack.c.l.b16 %v6095
      %v6740 = vunpack.c.l.b16 %v6096
      %v6741 = vunpack.c.l.b16 %v6097
      %v6742 = vunpack.c.l.b16 %v6098
      %v6743 = vunpack.c.l.b16 %v6099
      %v6744 = vunpack.c.l.b16 %v6100
      %v6745 = vunpack.c.l.b16 %v6101
      %v6746 = vunpack.c.l.b16 %v6102
      %v6747 = vunpack.c.l.b16 %v6103
      %v6748 = vunpack.c.l.b16 %v6104
      %v6749 = vunpack.c.l.b16 %v6105
      %v6750 = vunpack.c.l.b16 %v6106
      %v6751 = vunpack.c.l.b16 %v6107
      %v6752 = vunpack.c.l.b16 %v6108
      %v6753 = vunpack.c.l.b16 %v6109
      %v6754 = vunpack.c.l.b16 %v6110
      %v6755 = vunpack.c.l.b16 %v6111
      %v6756 = vunpack.c.l.b16 %v6112
      %v6757 = vunpack.c.l.b16 %v6113
      %v6758 = vunpack.c.l.b16 %v6114
      %v6759 = vunpack.c.l.b16 %v6115
      %v6760 = vunpack.c.l.b16 %v6116
      %v6761 = vunpack.c.l.b16 %v6117
      %v6762 = vpack.c.b16 %v6712, %v6711
      %v6763 = vpack.c.b16 %v6714, %v6713
      %v6764 = vpack.c.b16 %v6716, %v6715
      %v6765 = vpack.c.b16 %v6718, %v6717
      %v6766 = vpack.c.b16 %v6720, %v6719
      %v6767 = vpack.c.b16 %v6722, %v6721
      %v6768 = vpack.c.b16 %v6724, %v6723
      %v6769 = vpack.c.b16 %v6726, %v6725
      %v6770 = vpack.c.b16 %v6728, %v6727
      %v6771 = vpack.c.b16 %v6730, %v6729
      %v6772 = vpack.c.b16 %v6732, %v6731
      %v6773 = vpack.c.b16 %v6734, %v6733
      %v6774 = vpack.c.b16 %v6736, %v6735
      %v6775 = vpack.c.b16 %v6738, %v6737
      %v6776 = vpack.c.b16 %v6740, %v6739
      %v6777 = vpack.c.b16 %v6742, %v6741
      %v6778 = vpack.c.b16 %v6744, %v6743
      %v6779 = vpack.c.b16 %v6746, %v6745
      %v6780 = vpack.c.b16 %v6748, %v6747
      %v6781 = vpack.c.b16 %v6750, %v6749
      %v6782 = vpack.c.b16 %v6752, %v6751
      %v6783 = vpack.c.b16 %v6754, %v6753
      %v6784 = vpack.c.b16 %v6756, %v6755
      %v6785 = vpack.c.b16 %v6758, %v6757
      %v6786 = vpack.c.b16 %v6760, %v6759
      %v6787 = vpack.c.b16 %v6761, %v6761
      %v6830 = vunpack.c.l.b16 %v6118
      %v6831 = vunpack.c.l.b16 %v6119
      %v6832 = vunpack.c.l.b16 %v6120
      %v6833 = vunpack.c.l.b16 %v6121
      %v6834 = vunpack.c.l.b16 %v6122
      %v6835 = vunpack.c.l.b16 %v6123
      %v6836 = vunpack.c.l.b16 %v6124
      %v6837 = vunpack.c.l.b16 %v6125
      %v6838 = vunpack.c.l.b16 %v6126
      %v6839 = vunpack.c.l.b16 %v6127
      %v6840 = vunpack.c.l.b16 %v6128
      %v6841 = vunpack.c.l.b16 %v6129
      %v6842 = vunpack.c.l.b16 %v6130
      %v6843 = vunpack.c.l.b16 %v6131
      %v6844 = vunpack.c.l.b16 %v6132
      %v6845 = vunpack.c.l.b16 %v6133
      %v6846 = vpack.c.b16 %v6831, %v6830
      %v6847 = vpack.c.b16 %v6833, %v6832
      %v6848 = vpack.c.b16 %v6835, %v6834
      %v6849 = vpack.c.b16 %v6837, %v6836
      %v6850 = vpack.c.b16 %v6839, %v6838
      %v6851 = vpack.c.b16 %v6841, %v6840
      %v6852 = vpack.c.b16 %v6843, %v6842
      %v6853 = vpack.c.b16 %v6845, %v6844
      %6862 = vmatprep.subr.bf16.mxu0 0
      %6863 = vmatpush1.bf16.msra.mxu0 %v6846
      %6864 = vmatprep.subr.bf16.mxu0 0
      %6865 = vmatpush1.bf16.msra.mxu0 %v6847
      %6866 = vmatprep.subr.bf16.mxu0 0
      %6867 = vmatpush1.bf16.msra.mxu0 %v6848
      %6868 = vmatprep.subr.bf16.mxu0 0
      %6869 = vmatpush1.bf16.msra.mxu0 %v6849
      %6870 = vmatprep.subr.bf16.mxu0 0
      %6871 = vmatpush1.bf16.msra.mxu0 %v6850
      %6872 = vmatprep.subr.bf16.mxu0 0
      %6873 = vmatpush1.bf16.msra.mxu0 %v6851
      %6874 = vmatprep.subr.bf16.mxu0 0
      %6875 = vmatpush1.bf16.msra.mxu0 %v6852
      %6876 = vmatprep.subr.bf16.mxu0 0
      %6877 = vmatpush1.bf16.msra.mxu0 %v6853
      %6878 = vmatprep.subr.bf16.mxu0 0
      %6879 = vmatpush1.bf16.msra.mxu0 0
      %6880 = vmatprep.subr.bf16.mxu0 0
      %6881 = vmatpush1.bf16.msra.mxu0 0
      %6882 = vmatprep.subr.bf16.mxu0 0
      %6883 = vmatpush1.bf16.msra.mxu0 0
      %6884 = vmatprep.subr.bf16.mxu0 0
      %6885 = vmatpush1.bf16.msra.mxu0 0
      %6886 = vmatprep.subr.bf16.mxu0 0
      %6887 = vmatpush1.bf16.msra.mxu0 0
      %6888 = vmatprep.subr.bf16.mxu0 0
      %6889 = vmatpush1.bf16.msra.mxu0 0
      %6890 = vmatprep.subr.bf16.mxu0 0
      %6891 = vmatpush1.bf16.msra.mxu0 0
      %6892 = vmatprep.subr.bf16.mxu0 0
      %6893 = vmatpush1.bf16.msra.mxu0 0
      %6894 = vmatprep.mubr.bf16.mxu0 0
      %6895 = vmatmul.mubr.bf16.gmra.mrb[0].mxu0 %v6762
      %v6896 = vpop.f32.mrb[0].mxu0
      %v6897 = vadd.f32 %v6474, %v6896
      %v6898 = vpop.f32.mrb[0].mxu0
      %v6899 = vpop.f32.mrb[0].mxu0
      %v6900 = vadd.f32 %v6477, %v6899
      %v6901 = vpop.f32.mrb[0].mxu0
      %6902 = vmatprep.mubr.bf16.mxu0 0
      %6903 = vmatmul.mubr.bf16.gmra.mrb[0].mxu0 %v6763
      %v6904 = vpop.f32.mrb[0].mxu0
      %v6905 = vpop.f32.mrb[0].mxu0
      %v6906 = vpop.f32.mrb[0].mxu0
      %v6907 = vadd.f32 %v6484, %v6906
      %v6908 = vpop.f32.mrb[0].mxu0
      %6909 = vmatprep.mubr.bf16.mxu0 0
      %6910 = vmatmul.mubr.bf16.gmra.mrb[0].mxu0 %v6764
      %v6911 = vpop.f32.mrb[0].mxu0
      %v6912 = vadd.f32 %v6489, %v6911
      %v6913 = vpop.f32.mrb[0].mxu0
      %v6914 = vpop.f32.mrb[0].mxu0
      %v6915 = vpop.f32.mrb[0].mxu0
      %6916 = vmatprep.mubr.bf16.mxu0 0
      %6917 = vmatmul.mubr.bf16.gmra.mrb[0].mxu0 %v6765
      %v6918 = vpop.f32.mrb[0].mxu0
      %v6919 = vadd.f32 %v6496, %v6918
      %v6920 = vpop.f32.mrb[0].mxu0
      %v6921 = vpop.f32.mrb[0].mxu0
      %v6922 = vadd.f32 %v6499, %v6921
      %v6923 = vpop.f32.mrb[0].mxu0
      %6924 = vmatprep.mubr.bf16.mxu0 0
      %6925 = vmatmul.mubr.bf16.gmra.mrb[0].mxu0 %v6766
      %v6926 = vpop.f32.mrb[0].mxu0
      %v6927 = vpop.f32.mrb[0].mxu0
      %v6928 = vpop.f32.mrb[0].mxu0
      %v6929 = vadd.f32 %v6506, %v6928
      %v6930 = vpop.f32.mrb[0].mxu0
      %6931 = vmatprep.mubr.bf16.mxu0 0
      %6932 = vmatmul.mubr.bf16.gmra.mrb[0].mxu0 %v6767
      %v6933 = vpop.f32.mrb[0].mxu0
      %v6934 = vadd.f32 %v6511, %v6933
      %v6935 = vpop.f32.mrb[0].mxu0
      %v6936 = vpop.f32.mrb[0].mxu0
      %v6937 = vpop.f32.mrb[0].mxu0
      %6938 = vmatprep.mubr.bf16.mxu0 0
      %6939 = vmatmul.mubr.bf16.gmra.mrb[0].mxu0 %v6768
      %v6940 = vpop.f32.mrb[0].mxu0
      %v6941 = vadd.f32 %v6518, %v6940
      %v6942 = vpop.f32.mrb[0].mxu0
      %v6943 = vpop.f32.mrb[0].mxu0
      %v6944 = vadd.f32 %v6521, %v6943
      %v6945 = vpop.f32.mrb[0].mxu0
      %6946 = vmatprep.mubr.bf16.mxu0 0
      %6947 = vmatmul.mubr.bf16.gmra.mrb[0].mxu0 %v6769
      %v6948 = vpop.f32.mrb[0].mxu0
      %v6949 = vpop.f32.mrb[0].mxu0
      %v6950 = vpop.f32.mrb[0].mxu0
      %v6951 = vadd.f32 %v6528, %v6950
      %v6952 = vpop.f32.mrb[0].mxu0
      %6953 = vmatprep.mubr.bf16.mxu0 0
      %6954 = vmatmul.mubr.bf16.gmra.mrb[0].mxu0 %v6770
      %v6955 = vpop.f32.mrb[0].mxu0
      %v6956 = vadd.f32 %v6533, %v6955
      %v6957 = vpop.f32.mrb[0].mxu0
      %v6958 = vpop.f32.mrb[0].mxu0
      %v6959 = vpop.f32.mrb[0].mxu0
      %6960 = vmatprep.mubr.bf16.mxu0 0
      %6961 = vmatmul.mubr.bf16.gmra.mrb[0].mxu0 %v6771
      %v6962 = vpop.f32.mrb[0].mxu0
      %v6963 = vadd.f32 %v6540, %v6962
      %v6964 = vpop.f32.mrb[0].mxu0
      %v6965 = vpop.f32.mrb[0].mxu0
      %v6966 = vadd.f32 %v6543, %v6965
      %v6967 = vpop.f32.mrb[0].mxu0
      %6968 = vmatprep.mubr.bf16.mxu0 0
      %6969 = vmatmul.mubr.bf16.gmra.mrb[0].mxu0 %v6772
      %v6970 = vpop.f32.mrb[0].mxu0
      %v6971 = vpop.f32.mrb[0].mxu0
      %v6972 = vpop.f32.mrb[0].mxu0
      %v6973 = vadd.f32 %v6550, %v6972
      %v6974 = vpop.f32.mrb[0].mxu0
      %6975 = vmatprep.mubr.bf16.mxu0 0
      %6976 = vmatmul.mubr.bf16.gmra.mrb[0].mxu0 %v6773
      %v6977 = vpop.f32.mrb[0].mxu0
      %v6978 = vadd.f32 %v6555, %v6977
      %v6979 = vpop.f32.mrb[0].mxu0
      %v6980 = vpop.f32.mrb[0].mxu0
      %v6981 = vpop.f32.mrb[0].mxu0
      %6982 = vmatprep.mubr.bf16.mxu0 0
      %6983 = vmatmul.mubr.bf16.gmra.mrb[0].mxu0 %v6774
      %v6984 = vpop.f32.mrb[0].mxu0
      %v6985 = vadd.f32 %v6562, %v6984
      %v6986 = vpop.f32.mrb[0].mxu0
      %v6987 = vpop.f32.mrb[0].mxu0
      %v6988 = vadd.f32 %v6565, %v6987
      %v6989 = vpop.f32.mrb[0].mxu0
      %6990 = vmatprep.mubr.bf16.mxu0 0
      %6991 = vmatmul.mubr.bf16.gmra.mrb[0].mxu0 %v6775
      %v6992 = vpop.f32.mrb[0].mxu0
      %v6993 = vpop.f32.mrb[0].mxu0
      %v6994 = vpop.f32.mrb[0].mxu0
      %v6995 = vadd.f32 %v6572, %v6994
      %v6996 = vpop.f32.mrb[0].mxu0
      %6997 = vmatprep.mubr.bf16.mxu0 0
      %6998 = vmatmul.mubr.bf16.gmra.mrb[0].mxu0 %v6776
      %v6999 = vpop.f32.mrb[0].mxu0
      %v7000 = vadd.f32 %v6577, %v6999
      %v7001 = vpop.f32.mrb[0].mxu0
      %v7002 = vpop.f32.mrb[0].mxu0
      %v7003 = vpop.f32.mrb[0].mxu0
      %7004 = vmatprep.mubr.bf16.mxu0 0
      %7005 = vmatmul.mubr.bf16.gmra.mrb[0].mxu0 %v6777
      %v7006 = vpop.f32.mrb[0].mxu0
      %v7007 = vadd.f32 %v6584, %v7006
      %v7008 = vpop.f32.mrb[0].mxu0
      %v7009 = vpop.f32.mrb[0].mxu0
      %v7010 = vadd.f32 %v6587, %v7009
      %v7011 = vpop.f32.mrb[0].mxu0
      %7012 = vmatprep.mubr.bf16.mxu0 0
      %7013 = vmatmul.mubr.bf16.gmra.mrb[0].mxu0 %v6778
      %v7014 = vpop.f32.mrb[0].mxu0
      %v7015 = vpop.f32.mrb[0].mxu0
      %v7016 = vpop.f32.mrb[0].mxu0
      %v7017 = vadd.f32 %v6594, %v7016
      %v7018 = vpop.f32.mrb[0].mxu0
      %7019 = vmatprep.mubr.bf16.mxu0 0
      %7020 = vmatmul.mubr.bf16.gmra.mrb[0].mxu0 %v6779
      %v7021 = vpop.f32.mrb[0].mxu0
      %v7022 = vadd.f32 %v6599, %v7021
      %v7023 = vpop.f32.mrb[0].mxu0
      %v7024 = vpop.f32.mrb[0].mxu0
      %v7025 = vpop.f32.mrb[0].mxu0
      %7026 = vmatprep.mubr.bf16.mxu0 0
      %7027 = vmatmul.mubr.bf16.gmra.mrb[0].mxu0 %v6780
      %v7028 = vpop.f32.mrb[0].mxu0
      %v7029 = vadd.f32 %v6606, %v7028
      %v7030 = vpop.f32.mrb[0].mxu0
      %v7031 = vpop.f32.mrb[0].mxu0
      %v7032 = vadd.f32 %v6609, %v7031
      %v7033 = vpop.f32.mrb[0].mxu0
      %7034 = vmatprep.mubr.bf16.mxu0 0
      %7035 = vmatmul.mubr.bf16.gmra.mrb[0].mxu0 %v6781
      %v7036 = vpop.f32.mrb[0].mxu0
      %v7037 = vpop.f32.mrb[0].mxu0
      %v7038 = vpop.f32.mrb[0].mxu0
      %v7039 = vadd.f32 %v6616, %v7038
      %v7040 = vpop.f32.mrb[0].mxu0
      %7041 = vmatprep.mubr.bf16.mxu0 0
      %7042 = vmatmul.mubr.bf16.gmra.mrb[0].mxu0 %v6782
      %v7043 = vpop.f32.mrb[0].mxu0
      %v7044 = vadd.f32 %v6621, %v7043
      %v7045 = vpop.f32.mrb[0].mxu0
      %v7046 = vpop.f32.mrb[0].mxu0
      %v7047 = vpop.f32.mrb[0].mxu0
      %7048 = vmatprep.mubr.bf16.mxu0 0
      %7049 = vmatmul.mubr.bf16.gmra.mrb[0].mxu0 %v6783
      %v7050 = vpop.f32.mrb[0].mxu0
      %v7051 = vadd.f32 %v6628, %v7050
      %v7052 = vpop.f32.mrb[0].mxu0
      %v7053 = vpop.f32.mrb[0].mxu0
      %v7054 = vadd.f32 %v6631, %v7053
      %v7055 = vpop.f32.mrb[0].mxu0
      %7056 = vmatprep.mubr.bf16.mxu0 0
      %7057 = vmatmul.mubr.bf16.gmra.mrb[0].mxu0 %v6784
      %v7058 = vpop.f32.mrb[0].mxu0
      %v7059 = vpop.f32.mrb[0].mxu0
      %v7060 = vpop.f32.mrb[0].mxu0
      %v7061 = vadd.f32 %v6638, %v7060
      %v7062 = vpop.f32.mrb[0].mxu0
      %7063 = vmatprep.mubr.bf16.mxu0 0
      %7064 = vmatmul.mubr.bf16.gmra.mrb[0].mxu0 %v6785
      %v7065 = vpop.f32.mrb[0].mxu0
      %v7066 = vadd.f32 %v6643, %v7065
      %v7067 = vpop.f32.mrb[0].mxu0
      %v7068 = vpop.f32.mrb[0].mxu0
      %v7069 = vpop.f32.mrb[0].mxu0
      %7070 = vmatprep.mubr.bf16.mxu0 0
      %7071 = vmatmul.mubr.bf16.gmra.mrb[0].mxu0 %v6786
      %v7072 = vpop.f32.mrb[0].mxu0
      %v7073 = vpop.f32.mrb[0].mxu0
      %v7074 = vpop.f32.mrb[0].mxu0
      %v7075 = vpop.f32.mrb[0].mxu0
      %7076 = vmatprep.mubr.bf16.mxu0 0
      %7077 = vmatmul.mubr.bf16.gmra.mrb[0].mxu0 %v6787
      %v7078 = vpop.f32.mrb[0].mxu0
      %v7079 = vpop.f32.mrb[0].mxu0
      %v7080 = vpop.f32.mrb[0].mxu0
      %v7081 = vpop.f32.mrb[0].mxu0
      %7082 = vdwg.mxu0
      %s7083 = scalar_lea.vmem %s311, 256
      %v7084 = vld [vmem:[%s7083] sm:$0xf]
      %v7085 = vld [vmem:[%s7083 + $0x4] sm:$0xf]
      %v7086 = vld [vmem:[%s7083 + $0x8] sm:$0xf]
      %v7087 = vld [vmem:[%s7083 + $0xc] sm:$0xf]
      %v7088 = vld [vmem:[%s7083 + $0x10] sm:$0xf]
      %v7089 = vld [vmem:[%s7083 + $0x14] sm:$0xf]
      %v7090 = vld [vmem:[%s7083 + $0x18] sm:$0xf]
      %v7091 = vld [vmem:[%s7083 + $0x1c] sm:$0xf]
      %v7092 = vld [vmem:[%s7083 + $0x20] sm:$0xf]
      %v7093 = vld [vmem:[%s7083 + $0x24] sm:$0xf]
      %v7094 = vld [vmem:[%s7083 + $0x28] sm:$0xf]
      %v7095 = vld [vmem:[%s7083 + $0x2c] sm:$0xf]
      %v7096 = vld [vmem:[%s7083 + $0x30] sm:$0xf]
      %v7097 = vld [vmem:[%s7083 + $0x34] sm:$0xf]
      %v7098 = vld [vmem:[%s7083 + $0x38] sm:$0xf]
      %v7099 = vld [vmem:[%s7083 + $0x3c] sm:$0xf]
      %v7116 = vunpack.c.l.b16 %v7084
      %v7117 = vunpack.c.l.b16 %v7085
      %v7118 = vunpack.c.l.b16 %v7086
      %v7119 = vunpack.c.l.b16 %v7087
      %v7120 = vunpack.c.l.b16 %v7088
      %v7121 = vunpack.c.l.b16 %v7089
      %v7122 = vunpack.c.l.b16 %v7090
      %v7123 = vunpack.c.l.b16 %v7091
      %v7124 = vunpack.c.l.b16 %v7092
      %v7125 = vunpack.c.l.b16 %v7093
      %v7126 = vunpack.c.l.b16 %v7094
      %v7127 = vunpack.c.l.b16 %v7095
      %v7128 = vunpack.c.l.b16 %v7096
      %v7129 = vunpack.c.l.b16 %v7097
      %v7130 = vunpack.c.l.b16 %v7098
      %v7131 = vunpack.c.l.b16 %v7099
      %v7132 = vpack.c.b16 %v7117, %v7116
      %v7133 = vpack.c.b16 %v7119, %v7118
      %v7134 = vpack.c.b16 %v7121, %v7120
      %v7135 = vpack.c.b16 %v7123, %v7122
      %v7136 = vpack.c.b16 %v7125, %v7124
      %v7137 = vpack.c.b16 %v7127, %v7126
      %v7138 = vpack.c.b16 %v7129, %v7128
      %v7139 = vpack.c.b16 %v7131, %v7130
      %7148 = vmatprep.subr.bf16.mxu0 0
      %7149 = vmatpush1.bf16.msra.mxu0 %v7132
      %7150 = vmatprep.subr.bf16.mxu0 0
      %7151 = vmatpush1.bf16.msra.mxu0 %v7133
      %7152 = vmatprep.subr.bf16.mxu0 0
      %7153 = vmatpush1.bf16.msra.mxu0 %v7134
      %7154 = vmatprep.subr.bf16.mxu0 0
      %7155 = vmatpush1.bf16.msra.mxu0 %v7135
      %7156 = vmatprep.subr.bf16.mxu0 0
      %7157 = vmatpush1.bf16.msra.mxu0 %v7136
      %7158 = vmatprep.subr.bf16.mxu0 0
      %7159 = vmatpush1.bf16.msra.mxu0 %v7137
      %7160 = vmatprep.subr.bf16.mxu0 0
      %7161 = vmatpush1.bf16.msra.mxu0 %v7138
      %7162 = vmatprep.subr.bf16.mxu0 0
      %7163 = vmatpush1.bf16.msra.mxu0 %v7139
      %7164 = vmatprep.subr.bf16.mxu0 0
      %7165 = vmatpush1.bf16.msra.mxu0 0
      %7166 = vmatprep.subr.bf16.mxu0 0
      %7167 = vmatpush1.bf16.msra.mxu0 0
      %7168 = vmatprep.subr.bf16.mxu0 0
      %7169 = vmatpush1.bf16.msra.mxu0 0
      %7170 = vmatprep.subr.bf16.mxu0 0
      %7171 = vmatpush1.bf16.msra.mxu0 0
      %7172 = vmatprep.subr.bf16.mxu0 0
      %7173 = vmatpush1.bf16.msra.mxu0 0
      %7174 = vmatprep.subr.bf16.mxu0 0
      %7175 = vmatpush1.bf16.msra.mxu0 0
      %7176 = vmatprep.subr.bf16.mxu0 0
      %7177 = vmatpush1.bf16.msra.mxu0 0
      %7178 = vmatprep.subr.bf16.mxu0 0
      %7179 = vmatpush1.bf16.msra.mxu0 0
      %7180 = vmatprep.mubr.bf16.mxu0 0
      %7181 = vmatmul.mubr.bf16.gmra.mrb[0].mxu0 %v6339
      %v7182 = vpop.f32.mrb[0].mxu0
      %v7183 = vadd.f32 0.0, %v7182
      %v7184 = vpop.f32.mrb[0].mxu0
      %v7185 = vpop.f32.mrb[0].mxu0
      %v7186 = vadd.f32 0.0, %v7185
      %v7187 = vpop.f32.mrb[0].mxu0
      %7188 = vmatprep.mubr.bf16.mxu0 0
      %7189 = vmatmul.mubr.bf16.gmra.mrb[0].mxu0 %v6340
      %v7190 = vpop.f32.mrb[0].mxu0
      %v7191 = vadd.f32 0.0, %v7190
      %v7192 = vpop.f32.mrb[0].mxu0
      %v7193 = vpop.f32.mrb[0].mxu0
      %v7194 = vadd.f32 0.0, %v7193
      %v7195 = vpop.f32.mrb[0].mxu0
      %7196 = vmatprep.mubr.bf16.mxu0 0
      %7197 = vmatmul.mubr.bf16.gmra.mrb[0].mxu0 %v6341
      %v7198 = vpop.f32.mrb[0].mxu0
      %v7199 = vadd.f32 0.0, %v7198
      %v7200 = vpop.f32.mrb[0].mxu0
      %v7201 = vpop.f32.mrb[0].mxu0
      %v7202 = vadd.f32 0.0, %v7201
      %v7203 = vpop.f32.mrb[0].mxu0
      %7204 = vmatprep.mubr.bf16.mxu0 0
      %7205 = vmatmul.mubr.bf16.gmra.mrb[0].mxu0 %v6342
      %v7206 = vpop.f32.mrb[0].mxu0
      %v7207 = vadd.f32 0.0, %v7206
      %v7208 = vpop.f32.mrb[0].mxu0
      %v7209 = vpop.f32.mrb[0].mxu0
      %v7210 = vadd.f32 0.0, %v7209
      %v7211 = vpop.f32.mrb[0].mxu0
      %7212 = vmatprep.mubr.bf16.mxu0 0
      %7213 = vmatmul.mubr.bf16.gmra.mrb[0].mxu0 %v6343
      %v7214 = vpop.f32.mrb[0].mxu0
      %v7215 = vadd.f32 0.0, %v7214
      %v7216 = vpop.f32.mrb[0].mxu0
      %v7217 = vpop.f32.mrb[0].mxu0
      %v7218 = vadd.f32 0.0, %v7217
      %v7219 = vpop.f32.mrb[0].mxu0
      %7220 = vmatprep.mubr.bf16.mxu0 0
      %7221 = vmatmul.mubr.bf16.gmra.mrb[0].mxu0 %v6344
      %v7222 = vpop.f32.mrb[0].mxu0
      %v7223 = vadd.f32 0.0, %v7222
      %v7224 = vpop.f32.mrb[0].mxu0
      %v7225 = vpop.f32.mrb[0].mxu0
      %v7226 = vadd.f32 0.0, %v7225
      %v7227 = vpop.f32.mrb[0].mxu0
      %7228 = vmatprep.mubr.bf16.mxu0 0
      %7229 = vmatmul.mubr.bf16.gmra.mrb[0].mxu0 %v6345
      %v7230 = vpop.f32.mrb[0].mxu0
      %v7231 = vadd.f32 0.0, %v7230
      %v7232 = vpop.f32.mrb[0].mxu0
      %v7233 = vpop.f32.mrb[0].mxu0
      %v7234 = vadd.f32 0.0, %v7233
      %v7235 = vpop.f32.mrb[0].mxu0
      %7236 = vmatprep.mubr.bf16.mxu0 0
      %7237 = vmatmul.mubr.bf16.gmra.mrb[0].mxu0 %v6346
      %v7238 = vpop.f32.mrb[0].mxu0
      %v7239 = vadd.f32 0.0, %v7238
      %v7240 = vpop.f32.mrb[0].mxu0
      %v7241 = vpop.f32.mrb[0].mxu0
      %v7242 = vadd.f32 0.0, %v7241
      %v7243 = vpop.f32.mrb[0].mxu0
      %7244 = vmatprep.mubr.bf16.mxu0 0
      %7245 = vmatmul.mubr.bf16.gmra.mrb[0].mxu0 %v6347
      %v7246 = vpop.f32.mrb[0].mxu0
      %v7247 = vadd.f32 0.0, %v7246
      %v7248 = vpop.f32.mrb[0].mxu0
      %v7249 = vpop.f32.mrb[0].mxu0
      %v7250 = vadd.f32 0.0, %v7249
      %v7251 = vpop.f32.mrb[0].mxu0
      %7252 = vmatprep.mubr.bf16.mxu0 0
      %7253 = vmatmul.mubr.bf16.gmra.mrb[0].mxu0 %v6348
      %v7254 = vpop.f32.mrb[0].mxu0
      %v7255 = vadd.f32 0.0, %v7254
      %v7256 = vpop.f32.mrb[0].mxu0
      %v7257 = vpop.f32.mrb[0].mxu0
      %v7258 = vadd.f32 0.0, %v7257
      %v7259 = vpop.f32.mrb[0].mxu0
      %7260 = vmatprep.mubr.bf16.mxu0 0
      %7261 = vmatmul.mubr.bf16.gmra.mrb[0].mxu0 %v6349
      %v7262 = vpop.f32.mrb[0].mxu0
      %v7263 = vadd.f32 0.0, %v7262
      %v7264 = vpop.f32.mrb[0].mxu0
      %v7265 = vpop.f32.mrb[0].mxu0
      %v7266 = vadd.f32 0.0, %v7265
      %v7267 = vpop.f32.mrb[0].mxu0
      %7268 = vmatprep.mubr.bf16.mxu0 0
      %7269 = vmatmul.mubr.bf16.gmra.mrb[0].mxu0 %v6350
      %v7270 = vpop.f32.mrb[0].mxu0
      %v7271 = vadd.f32 0.0, %v7270
      %v7272 = vpop.f32.mrb[0].mxu0
      %v7273 = vpop.f32.mrb[0].mxu0
      %v7274 = vadd.f32 0.0, %v7273
      %v7275 = vpop.f32.mrb[0].mxu0
      %7276 = vmatprep.mubr.bf16.mxu0 0
      %7277 = vmatmul.mubr.bf16.gmra.mrb[0].mxu0 %v6351
      %v7278 = vpop.f32.mrb[0].mxu0
      %v7279 = vadd.f32 0.0, %v7278
      %v7280 = vpop.f32.mrb[0].mxu0
      %v7281 = vpop.f32.mrb[0].mxu0
      %v7282 = vadd.f32 0.0, %v7281
      %v7283 = vpop.f32.mrb[0].mxu0
      %7284 = vmatprep.mubr.bf16.mxu0 0
      %7285 = vmatmul.mubr.bf16.gmra.mrb[0].mxu0 %v6352
      %v7286 = vpop.f32.mrb[0].mxu0
      %v7287 = vadd.f32 0.0, %v7286
      %v7288 = vpop.f32.mrb[0].mxu0
      %v7289 = vpop.f32.mrb[0].mxu0
      %v7290 = vadd.f32 0.0, %v7289
      %v7291 = vpop.f32.mrb[0].mxu0
      %7292 = vmatprep.mubr.bf16.mxu0 0
      %7293 = vmatmul.mubr.bf16.gmra.mrb[0].mxu0 %v6353
      %v7294 = vpop.f32.mrb[0].mxu0
      %v7295 = vadd.f32 0.0, %v7294
      %v7296 = vpop.f32.mrb[0].mxu0
      %v7297 = vpop.f32.mrb[0].mxu0
      %v7298 = vadd.f32 0.0, %v7297
      %v7299 = vpop.f32.mrb[0].mxu0
      %7300 = vmatprep.mubr.bf16.mxu0 0
      %7301 = vmatmul.mubr.bf16.gmra.mrb[0].mxu0 %v6354
      %v7302 = vpop.f32.mrb[0].mxu0
      %v7303 = vadd.f32 0.0, %v7302
      %v7304 = vpop.f32.mrb[0].mxu0
      %v7305 = vpop.f32.mrb[0].mxu0
      %v7306 = vadd.f32 0.0, %v7305
      %v7307 = vpop.f32.mrb[0].mxu0
      %7308 = vmatprep.mubr.bf16.mxu0 0
      %7309 = vmatmul.mubr.bf16.gmra.mrb[0].mxu0 %v6355
      %v7310 = vpop.f32.mrb[0].mxu0
      %v7311 = vadd.f32 0.0, %v7310
      %v7312 = vpop.f32.mrb[0].mxu0
      %v7313 = vpop.f32.mrb[0].mxu0
      %v7314 = vadd.f32 0.0, %v7313
      %v7315 = vpop.f32.mrb[0].mxu0
      %7316 = vmatprep.mubr.bf16.mxu0 0
      %7317 = vmatmul.mubr.bf16.gmra.mrb[0].mxu0 %v6356
      %v7318 = vpop.f32.mrb[0].mxu0
      %v7319 = vadd.f32 0.0, %v7318
      %v7320 = vpop.f32.mrb[0].mxu0
      %v7321 = vpop.f32.mrb[0].mxu0
      %v7322 = vadd.f32 0.0, %v7321
      %v7323 = vpop.f32.mrb[0].mxu0
      %7324 = vmatprep.mubr.bf16.mxu0 0
      %7325 = vmatmul.mubr.bf16.gmra.mrb[0].mxu0 %v6357
      %v7326 = vpop.f32.mrb[0].mxu0
      %v7327 = vadd.f32 0.0, %v7326
      %v7328 = vpop.f32.mrb[0].mxu0
      %v7329 = vpop.f32.mrb[0].mxu0
      %v7330 = vadd.f32 0.0, %v7329
      %v7331 = vpop.f32.mrb[0].mxu0
      %7332 = vmatprep.mubr.bf16.mxu0 0
      %7333 = vmatmul.mubr.bf16.gmra.mrb[0].mxu0 %v6358
      %v7334 = vpop.f32.mrb[0].mxu0
      %v7335 = vadd.f32 0.0, %v7334
      %v7336 = vpop.f32.mrb[0].mxu0
      %v7337 = vpop.f32.mrb[0].mxu0
      %v7338 = vadd.f32 0.0, %v7337
      %v7339 = vpop.f32.mrb[0].mxu0
      %7340 = vmatprep.mubr.bf16.mxu0 0
      %7341 = vmatmul.mubr.bf16.gmra.mrb[0].mxu0 %v6359
      %v7342 = vpop.f32.mrb[0].mxu0
      %v7343 = vadd.f32 0.0, %v7342
      %v7344 = vpop.f32.mrb[0].mxu0
      %v7345 = vpop.f32.mrb[0].mxu0
      %v7346 = vadd.f32 0.0, %v7345
      %v7347 = vpop.f32.mrb[0].mxu0
      %7348 = vmatprep.mubr.bf16.mxu0 0
      %7349 = vmatmul.mubr.bf16.gmra.mrb[0].mxu0 %v6360
      %v7350 = vpop.f32.mrb[0].mxu0
      %v7351 = vadd.f32 0.0, %v7350
      %v7352 = vpop.f32.mrb[0].mxu0
      %v7353 = vpop.f32.mrb[0].mxu0
      %v7354 = vadd.f32 0.0, %v7353
      %v7355 = vpop.f32.mrb[0].mxu0
      %7356 = vmatprep.mubr.bf16.mxu0 0
      %7357 = vmatmul.mubr.bf16.gmra.mrb[0].mxu0 %v6361
      %v7358 = vpop.f32.mrb[0].mxu0
      %v7359 = vadd.f32 0.0, %v7358
      %v7360 = vpop.f32.mrb[0].mxu0
      %v7361 = vpop.f32.mrb[0].mxu0
      %v7362 = vadd.f32 0.0, %v7361
      %v7363 = vpop.f32.mrb[0].mxu0
      %7364 = vmatprep.mubr.bf16.mxu0 0
      %7365 = vmatmul.mubr.bf16.gmra.mrb[0].mxu0 %v6362
      %v7366 = vpop.f32.mrb[0].mxu0
      %v7367 = vadd.f32 0.0, %v7366
      %v7368 = vpop.f32.mrb[0].mxu0
      %v7369 = vpop.f32.mrb[0].mxu0
      %v7370 = vadd.f32 0.0, %v7369
      %v7371 = vpop.f32.mrb[0].mxu0
      %7372 = vmatprep.mubr.bf16.mxu0 0
      %7373 = vmatmul.mubr.bf16.gmra.mrb[0].mxu0 %v6363
      %v7374 = vpop.f32.mrb[0].mxu0
      %v7375 = vpop.f32.mrb[0].mxu0
      %v7376 = vpop.f32.mrb[0].mxu0
      %v7377 = vpop.f32.mrb[0].mxu0
      %7378 = vmatprep.mubr.bf16.mxu0 0
      %7379 = vmatmul.mubr.bf16.gmra.mrb[0].mxu0 %v6364
      %v7380 = vpop.f32.mrb[0].mxu0
      %v7381 = vpop.f32.mrb[0].mxu0
      %v7382 = vpop.f32.mrb[0].mxu0
      %v7383 = vpop.f32.mrb[0].mxu0
      %7384 = vdwg.mxu0
      %v7401 = vunpack.c.l.b16 %v6135
      %v7402 = vunpack.c.l.b16 %v6136
      %v7403 = vunpack.c.l.b16 %v6137
      %v7404 = vunpack.c.l.b16 %v6138
      %v7405 = vunpack.c.l.b16 %v6139
      %v7406 = vunpack.c.l.b16 %v6140
      %v7407 = vunpack.c.l.b16 %v6141
      %v7408 = vunpack.c.l.b16 %v6142
      %v7409 = vunpack.c.l.b16 %v6143
      %v7410 = vunpack.c.l.b16 %v6144
      %v7411 = vunpack.c.l.b16 %v6145
      %v7412 = vunpack.c.l.b16 %v6146
      %v7413 = vunpack.c.l.b16 %v6147
      %v7414 = vunpack.c.l.b16 %v6148
      %v7415 = vunpack.c.l.b16 %v6149
      %v7416 = vunpack.c.l.b16 %v6150
      %v7417 = vpack.c.b16 %v7402, %v7401
      %v7418 = vpack.c.b16 %v7404, %v7403
      %v7419 = vpack.c.b16 %v7406, %v7405
      %v7420 = vpack.c.b16 %v7408, %v7407
      %v7421 = vpack.c.b16 %v7410, %v7409
      %v7422 = vpack.c.b16 %v7412, %v7411
      %v7423 = vpack.c.b16 %v7414, %v7413
      %v7424 = vpack.c.b16 %v7416, %v7415
      %7433 = vmatprep.subr.bf16.mxu0 0
      %7434 = vmatpush1.bf16.msra.mxu0 %v7417
      %7435 = vmatprep.subr.bf16.mxu0 0
      %7436 = vmatpush1.bf16.msra.mxu0 %v7418
      %7437 = vmatprep.subr.bf16.mxu0 0
      %7438 = vmatpush1.bf16.msra.mxu0 %v7419
      %7439 = vmatprep.subr.bf16.mxu0 0
      %7440 = vmatpush1.bf16.msra.mxu0 %v7420
      %7441 = vmatprep.subr.bf16.mxu0 0
      %7442 = vmatpush1.bf16.msra.mxu0 %v7421
      %7443 = vmatprep.subr.bf16.mxu0 0
      %7444 = vmatpush1.bf16.msra.mxu0 %v7422
      %7445 = vmatprep.subr.bf16.mxu0 0
      %7446 = vmatpush1.bf16.msra.mxu0 %v7423
      %7447 = vmatprep.subr.bf16.mxu0 0
      %7448 = vmatpush1.bf16.msra.mxu0 %v7424
      %7449 = vmatprep.subr.bf16.mxu0 0
      %7450 = vmatpush1.bf16.msra.mxu0 0
      %7451 = vmatprep.subr.bf16.mxu0 0
      %7452 = vmatpush1.bf16.msra.mxu0 0
      %7453 = vmatprep.subr.bf16.mxu0 0
      %7454 = vmatpush1.bf16.msra.mxu0 0
      %7455 = vmatprep.subr.bf16.mxu0 0
      %7456 = vmatpush1.bf16.msra.mxu0 0
      %7457 = vmatprep.subr.bf16.mxu0 0
      %7458 = vmatpush1.bf16.msra.mxu0 0
      %7459 = vmatprep.subr.bf16.mxu0 0
      %7460 = vmatpush1.bf16.msra.mxu0 0
      %7461 = vmatprep.subr.bf16.mxu0 0
      %7462 = vmatpush1.bf16.msra.mxu0 0
      %7463 = vmatprep.subr.bf16.mxu0 0
      %7464 = vmatpush1.bf16.msra.mxu0 0
      %7465 = vmatprep.mubr.bf16.mxu0 0
      %7466 = vmatmul.mubr.bf16.gmra.mrb[0].mxu0 %v6762
      %v7467 = vpop.f32.mrb[0].mxu0
      %v7468 = vadd.f32 %v7183, %v7467
      %v7469 = vpop.f32.mrb[0].mxu0
      %v7470 = vpop.f32.mrb[0].mxu0
      %v7471 = vadd.f32 %v7186, %v7470
      %v7472 = vpop.f32.mrb[0].mxu0
      %7473 = vmatprep.mubr.bf16.mxu0 0
      %7474 = vmatmul.mubr.bf16.gmra.mrb[0].mxu0 %v6763
      %v7475 = vpop.f32.mrb[0].mxu0
      %v7476 = vadd.f32 %v7191, %v7475
      %v7477 = vpop.f32.mrb[0].mxu0
      %v7478 = vpop.f32.mrb[0].mxu0
      %v7479 = vadd.f32 %v7194, %v7478
      %v7480 = vpop.f32.mrb[0].mxu0
      %7481 = vmatprep.mubr.bf16.mxu0 0
      %7482 = vmatmul.mubr.bf16.gmra.mrb[0].mxu0 %v6764
      %v7483 = vpop.f32.mrb[0].mxu0
      %v7484 = vadd.f32 %v7199, %v7483
      %v7485 = vpop.f32.mrb[0].mxu0
      %v7486 = vpop.f32.mrb[0].mxu0
      %v7487 = vadd.f32 %v7202, %v7486
      %v7488 = vpop.f32.mrb[0].mxu0
      %7489 = vmatprep.mubr.bf16.mxu0 0
      %7490 = vmatmul.mubr.bf16.gmra.mrb[0].mxu0 %v6765
      %v7491 = vpop.f32.mrb[0].mxu0
      %v7492 = vadd.f32 %v7207, %v7491
      %v7493 = vpop.f32.mrb[0].mxu0
      %v7494 = vpop.f32.mrb[0].mxu0
      %v7495 = vadd.f32 %v7210, %v7494
      %v7496 = vpop.f32.mrb[0].mxu0
      %7497 = vmatprep.mubr.bf16.mxu0 0
      %7498 = vmatmul.mubr.bf16.gmra.mrb[0].mxu0 %v6766
      %v7499 = vpop.f32.mrb[0].mxu0
      %v7500 = vadd.f32 %v7215, %v7499
      %v7501 = vpop.f32.mrb[0].mxu0
      %v7502 = vpop.f32.mrb[0].mxu0
      %v7503 = vadd.f32 %v7218, %v7502
      %v7504 = vpop.f32.mrb[0].mxu0
      %7505 = vmatprep.mubr.bf16.mxu0 0
      %7506 = vmatmul.mubr.bf16.gmra.mrb[0].mxu0 %v6767
      %v7507 = vpop.f32.mrb[0].mxu0
      %v7508 = vadd.f32 %v7223, %v7507
      %v7509 = vpop.f32.mrb[0].mxu0
      %v7510 = vpop.f32.mrb[0].mxu0
      %v7511 = vadd.f32 %v7226, %v7510
      %v7512 = vpop.f32.mrb[0].mxu0
      %7513 = vmatprep.mubr.bf16.mxu0 0
      %7514 = vmatmul.mubr.bf16.gmra.mrb[0].mxu0 %v6768
      %v7515 = vpop.f32.mrb[0].mxu0
      %v7516 = vadd.f32 %v7231, %v7515
      %v7517 = vpop.f32.mrb[0].mxu0
      %v7518 = vpop.f32.mrb[0].mxu0
      %v7519 = vadd.f32 %v7234, %v7518
      %v7520 = vpop.f32.mrb[0].mxu0
      %7521 = vmatprep.mubr.bf16.mxu0 0
      %7522 = vmatmul.mubr.bf16.gmra.mrb[0].mxu0 %v6769
      %v7523 = vpop.f32.mrb[0].mxu0
      %v7524 = vadd.f32 %v7239, %v7523
      %v7525 = vpop.f32.mrb[0].mxu0
      %v7526 = vpop.f32.mrb[0].mxu0
      %v7527 = vadd.f32 %v7242, %v7526
      %v7528 = vpop.f32.mrb[0].mxu0
      %7529 = vmatprep.mubr.bf16.mxu0 0
      %7530 = vmatmul.mubr.bf16.gmra.mrb[0].mxu0 %v6770
      %v7531 = vpop.f32.mrb[0].mxu0
      %v7532 = vadd.f32 %v7247, %v7531
      %v7533 = vpop.f32.mrb[0].mxu0
      %v7534 = vpop.f32.mrb[0].mxu0
      %v7535 = vadd.f32 %v7250, %v7534
      %v7536 = vpop.f32.mrb[0].mxu0
      %7537 = vmatprep.mubr.bf16.mxu0 0
      %7538 = vmatmul.mubr.bf16.gmra.mrb[0].mxu0 %v6771
      %v7539 = vpop.f32.mrb[0].mxu0
      %v7540 = vadd.f32 %v7255, %v7539
      %v7541 = vpop.f32.mrb[0].mxu0
      %v7542 = vpop.f32.mrb[0].mxu0
      %v7543 = vadd.f32 %v7258, %v7542
      %v7544 = vpop.f32.mrb[0].mxu0
      %7545 = vmatprep.mubr.bf16.mxu0 0
      %7546 = vmatmul.mubr.bf16.gmra.mrb[0].mxu0 %v6772
      %v7547 = vpop.f32.mrb[0].mxu0
      %v7548 = vadd.f32 %v7263, %v7547
      %v7549 = vpop.f32.mrb[0].mxu0
      %v7550 = vpop.f32.mrb[0].mxu0
      %v7551 = vadd.f32 %v7266, %v7550
      %v7552 = vpop.f32.mrb[0].mxu0
      %7553 = vmatprep.mubr.bf16.mxu0 0
      %7554 = vmatmul.mubr.bf16.gmra.mrb[0].mxu0 %v6773
      %v7555 = vpop.f32.mrb[0].mxu0
      %v7556 = vadd.f32 %v7271, %v7555
      %v7557 = vpop.f32.mrb[0].mxu0
      %v7558 = vpop.f32.mrb[0].mxu0
      %v7559 = vadd.f32 %v7274, %v7558
      %v7560 = vpop.f32.mrb[0].mxu0
      %7561 = vmatprep.mubr.bf16.mxu0 0
      %7562 = vmatmul.mubr.bf16.gmra.mrb[0].mxu0 %v6774
      %v7563 = vpop.f32.mrb[0].mxu0
      %v7564 = vadd.f32 %v7279, %v7563
      %v7565 = vpop.f32.mrb[0].mxu0
      %v7566 = vpop.f32.mrb[0].mxu0
      %v7567 = vadd.f32 %v7282, %v7566
      %v7568 = vpop.f32.mrb[0].mxu0
      %7569 = vmatprep.mubr.bf16.mxu0 0
      %7570 = vmatmul.mubr.bf16.gmra.mrb[0].mxu0 %v6775
      %v7571 = vpop.f32.mrb[0].mxu0
      %v7572 = vadd.f32 %v7287, %v7571
      %v7573 = vpop.f32.mrb[0].mxu0
      %v7574 = vpop.f32.mrb[0].mxu0
      %v7575 = vadd.f32 %v7290, %v7574
      %v7576 = vpop.f32.mrb[0].mxu0
      %7577 = vmatprep.mubr.bf16.mxu0 0
      %7578 = vmatmul.mubr.bf16.gmra.mrb[0].mxu0 %v6776
      %v7579 = vpop.f32.mrb[0].mxu0
      %v7580 = vadd.f32 %v7295, %v7579
      %v7581 = vpop.f32.mrb[0].mxu0
      %v7582 = vpop.f32.mrb[0].mxu0
      %v7583 = vadd.f32 %v7298, %v7582
      %v7584 = vpop.f32.mrb[0].mxu0
      %7585 = vmatprep.mubr.bf16.mxu0 0
      %7586 = vmatmul.mubr.bf16.gmra.mrb[0].mxu0 %v6777
      %v7587 = vpop.f32.mrb[0].mxu0
      %v7588 = vadd.f32 %v7303, %v7587
      %v7589 = vpop.f32.mrb[0].mxu0
      %v7590 = vpop.f32.mrb[0].mxu0
      %v7591 = vadd.f32 %v7306, %v7590
      %v7592 = vpop.f32.mrb[0].mxu0
      %7593 = vmatprep.mubr.bf16.mxu0 0
      %7594 = vmatmul.mubr.bf16.gmra.mrb[0].mxu0 %v6778
      %v7595 = vpop.f32.mrb[0].mxu0
      %v7596 = vadd.f32 %v7311, %v7595
      %v7597 = vpop.f32.mrb[0].mxu0
      %v7598 = vpop.f32.mrb[0].mxu0
      %v7599 = vadd.f32 %v7314, %v7598
      %v7600 = vpop.f32.mrb[0].mxu0
      %7601 = vmatprep.mubr.bf16.mxu0 0
      %7602 = vmatmul.mubr.bf16.gmra.mrb[0].mxu0 %v6779
      %v7603 = vpop.f32.mrb[0].mxu0
      %v7604 = vadd.f32 %v7319, %v7603
      %v7605 = vpop.f32.mrb[0].mxu0
      %v7606 = vpop.f32.mrb[0].mxu0
      %v7607 = vadd.f32 %v7322, %v7606
      %v7608 = vpop.f32.mrb[0].mxu0
      %7609 = vmatprep.mubr.bf16.mxu0 0
      %7610 = vmatmul.mubr.bf16.gmra.mrb[0].mxu0 %v6780
      %v7611 = vpop.f32.mrb[0].mxu0
      %v7612 = vadd.f32 %v7327, %v7611
      %v7613 = vpop.f32.mrb[0].mxu0
      %v7614 = vpop.f32.mrb[0].mxu0
      %v7615 = vadd.f32 %v7330, %v7614
      %v7616 = vpop.f32.mrb[0].mxu0
      %7617 = vmatprep.mubr.bf16.mxu0 0
      %7618 = vmatmul.mubr.bf16.gmra.mrb[0].mxu0 %v6781
      %v7619 = vpop.f32.mrb[0].mxu0
      %v7620 = vadd.f32 %v7335, %v7619
      %v7621 = vpop.f32.mrb[0].mxu0
      %v7622 = vpop.f32.mrb[0].mxu0
      %v7623 = vadd.f32 %v7338, %v7622
      %v7624 = vpop.f32.mrb[0].mxu0
      %7625 = vmatprep.mubr.bf16.mxu0 0
      %7626 = vmatmul.mubr.bf16.gmra.mrb[0].mxu0 %v6782
      %v7627 = vpop.f32.mrb[0].mxu0
      %v7628 = vadd.f32 %v7343, %v7627
      %v7629 = vpop.f32.mrb[0].mxu0
      %v7630 = vpop.f32.mrb[0].mxu0
      %v7631 = vadd.f32 %v7346, %v7630
      %v7632 = vpop.f32.mrb[0].mxu0
      %7633 = vmatprep.mubr.bf16.mxu0 0
      %7634 = vmatmul.mubr.bf16.gmra.mrb[0].mxu0 %v6783
      %v7635 = vpop.f32.mrb[0].mxu0
      %v7636 = vadd.f32 %v7351, %v7635
      %v7637 = vpop.f32.mrb[0].mxu0
      %v7638 = vpop.f32.mrb[0].mxu0
      %v7639 = vadd.f32 %v7354, %v7638
      %v7640 = vpop.f32.mrb[0].mxu0
      %7641 = vmatprep.mubr.bf16.mxu0 0
      %7642 = vmatmul.mubr.bf16.gmra.mrb[0].mxu0 %v6784
      %v7643 = vpop.f32.mrb[0].mxu0
      %v7644 = vadd.f32 %v7359, %v7643
      %v7645 = vpop.f32.mrb[0].mxu0
      %v7646 = vpop.f32.mrb[0].mxu0
      %v7647 = vadd.f32 %v7362, %v7646
      %v7648 = vpop.f32.mrb[0].mxu0
      %7649 = vmatprep.mubr.bf16.mxu0 0
      %7650 = vmatmul.mubr.bf16.gmra.mrb[0].mxu0 %v6785
      %v7651 = vpop.f32.mrb[0].mxu0
      %v7652 = vadd.f32 %v7367, %v7651
      %v7653 = vpop.f32.mrb[0].mxu0
      %v7654 = vpop.f32.mrb[0].mxu0
      %v7655 = vadd.f32 %v7370, %v7654
      %v7656 = vpop.f32.mrb[0].mxu0
      %7657 = vmatprep.mubr.bf16.mxu0 0
      %7658 = vmatmul.mubr.bf16.gmra.mrb[0].mxu0 %v6786
      %v7659 = vpop.f32.mrb[0].mxu0
      %v7660 = vpop.f32.mrb[0].mxu0
      %v7661 = vpop.f32.mrb[0].mxu0
      %v7662 = vpop.f32.mrb[0].mxu0
      %7663 = vmatprep.mubr.bf16.mxu0 0
      %7664 = vmatmul.mubr.bf16.gmra.mrb[0].mxu0 %v6787
      %v7665 = vpop.f32.mrb[0].mxu0
      %v7666 = vpop.f32.mrb[0].mxu0
      %v7667 = vpop.f32.mrb[0].mxu0
      %v7668 = vpop.f32.mrb[0].mxu0
      %7669 = vdwg.mxu0
      %s7670 = scalar_lea.vmem %s311, 320
      %v7671 = vld [vmem:[%s7670] sm:$0xf]
      %v7672 = vld [vmem:[%s7670 + $0x4] sm:$0xf]
      %v7673 = vld [vmem:[%s7670 + $0x8] sm:$0xf]
      %v7674 = vld [vmem:[%s7670 + $0xc] sm:$0xf]
      %v7675 = vld [vmem:[%s7670 + $0x10] sm:$0xf]
      %v7676 = vld [vmem:[%s7670 + $0x14] sm:$0xf]
      %v7677 = vld [vmem:[%s7670 + $0x18] sm:$0xf]
      %v7678 = vld [vmem:[%s7670 + $0x1c] sm:$0xf]
      %v7679 = vld [vmem:[%s7670 + $0x20] sm:$0xf]
      %v7680 = vld [vmem:[%s7670 + $0x24] sm:$0xf]
      %v7681 = vld [vmem:[%s7670 + $0x28] sm:$0xf]
      %v7682 = vld [vmem:[%s7670 + $0x2c] sm:$0xf]
      %v7683 = vld [vmem:[%s7670 + $0x30] sm:$0xf]
      %v7684 = vld [vmem:[%s7670 + $0x34] sm:$0xf]
      %v7685 = vld [vmem:[%s7670 + $0x38] sm:$0xf]
      %v7686 = vld [vmem:[%s7670 + $0x3c] sm:$0xf]
      %v7703 = vunpack.c.l.b16 %v7671
      %v7704 = vunpack.c.l.b16 %v7672
      %v7705 = vunpack.c.l.b16 %v7673
      %v7706 = vunpack.c.l.b16 %v7674
      %v7707 = vunpack.c.l.b16 %v7675
      %v7708 = vunpack.c.l.b16 %v7676
      %v7709 = vunpack.c.l.b16 %v7677
      %v7710 = vunpack.c.l.b16 %v7678
      %v7711 = vunpack.c.l.b16 %v7679
      %v7712 = vunpack.c.l.b16 %v7680
      %v7713 = vunpack.c.l.b16 %v7681
      %v7714 = vunpack.c.l.b16 %v7682
      %v7715 = vunpack.c.l.b16 %v7683
      %v7716 = vunpack.c.l.b16 %v7684
      %v7717 = vunpack.c.l.b16 %v7685
      %v7718 = vunpack.c.l.b16 %v7686
      %v7719 = vpack.c.b16 %v7704, %v7703
      %v7720 = vpack.c.b16 %v7706, %v7705
      %v7721 = vpack.c.b16 %v7708, %v7707
      %v7722 = vpack.c.b16 %v7710, %v7709
      %v7723 = vpack.c.b16 %v7712, %v7711
      %v7724 = vpack.c.b16 %v7714, %v7713
      %v7725 = vpack.c.b16 %v7716, %v7715
      %v7726 = vpack.c.b16 %v7718, %v7717
      %7735 = vmatprep.subr.bf16.mxu0 0
      %7736 = vmatpush1.bf16.msra.mxu0 %v7719
      %7737 = vmatprep.subr.bf16.mxu0 0
      %7738 = vmatpush1.bf16.msra.mxu0 %v7720
      %7739 = vmatprep.subr.bf16.mxu0 0
      %7740 = vmatpush1.bf16.msra.mxu0 %v7721
      %7741 = vmatprep.subr.bf16.mxu0 0
      %7742 = vmatpush1.bf16.msra.mxu0 %v7722
      %7743 = vmatprep.subr.bf16.mxu0 0
      %7744 = vmatpush1.bf16.msra.mxu0 %v7723
      %7745 = vmatprep.subr.bf16.mxu0 0
      %7746 = vmatpush1.bf16.msra.mxu0 %v7724
      %7747 = vmatprep.subr.bf16.mxu0 0
      %7748 = vmatpush1.bf16.msra.mxu0 %v7725
      %7749 = vmatprep.subr.bf16.mxu0 0
      %7750 = vmatpush1.bf16.msra.mxu0 %v7726
      %7751 = vmatprep.subr.bf16.mxu0 0
      %7752 = vmatpush1.bf16.msra.mxu0 0
      %7753 = vmatprep.subr.bf16.mxu0 0
      %7754 = vmatpush1.bf16.msra.mxu0 0
      %7755 = vmatprep.subr.bf16.mxu0 0
      %7756 = vmatpush1.bf16.msra.mxu0 0
      %7757 = vmatprep.subr.bf16.mxu0 0
      %7758 = vmatpush1.bf16.msra.mxu0 0
      %7759 = vmatprep.subr.bf16.mxu0 0
      %7760 = vmatpush1.bf16.msra.mxu0 0
      %7761 = vmatprep.subr.bf16.mxu0 0
      %7762 = vmatpush1.bf16.msra.mxu0 0
      %7763 = vmatprep.subr.bf16.mxu0 0
      %7764 = vmatpush1.bf16.msra.mxu0 0
      %7765 = vmatprep.subr.bf16.mxu0 0
      %7766 = vmatpush1.bf16.msra.mxu0 0
      %7767 = vmatprep.mubr.bf16.mxu0 0
      %7768 = vmatmul.mubr.bf16.gmra.mrb[0].mxu0 %v6339
      %v7769 = vpop.f32.mrb[0].mxu0
      %v7770 = vadd.f32 0.0, %v7769
      %v7771 = vpop.f32.mrb[0].mxu0
      %v7772 = vpop.f32.mrb[0].mxu0
      %v7773 = vadd.f32 0.0, %v7772
      %v7774 = vpop.f32.mrb[0].mxu0
      %7775 = vmatprep.mubr.bf16.mxu0 0
      %7776 = vmatmul.mubr.bf16.gmra.mrb[0].mxu0 %v6340
      %v7777 = vpop.f32.mrb[0].mxu0
      %v7778 = vadd.f32 0.0, %v7777
      %v7779 = vpop.f32.mrb[0].mxu0
      %v7780 = vpop.f32.mrb[0].mxu0
      %v7781 = vadd.f32 0.0, %v7780
      %v7782 = vpop.f32.mrb[0].mxu0
      %7783 = vmatprep.mubr.bf16.mxu0 0
      %7784 = vmatmul.mubr.bf16.gmra.mrb[0].mxu0 %v6341
      %v7785 = vpop.f32.mrb[0].mxu0
      %v7786 = vadd.f32 0.0, %v7785
      %v7787 = vpop.f32.mrb[0].mxu0
      %v7788 = vpop.f32.mrb[0].mxu0
      %v7789 = vadd.f32 0.0, %v7788
      %v7790 = vpop.f32.mrb[0].mxu0
      %7791 = vmatprep.mubr.bf16.mxu0 0
      %7792 = vmatmul.mubr.bf16.gmra.mrb[0].mxu0 %v6342
      %v7793 = vpop.f32.mrb[0].mxu0
      %v7794 = vadd.f32 0.0, %v7793
      %v7795 = vpop.f32.mrb[0].mxu0
      %v7796 = vpop.f32.mrb[0].mxu0
      %v7797 = vadd.f32 0.0, %v7796
      %v7798 = vpop.f32.mrb[0].mxu0
      %7799 = vmatprep.mubr.bf16.mxu0 0
      %7800 = vmatmul.mubr.bf16.gmra.mrb[0].mxu0 %v6343
      %v7801 = vpop.f32.mrb[0].mxu0
      %v7802 = vadd.f32 0.0, %v7801
      %v7803 = vpop.f32.mrb[0].mxu0
      %v7804 = vpop.f32.mrb[0].mxu0
      %v7805 = vadd.f32 0.0, %v7804
      %v7806 = vpop.f32.mrb[0].mxu0
      %7807 = vmatprep.mubr.bf16.mxu0 0
      %7808 = vmatmul.mubr.bf16.gmra.mrb[0].mxu0 %v6344
      %v7809 = vpop.f32.mrb[0].mxu0
      %v7810 = vadd.f32 0.0, %v7809
      %v7811 = vpop.f32.mrb[0].mxu0
      %v7812 = vpop.f32.mrb[0].mxu0
      %v7813 = vadd.f32 0.0, %v7812
      %v7814 = vpop.f32.mrb[0].mxu0
      %7815 = vmatprep.mubr.bf16.mxu0 0
      %7816 = vmatmul.mubr.bf16.gmra.mrb[0].mxu0 %v6345
      %v7817 = vpop.f32.mrb[0].mxu0
      %v7818 = vadd.f32 0.0, %v7817
      %v7819 = vpop.f32.mrb[0].mxu0
      %v7820 = vpop.f32.mrb[0].mxu0
      %v7821 = vadd.f32 0.0, %v7820
      %v7822 = vpop.f32.mrb[0].mxu0
      %7823 = vmatprep.mubr.bf16.mxu0 0
      %7824 = vmatmul.mubr.bf16.gmra.mrb[0].mxu0 %v6346
      %v7825 = vpop.f32.mrb[0].mxu0
      %v7826 = vadd.f32 0.0, %v7825
      %v7827 = vpop.f32.mrb[0].mxu0
      %v7828 = vpop.f32.mrb[0].mxu0
      %v7829 = vadd.f32 0.0, %v7828
      %v7830 = vpop.f32.mrb[0].mxu0
      %7831 = vmatprep.mubr.bf16.mxu0 0
      %7832 = vmatmul.mubr.bf16.gmra.mrb[0].mxu0 %v6347
      %v7833 = vpop.f32.mrb[0].mxu0
      %v7834 = vadd.f32 0.0, %v7833
      %v7835 = vpop.f32.mrb[0].mxu0
      %v7836 = vpop.f32.mrb[0].mxu0
      %v7837 = vadd.f32 0.0, %v7836
      %v7838 = vpop.f32.mrb[0].mxu0
      %7839 = vmatprep.mubr.bf16.mxu0 0
      %7840 = vmatmul.mubr.bf16.gmra.mrb[0].mxu0 %v6348
      %v7841 = vpop.f32.mrb[0].mxu0
      %v7842 = vadd.f32 0.0, %v7841
      %v7843 = vpop.f32.mrb[0].mxu0
      %v7844 = vpop.f32.mrb[0].mxu0
      %v7845 = vadd.f32 0.0, %v7844
      %v7846 = vpop.f32.mrb[0].mxu0
      %7847 = vmatprep.mubr.bf16.mxu0 0
      %7848 = vmatmul.mubr.bf16.gmra.mrb[0].mxu0 %v6349
      %v7849 = vpop.f32.mrb[0].mxu0
      %v7850 = vadd.f32 0.0, %v7849
      %v7851 = vpop.f32.mrb[0].mxu0
      %v7852 = vpop.f32.mrb[0].mxu0
      %v7853 = vadd.f32 0.0, %v7852
      %v7854 = vpop.f32.mrb[0].mxu0
      %7855 = vmatprep.mubr.bf16.mxu0 0
      %7856 = vmatmul.mubr.bf16.gmra.mrb[0].mxu0 %v6350
      %v7857 = vpop.f32.mrb[0].mxu0
      %v7858 = vadd.f32 0.0, %v7857
      %v7859 = vpop.f32.mrb[0].mxu0
      %v7860 = vpop.f32.mrb[0].mxu0
      %v7861 = vadd.f32 0.0, %v7860
      %v7862 = vpop.f32.mrb[0].mxu0
      %7863 = vmatprep.mubr.bf16.mxu0 0
      %7864 = vmatmul.mubr.bf16.gmra.mrb[0].mxu0 %v6351
      %v7865 = vpop.f32.mrb[0].mxu0
      %v7866 = vadd.f32 0.0, %v7865
      %v7867 = vpop.f32.mrb[0].mxu0
      %v7868 = vpop.f32.mrb[0].mxu0
      %v7869 = vadd.f32 0.0, %v7868
      %v7870 = vpop.f32.mrb[0].mxu0
      %7871 = vmatprep.mubr.bf16.mxu0 0
      %7872 = vmatmul.mubr.bf16.gmra.mrb[0].mxu0 %v6352
      %v7873 = vpop.f32.mrb[0].mxu0
      %v7874 = vadd.f32 0.0, %v7873
      %v7875 = vpop.f32.mrb[0].mxu0
      %v7876 = vpop.f32.mrb[0].mxu0
      %v7877 = vadd.f32 0.0, %v7876
      %v7878 = vpop.f32.mrb[0].mxu0
      %7879 = vmatprep.mubr.bf16.mxu0 0
      %7880 = vmatmul.mubr.bf16.gmra.mrb[0].mxu0 %v6353
      %v7881 = vpop.f32.mrb[0].mxu0
      %v7882 = vadd.f32 0.0, %v7881
      %v7883 = vpop.f32.mrb[0].mxu0
      %v7884 = vpop.f32.mrb[0].mxu0
      %v7885 = vadd.f32 0.0, %v7884
      %v7886 = vpop.f32.mrb[0].mxu0
      %7887 = vmatprep.mubr.bf16.mxu0 0
      %7888 = vmatmul.mubr.bf16.gmra.mrb[0].mxu0 %v6354
      %v7889 = vpop.f32.mrb[0].mxu0
      %v7890 = vadd.f32 0.0, %v7889
      %v7891 = vpop.f32.mrb[0].mxu0
      %v7892 = vpop.f32.mrb[0].mxu0
      %v7893 = vadd.f32 0.0, %v7892
      %v7894 = vpop.f32.mrb[0].mxu0
      %7895 = vmatprep.mubr.bf16.mxu0 0
      %7896 = vmatmul.mubr.bf16.gmra.mrb[0].mxu0 %v6355
      %v7897 = vpop.f32.mrb[0].mxu0
      %v7898 = vadd.f32 0.0, %v7897
      %v7899 = vpop.f32.mrb[0].mxu0
      %v7900 = vpop.f32.mrb[0].mxu0
      %v7901 = vadd.f32 0.0, %v7900
      %v7902 = vpop.f32.mrb[0].mxu0
      %7903 = vmatprep.mubr.bf16.mxu0 0
      %7904 = vmatmul.mubr.bf16.gmra.mrb[0].mxu0 %v6356
      %v7905 = vpop.f32.mrb[0].mxu0
      %v7906 = vadd.f32 0.0, %v7905
      %v7907 = vpop.f32.mrb[0].mxu0
      %v7908 = vpop.f32.mrb[0].mxu0
      %v7909 = vadd.f32 0.0, %v7908
      %v7910 = vpop.f32.mrb[0].mxu0
      %7911 = vmatprep.mubr.bf16.mxu0 0
      %7912 = vmatmul.mubr.bf16.gmra.mrb[0].mxu0 %v6357
      %v7913 = vpop.f32.mrb[0].mxu0
      %v7914 = vadd.f32 0.0, %v7913
      %v7915 = vpop.f32.mrb[0].mxu0
      %v7916 = vpop.f32.mrb[0].mxu0
      %v7917 = vadd.f32 0.0, %v7916
      %v7918 = vpop.f32.mrb[0].mxu0
      %7919 = vmatprep.mubr.bf16.mxu0 0
      %7920 = vmatmul.mubr.bf16.gmra.mrb[0].mxu0 %v6358
      %v7921 = vpop.f32.mrb[0].mxu0
      %v7922 = vadd.f32 0.0, %v7921
      %v7923 = vpop.f32.mrb[0].mxu0
      %v7924 = vpop.f32.mrb[0].mxu0
      %v7925 = vadd.f32 0.0, %v7924
      %v7926 = vpop.f32.mrb[0].mxu0
      %7927 = vmatprep.mubr.bf16.mxu0 0
      %7928 = vmatmul.mubr.bf16.gmra.mrb[0].mxu0 %v6359
      %v7929 = vpop.f32.mrb[0].mxu0
      %v7930 = vadd.f32 0.0, %v7929
      %v7931 = vpop.f32.mrb[0].mxu0
      %v7932 = vpop.f32.mrb[0].mxu0
      %v7933 = vadd.f32 0.0, %v7932
      %v7934 = vpop.f32.mrb[0].mxu0
      %7935 = vmatprep.mubr.bf16.mxu0 0
      %7936 = vmatmul.mubr.bf16.gmra.mrb[0].mxu0 %v6360
      %v7937 = vpop.f32.mrb[0].mxu0
      %v7938 = vadd.f32 0.0, %v7937
      %v7939 = vpop.f32.mrb[0].mxu0
      %v7940 = vpop.f32.mrb[0].mxu0
      %v7941 = vadd.f32 0.0, %v7940
      %v7942 = vpop.f32.mrb[0].mxu0
      %7943 = vmatprep.mubr.bf16.mxu0 0
      %7944 = vmatmul.mubr.bf16.gmra.mrb[0].mxu0 %v6361
      %v7945 = vpop.f32.mrb[0].mxu0
      %v7946 = vadd.f32 0.0, %v7945
      %v7947 = vpop.f32.mrb[0].mxu0
      %v7948 = vpop.f32.mrb[0].mxu0
      %v7949 = vadd.f32 0.0, %v7948
      %v7950 = vpop.f32.mrb[0].mxu0
      %7951 = vmatprep.mubr.bf16.mxu0 0
      %7952 = vmatmul.mubr.bf16.gmra.mrb[0].mxu0 %v6362
      %v7953 = vpop.f32.mrb[0].mxu0
      %v7954 = vadd.f32 0.0, %v7953
      %v7955 = vpop.f32.mrb[0].mxu0
      %v7956 = vpop.f32.mrb[0].mxu0
      %v7957 = vadd.f32 0.0, %v7956
      %v7958 = vpop.f32.mrb[0].mxu0
      %7959 = vmatprep.mubr.bf16.mxu0 0
      %7960 = vmatmul.mubr.bf16.gmra.mrb[0].mxu0 %v6363
      %v7961 = vpop.f32.mrb[0].mxu0
      %v7962 = vpop.f32.mrb[0].mxu0
      %v7963 = vpop.f32.mrb[0].mxu0
      %v7964 = vpop.f32.mrb[0].mxu0
      %7965 = vmatprep.mubr.bf16.mxu0 0
      %7966 = vmatmul.mubr.bf16.gmra.mrb[0].mxu0 %v6364
      %v7967 = vpop.f32.mrb[0].mxu0
      %v7968 = vpop.f32.mrb[0].mxu0
      %v7969 = vpop.f32.mrb[0].mxu0
      %v7970 = vpop.f32.mrb[0].mxu0
      %7971 = vdwg.mxu0
      %v7988 = vunpack.c.l.b16 %v6152
      %v7989 = vunpack.c.l.b16 %v6153
      %v7990 = vunpack.c.l.b16 %v6154
      %v7991 = vunpack.c.l.b16 %v6155
      %v7992 = vunpack.c.l.b16 %v6156
      %v7993 = vunpack.c.l.b16 %v6157
      %v7994 = vunpack.c.l.b16 %v6158
      %v7995 = vunpack.c.l.b16 %v6159
      %v7996 = vunpack.c.l.b16 %v6160
      %v7997 = vunpack.c.l.b16 %v6161
      %v7998 = vunpack.c.l.b16 %v6162
      %v7999 = vunpack.c.l.b16 %v6163
      %v8000 = vunpack.c.l.b16 %v6164
      %v8001 = vunpack.c.l.b16 %v6165
      %v8002 = vunpack.c.l.b16 %v6166
      %v8003 = vunpack.c.l.b16 %v6167
      %v8004 = vpack.c.b16 %v7989, %v7988
      %v8005 = vpack.c.b16 %v7991, %v7990
      %v8006 = vpack.c.b16 %v7993, %v7992
      %v8007 = vpack.c.b16 %v7995, %v7994
      %v8008 = vpack.c.b16 %v7997, %v7996
      %v8009 = vpack.c.b16 %v7999, %v7998
      %v8010 = vpack.c.b16 %v8001, %v8000
      %v8011 = vpack.c.b16 %v8003, %v8002
      %8020 = vmatprep.subr.bf16.mxu0 0
      %8021 = vmatpush1.bf16.msra.mxu0 %v8004
      %8022 = vmatprep.subr.bf16.mxu0 0
      %8023 = vmatpush1.bf16.msra.mxu0 %v8005
      %8024 = vmatprep.subr.bf16.mxu0 0
      %8025 = vmatpush1.bf16.msra.mxu0 %v8006
      %8026 = vmatprep.subr.bf16.mxu0 0
      %8027 = vmatpush1.bf16.msra.mxu0 %v8007
      %8028 = vmatprep.subr.bf16.mxu0 0
      %8029 = vmatpush1.bf16.msra.mxu0 %v8008
      %8030 = vmatprep.subr.bf16.mxu0 0
      %8031 = vmatpush1.bf16.msra.mxu0 %v8009
      %8032 = vmatprep.subr.bf16.mxu0 0
      %8033 = vmatpush1.bf16.msra.mxu0 %v8010
      %8034 = vmatprep.subr.bf16.mxu0 0
      %8035 = vmatpush1.bf16.msra.mxu0 %v8011
      %8036 = vmatprep.subr.bf16.mxu0 0
      %8037 = vmatpush1.bf16.msra.mxu0 0
      %8038 = vmatprep.subr.bf16.mxu0 0
      %8039 = vmatpush1.bf16.msra.mxu0 0
      %8040 = vmatprep.subr.bf16.mxu0 0
      %8041 = vmatpush1.bf16.msra.mxu0 0
      %8042 = vmatprep.subr.bf16.mxu0 0
      %8043 = vmatpush1.bf16.msra.mxu0 0
      %8044 = vmatprep.subr.bf16.mxu0 0
      %8045 = vmatpush1.bf16.msra.mxu0 0
      %8046 = vmatprep.subr.bf16.mxu0 0
      %8047 = vmatpush1.bf16.msra.mxu0 0
      %8048 = vmatprep.subr.bf16.mxu0 0
      %8049 = vmatpush1.bf16.msra.mxu0 0
      %8050 = vmatprep.subr.bf16.mxu0 0
      %8051 = vmatpush1.bf16.msra.mxu0 0
      %8052 = vmatprep.mubr.bf16.mxu0 0
      %8053 = vmatmul.mubr.bf16.gmra.mrb[0].mxu0 %v6762
      %v8054 = vpop.f32.mrb[0].mxu0
      %v8055 = vadd.f32 %v7770, %v8054
      %v8056 = vpop.f32.mrb[0].mxu0
      %v8057 = vpop.f32.mrb[0].mxu0
      %v8058 = vadd.f32 %v7773, %v8057
      %v8059 = vpop.f32.mrb[0].mxu0
      %8060 = vmatprep.mubr.bf16.mxu0 0
      %8061 = vmatmul.mubr.bf16.gmra.mrb[0].mxu0 %v6763
      %v8062 = vpop.f32.mrb[0].mxu0
      %v8063 = vadd.f32 %v7778, %v8062
      %v8064 = vpop.f32.mrb[0].mxu0
      %v8065 = vpop.f32.mrb[0].mxu0
      %v8066 = vadd.f32 %v7781, %v8065
      %v8067 = vpop.f32.mrb[0].mxu0
      %8068 = vmatprep.mubr.bf16.mxu0 0
      %8069 = vmatmul.mubr.bf16.gmra.mrb[0].mxu0 %v6764
      %v8070 = vpop.f32.mrb[0].mxu0
      %v8071 = vadd.f32 %v7786, %v8070
      %v8072 = vpop.f32.mrb[0].mxu0
      %v8073 = vpop.f32.mrb[0].mxu0
      %v8074 = vadd.f32 %v7789, %v8073
      %v8075 = vpop.f32.mrb[0].mxu0
      %8076 = vmatprep.mubr.bf16.mxu0 0
      %8077 = vmatmul.mubr.bf16.gmra.mrb[0].mxu0 %v6765
      %v8078 = vpop.f32.mrb[0].mxu0
      %v8079 = vadd.f32 %v7794, %v8078
      %v8080 = vpop.f32.mrb[0].mxu0
      %v8081 = vpop.f32.mrb[0].mxu0
      %v8082 = vadd.f32 %v7797, %v8081
      %v8083 = vpop.f32.mrb[0].mxu0
      %8084 = vmatprep.mubr.bf16.mxu0 0
      %8085 = vmatmul.mubr.bf16.gmra.mrb[0].mxu0 %v6766
      %v8086 = vpop.f32.mrb[0].mxu0
      %v8087 = vadd.f32 %v7802, %v8086
      %v8088 = vpop.f32.mrb[0].mxu0
      %v8089 = vpop.f32.mrb[0].mxu0
      %v8090 = vadd.f32 %v7805, %v8089
      %v8091 = vpop.f32.mrb[0].mxu0
      %8092 = vmatprep.mubr.bf16.mxu0 0
      %8093 = vmatmul.mubr.bf16.gmra.mrb[0].mxu0 %v6767
      %v8094 = vpop.f32.mrb[0].mxu0
      %v8095 = vadd.f32 %v7810, %v8094
      %v8096 = vpop.f32.mrb[0].mxu0
      %v8097 = vpop.f32.mrb[0].mxu0
      %v8098 = vadd.f32 %v7813, %v8097
      %v8099 = vpop.f32.mrb[0].mxu0
      %8100 = vmatprep.mubr.bf16.mxu0 0
      %8101 = vmatmul.mubr.bf16.gmra.mrb[0].mxu0 %v6768
      %v8102 = vpop.f32.mrb[0].mxu0
      %v8103 = vadd.f32 %v7818, %v8102
      %v8104 = vpop.f32.mrb[0].mxu0
      %v8105 = vpop.f32.mrb[0].mxu0
      %v8106 = vadd.f32 %v7821, %v8105
      %v8107 = vpop.f32.mrb[0].mxu0
      %8108 = vmatprep.mubr.bf16.mxu0 0
      %8109 = vmatmul.mubr.bf16.gmra.mrb[0].mxu0 %v6769
      %v8110 = vpop.f32.mrb[0].mxu0
      %v8111 = vadd.f32 %v7826, %v8110
      %v8112 = vpop.f32.mrb[0].mxu0
      %v8113 = vpop.f32.mrb[0].mxu0
      %v8114 = vadd.f32 %v7829, %v8113
      %v8115 = vpop.f32.mrb[0].mxu0
      %8116 = vmatprep.mubr.bf16.mxu0 0
      %8117 = vmatmul.mubr.bf16.gmra.mrb[0].mxu0 %v6770
      %v8118 = vpop.f32.mrb[0].mxu0
      %v8119 = vadd.f32 %v7834, %v8118
      %v8120 = vpop.f32.mrb[0].mxu0
      %v8121 = vpop.f32.mrb[0].mxu0
      %v8122 = vadd.f32 %v7837, %v8121
      %v8123 = vpop.f32.mrb[0].mxu0
      %8124 = vmatprep.mubr.bf16.mxu0 0
      %8125 = vmatmul.mubr.bf16.gmra.mrb[0].mxu0 %v6771
      %v8126 = vpop.f32.mrb[0].mxu0
      %v8127 = vadd.f32 %v7842, %v8126
      %v8128 = vpop.f32.mrb[0].mxu0
      %v8129 = vpop.f32.mrb[0].mxu0
      %v8130 = vadd.f32 %v7845, %v8129
      %v8131 = vpop.f32.mrb[0].mxu0
      %8132 = vmatprep.mubr.bf16.mxu0 0
      %8133 = vmatmul.mubr.bf16.gmra.mrb[0].mxu0 %v6772
      %v8134 = vpop.f32.mrb[0].mxu0
      %v8135 = vadd.f32 %v7850, %v8134
      %v8136 = vpop.f32.mrb[0].mxu0
      %v8137 = vpop.f32.mrb[0].mxu0
      %v8138 = vadd.f32 %v7853, %v8137
      %v8139 = vpop.f32.mrb[0].mxu0
      %8140 = vmatprep.mubr.bf16.mxu0 0
      %8141 = vmatmul.mubr.bf16.gmra.mrb[0].mxu0 %v6773
      %v8142 = vpop.f32.mrb[0].mxu0
      %v8143 = vadd.f32 %v7858, %v8142
      %v8144 = vpop.f32.mrb[0].mxu0
      %v8145 = vpop.f32.mrb[0].mxu0
      %v8146 = vadd.f32 %v7861, %v8145
      %v8147 = vpop.f32.mrb[0].mxu0
      %8148 = vmatprep.mubr.bf16.mxu0 0
      %8149 = vmatmul.mubr.bf16.gmra.mrb[0].mxu0 %v6774
      %v8150 = vpop.f32.mrb[0].mxu0
      %v8151 = vadd.f32 %v7866, %v8150
      %v8152 = vpop.f32.mrb[0].mxu0
      %v8153 = vpop.f32.mrb[0].mxu0
      %v8154 = vadd.f32 %v7869, %v8153
      %v8155 = vpop.f32.mrb[0].mxu0
      %8156 = vmatprep.mubr.bf16.mxu0 0
      %8157 = vmatmul.mubr.bf16.gmra.mrb[0].mxu0 %v6775
      %v8158 = vpop.f32.mrb[0].mxu0
      %v8159 = vadd.f32 %v7874, %v8158
      %v8160 = vpop.f32.mrb[0].mxu0
      %v8161 = vpop.f32.mrb[0].mxu0
      %v8162 = vadd.f32 %v7877, %v8161
      %v8163 = vpop.f32.mrb[0].mxu0
      %8164 = vmatprep.mubr.bf16.mxu0 0
      %8165 = vmatmul.mubr.bf16.gmra.mrb[0].mxu0 %v6776
      %v8166 = vpop.f32.mrb[0].mxu0
      %v8167 = vadd.f32 %v7882, %v8166
      %v8168 = vpop.f32.mrb[0].mxu0
      %v8169 = vpop.f32.mrb[0].mxu0
      %v8170 = vadd.f32 %v7885, %v8169
      %v8171 = vpop.f32.mrb[0].mxu0
      %8172 = vmatprep.mubr.bf16.mxu0 0
      %8173 = vmatmul.mubr.bf16.gmra.mrb[0].mxu0 %v6777
      %v8174 = vpop.f32.mrb[0].mxu0
      %v8175 = vadd.f32 %v7890, %v8174
      %v8176 = vpop.f32.mrb[0].mxu0
      %v8177 = vpop.f32.mrb[0].mxu0
      %v8178 = vadd.f32 %v7893, %v8177
      %v8179 = vpop.f32.mrb[0].mxu0
      %8180 = vmatprep.mubr.bf16.mxu0 0
      %8181 = vmatmul.mubr.bf16.gmra.mrb[0].mxu0 %v6778
      %v8182 = vpop.f32.mrb[0].mxu0
      %v8183 = vadd.f32 %v7898, %v8182
      %v8184 = vpop.f32.mrb[0].mxu0
      %v8185 = vpop.f32.mrb[0].mxu0
      %v8186 = vadd.f32 %v7901, %v8185
      %v8187 = vpop.f32.mrb[0].mxu0
      %8188 = vmatprep.mubr.bf16.mxu0 0
      %8189 = vmatmul.mubr.bf16.gmra.mrb[0].mxu0 %v6779
      %v8190 = vpop.f32.mrb[0].mxu0
      %v8191 = vadd.f32 %v7906, %v8190
      %v8192 = vpop.f32.mrb[0].mxu0
      %v8193 = vpop.f32.mrb[0].mxu0
      %v8194 = vadd.f32 %v7909, %v8193
      %v8195 = vpop.f32.mrb[0].mxu0
      %8196 = vmatprep.mubr.bf16.mxu0 0
      %8197 = vmatmul.mubr.bf16.gmra.mrb[0].mxu0 %v6780
      %v8198 = vpop.f32.mrb[0].mxu0
      %v8199 = vadd.f32 %v7914, %v8198
      %v8200 = vpop.f32.mrb[0].mxu0
      %v8201 = vpop.f32.mrb[0].mxu0
      %v8202 = vadd.f32 %v7917, %v8201
      %v8203 = vpop.f32.mrb[0].mxu0
      %8204 = vmatprep.mubr.bf16.mxu0 0
      %8205 = vmatmul.mubr.bf16.gmra.mrb[0].mxu0 %v6781
      %v8206 = vpop.f32.mrb[0].mxu0
      %v8207 = vadd.f32 %v7922, %v8206
      %v8208 = vpop.f32.mrb[0].mxu0
      %v8209 = vpop.f32.mrb[0].mxu0
      %v8210 = vadd.f32 %v7925, %v8209
      %v8211 = vpop.f32.mrb[0].mxu0
      %8212 = vmatprep.mubr.bf16.mxu0 0
      %8213 = vmatmul.mubr.bf16.gmra.mrb[0].mxu0 %v6782
      %v8214 = vpop.f32.mrb[0].mxu0
      %v8215 = vadd.f32 %v7930, %v8214
      %v8216 = vpop.f32.mrb[0].mxu0
      %v8217 = vpop.f32.mrb[0].mxu0
      %v8218 = vadd.f32 %v7933, %v8217
      %v8219 = vpop.f32.mrb[0].mxu0
      %8220 = vmatprep.mubr.bf16.mxu0 0
      %8221 = vmatmul.mubr.bf16.gmra.mrb[0].mxu0 %v6783
      %v8222 = vpop.f32.mrb[0].mxu0
      %v8223 = vadd.f32 %v7938, %v8222
      %v8224 = vpop.f32.mrb[0].mxu0
      %v8225 = vpop.f32.mrb[0].mxu0
      %v8226 = vadd.f32 %v7941, %v8225
      %v8227 = vpop.f32.mrb[0].mxu0
      %8228 = vmatprep.mubr.bf16.mxu0 0
      %8229 = vmatmul.mubr.bf16.gmra.mrb[0].mxu0 %v6784
      %v8230 = vpop.f32.mrb[0].mxu0
      %v8231 = vadd.f32 %v7946, %v8230
      %v8232 = vpop.f32.mrb[0].mxu0
      %v8233 = vpop.f32.mrb[0].mxu0
      %v8234 = vadd.f32 %v7949, %v8233
      %v8235 = vpop.f32.mrb[0].mxu0
      %8236 = vmatprep.mubr.bf16.mxu0 0
      %8237 = vmatmul.mubr.bf16.gmra.mrb[0].mxu0 %v6785
      %v8238 = vpop.f32.mrb[0].mxu0
      %v8239 = vadd.f32 %v7954, %v8238
      %v8240 = vpop.f32.mrb[0].mxu0
      %v8241 = vpop.f32.mrb[0].mxu0
      %v8242 = vadd.f32 %v7957, %v8241
      %v8243 = vpop.f32.mrb[0].mxu0
      %8244 = vmatprep.mubr.bf16.mxu0 0
      %8245 = vmatmul.mubr.bf16.gmra.mrb[0].mxu0 %v6786
      %v8246 = vpop.f32.mrb[0].mxu0
      %v8247 = vpop.f32.mrb[0].mxu0
      %v8248 = vpop.f32.mrb[0].mxu0
      %v8249 = vpop.f32.mrb[0].mxu0
      %8250 = vmatprep.mubr.bf16.mxu0 0
      %8251 = vmatmul.mubr.bf16.gmra.mrb[0].mxu0 %v6787
      %v8252 = vpop.f32.mrb[0].mxu0
      %v8253 = vpop.f32.mrb[0].mxu0
      %v8254 = vpop.f32.mrb[0].mxu0
      %v8255 = vpop.f32.mrb[0].mxu0
      %8256 = vdwg.mxu0
      %s8257 = scalar_lea.vmem [#allocation3], 24
      %v8258 = vld [vmem:[%s8257] sm:$0xf]
      %v8259 = vld [vmem:[%s8257 + $0x4] sm:$0xf]
      %v8260 = vld [vmem:[%s8257 + $0x8] sm:$0xf]
      %v8261 = vld [vmem:[%s8257 + $0xc] sm:$0xf]
      %v8262 = vld [vmem:[%s8257 + $0x10] sm:$0xf]
      %v8263 = vld [vmem:[%s8257 + $0x14] sm:$0xf]
      %v8264 = vld [vmem:[%s8257 + $0x18] sm:$0xf]
      %v8265 = vld [vmem:[%s8257 + $0x1c] sm:$0xf]
      %v8266 = vld [vmem:[%s8257 + $0x20] sm:$0xf]
      %v8267 = vld [vmem:[%s8257 + $0x24] sm:$0xf]
      %v8268 = vld [vmem:[%s8257 + $0x28] sm:$0xf]
      %v8269 = vld [vmem:[%s8257 + $0x2c] sm:$0xf]
      %v8270 = vld [vmem:[%s8257 + $0x30] sm:$0xf]
      %v8271 = vld [vmem:[%s8257 + $0x34] sm:$0xf]
      %v8272 = vld [vmem:[%s8257 + $0x38] sm:$0xf]
      %v8273 = vld [vmem:[%s8257 + $0x3c] sm:$0xf]
      %v8274 = vld [vmem:[%s8257 + $0x40] sm:$0xf]
      %v8275 = vld [vmem:[%s8257 + $0x44] sm:$0xf]
      %v8276 = vld [vmem:[%s8257 + $0x48] sm:$0xf]
      %v8277 = vld [vmem:[%s8257 + $0x4c] sm:$0xf]
      %v8278 = vld [vmem:[%s8257 + $0x50] sm:$0xf]
      %v8279 = vld [vmem:[%s8257 + $0x54] sm:$0xf]
      %v8280 = vld [vmem:[%s8257 + $0x58] sm:$0xf]
      %v8281 = vld [vmem:[%s8257 + $0x5c] sm:$0xf]
      %v8282 = vld [vmem:[%s8257 + $0x60] sm:$0xf]
      %v8283 = vld [vmem:[%s8257 + $0x64] sm:$0xf]
      %v8284 = vld [vmem:[%s8257 + $0x68] sm:$0xf]
      %v8285 = vld [vmem:[%s8257 + $0x6c] sm:$0xf]
      %v8286 = vld [vmem:[%s8257 + $0x70] sm:$0xf]
      %v8287 = vld [vmem:[%s8257 + $0x74] sm:$0xf]
      %v8288 = vld [vmem:[%s8257 + $0x78] sm:$0xf]
      %v8289 = vld [vmem:[%s8257 + $0x7c] sm:$0xf]
      %v8290 = vld [vmem:[%s8257 + $0x80] sm:$0xf]
      %v8291 = vld [vmem:[%s8257 + $0x84] sm:$0xf]
      %v8292 = vld [vmem:[%s8257 + $0x88] sm:$0xf]
      %v8293 = vld [vmem:[%s8257 + $0x8c] sm:$0xf]
      %v8294 = vld [vmem:[%s8257 + $0x90] sm:$0xf]
      %v8295 = vld [vmem:[%s8257 + $0x94] sm:$0xf]
      %v8296 = vld [vmem:[%s8257 + $0x98] sm:$0xf]
      %v8297 = vld [vmem:[%s8257 + $0x9c] sm:$0xf]
      %v8298 = vld [vmem:[%s8257 + $0xa0] sm:$0xf]
      %v8299 = vld [vmem:[%s8257 + $0xa4] sm:$0xf]
      %v8300 = vld [vmem:[%s8257 + $0xa8] sm:$0xf]
      %v8301 = vld [vmem:[%s8257 + $0xac] sm:$0xf]
      %v8302 = vld [vmem:[%s8257 + $0xb0] sm:$0xf]
      %v8303 = vld [vmem:[%s8257 + $0xb4] sm:$0xf]
      %v8304 = vld [vmem:[%s8257 + $0xb8] sm:$0xf]
      %v8305 = vld [vmem:[%s8257 + $0xbc] sm:$0xf]
      %v8306 = vld [vmem:[%s8257 + $0xc0] sm:$0xf]
      %v8307 = vld [vmem:[%s8257 + $0xc4] sm:$0xf]
      %v8308 = vld [vmem:[%s8257 + $0xc8] sm:$0xf]
      %s8309 = scalar_lea.vmem %s311, 384
      %v8310 = vld [vmem:[%s8309] sm:$0xf]
      %v8311 = vld [vmem:[%s8309 + $0x4] sm:$0xf]
      %v8312 = vld [vmem:[%s8309 + $0x8] sm:$0xf]
      %v8313 = vld [vmem:[%s8309 + $0xc] sm:$0xf]
      %v8314 = vld [vmem:[%s8309 + $0x10] sm:$0xf]
      %v8315 = vld [vmem:[%s8309 + $0x14] sm:$0xf]
      %v8316 = vld [vmem:[%s8309 + $0x18] sm:$0xf]
      %v8317 = vld [vmem:[%s8309 + $0x1c] sm:$0xf]
      %v8318 = vld [vmem:[%s8309 + $0x20] sm:$0xf]
      %v8319 = vld [vmem:[%s8309 + $0x24] sm:$0xf]
      %v8320 = vld [vmem:[%s8309 + $0x28] sm:$0xf]
      %v8321 = vld [vmem:[%s8309 + $0x2c] sm:$0xf]
      %v8322 = vld [vmem:[%s8309 + $0x30] sm:$0xf]
      %v8323 = vld [vmem:[%s8309 + $0x34] sm:$0xf]
      %v8324 = vld [vmem:[%s8309 + $0x38] sm:$0xf]
      %v8325 = vld [vmem:[%s8309 + $0x3c] sm:$0xf]
      %v8377 = vunpack.c.l.b16 %v8258
      %v8378 = vunpack.c.l.b16 %v8259
      %v8379 = vunpack.c.l.b16 %v8260
      %v8380 = vunpack.c.l.b16 %v8261
      %v8381 = vunpack.c.l.b16 %v8262
      %v8382 = vunpack.c.l.b16 %v8263
      %v8383 = vunpack.c.l.b16 %v8264
      %v8384 = vunpack.c.l.b16 %v8265
      %v8385 = vunpack.c.l.b16 %v8266
      %v8386 = vunpack.c.l.b16 %v8267
      %v8387 = vunpack.c.l.b16 %v8268
      %v8388 = vunpack.c.l.b16 %v8269
      %v8389 = vunpack.c.l.b16 %v8270
      %v8390 = vunpack.c.l.b16 %v8271
      %v8391 = vunpack.c.l.b16 %v8272
      %v8392 = vunpack.c.l.b16 %v8273
      %v8393 = vunpack.c.l.b16 %v8274
      %v8394 = vunpack.c.l.b16 %v8275
      %v8395 = vunpack.c.l.b16 %v8276
      %v8396 = vunpack.c.l.b16 %v8277
      %v8397 = vunpack.c.l.b16 %v8278
      %v8398 = vunpack.c.l.b16 %v8279
      %v8399 = vunpack.c.l.b16 %v8280
      %v8400 = vunpack.c.l.b16 %v8281
      %v8401 = vunpack.c.l.b16 %v8282
      %v8402 = vunpack.c.l.b16 %v8283
      %v8403 = vunpack.c.l.b16 %v8284
      %v8404 = vunpack.c.l.b16 %v8285
      %v8405 = vunpack.c.l.b16 %v8286
      %v8406 = vunpack.c.l.b16 %v8287
      %v8407 = vunpack.c.l.b16 %v8288
      %v8408 = vunpack.c.l.b16 %v8289
      %v8409 = vunpack.c.l.b16 %v8290
      %v8410 = vunpack.c.l.b16 %v8291
      %v8411 = vunpack.c.l.b16 %v8292
      %v8412 = vunpack.c.l.b16 %v8293
      %v8413 = vunpack.c.l.b16 %v8294
      %v8414 = vunpack.c.l.b16 %v8295
      %v8415 = vunpack.c.l.b16 %v8296
      %v8416 = vunpack.c.l.b16 %v8297
      %v8417 = vunpack.c.l.b16 %v8298
      %v8418 = vunpack.c.l.b16 %v8299
      %v8419 = vunpack.c.l.b16 %v8300
      %v8420 = vunpack.c.l.b16 %v8301
      %v8421 = vunpack.c.l.b16 %v8302
      %v8422 = vunpack.c.l.b16 %v8303
      %v8423 = vunpack.c.l.b16 %v8304
      %v8424 = vunpack.c.l.b16 %v8305
      %v8425 = vunpack.c.l.b16 %v8306
      %v8426 = vunpack.c.l.b16 %v8307
      %v8427 = vunpack.c.l.b16 %v8308
      %v8428 = vpack.c.b16 %v8378, %v8377
      %v8429 = vpack.c.b16 %v8380, %v8379
      %v8430 = vpack.c.b16 %v8382, %v8381
      %v8431 = vpack.c.b16 %v8384, %v8383
      %v8432 = vpack.c.b16 %v8386, %v8385
      %v8433 = vpack.c.b16 %v8388, %v8387
      %v8434 = vpack.c.b16 %v8390, %v8389
      %v8435 = vpack.c.b16 %v8392, %v8391
      %v8436 = vpack.c.b16 %v8394, %v8393
      %v8437 = vpack.c.b16 %v8396, %v8395
      %v8438 = vpack.c.b16 %v8398, %v8397
      %v8439 = vpack.c.b16 %v8400, %v8399
      %v8440 = vpack.c.b16 %v8402, %v8401
      %v8441 = vpack.c.b16 %v8404, %v8403
      %v8442 = vpack.c.b16 %v8406, %v8405
      %v8443 = vpack.c.b16 %v8408, %v8407
      %v8444 = vpack.c.b16 %v8410, %v8409
      %v8445 = vpack.c.b16 %v8412, %v8411
      %v8446 = vpack.c.b16 %v8414, %v8413
      %v8447 = vpack.c.b16 %v8416, %v8415
      %v8448 = vpack.c.b16 %v8418, %v8417
      %v8449 = vpack.c.b16 %v8420, %v8419
      %v8450 = vpack.c.b16 %v8422, %v8421
      %v8451 = vpack.c.b16 %v8424, %v8423
      %v8452 = vpack.c.b16 %v8426, %v8425
      %v8453 = vpack.c.b16 %v8427, %v8427
      %v8496 = vunpack.c.l.b16 %v8310
      %v8497 = vunpack.c.l.b16 %v8311
      %v8498 = vunpack.c.l.b16 %v8312
      %v8499 = vunpack.c.l.b16 %v8313
      %v8500 = vunpack.c.l.b16 %v8314
      %v8501 = vunpack.c.l.b16 %v8315
      %v8502 = vunpack.c.l.b16 %v8316
      %v8503 = vunpack.c.l.b16 %v8317
      %v8504 = vunpack.c.l.b16 %v8318
      %v8505 = vunpack.c.l.b16 %v8319
      %v8506 = vunpack.c.l.b16 %v8320
      %v8507 = vunpack.c.l.b16 %v8321
      %v8508 = vunpack.c.l.b16 %v8322
      %v8509 = vunpack.c.l.b16 %v8323
      %v8510 = vunpack.c.l.b16 %v8324
      %v8511 = vunpack.c.l.b16 %v8325
      %v8512 = vpack.c.b16 %v8497, %v8496
      %v8513 = vpack.c.b16 %v8499, %v8498
      %v8514 = vpack.c.b16 %v8501, %v8500
      %v8515 = vpack.c.b16 %v8503, %v8502
      %v8516 = vpack.c.b16 %v8505, %v8504
      %v8517 = vpack.c.b16 %v8507, %v8506
      %v8518 = vpack.c.b16 %v8509, %v8508
      %v8519 = vpack.c.b16 %v8511, %v8510
      %8528 = vmatprep.subr.bf16.mxu0 0
      %8529 = vmatpush1.bf16.msra.mxu0 %v8512
      %8530 = vmatprep.subr.bf16.mxu0 0
      %8531 = vmatpush1.bf16.msra.mxu0 %v8513
      %8532 = vmatprep.subr.bf16.mxu0 0
      %8533 = vmatpush1.bf16.msra.mxu0 %v8514
      %8534 = vmatprep.subr.bf16.mxu0 0
      %8535 = vmatpush1.bf16.msra.mxu0 %v8515
      %8536 = vmatprep.subr.bf16.mxu0 0
      %8537 = vmatpush1.bf16.msra.mxu0 %v8516
      %8538 = vmatprep.subr.bf16.mxu0 0
      %8539 = vmatpush1.bf16.msra.mxu0 %v8517
      %8540 = vmatprep.subr.bf16.mxu0 0
      %8541 = vmatpush1.bf16.msra.mxu0 %v8518
      %8542 = vmatprep.subr.bf16.mxu0 0
      %8543 = vmatpush1.bf16.msra.mxu0 %v8519
      %8544 = vmatprep.subr.bf16.mxu0 0
      %8545 = vmatpush1.bf16.msra.mxu0 0
      %8546 = vmatprep.subr.bf16.mxu0 0
      %8547 = vmatpush1.bf16.msra.mxu0 0
      %8548 = vmatprep.subr.bf16.mxu0 0
      %8549 = vmatpush1.bf16.msra.mxu0 0
      %8550 = vmatprep.subr.bf16.mxu0 0
      %8551 = vmatpush1.bf16.msra.mxu0 0
      %8552 = vmatprep.subr.bf16.mxu0 0
      %8553 = vmatpush1.bf16.msra.mxu0 0
      %8554 = vmatprep.subr.bf16.mxu0 0
      %8555 = vmatpush1.bf16.msra.mxu0 0
      %8556 = vmatprep.subr.bf16.mxu0 0
      %8557 = vmatpush1.bf16.msra.mxu0 0
      %8558 = vmatprep.subr.bf16.mxu0 0
      %8559 = vmatpush1.bf16.msra.mxu0 0
      %8560 = vmatprep.mubr.bf16.mxu0 0
      %8561 = vmatmul.mubr.bf16.gmra.mrb[0].mxu0 %v8428
      %v8562 = vpop.f32.mrb[0].mxu0
      %v8563 = vadd.f32 0.0, %v8562
      %v8564 = vpop.f32.mrb[0].mxu0
      %v8565 = vpop.f32.mrb[0].mxu0
      %v8566 = vadd.f32 0.0, %v8565
      %v8567 = vpop.f32.mrb[0].mxu0
      %8568 = vmatprep.mubr.bf16.mxu0 0
      %8569 = vmatmul.mubr.bf16.gmra.mrb[0].mxu0 %v8429
      %v8570 = vpop.f32.mrb[0].mxu0
      %v8571 = vpop.f32.mrb[0].mxu0
      %v8572 = vpop.f32.mrb[0].mxu0
      %v8573 = vadd.f32 0.0, %v8572
      %v8574 = vpop.f32.mrb[0].mxu0
      %8575 = vmatprep.mubr.bf16.mxu0 0
      %8576 = vmatmul.mubr.bf16.gmra.mrb[0].mxu0 %v8430
      %v8577 = vpop.f32.mrb[0].mxu0
      %v8578 = vadd.f32 0.0, %v8577
      %v8579 = vpop.f32.mrb[0].mxu0
      %v8580 = vpop.f32.mrb[0].mxu0
      %v8581 = vpop.f32.mrb[0].mxu0
      %8582 = vmatprep.mubr.bf16.mxu0 0
      %8583 = vmatmul.mubr.bf16.gmra.mrb[0].mxu0 %v8431
      %v8584 = vpop.f32.mrb[0].mxu0
      %v8585 = vadd.f32 0.0, %v8584
      %v8586 = vpop.f32.mrb[0].mxu0
      %v8587 = vpop.f32.mrb[0].mxu0
      %v8588 = vadd.f32 0.0, %v8587
      %v8589 = vpop.f32.mrb[0].mxu0
      %8590 = vmatprep.mubr.bf16.mxu0 0
      %8591 = vmatmul.mubr.bf16.gmra.mrb[0].mxu0 %v8432
      %v8592 = vpop.f32.mrb[0].mxu0
      %v8593 = vpop.f32.mrb[0].mxu0
      %v8594 = vpop.f32.mrb[0].mxu0
      %v8595 = vadd.f32 0.0, %v8594
      %v8596 = vpop.f32.mrb[0].mxu0
      %8597 = vmatprep.mubr.bf16.mxu0 0
      %8598 = vmatmul.mubr.bf16.gmra.mrb[0].mxu0 %v8433
      %v8599 = vpop.f32.mrb[0].mxu0
      %v8600 = vadd.f32 0.0, %v8599
      %v8601 = vpop.f32.mrb[0].mxu0
      %v8602 = vpop.f32.mrb[0].mxu0
      %v8603 = vpop.f32.mrb[0].mxu0
      %8604 = vmatprep.mubr.bf16.mxu0 0
      %8605 = vmatmul.mubr.bf16.gmra.mrb[0].mxu0 %v8434
      %v8606 = vpop.f32.mrb[0].mxu0
      %v8607 = vadd.f32 0.0, %v8606
      %v8608 = vpop.f32.mrb[0].mxu0
      %v8609 = vpop.f32.mrb[0].mxu0
      %v8610 = vadd.f32 0.0, %v8609
      %v8611 = vpop.f32.mrb[0].mxu0
      %8612 = vmatprep.mubr.bf16.mxu0 0
      %8613 = vmatmul.mubr.bf16.gmra.mrb[0].mxu0 %v8435
      %v8614 = vpop.f32.mrb[0].mxu0
      %v8615 = vpop.f32.mrb[0].mxu0
      %v8616 = vpop.f32.mrb[0].mxu0
      %v8617 = vadd.f32 0.0, %v8616
      %v8618 = vpop.f32.mrb[0].mxu0
      %8619 = vmatprep.mubr.bf16.mxu0 0
      %8620 = vmatmul.mubr.bf16.gmra.mrb[0].mxu0 %v8436
      %v8621 = vpop.f32.mrb[0].mxu0
      %v8622 = vadd.f32 0.0, %v8621
      %v8623 = vpop.f32.mrb[0].mxu0
      %v8624 = vpop.f32.mrb[0].mxu0
      %v8625 = vpop.f32.mrb[0].mxu0
      %8626 = vmatprep.mubr.bf16.mxu0 0
      %8627 = vmatmul.mubr.bf16.gmra.mrb[0].mxu0 %v8437
      %v8628 = vpop.f32.mrb[0].mxu0
      %v8629 = vadd.f32 0.0, %v8628
      %v8630 = vpop.f32.mrb[0].mxu0
      %v8631 = vpop.f32.mrb[0].mxu0
      %v8632 = vadd.f32 0.0, %v8631
      %v8633 = vpop.f32.mrb[0].mxu0
      %8634 = vmatprep.mubr.bf16.mxu0 0
      %8635 = vmatmul.mubr.bf16.gmra.mrb[0].mxu0 %v8438
      %v8636 = vpop.f32.mrb[0].mxu0
      %v8637 = vpop.f32.mrb[0].mxu0
      %v8638 = vpop.f32.mrb[0].mxu0
      %v8639 = vadd.f32 0.0, %v8638
      %v8640 = vpop.f32.mrb[0].mxu0
      %8641 = vmatprep.mubr.bf16.mxu0 0
      %8642 = vmatmul.mubr.bf16.gmra.mrb[0].mxu0 %v8439
      %v8643 = vpop.f32.mrb[0].mxu0
      %v8644 = vadd.f32 0.0, %v8643
      %v8645 = vpop.f32.mrb[0].mxu0
      %v8646 = vpop.f32.mrb[0].mxu0
      %v8647 = vpop.f32.mrb[0].mxu0
      %8648 = vmatprep.mubr.bf16.mxu0 0
      %8649 = vmatmul.mubr.bf16.gmra.mrb[0].mxu0 %v8440
      %v8650 = vpop.f32.mrb[0].mxu0
      %v8651 = vadd.f32 0.0, %v8650
      %v8652 = vpop.f32.mrb[0].mxu0
      %v8653 = vpop.f32.mrb[0].mxu0
      %v8654 = vadd.f32 0.0, %v8653
      %v8655 = vpop.f32.mrb[0].mxu0
      %8656 = vmatprep.mubr.bf16.mxu0 0
      %8657 = vmatmul.mubr.bf16.gmra.mrb[0].mxu0 %v8441
      %v8658 = vpop.f32.mrb[0].mxu0
      %v8659 = vpop.f32.mrb[0].mxu0
      %v8660 = vpop.f32.mrb[0].mxu0
      %v8661 = vadd.f32 0.0, %v8660
      %v8662 = vpop.f32.mrb[0].mxu0
      %8663 = vmatprep.mubr.bf16.mxu0 0
      %8664 = vmatmul.mubr.bf16.gmra.mrb[0].mxu0 %v8442
      %v8665 = vpop.f32.mrb[0].mxu0
      %v8666 = vadd.f32 0.0, %v8665
      %v8667 = vpop.f32.mrb[0].mxu0
      %v8668 = vpop.f32.mrb[0].mxu0
      %v8669 = vpop.f32.mrb[0].mxu0
      %8670 = vmatprep.mubr.bf16.mxu0 0
      %8671 = vmatmul.mubr.bf16.gmra.mrb[0].mxu0 %v8443
      %v8672 = vpop.f32.mrb[0].mxu0
      %v8673 = vadd.f32 0.0, %v8672
      %v8674 = vpop.f32.mrb[0].mxu0
      %v8675 = vpop.f32.mrb[0].mxu0
      %v8676 = vadd.f32 0.0, %v8675
      %v8677 = vpop.f32.mrb[0].mxu0
      %8678 = vmatprep.mubr.bf16.mxu0 0
      %8679 = vmatmul.mubr.bf16.gmra.mrb[0].mxu0 %v8444
      %v8680 = vpop.f32.mrb[0].mxu0
      %v8681 = vpop.f32.mrb[0].mxu0
      %v8682 = vpop.f32.mrb[0].mxu0
      %v8683 = vadd.f32 0.0, %v8682
      %v8684 = vpop.f32.mrb[0].mxu0
      %8685 = vmatprep.mubr.bf16.mxu0 0
      %8686 = vmatmul.mubr.bf16.gmra.mrb[0].mxu0 %v8445
      %v8687 = vpop.f32.mrb[0].mxu0
      %v8688 = vadd.f32 0.0, %v8687
      %v8689 = vpop.f32.mrb[0].mxu0
      %v8690 = vpop.f32.mrb[0].mxu0
      %v8691 = vpop.f32.mrb[0].mxu0
      %8692 = vmatprep.mubr.bf16.mxu0 0
      %8693 = vmatmul.mubr.bf16.gmra.mrb[0].mxu0 %v8446
      %v8694 = vpop.f32.mrb[0].mxu0
      %v8695 = vadd.f32 0.0, %v8694
      %v8696 = vpop.f32.mrb[0].mxu0
      %v8697 = vpop.f32.mrb[0].mxu0
      %v8698 = vadd.f32 0.0, %v8697
      %v8699 = vpop.f32.mrb[0].mxu0
      %8700 = vmatprep.mubr.bf16.mxu0 0
      %8701 = vmatmul.mubr.bf16.gmra.mrb[0].mxu0 %v8447
      %v8702 = vpop.f32.mrb[0].mxu0
      %v8703 = vpop.f32.mrb[0].mxu0
      %v8704 = vpop.f32.mrb[0].mxu0
      %v8705 = vadd.f32 0.0, %v8704
      %v8706 = vpop.f32.mrb[0].mxu0
      %8707 = vmatprep.mubr.bf16.mxu0 0
      %8708 = vmatmul.mubr.bf16.gmra.mrb[0].mxu0 %v8448
      %v8709 = vpop.f32.mrb[0].mxu0
      %v8710 = vadd.f32 0.0, %v8709
      %v8711 = vpop.f32.mrb[0].mxu0
      %v8712 = vpop.f32.mrb[0].mxu0
      %v8713 = vpop.f32.mrb[0].mxu0
      %8714 = vmatprep.mubr.bf16.mxu0 0
      %8715 = vmatmul.mubr.bf16.gmra.mrb[0].mxu0 %v8449
      %v8716 = vpop.f32.mrb[0].mxu0
      %v8717 = vadd.f32 0.0, %v8716
      %v8718 = vpop.f32.mrb[0].mxu0
      %v8719 = vpop.f32.mrb[0].mxu0
      %v8720 = vadd.f32 0.0, %v8719
      %v8721 = vpop.f32.mrb[0].mxu0
      %8722 = vmatprep.mubr.bf16.mxu0 0
      %8723 = vmatmul.mubr.bf16.gmra.mrb[0].mxu0 %v8450
      %v8724 = vpop.f32.mrb[0].mxu0
      %v8725 = vpop.f32.mrb[0].mxu0
      %v8726 = vpop.f32.mrb[0].mxu0
      %v8727 = vadd.f32 0.0, %v8726
      %v8728 = vpop.f32.mrb[0].mxu0
      %8729 = vmatprep.mubr.bf16.mxu0 0
      %8730 = vmatmul.mubr.bf16.gmra.mrb[0].mxu0 %v8451
      %v8731 = vpop.f32.mrb[0].mxu0
      %v8732 = vadd.f32 0.0, %v8731
      %v8733 = vpop.f32.mrb[0].mxu0
      %v8734 = vpop.f32.mrb[0].mxu0
      %v8735 = vpop.f32.mrb[0].mxu0
      %8736 = vmatprep.mubr.bf16.mxu0 0
      %8737 = vmatmul.mubr.bf16.gmra.mrb[0].mxu0 %v8452
      %v8738 = vpop.f32.mrb[0].mxu0
      %v8739 = vpop.f32.mrb[0].mxu0
      %v8740 = vpop.f32.mrb[0].mxu0
      %v8741 = vpop.f32.mrb[0].mxu0
      %8742 = vmatprep.mubr.bf16.mxu0 0
      %8743 = vmatmul.mubr.bf16.gmra.mrb[0].mxu0 %v8453
      %v8744 = vpop.f32.mrb[0].mxu0
      %v8745 = vpop.f32.mrb[0].mxu0
      %v8746 = vpop.f32.mrb[0].mxu0
      %v8747 = vpop.f32.mrb[0].mxu0
      %8748 = vdwg.mxu0
      %v8749 = vadd.f32 %v6897, %v8563
      %v8750 = vadd.f32 %v6900, %v8566
      %v8751 = vadd.f32 %v6907, %v8573
      %v8752 = vadd.f32 %v6912, %v8578
      %v8753 = vadd.f32 %v6919, %v8585
      %v8754 = vadd.f32 %v6922, %v8588
      %v8755 = vadd.f32 %v6929, %v8595
      %v8756 = vadd.f32 %v6934, %v8600
      %v8757 = vadd.f32 %v6941, %v8607
      %v8758 = vadd.f32 %v6944, %v8610
      %v8759 = vadd.f32 %v6951, %v8617
      %v8760 = vadd.f32 %v6956, %v8622
      %v8761 = vadd.f32 %v6963, %v8629
      %v8762 = vadd.f32 %v6966, %v8632
      %v8763 = vadd.f32 %v6973, %v8639
      %v8764 = vadd.f32 %v6978, %v8644
      %v8765 = vadd.f32 %v6985, %v8651
      %v8766 = vadd.f32 %v6988, %v8654
      %v8767 = vadd.f32 %v6995, %v8661
      %v8768 = vadd.f32 %v7000, %v8666
      %v8769 = vadd.f32 %v7007, %v8673
      %v8770 = vadd.f32 %v7010, %v8676
      %v8771 = vadd.f32 %v7017, %v8683
      %v8772 = vadd.f32 %v7022, %v8688
      %v8773 = vadd.f32 %v7029, %v8695
      %v8774 = vadd.f32 %v7032, %v8698
      %v8775 = vadd.f32 %v7039, %v8705
      %v8776 = vadd.f32 %v7044, %v8710
      %v8777 = vadd.f32 %v7051, %v8717
      %v8778 = vadd.f32 %v7054, %v8720
      %v8779 = vadd.f32 %v7061, %v8727
      %v8780 = vadd.f32 %v7066, %v8732
      %s8781 = scalar_lea.vmem %s311, 448
      %v8782 = vld [vmem:[%s8781] sm:$0xf]
      %v8783 = vld [vmem:[%s8781 + $0x4] sm:$0xf]
      %v8784 = vld [vmem:[%s8781 + $0x8] sm:$0xf]
      %v8785 = vld [vmem:[%s8781 + $0xc] sm:$0xf]
      %v8786 = vld [vmem:[%s8781 + $0x10] sm:$0xf]
      %v8787 = vld [vmem:[%s8781 + $0x14] sm:$0xf]
      %v8788 = vld [vmem:[%s8781 + $0x18] sm:$0xf]
      %v8789 = vld [vmem:[%s8781 + $0x1c] sm:$0xf]
      %v8790 = vld [vmem:[%s8781 + $0x20] sm:$0xf]
      %v8791 = vld [vmem:[%s8781 + $0x24] sm:$0xf]
      %v8792 = vld [vmem:[%s8781 + $0x28] sm:$0xf]
      %v8793 = vld [vmem:[%s8781 + $0x2c] sm:$0xf]
      %v8794 = vld [vmem:[%s8781 + $0x30] sm:$0xf]
      %v8795 = vld [vmem:[%s8781 + $0x34] sm:$0xf]
      %v8796 = vld [vmem:[%s8781 + $0x38] sm:$0xf]
      %v8797 = vld [vmem:[%s8781 + $0x3c] sm:$0xf]
      %v8814 = vunpack.c.l.b16 %v8782
      %v8815 = vunpack.c.l.b16 %v8783
      %v8816 = vunpack.c.l.b16 %v8784
      %v8817 = vunpack.c.l.b16 %v8785
      %v8818 = vunpack.c.l.b16 %v8786
      %v8819 = vunpack.c.l.b16 %v8787
      %v8820 = vunpack.c.l.b16 %v8788
      %v8821 = vunpack.c.l.b16 %v8789
      %v8822 = vunpack.c.l.b16 %v8790
      %v8823 = vunpack.c.l.b16 %v8791
      %v8824 = vunpack.c.l.b16 %v8792
      %v8825 = vunpack.c.l.b16 %v8793
      %v8826 = vunpack.c.l.b16 %v8794
      %v8827 = vunpack.c.l.b16 %v8795
      %v8828 = vunpack.c.l.b16 %v8796
      %v8829 = vunpack.c.l.b16 %v8797
      %v8830 = vpack.c.b16 %v8815, %v8814
      %v8831 = vpack.c.b16 %v8817, %v8816
      %v8832 = vpack.c.b16 %v8819, %v8818
      %v8833 = vpack.c.b16 %v8821, %v8820
      %v8834 = vpack.c.b16 %v8823, %v8822
      %v8835 = vpack.c.b16 %v8825, %v8824
      %v8836 = vpack.c.b16 %v8827, %v8826
      %v8837 = vpack.c.b16 %v8829, %v8828
      %8846 = vmatprep.subr.bf16.mxu0 0
      %8847 = vmatpush1.bf16.msra.mxu0 %v8830
      %8848 = vmatprep.subr.bf16.mxu0 0
      %8849 = vmatpush1.bf16.msra.mxu0 %v8831
      %8850 = vmatprep.subr.bf16.mxu0 0
      %8851 = vmatpush1.bf16.msra.mxu0 %v8832
      %8852 = vmatprep.subr.bf16.mxu0 0
      %8853 = vmatpush1.bf16.msra.mxu0 %v8833
      %8854 = vmatprep.subr.bf16.mxu0 0
      %8855 = vmatpush1.bf16.msra.mxu0 %v8834
      %8856 = vmatprep.subr.bf16.mxu0 0
      %8857 = vmatpush1.bf16.msra.mxu0 %v8835
      %8858 = vmatprep.subr.bf16.mxu0 0
      %8859 = vmatpush1.bf16.msra.mxu0 %v8836
      %8860 = vmatprep.subr.bf16.mxu0 0
      %8861 = vmatpush1.bf16.msra.mxu0 %v8837
      %8862 = vmatprep.subr.bf16.mxu0 0
      %8863 = vmatpush1.bf16.msra.mxu0 0
      %8864 = vmatprep.subr.bf16.mxu0 0
      %8865 = vmatpush1.bf16.msra.mxu0 0
      %8866 = vmatprep.subr.bf16.mxu0 0
      %8867 = vmatpush1.bf16.msra.mxu0 0
      %8868 = vmatprep.subr.bf16.mxu0 0
      %8869 = vmatpush1.bf16.msra.mxu0 0
      %8870 = vmatprep.subr.bf16.mxu0 0
      %8871 = vmatpush1.bf16.msra.mxu0 0
      %8872 = vmatprep.subr.bf16.mxu0 0
      %8873 = vmatpush1.bf16.msra.mxu0 0
      %8874 = vmatprep.subr.bf16.mxu0 0
      %8875 = vmatpush1.bf16.msra.mxu0 0
      %8876 = vmatprep.subr.bf16.mxu0 0
      %8877 = vmatpush1.bf16.msra.mxu0 0
      %8878 = vmatprep.mubr.bf16.mxu0 0
      %8879 = vmatmul.mubr.bf16.gmra.mrb[0].mxu0 %v8428
      %v8880 = vpop.f32.mrb[0].mxu0
      %v8881 = vadd.f32 0.0, %v8880
      %v8882 = vpop.f32.mrb[0].mxu0
      %v8883 = vpop.f32.mrb[0].mxu0
      %v8884 = vadd.f32 0.0, %v8883
      %v8885 = vpop.f32.mrb[0].mxu0
      %8886 = vmatprep.mubr.bf16.mxu0 0
      %8887 = vmatmul.mubr.bf16.gmra.mrb[0].mxu0 %v8429
      %v8888 = vpop.f32.mrb[0].mxu0
      %v8889 = vadd.f32 0.0, %v8888
      %v8890 = vpop.f32.mrb[0].mxu0
      %v8891 = vpop.f32.mrb[0].mxu0
      %v8892 = vadd.f32 0.0, %v8891
      %v8893 = vpop.f32.mrb[0].mxu0
      %8894 = vmatprep.mubr.bf16.mxu0 0
      %8895 = vmatmul.mubr.bf16.gmra.mrb[0].mxu0 %v8430
      %v8896 = vpop.f32.mrb[0].mxu0
      %v8897 = vadd.f32 0.0, %v8896
      %v8898 = vpop.f32.mrb[0].mxu0
      %v8899 = vpop.f32.mrb[0].mxu0
      %v8900 = vadd.f32 0.0, %v8899
      %v8901 = vpop.f32.mrb[0].mxu0
      %8902 = vmatprep.mubr.bf16.mxu0 0
      %8903 = vmatmul.mubr.bf16.gmra.mrb[0].mxu0 %v8431
      %v8904 = vpop.f32.mrb[0].mxu0
      %v8905 = vadd.f32 0.0, %v8904
      %v8906 = vpop.f32.mrb[0].mxu0
      %v8907 = vpop.f32.mrb[0].mxu0
      %v8908 = vadd.f32 0.0, %v8907
      %v8909 = vpop.f32.mrb[0].mxu0
      %8910 = vmatprep.mubr.bf16.mxu0 0
      %8911 = vmatmul.mubr.bf16.gmra.mrb[0].mxu0 %v8432
      %v8912 = vpop.f32.mrb[0].mxu0
      %v8913 = vadd.f32 0.0, %v8912
      %v8914 = vpop.f32.mrb[0].mxu0
      %v8915 = vpop.f32.mrb[0].mxu0
      %v8916 = vadd.f32 0.0, %v8915
      %v8917 = vpop.f32.mrb[0].mxu0
      %8918 = vmatprep.mubr.bf16.mxu0 0
      %8919 = vmatmul.mubr.bf16.gmra.mrb[0].mxu0 %v8433
      %v8920 = vpop.f32.mrb[0].mxu0
      %v8921 = vadd.f32 0.0, %v8920
      %v8922 = vpop.f32.mrb[0].mxu0
      %v8923 = vpop.f32.mrb[0].mxu0
      %v8924 = vadd.f32 0.0, %v8923
      %v8925 = vpop.f32.mrb[0].mxu0
      %8926 = vmatprep.mubr.bf16.mxu0 0
      %8927 = vmatmul.mubr.bf16.gmra.mrb[0].mxu0 %v8434
      %v8928 = vpop.f32.mrb[0].mxu0
      %v8929 = vadd.f32 0.0, %v8928
      %v8930 = vpop.f32.mrb[0].mxu0
      %v8931 = vpop.f32.mrb[0].mxu0
      %v8932 = vadd.f32 0.0, %v8931
      %v8933 = vpop.f32.mrb[0].mxu0
      %8934 = vmatprep.mubr.bf16.mxu0 0
      %8935 = vmatmul.mubr.bf16.gmra.mrb[0].mxu0 %v8435
      %v8936 = vpop.f32.mrb[0].mxu0
      %v8937 = vadd.f32 0.0, %v8936
      %v8938 = vpop.f32.mrb[0].mxu0
      %v8939 = vpop.f32.mrb[0].mxu0
      %v8940 = vadd.f32 0.0, %v8939
      %v8941 = vpop.f32.mrb[0].mxu0
      %8942 = vmatprep.mubr.bf16.mxu0 0
      %8943 = vmatmul.mubr.bf16.gmra.mrb[0].mxu0 %v8436
      %v8944 = vpop.f32.mrb[0].mxu0
      %v8945 = vadd.f32 0.0, %v8944
      %v8946 = vpop.f32.mrb[0].mxu0
      %v8947 = vpop.f32.mrb[0].mxu0
      %v8948 = vadd.f32 0.0, %v8947
      %v8949 = vpop.f32.mrb[0].mxu0
      %8950 = vmatprep.mubr.bf16.mxu0 0
      %8951 = vmatmul.mubr.bf16.gmra.mrb[0].mxu0 %v8437
      %v8952 = vpop.f32.mrb[0].mxu0
      %v8953 = vadd.f32 0.0, %v8952
      %v8954 = vpop.f32.mrb[0].mxu0
      %v8955 = vpop.f32.mrb[0].mxu0
      %v8956 = vadd.f32 0.0, %v8955
      %v8957 = vpop.f32.mrb[0].mxu0
      %8958 = vmatprep.mubr.bf16.mxu0 0
      %8959 = vmatmul.mubr.bf16.gmra.mrb[0].mxu0 %v8438
      %v8960 = vpop.f32.mrb[0].mxu0
      %v8961 = vadd.f32 0.0, %v8960
      %v8962 = vpop.f32.mrb[0].mxu0
      %v8963 = vpop.f32.mrb[0].mxu0
      %v8964 = vadd.f32 0.0, %v8963
      %v8965 = vpop.f32.mrb[0].mxu0
      %8966 = vmatprep.mubr.bf16.mxu0 0
      %8967 = vmatmul.mubr.bf16.gmra.mrb[0].mxu0 %v8439
      %v8968 = vpop.f32.mrb[0].mxu0
      %v8969 = vadd.f32 0.0, %v8968
      %v8970 = vpop.f32.mrb[0].mxu0
      %v8971 = vpop.f32.mrb[0].mxu0
      %v8972 = vadd.f32 0.0, %v8971
      %v8973 = vpop.f32.mrb[0].mxu0
      %8974 = vmatprep.mubr.bf16.mxu0 0
      %8975 = vmatmul.mubr.bf16.gmra.mrb[0].mxu0 %v8440
      %v8976 = vpop.f32.mrb[0].mxu0
      %v8977 = vadd.f32 0.0, %v8976
      %v8978 = vpop.f32.mrb[0].mxu0
      %v8979 = vpop.f32.mrb[0].mxu0
      %v8980 = vadd.f32 0.0, %v8979
      %v8981 = vpop.f32.mrb[0].mxu0
      %8982 = vmatprep.mubr.bf16.mxu0 0
      %8983 = vmatmul.mubr.bf16.gmra.mrb[0].mxu0 %v8441
      %v8984 = vpop.f32.mrb[0].mxu0
      %v8985 = vadd.f32 0.0, %v8984
      %v8986 = vpop.f32.mrb[0].mxu0
      %v8987 = vpop.f32.mrb[0].mxu0
      %v8988 = vadd.f32 0.0, %v8987
      %v8989 = vpop.f32.mrb[0].mxu0
      %8990 = vmatprep.mubr.bf16.mxu0 0
      %8991 = vmatmul.mubr.bf16.gmra.mrb[0].mxu0 %v8442
      %v8992 = vpop.f32.mrb[0].mxu0
      %v8993 = vadd.f32 0.0, %v8992
      %v8994 = vpop.f32.mrb[0].mxu0
      %v8995 = vpop.f32.mrb[0].mxu0
      %v8996 = vadd.f32 0.0, %v8995
      %v8997 = vpop.f32.mrb[0].mxu0
      %8998 = vmatprep.mubr.bf16.mxu0 0
      %8999 = vmatmul.mubr.bf16.gmra.mrb[0].mxu0 %v8443
      %v9000 = vpop.f32.mrb[0].mxu0
      %v9001 = vadd.f32 0.0, %v9000
      %v9002 = vpop.f32.mrb[0].mxu0
      %v9003 = vpop.f32.mrb[0].mxu0
      %v9004 = vadd.f32 0.0, %v9003
      %v9005 = vpop.f32.mrb[0].mxu0
      %9006 = vmatprep.mubr.bf16.mxu0 0
      %9007 = vmatmul.mubr.bf16.gmra.mrb[0].mxu0 %v8444
      %v9008 = vpop.f32.mrb[0].mxu0
      %v9009 = vadd.f32 0.0, %v9008
      %v9010 = vpop.f32.mrb[0].mxu0
      %v9011 = vpop.f32.mrb[0].mxu0
      %v9012 = vadd.f32 0.0, %v9011
      %v9013 = vpop.f32.mrb[0].mxu0
      %9014 = vmatprep.mubr.bf16.mxu0 0
      %9015 = vmatmul.mubr.bf16.gmra.mrb[0].mxu0 %v8445
      %v9016 = vpop.f32.mrb[0].mxu0
      %v9017 = vadd.f32 0.0, %v9016
      %v9018 = vpop.f32.mrb[0].mxu0
      %v9019 = vpop.f32.mrb[0].mxu0
      %v9020 = vadd.f32 0.0, %v9019
      %v9021 = vpop.f32.mrb[0].mxu0
      %9022 = vmatprep.mubr.bf16.mxu0 0
      %9023 = vmatmul.mubr.bf16.gmra.mrb[0].mxu0 %v8446
      %v9024 = vpop.f32.mrb[0].mxu0
      %v9025 = vadd.f32 0.0, %v9024
      %v9026 = vpop.f32.mrb[0].mxu0
      %v9027 = vpop.f32.mrb[0].mxu0
      %v9028 = vadd.f32 0.0, %v9027
      %v9029 = vpop.f32.mrb[0].mxu0
      %9030 = vmatprep.mubr.bf16.mxu0 0
      %9031 = vmatmul.mubr.bf16.gmra.mrb[0].mxu0 %v8447
      %v9032 = vpop.f32.mrb[0].mxu0
      %v9033 = vadd.f32 0.0, %v9032
      %v9034 = vpop.f32.mrb[0].mxu0
      %v9035 = vpop.f32.mrb[0].mxu0
      %v9036 = vadd.f32 0.0, %v9035
      %v9037 = vpop.f32.mrb[0].mxu0
      %9038 = vmatprep.mubr.bf16.mxu0 0
      %9039 = vmatmul.mubr.bf16.gmra.mrb[0].mxu0 %v8448
      %v9040 = vpop.f32.mrb[0].mxu0
      %v9041 = vadd.f32 0.0, %v9040
      %v9042 = vpop.f32.mrb[0].mxu0
      %v9043 = vpop.f32.mrb[0].mxu0
      %v9044 = vadd.f32 0.0, %v9043
      %v9045 = vpop.f32.mrb[0].mxu0
      %9046 = vmatprep.mubr.bf16.mxu0 0
      %9047 = vmatmul.mubr.bf16.gmra.mrb[0].mxu0 %v8449
      %v9048 = vpop.f32.mrb[0].mxu0
      %v9049 = vadd.f32 0.0, %v9048
      %v9050 = vpop.f32.mrb[0].mxu0
      %v9051 = vpop.f32.mrb[0].mxu0
      %v9052 = vadd.f32 0.0, %v9051
      %v9053 = vpop.f32.mrb[0].mxu0
      %9054 = vmatprep.mubr.bf16.mxu0 0
      %9055 = vmatmul.mubr.bf16.gmra.mrb[0].mxu0 %v8450
      %v9056 = vpop.f32.mrb[0].mxu0
      %v9057 = vadd.f32 0.0, %v9056
      %v9058 = vpop.f32.mrb[0].mxu0
      %v9059 = vpop.f32.mrb[0].mxu0
      %v9060 = vadd.f32 0.0, %v9059
      %v9061 = vpop.f32.mrb[0].mxu0
      %9062 = vmatprep.mubr.bf16.mxu0 0
      %9063 = vmatmul.mubr.bf16.gmra.mrb[0].mxu0 %v8451
      %v9064 = vpop.f32.mrb[0].mxu0
      %v9065 = vadd.f32 0.0, %v9064
      %v9066 = vpop.f32.mrb[0].mxu0
      %v9067 = vpop.f32.mrb[0].mxu0
      %v9068 = vadd.f32 0.0, %v9067
      %v9069 = vpop.f32.mrb[0].mxu0
      %9070 = vmatprep.mubr.bf16.mxu0 0
      %9071 = vmatmul.mubr.bf16.gmra.mrb[0].mxu0 %v8452
      %v9072 = vpop.f32.mrb[0].mxu0
      %v9073 = vpop.f32.mrb[0].mxu0
      %v9074 = vpop.f32.mrb[0].mxu0
      %v9075 = vpop.f32.mrb[0].mxu0
      %9076 = vmatprep.mubr.bf16.mxu0 0
      %9077 = vmatmul.mubr.bf16.gmra.mrb[0].mxu0 %v8453
      %v9078 = vpop.f32.mrb[0].mxu0
      %v9079 = vpop.f32.mrb[0].mxu0
      %v9080 = vpop.f32.mrb[0].mxu0
      %v9081 = vpop.f32.mrb[0].mxu0
      %9082 = vdwg.mxu0
      %v9083 = vadd.f32 %v7468, %v8881
      %v9084 = vadd.f32 %v7471, %v8884
      %v9085 = vadd.f32 %v7476, %v8889
      %v9086 = vadd.f32 %v7479, %v8892
      %v9087 = vadd.f32 %v7484, %v8897
      %v9088 = vadd.f32 %v7487, %v8900
      %v9089 = vadd.f32 %v7492, %v8905
      %v9090 = vadd.f32 %v7495, %v8908
      %v9091 = vadd.f32 %v7500, %v8913
      %v9092 = vadd.f32 %v7503, %v8916
      %v9093 = vadd.f32 %v7508, %v8921
      %v9094 = vadd.f32 %v7511, %v8924
      %v9095 = vadd.f32 %v7516, %v8929
      %v9096 = vadd.f32 %v7519, %v8932
      %v9097 = vadd.f32 %v7524, %v8937
      %v9098 = vadd.f32 %v7527, %v8940
      %v9099 = vadd.f32 %v7532, %v8945
      %v9100 = vadd.f32 %v7535, %v8948
      %v9101 = vadd.f32 %v7540, %v8953
      %v9102 = vadd.f32 %v7543, %v8956
      %v9103 = vadd.f32 %v7548, %v8961
      %v9104 = vadd.f32 %v7551, %v8964
      %v9105 = vadd.f32 %v7556, %v8969
      %v9106 = vadd.f32 %v7559, %v8972
      %v9107 = vadd.f32 %v7564, %v8977
      %v9108 = vadd.f32 %v7567, %v8980
      %v9109 = vadd.f32 %v7572, %v8985
      %v9110 = vadd.f32 %v7575, %v8988
      %v9111 = vadd.f32 %v7580, %v8993
      %v9112 = vadd.f32 %v7583, %v8996
      %v9113 = vadd.f32 %v7588, %v9001
      %v9114 = vadd.f32 %v7591, %v9004
      %v9115 = vadd.f32 %v7596, %v9009
      %v9116 = vadd.f32 %v7599, %v9012
      %v9117 = vadd.f32 %v7604, %v9017
      %v9118 = vadd.f32 %v7607, %v9020
      %v9119 = vadd.f32 %v7612, %v9025
      %v9120 = vadd.f32 %v7615, %v9028
      %v9121 = vadd.f32 %v7620, %v9033
      %v9122 = vadd.f32 %v7623, %v9036
      %v9123 = vadd.f32 %v7628, %v9041
      %v9124 = vadd.f32 %v7631, %v9044
      %v9125 = vadd.f32 %v7636, %v9049
      %v9126 = vadd.f32 %v7639, %v9052
      %v9127 = vadd.f32 %v7644, %v9057
      %v9128 = vadd.f32 %v7647, %v9060
      %v9129 = vadd.f32 %v7652, %v9065
      %v9130 = vadd.f32 %v7655, %v9068
      %s9131 = scalar_lea.vmem %s311, 512
      %v9132 = vld [vmem:[%s9131] sm:$0xf]
      %v9133 = vld [vmem:[%s9131 + $0x4] sm:$0xf]
      %v9134 = vld [vmem:[%s9131 + $0x8] sm:$0xf]
      %v9135 = vld [vmem:[%s9131 + $0xc] sm:$0xf]
      %v9136 = vld [vmem:[%s9131 + $0x10] sm:$0xf]
      %v9137 = vld [vmem:[%s9131 + $0x14] sm:$0xf]
      %v9138 = vld [vmem:[%s9131 + $0x18] sm:$0xf]
      %v9139 = vld [vmem:[%s9131 + $0x1c] sm:$0xf]
      %v9140 = vld [vmem:[%s9131 + $0x20] sm:$0xf]
      %v9141 = vld [vmem:[%s9131 + $0x24] sm:$0xf]
      %v9142 = vld [vmem:[%s9131 + $0x28] sm:$0xf]
      %v9143 = vld [vmem:[%s9131 + $0x2c] sm:$0xf]
      %v9144 = vld [vmem:[%s9131 + $0x30] sm:$0xf]
      %v9145 = vld [vmem:[%s9131 + $0x34] sm:$0xf]
      %v9146 = vld [vmem:[%s9131 + $0x38] sm:$0xf]
      %v9147 = vld [vmem:[%s9131 + $0x3c] sm:$0xf]
      %v9164 = vunpack.c.l.b16 %v9132
      %v9165 = vunpack.c.l.b16 %v9133
      %v9166 = vunpack.c.l.b16 %v9134
      %v9167 = vunpack.c.l.b16 %v9135
      %v9168 = vunpack.c.l.b16 %v9136
      %v9169 = vunpack.c.l.b16 %v9137
      %v9170 = vunpack.c.l.b16 %v9138
      %v9171 = vunpack.c.l.b16 %v9139
      %v9172 = vunpack.c.l.b16 %v9140
      %v9173 = vunpack.c.l.b16 %v9141
      %v9174 = vunpack.c.l.b16 %v9142
      %v9175 = vunpack.c.l.b16 %v9143
      %v9176 = vunpack.c.l.b16 %v9144
      %v9177 = vunpack.c.l.b16 %v9145
      %v9178 = vunpack.c.l.b16 %v9146
      %v9179 = vunpack.c.l.b16 %v9147
      %v9180 = vpack.c.b16 %v9165, %v9164
      %v9181 = vpack.c.b16 %v9167, %v9166
      %v9182 = vpack.c.b16 %v9169, %v9168
      %v9183 = vpack.c.b16 %v9171, %v9170
      %v9184 = vpack.c.b16 %v9173, %v9172
      %v9185 = vpack.c.b16 %v9175, %v9174
      %v9186 = vpack.c.b16 %v9177, %v9176
      %v9187 = vpack.c.b16 %v9179, %v9178
      %9196 = vmatprep.subr.bf16.mxu0 0
      %9197 = vmatpush1.bf16.msra.mxu0 %v9180
      %9198 = vmatprep.subr.bf16.mxu0 0
      %9199 = vmatpush1.bf16.msra.mxu0 %v9181
      %9200 = vmatprep.subr.bf16.mxu0 0
      %9201 = vmatpush1.bf16.msra.mxu0 %v9182
      %9202 = vmatprep.subr.bf16.mxu0 0
      %9203 = vmatpush1.bf16.msra.mxu0 %v9183
      %9204 = vmatprep.subr.bf16.mxu0 0
      %9205 = vmatpush1.bf16.msra.mxu0 %v9184
      %9206 = vmatprep.subr.bf16.mxu0 0
      %9207 = vmatpush1.bf16.msra.mxu0 %v9185
      %9208 = vmatprep.subr.bf16.mxu0 0
      %9209 = vmatpush1.bf16.msra.mxu0 %v9186
      %9210 = vmatprep.subr.bf16.mxu0 0
      %9211 = vmatpush1.bf16.msra.mxu0 %v9187
      %9212 = vmatprep.subr.bf16.mxu0 0
      %9213 = vmatpush1.bf16.msra.mxu0 0
      %9214 = vmatprep.subr.bf16.mxu0 0
      %9215 = vmatpush1.bf16.msra.mxu0 0
      %9216 = vmatprep.subr.bf16.mxu0 0
      %9217 = vmatpush1.bf16.msra.mxu0 0
      %9218 = vmatprep.subr.bf16.mxu0 0
      %9219 = vmatpush1.bf16.msra.mxu0 0
      %9220 = vmatprep.subr.bf16.mxu0 0
      %9221 = vmatpush1.bf16.msra.mxu0 0
      %9222 = vmatprep.subr.bf16.mxu0 0
      %9223 = vmatpush1.bf16.msra.mxu0 0
      %9224 = vmatprep.subr.bf16.mxu0 0
      %9225 = vmatpush1.bf16.msra.mxu0 0
      %9226 = vmatprep.subr.bf16.mxu0 0
      %9227 = vmatpush1.bf16.msra.mxu0 0
      %9228 = vmatprep.mubr.bf16.mxu0 0
      %9229 = vmatmul.mubr.bf16.gmra.mrb[0].mxu0 %v8428
      %v9230 = vpop.f32.mrb[0].mxu0
      %v9231 = vadd.f32 0.0, %v9230
      %v9232 = vpop.f32.mrb[0].mxu0
      %v9233 = vpop.f32.mrb[0].mxu0
      %v9234 = vadd.f32 0.0, %v9233
      %v9235 = vpop.f32.mrb[0].mxu0
      %9236 = vmatprep.mubr.bf16.mxu0 0
      %9237 = vmatmul.mubr.bf16.gmra.mrb[0].mxu0 %v8429
      %v9238 = vpop.f32.mrb[0].mxu0
      %v9239 = vadd.f32 0.0, %v9238
      %v9240 = vpop.f32.mrb[0].mxu0
      %v9241 = vpop.f32.mrb[0].mxu0
      %v9242 = vadd.f32 0.0, %v9241
      %v9243 = vpop.f32.mrb[0].mxu0
      %9244 = vmatprep.mubr.bf16.mxu0 0
      %9245 = vmatmul.mubr.bf16.gmra.mrb[0].mxu0 %v8430
      %v9246 = vpop.f32.mrb[0].mxu0
      %v9247 = vadd.f32 0.0, %v9246
      %v9248 = vpop.f32.mrb[0].mxu0
      %v9249 = vpop.f32.mrb[0].mxu0
      %v9250 = vadd.f32 0.0, %v9249
      %v9251 = vpop.f32.mrb[0].mxu0
      %9252 = vmatprep.mubr.bf16.mxu0 0
      %9253 = vmatmul.mubr.bf16.gmra.mrb[0].mxu0 %v8431
      %v9254 = vpop.f32.mrb[0].mxu0
      %v9255 = vadd.f32 0.0, %v9254
      %v9256 = vpop.f32.mrb[0].mxu0
      %v9257 = vpop.f32.mrb[0].mxu0
      %v9258 = vadd.f32 0.0, %v9257
      %v9259 = vpop.f32.mrb[0].mxu0
      %9260 = vmatprep.mubr.bf16.mxu0 0
      %9261 = vmatmul.mubr.bf16.gmra.mrb[0].mxu0 %v8432
      %v9262 = vpop.f32.mrb[0].mxu0
      %v9263 = vadd.f32 0.0, %v9262
      %v9264 = vpop.f32.mrb[0].mxu0
      %v9265 = vpop.f32.mrb[0].mxu0
      %v9266 = vadd.f32 0.0, %v9265
      %v9267 = vpop.f32.mrb[0].mxu0
      %9268 = vmatprep.mubr.bf16.mxu0 0
      %9269 = vmatmul.mubr.bf16.gmra.mrb[0].mxu0 %v8433
      %v9270 = vpop.f32.mrb[0].mxu0
      %v9271 = vadd.f32 0.0, %v9270
      %v9272 = vpop.f32.mrb[0].mxu0
      %v9273 = vpop.f32.mrb[0].mxu0
      %v9274 = vadd.f32 0.0, %v9273
      %v9275 = vpop.f32.mrb[0].mxu0
      %9276 = vmatprep.mubr.bf16.mxu0 0
      %9277 = vmatmul.mubr.bf16.gmra.mrb[0].mxu0 %v8434
      %v9278 = vpop.f32.mrb[0].mxu0
      %v9279 = vadd.f32 0.0, %v9278
      %v9280 = vpop.f32.mrb[0].mxu0
      %v9281 = vpop.f32.mrb[0].mxu0
      %v9282 = vadd.f32 0.0, %v9281
      %v9283 = vpop.f32.mrb[0].mxu0
      %9284 = vmatprep.mubr.bf16.mxu0 0
      %9285 = vmatmul.mubr.bf16.gmra.mrb[0].mxu0 %v8435
      %v9286 = vpop.f32.mrb[0].mxu0
      %v9287 = vadd.f32 0.0, %v9286
      %v9288 = vpop.f32.mrb[0].mxu0
      %v9289 = vpop.f32.mrb[0].mxu0
      %v9290 = vadd.f32 0.0, %v9289
      %v9291 = vpop.f32.mrb[0].mxu0
      %9292 = vmatprep.mubr.bf16.mxu0 0
      %9293 = vmatmul.mubr.bf16.gmra.mrb[0].mxu0 %v8436
      %v9294 = vpop.f32.mrb[0].mxu0
      %v9295 = vadd.f32 0.0, %v9294
      %v9296 = vpop.f32.mrb[0].mxu0
      %v9297 = vpop.f32.mrb[0].mxu0
      %v9298 = vadd.f32 0.0, %v9297
      %v9299 = vpop.f32.mrb[0].mxu0
      %9300 = vmatprep.mubr.bf16.mxu0 0
      %9301 = vmatmul.mubr.bf16.gmra.mrb[0].mxu0 %v8437
      %v9302 = vpop.f32.mrb[0].mxu0
      %v9303 = vadd.f32 0.0, %v9302
      %v9304 = vpop.f32.mrb[0].mxu0
      %v9305 = vpop.f32.mrb[0].mxu0
      %v9306 = vadd.f32 0.0, %v9305
      %v9307 = vpop.f32.mrb[0].mxu0
      %9308 = vmatprep.mubr.bf16.mxu0 0
      %9309 = vmatmul.mubr.bf16.gmra.mrb[0].mxu0 %v8438
      %v9310 = vpop.f32.mrb[0].mxu0
      %v9311 = vadd.f32 0.0, %v9310
      %v9312 = vpop.f32.mrb[0].mxu0
      %v9313 = vpop.f32.mrb[0].mxu0
      %v9314 = vadd.f32 0.0, %v9313
      %v9315 = vpop.f32.mrb[0].mxu0
      %9316 = vmatprep.mubr.bf16.mxu0 0
      %9317 = vmatmul.mubr.bf16.gmra.mrb[0].mxu0 %v8439
      %v9318 = vpop.f32.mrb[0].mxu0
      %v9319 = vadd.f32 0.0, %v9318
      %v9320 = vpop.f32.mrb[0].mxu0
      %v9321 = vpop.f32.mrb[0].mxu0
      %v9322 = vadd.f32 0.0, %v9321
      %v9323 = vpop.f32.mrb[0].mxu0
      %9324 = vmatprep.mubr.bf16.mxu0 0
      %9325 = vmatmul.mubr.bf16.gmra.mrb[0].mxu0 %v8440
      %v9326 = vpop.f32.mrb[0].mxu0
      %v9327 = vadd.f32 0.0, %v9326
      %v9328 = vpop.f32.mrb[0].mxu0
      %v9329 = vpop.f32.mrb[0].mxu0
      %v9330 = vadd.f32 0.0, %v9329
      %v9331 = vpop.f32.mrb[0].mxu0
      %9332 = vmatprep.mubr.bf16.mxu0 0
      %9333 = vmatmul.mubr.bf16.gmra.mrb[0].mxu0 %v8441
      %v9334 = vpop.f32.mrb[0].mxu0
      %v9335 = vadd.f32 0.0, %v9334
      %v9336 = vpop.f32.mrb[0].mxu0
      %v9337 = vpop.f32.mrb[0].mxu0
      %v9338 = vadd.f32 0.0, %v9337
      %v9339 = vpop.f32.mrb[0].mxu0
      %9340 = vmatprep.mubr.bf16.mxu0 0
      %9341 = vmatmul.mubr.bf16.gmra.mrb[0].mxu0 %v8442
      %v9342 = vpop.f32.mrb[0].mxu0
      %v9343 = vadd.f32 0.0, %v9342
      %v9344 = vpop.f32.mrb[0].mxu0
      %v9345 = vpop.f32.mrb[0].mxu0
      %v9346 = vadd.f32 0.0, %v9345
      %v9347 = vpop.f32.mrb[0].mxu0
      %9348 = vmatprep.mubr.bf16.mxu0 0
      %9349 = vmatmul.mubr.bf16.gmra.mrb[0].mxu0 %v8443
      %v9350 = vpop.f32.mrb[0].mxu0
      %v9351 = vadd.f32 0.0, %v9350
      %v9352 = vpop.f32.mrb[0].mxu0
      %v9353 = vpop.f32.mrb[0].mxu0
      %v9354 = vadd.f32 0.0, %v9353
      %v9355 = vpop.f32.mrb[0].mxu0
      %9356 = vmatprep.mubr.bf16.mxu0 0
      %9357 = vmatmul.mubr.bf16.gmra.mrb[0].mxu0 %v8444
      %v9358 = vpop.f32.mrb[0].mxu0
      %v9359 = vadd.f32 0.0, %v9358
      %v9360 = vpop.f32.mrb[0].mxu0
      %v9361 = vpop.f32.mrb[0].mxu0
      %v9362 = vadd.f32 0.0, %v9361
      %v9363 = vpop.f32.mrb[0].mxu0
      %9364 = vmatprep.mubr.bf16.mxu0 0
      %9365 = vmatmul.mubr.bf16.gmra.mrb[0].mxu0 %v8445
      %v9366 = vpop.f32.mrb[0].mxu0
      %v9367 = vadd.f32 0.0, %v9366
      %v9368 = vpop.f32.mrb[0].mxu0
      %v9369 = vpop.f32.mrb[0].mxu0
      %v9370 = vadd.f32 0.0, %v9369
      %v9371 = vpop.f32.mrb[0].mxu0
      %9372 = vmatprep.mubr.bf16.mxu0 0
      %9373 = vmatmul.mubr.bf16.gmra.mrb[0].mxu0 %v8446
      %v9374 = vpop.f32.mrb[0].mxu0
      %v9375 = vadd.f32 0.0, %v9374
      %v9376 = vpop.f32.mrb[0].mxu0
      %v9377 = vpop.f32.mrb[0].mxu0
      %v9378 = vadd.f32 0.0, %v9377
      %v9379 = vpop.f32.mrb[0].mxu0
      %9380 = vmatprep.mubr.bf16.mxu0 0
      %9381 = vmatmul.mubr.bf16.gmra.mrb[0].mxu0 %v8447
      %v9382 = vpop.f32.mrb[0].mxu0
      %v9383 = vadd.f32 0.0, %v9382
      %v9384 = vpop.f32.mrb[0].mxu0
      %v9385 = vpop.f32.mrb[0].mxu0
      %v9386 = vadd.f32 0.0, %v9385
      %v9387 = vpop.f32.mrb[0].mxu0
      %9388 = vmatprep.mubr.bf16.mxu0 0
      %9389 = vmatmul.mubr.bf16.gmra.mrb[0].mxu0 %v8448
      %v9390 = vpop.f32.mrb[0].mxu0
      %v9391 = vadd.f32 0.0, %v9390
      %v9392 = vpop.f32.mrb[0].mxu0
      %v9393 = vpop.f32.mrb[0].mxu0
      %v9394 = vadd.f32 0.0, %v9393
      %v9395 = vpop.f32.mrb[0].mxu0
      %9396 = vmatprep.mubr.bf16.mxu0 0
      %9397 = vmatmul.mubr.bf16.gmra.mrb[0].mxu0 %v8449
      %v9398 = vpop.f32.mrb[0].mxu0
      %v9399 = vadd.f32 0.0, %v9398
      %v9400 = vpop.f32.mrb[0].mxu0
      %v9401 = vpop.f32.mrb[0].mxu0
      %v9402 = vadd.f32 0.0, %v9401
      %v9403 = vpop.f32.mrb[0].mxu0
      %9404 = vmatprep.mubr.bf16.mxu0 0
      %9405 = vmatmul.mubr.bf16.gmra.mrb[0].mxu0 %v8450
      %v9406 = vpop.f32.mrb[0].mxu0
      %v9407 = vadd.f32 0.0, %v9406
      %v9408 = vpop.f32.mrb[0].mxu0
      %v9409 = vpop.f32.mrb[0].mxu0
      %v9410 = vadd.f32 0.0, %v9409
      %v9411 = vpop.f32.mrb[0].mxu0
      %9412 = vmatprep.mubr.bf16.mxu0 0
      %9413 = vmatmul.mubr.bf16.gmra.mrb[0].mxu0 %v8451
      %v9414 = vpop.f32.mrb[0].mxu0
      %v9415 = vadd.f32 0.0, %v9414
      %v9416 = vpop.f32.mrb[0].mxu0
      %v9417 = vpop.f32.mrb[0].mxu0
      %v9418 = vadd.f32 0.0, %v9417
      %v9419 = vpop.f32.mrb[0].mxu0
      %9420 = vmatprep.mubr.bf16.mxu0 0
      %9421 = vmatmul.mubr.bf16.gmra.mrb[0].mxu0 %v8452
      %v9422 = vpop.f32.mrb[0].mxu0
      %v9423 = vpop.f32.mrb[0].mxu0
      %v9424 = vpop.f32.mrb[0].mxu0
      %v9425 = vpop.f32.mrb[0].mxu0
      %9426 = vmatprep.mubr.bf16.mxu0 0
      %9427 = vmatmul.mubr.bf16.gmra.mrb[0].mxu0 %v8453
      %v9428 = vpop.f32.mrb[0].mxu0
      %v9429 = vpop.f32.mrb[0].mxu0
      %v9430 = vpop.f32.mrb[0].mxu0
      %v9431 = vpop.f32.mrb[0].mxu0
      %9432 = vdwg.mxu0
      %v9433 = vadd.f32 %v8055, %v9231
      %v9434 = vadd.f32 %v8058, %v9234
      %v9435 = vadd.f32 %v8063, %v9239
      %v9436 = vadd.f32 %v8066, %v9242
      %v9437 = vadd.f32 %v8071, %v9247
      %v9438 = vadd.f32 %v8074, %v9250
      %v9439 = vadd.f32 %v8079, %v9255
      %v9440 = vadd.f32 %v8082, %v9258
      %v9441 = vadd.f32 %v8087, %v9263
      %v9442 = vadd.f32 %v8090, %v9266
      %v9443 = vadd.f32 %v8095, %v9271
      %v9444 = vadd.f32 %v8098, %v9274
      %v9445 = vadd.f32 %v8103, %v9279
      %v9446 = vadd.f32 %v8106, %v9282
      %v9447 = vadd.f32 %v8111, %v9287
      %v9448 = vadd.f32 %v8114, %v9290
      %v9449 = vadd.f32 %v8119, %v9295
      %v9450 = vadd.f32 %v8122, %v9298
      %v9451 = vadd.f32 %v8127, %v9303
      %v9452 = vadd.f32 %v8130, %v9306
      %v9453 = vadd.f32 %v8135, %v9311
      %v9454 = vadd.f32 %v8138, %v9314
      %v9455 = vadd.f32 %v8143, %v9319
      %v9456 = vadd.f32 %v8146, %v9322
      %v9457 = vadd.f32 %v8151, %v9327
      %v9458 = vadd.f32 %v8154, %v9330
      %v9459 = vadd.f32 %v8159, %v9335
      %v9460 = vadd.f32 %v8162, %v9338
      %v9461 = vadd.f32 %v8167, %v9343
      %v9462 = vadd.f32 %v8170, %v9346
      %v9463 = vadd.f32 %v8175, %v9351
      %v9464 = vadd.f32 %v8178, %v9354
      %v9465 = vadd.f32 %v8183, %v9359
      %v9466 = vadd.f32 %v8186, %v9362
      %v9467 = vadd.f32 %v8191, %v9367
      %v9468 = vadd.f32 %v8194, %v9370
      %v9469 = vadd.f32 %v8199, %v9375
      %v9470 = vadd.f32 %v8202, %v9378
      %v9471 = vadd.f32 %v8207, %v9383
      %v9472 = vadd.f32 %v8210, %v9386
      %v9473 = vadd.f32 %v8215, %v9391
      %v9474 = vadd.f32 %v8218, %v9394
      %v9475 = vadd.f32 %v8223, %v9399
      %v9476 = vadd.f32 %v8226, %v9402
      %v9477 = vadd.f32 %v8231, %v9407
      %v9478 = vadd.f32 %v8234, %v9410
      %v9479 = vadd.f32 %v8239, %v9415
      %v9480 = vadd.f32 %v8242, %v9418
      %vm9529 = vcmask 1046528
      %v9530 = vrot.slane %v9083, 1
      %v9531 = vrot.slane %v9084, 1
      %v9532 = vsel %vm9529, %v9530, %v9531
      %v9533 = vrot.slane %v9085, 1
      %v9534 = vsel %vm9529, %v9531, %v9533
      %v9535 = vrot.slane %v9086, 1
      %v9536 = vrot.slane %v9087, 1
      %v9537 = vsel %vm9529, %v9535, %v9536
      %v9538 = vrot.slane %v9088, 1
      %v9539 = vsel %vm9529, %v9536, %v9538
      %v9540 = vrot.slane %v9089, 1
      %v9541 = vrot.slane %v9090, 1
      %v9542 = vsel %vm9529, %v9540, %v9541
      %v9543 = vrot.slane %v9091, 1
      %v9544 = vsel %vm9529, %v9541, %v9543
      %v9545 = vrot.slane %v9092, 1
      %v9546 = vrot.slane %v9093, 1
      %v9547 = vsel %vm9529, %v9545, %v9546
      %v9548 = vrot.slane %v9094, 1
      %v9549 = vsel %vm9529, %v9546, %v9548
      %v9550 = vrot.slane %v9095, 1
      %v9551 = vrot.slane %v9096, 1
      %v9552 = vsel %vm9529, %v9550, %v9551
      %v9553 = vrot.slane %v9097, 1
      %v9554 = vsel %vm9529, %v9551, %v9553
      %v9555 = vrot.slane %v9098, 1
      %v9556 = vrot.slane %v9099, 1
      %v9557 = vsel %vm9529, %v9555, %v9556
      %v9558 = vrot.slane %v9100, 1
      %v9559 = vsel %vm9529, %v9556, %v9558
      %v9560 = vrot.slane %v9101, 1
      %v9561 = vrot.slane %v9102, 1
      %v9562 = vsel %vm9529, %v9560, %v9561
      %v9563 = vrot.slane %v9103, 1
      %v9564 = vsel %vm9529, %v9561, %v9563
      %v9565 = vrot.slane %v9104, 1
      %v9566 = vrot.slane %v9105, 1
      %v9567 = vsel %vm9529, %v9565, %v9566
      %v9568 = vrot.slane %v9106, 1
      %v9569 = vsel %vm9529, %v9566, %v9568
      %v9570 = vrot.slane %v9107, 1
      %v9571 = vrot.slane %v9108, 1
      %v9572 = vsel %vm9529, %v9570, %v9571
      %v9573 = vrot.slane %v9109, 1
      %v9574 = vsel %vm9529, %v9571, %v9573
      %v9575 = vrot.slane %v9110, 1
      %v9576 = vrot.slane %v9111, 1
      %v9577 = vsel %vm9529, %v9575, %v9576
      %v9578 = vrot.slane %v9112, 1
      %v9579 = vsel %vm9529, %v9576, %v9578
      %v9580 = vrot.slane %v9113, 1
      %v9581 = vrot.slane %v9114, 1
      %v9582 = vsel %vm9529, %v9580, %v9581
      %v9583 = vrot.slane %v9115, 1
      %v9584 = vsel %vm9529, %v9581, %v9583
      %v9585 = vrot.slane %v9116, 1
      %v9586 = vrot.slane %v9117, 1
      %v9587 = vsel %vm9529, %v9585, %v9586
      %v9588 = vrot.slane %v9118, 1
      %v9589 = vsel %vm9529, %v9586, %v9588
      %v9590 = vrot.slane %v9119, 1
      %v9591 = vrot.slane %v9120, 1
      %v9592 = vsel %vm9529, %v9590, %v9591
      %v9593 = vrot.slane %v9121, 1
      %v9594 = vsel %vm9529, %v9591, %v9593
      %v9595 = vrot.slane %v9122, 1
      %v9596 = vrot.slane %v9123, 1
      %v9597 = vsel %vm9529, %v9595, %v9596
      %v9598 = vrot.slane %v9124, 1
      %v9599 = vsel %vm9529, %v9596, %v9598
      %v9600 = vrot.slane %v9125, 1
      %v9601 = vrot.slane %v9126, 1
      %v9602 = vsel %vm9529, %v9600, %v9601
      %v9603 = vrot.slane %v9127, 1
      %v9604 = vsel %vm9529, %v9601, %v9603
      %v9605 = vrot.slane %v9128, 1
      %v9606 = vrot.slane %v9129, 1
      %v9607 = vsel %vm9529, %v9605, %v9606
      %v9608 = vrot.slane %v9130, 1
      %v9609 = vsel %vm9529, %v9606, %v9608
      %v9642 = vadd.f32 %v8749, %v9532
      %v9643 = vadd.f32 %v8750, %v9534
      %v9644 = vadd.f32 %v8751, %v9537
      %v9645 = vadd.f32 %v8752, %v9539
      %v9646 = vadd.f32 %v8753, %v9542
      %v9647 = vadd.f32 %v8754, %v9544
      %v9648 = vadd.f32 %v8755, %v9547
      %v9649 = vadd.f32 %v8756, %v9549
      %v9650 = vadd.f32 %v8757, %v9552
      %v9651 = vadd.f32 %v8758, %v9554
      %v9652 = vadd.f32 %v8759, %v9557
      %v9653 = vadd.f32 %v8760, %v9559
      %v9654 = vadd.f32 %v8761, %v9562
      %v9655 = vadd.f32 %v8762, %v9564
      %v9656 = vadd.f32 %v8763, %v9567
      %v9657 = vadd.f32 %v8764, %v9569
      %v9658 = vadd.f32 %v8765, %v9572
      %v9659 = vadd.f32 %v8766, %v9574
      %v9660 = vadd.f32 %v8767, %v9577
      %v9661 = vadd.f32 %v8768, %v9579
      %v9662 = vadd.f32 %v8769, %v9582
      %v9663 = vadd.f32 %v8770, %v9584
      %v9664 = vadd.f32 %v8771, %v9587
      %v9665 = vadd.f32 %v8772, %v9589
      %v9666 = vadd.f32 %v8773, %v9592
      %v9667 = vadd.f32 %v8774, %v9594
      %v9668 = vadd.f32 %v8775, %v9597
      %v9669 = vadd.f32 %v8776, %v9599
      %v9670 = vadd.f32 %v8777, %v9602
      %v9671 = vadd.f32 %v8778, %v9604
      %v9672 = vadd.f32 %v8779, %v9607
      %v9673 = vadd.f32 %v8780, %v9609
      %vm9722 = vcmask 1045504
      %v9723 = vrot.slane %v9433, 2
      %v9724 = vrot.slane %v9434, 2
      %v9725 = vsel %vm9722, %v9723, %v9724
      %v9726 = vrot.slane %v9435, 2
      %v9727 = vsel %vm9722, %v9724, %v9726
      %v9728 = vrot.slane %v9436, 2
      %v9729 = vrot.slane %v9437, 2
      %v9730 = vsel %vm9722, %v9728, %v9729
      %v9731 = vrot.slane %v9438, 2
      %v9732 = vsel %vm9722, %v9729, %v9731
      %v9733 = vrot.slane %v9439, 2
      %v9734 = vrot.slane %v9440, 2
      %v9735 = vsel %vm9722, %v9733, %v9734
      %v9736 = vrot.slane %v9441, 2
      %v9737 = vsel %vm9722, %v9734, %v9736
      %v9738 = vrot.slane %v9442, 2
      %v9739 = vrot.slane %v9443, 2
      %v9740 = vsel %vm9722, %v9738, %v9739
      %v9741 = vrot.slane %v9444, 2
      %v9742 = vsel %vm9722, %v9739, %v9741
      %v9743 = vrot.slane %v9445, 2
      %v9744 = vrot.slane %v9446, 2
      %v9745 = vsel %vm9722, %v9743, %v9744
      %v9746 = vrot.slane %v9447, 2
      %v9747 = vsel %vm9722, %v9744, %v9746
      %v9748 = vrot.slane %v9448, 2
      %v9749 = vrot.slane %v9449, 2
      %v9750 = vsel %vm9722, %v9748, %v9749
      %v9751 = vrot.slane %v9450, 2
      %v9752 = vsel %vm9722, %v9749, %v9751
      %v9753 = vrot.slane %v9451, 2
      %v9754 = vrot.slane %v9452, 2
      %v9755 = vsel %vm9722, %v9753, %v9754
      %v9756 = vrot.slane %v9453, 2
      %v9757 = vsel %vm9722, %v9754, %v9756
      %v9758 = vrot.slane %v9454, 2
      %v9759 = vrot.slane %v9455, 2
      %v9760 = vsel %vm9722, %v9758, %v9759
      %v9761 = vrot.slane %v9456, 2
      %v9762 = vsel %vm9722, %v9759, %v9761
      %v9763 = vrot.slane %v9457, 2
      %v9764 = vrot.slane %v9458, 2
      %v9765 = vsel %vm9722, %v9763, %v9764
      %v9766 = vrot.slane %v9459, 2
      %v9767 = vsel %vm9722, %v9764, %v9766
      %v9768 = vrot.slane %v9460, 2
      %v9769 = vrot.slane %v9461, 2
      %v9770 = vsel %vm9722, %v9768, %v9769
      %v9771 = vrot.slane %v9462, 2
      %v9772 = vsel %vm9722, %v9769, %v9771
      %v9773 = vrot.slane %v9463, 2
      %v9774 = vrot.slane %v9464, 2
      %v9775 = vsel %vm9722, %v9773, %v9774
      %v9776 = vrot.slane %v9465, 2
      %v9777 = vsel %vm9722, %v9774, %v9776
      %v9778 = vrot.slane %v9466, 2
      %v9779 = vrot.slane %v9467, 2
      %v9780 = vsel %vm9722, %v9778, %v9779
      %v9781 = vrot.slane %v9468, 2
      %v9782 = vsel %vm9722, %v9779, %v9781
      %v9783 = vrot.slane %v9469, 2
      %v9784 = vrot.slane %v9470, 2
      %v9785 = vsel %vm9722, %v9783, %v9784
      %v9786 = vrot.slane %v9471, 2
      %v9787 = vsel %vm9722, %v9784, %v9786
      %v9788 = vrot.slane %v9472, 2
      %v9789 = vrot.slane %v9473, 2
      %v9790 = vsel %vm9722, %v9788, %v9789
      %v9791 = vrot.slane %v9474, 2
      %v9792 = vsel %vm9722, %v9789, %v9791
      %v9793 = vrot.slane %v9475, 2
      %v9794 = vrot.slane %v9476, 2
      %v9795 = vsel %vm9722, %v9793, %v9794
      %v9796 = vrot.slane %v9477, 2
      %v9797 = vsel %vm9722, %v9794, %v9796
      %v9798 = vrot.slane %v9478, 2
      %v9799 = vrot.slane %v9479, 2
      %v9800 = vsel %vm9722, %v9798, %v9799
      %v9801 = vrot.slane %v9480, 2
      %v9802 = vsel %vm9722, %v9799, %v9801
      %v9835 = vadd.f32 %v9642, %v9725
      %v9836 = vadd.f32 %v9643, %v9727
      %v9837 = vadd.f32 %v9644, %v9730
      %v9838 = vadd.f32 %v9645, %v9732
      %v9839 = vadd.f32 %v9646, %v9735
      %v9840 = vadd.f32 %v9647, %v9737
      %v9841 = vadd.f32 %v9648, %v9740
      %v9842 = vadd.f32 %v9649, %v9742
      %v9843 = vadd.f32 %v9650, %v9745
      %v9844 = vadd.f32 %v9651, %v9747
      %v9845 = vadd.f32 %v9652, %v9750
      %v9846 = vadd.f32 %v9653, %v9752
      %v9847 = vadd.f32 %v9654, %v9755
      %v9848 = vadd.f32 %v9655, %v9757
      %v9849 = vadd.f32 %v9656, %v9760
      %v9850 = vadd.f32 %v9657, %v9762
      %v9851 = vadd.f32 %v9658, %v9765
      %v9852 = vadd.f32 %v9659, %v9767
      %v9853 = vadd.f32 %v9660, %v9770
      %v9854 = vadd.f32 %v9661, %v9772
      %v9855 = vadd.f32 %v9662, %v9775
      %v9856 = vadd.f32 %v9663, %v9777
      %v9857 = vadd.f32 %v9664, %v9780
      %v9858 = vadd.f32 %v9665, %v9782
      %v9859 = vadd.f32 %v9666, %v9785
      %v9860 = vadd.f32 %v9667, %v9787
      %v9861 = vadd.f32 %v9668, %v9790
      %v9862 = vadd.f32 %v9669, %v9792
      %v9863 = vadd.f32 %v9670, %v9795
      %v9864 = vadd.f32 %v9671, %v9797
      %v9865 = vadd.f32 %v9672, %v9800
      %v9866 = vadd.f32 %v9673, %v9802
      %v9868 = vlaneseq
      %v9869 = vshrl.u32 %v9868, 7
      %v9870 = vsub.s32 0, %v9869
      %v9871 = vrot.slane %v6066, %v9870
      %v9873 = vadd.f32 %v9835, %v9871
      %v9874 = vadd.f32 %v9836, %v9871
      %v9875 = vadd.f32 %v9837, %v9871
      %v9876 = vadd.f32 %v9838, %v9871
      %v9877 = vadd.f32 %v9839, %v9871
      %v9878 = vadd.f32 %v9840, %v9871
      %v9879 = vadd.f32 %v9841, %v9871
      %v9880 = vadd.f32 %v9842, %v9871
      %v9881 = vadd.f32 %v9843, %v9871
      %v9882 = vadd.f32 %v9844, %v9871
      %v9883 = vadd.f32 %v9845, %v9871
      %v9884 = vadd.f32 %v9846, %v9871
      %v9885 = vadd.f32 %v9847, %v9871
      %v9886 = vadd.f32 %v9848, %v9871
      %v9887 = vadd.f32 %v9849, %v9871
      %v9888 = vadd.f32 %v9850, %v9871
      %v9889 = vadd.f32 %v9851, %v9871
      %v9890 = vadd.f32 %v9852, %v9871
      %v9891 = vadd.f32 %v9853, %v9871
      %v9892 = vadd.f32 %v9854, %v9871
      %v9893 = vadd.f32 %v9855, %v9871
      %v9894 = vadd.f32 %v9856, %v9871
      %v9895 = vadd.f32 %v9857, %v9871
      %v9896 = vadd.f32 %v9858, %v9871
      %v9897 = vadd.f32 %v9859, %v9871
      %v9898 = vadd.f32 %v9860, %v9871
      %v9899 = vadd.f32 %v9861, %v9871
      %v9900 = vadd.f32 %v9862, %v9871
      %v9901 = vadd.f32 %v9863, %v9871
      %v9902 = vadd.f32 %v9864, %v9871
      %v9903 = vadd.f32 %v9865, %v9871
      %v9904 = vadd.f32 %v9866, %v9871
      %v9905 = vmax.f32 %v9873, 0.0
      %v9906 = vmax.f32 %v9874, 0.0
      %v9907 = vmax.f32 %v9875, 0.0
      %v9908 = vmax.f32 %v9876, 0.0
      %v9909 = vmax.f32 %v9877, 0.0
      %v9910 = vmax.f32 %v9878, 0.0
      %v9911 = vmax.f32 %v9879, 0.0
      %v9912 = vmax.f32 %v9880, 0.0
      %v9913 = vmax.f32 %v9881, 0.0
      %v9914 = vmax.f32 %v9882, 0.0
      %v9915 = vmax.f32 %v9883, 0.0
      %v9916 = vmax.f32 %v9884, 0.0
      %v9917 = vmax.f32 %v9885, 0.0
      %v9918 = vmax.f32 %v9886, 0.0
      %v9919 = vmax.f32 %v9887, 0.0
      %v9920 = vmax.f32 %v9888, 0.0
      %v9921 = vmax.f32 %v9889, 0.0
      %v9922 = vmax.f32 %v9890, 0.0
      %v9923 = vmax.f32 %v9891, 0.0
      %v9924 = vmax.f32 %v9892, 0.0
      %v9925 = vmax.f32 %v9893, 0.0
      %v9926 = vmax.f32 %v9894, 0.0
      %v9927 = vmax.f32 %v9895, 0.0
      %v9928 = vmax.f32 %v9896, 0.0
      %v9929 = vmax.f32 %v9897, 0.0
      %v9930 = vmax.f32 %v9898, 0.0
      %v9931 = vmax.f32 %v9899, 0.0
      %v9932 = vmax.f32 %v9900, 0.0
      %v9933 = vmax.f32 %v9901, 0.0
      %v9934 = vmax.f32 %v9902, 0.0
      %v9935 = vmax.f32 %v9903, 0.0
      %v9936 = vmax.f32 %v9904, 0.0
      %9937 = vst [vmem:[%s322] sm:$0xff] %v9905
      %9938 = vst [vmem:[%s322 + $0x8] sm:$0xff] %v9906
      %9939 = vst [vmem:[%s322 + $0x10] sm:$0xff] %v9907
      %9940 = vst [vmem:[%s322 + $0x18] sm:$0xff] %v9908
      %9941 = vst [vmem:[%s322 + $0x20] sm:$0xff] %v9909
      %9942 = vst [vmem:[%s322 + $0x28] sm:$0xff] %v9910
      %9943 = vst [vmem:[%s322 + $0x30] sm:$0xff] %v9911
      %9944 = vst [vmem:[%s322 + $0x38] sm:$0xff] %v9912
      %9945 = vst [vmem:[%s322 + $0x40] sm:$0xff] %v9913
      %9946 = vst [vmem:[%s322 + $0x48] sm:$0xff] %v9914
      %9947 = vst [vmem:[%s322 + $0x50] sm:$0xff] %v9915
      %9948 = vst [vmem:[%s322 + $0x58] sm:$0xff] %v9916
      %9949 = vst [vmem:[%s322 + $0x60] sm:$0xff] %v9917
      %9950 = vst [vmem:[%s322 + $0x68] sm:$0xff] %v9918
      %9951 = vst [vmem:[%s322 + $0x70] sm:$0xff] %v9919
      %9952 = vst [vmem:[%s322 + $0x78] sm:$0xff] %v9920
      %9953 = vst [vmem:[%s322 + $0x80] sm:$0xff] %v9921
      %9954 = vst [vmem:[%s322 + $0x88] sm:$0xff] %v9922
      %9955 = vst [vmem:[%s322 + $0x90] sm:$0xff] %v9923
      %9956 = vst [vmem:[%s322 + $0x98] sm:$0xff] %v9924
      %9957 = vst [vmem:[%s322 + $0xa0] sm:$0xff] %v9925
      %9958 = vst [vmem:[%s322 + $0xa8] sm:$0xff] %v9926
      %9959 = vst [vmem:[%s322 + $0xb0] sm:$0xff] %v9927
      %9960 = vst [vmem:[%s322 + $0xb8] sm:$0xff] %v9928
      %9961 = vst [vmem:[%s322 + $0xc0] sm:$0xff] %v9929
      %9962 = vst [vmem:[%s322 + $0xc8] sm:$0xff] %v9930
      %9963 = vst [vmem:[%s322 + $0xd0] sm:$0xff] %v9931
      %9964 = vst [vmem:[%s322 + $0xd8] sm:$0xff] %v9932
      %9965 = vst [vmem:[%s322 + $0xe0] sm:$0xff] %v9933
      %9966 = vst [vmem:[%s322 + $0xe8] sm:$0xff] %v9934
      %9967 = vst [vmem:[%s322 + $0xf0] sm:$0xff] %v9935
      %9968 = vst [vmem:[%s322 + $0xf8] sm:$0xff] %v9936
      %p9969 = scmp.lt.s32.totalorder %s21, 1
      %s9970 = scalar_select %p9969, %s21, 1
      %p9971 = scmp.lt.s32.totalorder %s22, 0
      %s9972 = scalar_select %p9971, %s22, 0
      %s9973 = smul.addr %s9970, 32
      %s9974 = sadd.s32 %s9972, %s9973
      %s9975 = smul.addr %s9974, 8
      %s9976 = scalar_lea.vmem %s6, %s9975
      // Predicated region
      $region49: #{unet_up_apply.1} parent=43 // pred_check
        %p9977 = pneg %p195
      $region50: #{unet_up_apply.1} parent=43 // pred_check_branch
        %9979 = sbr.rel (%p9977) target = $region52
      $region51: #{unet_up_apply.1} parent=43 // pred_region
        _
      $region52: #{unet_up_apply.1} parent=43 // pred_fallthru
        _
    $region44: #{unet_up_apply.1} parent=5 // pred_fallthru
      _
    %p9980 = scmp.le.s32.totalorder 2, %s12
    // Predicated region
    $region53: #{unet_up_apply.1} parent=5 // pred_check
      %p9981 = pneg %p9980
    $region54: #{unet_up_apply.1} parent=5 // pred_check_branch
      %9983 = sbr.rel (%p9981) target = $region56
    $region55: #{unet_up_apply.1} parent=5 // pred_region
      %s9984 = ssub.s32 %s12, 2
      // Predicated region
      $region57: #{unet_up_apply.1} parent=55 // pred_check
        %p9985 = pneg %p201
      $region58: #{unet_up_apply.1} parent=55 // pred_check_branch
        %9987 = sbr.rel (%p9985) target = $region60
      $region59: #{unet_up_apply.1} parent=55 // pred_region
        %p9988 = scmp.lt.s32.totalorder %s23, 1
        %s9989 = scalar_select %p9988, %s23, 1
        %p9990 = scmp.lt.s32.totalorder %s24, 0
        %s9991 = scalar_select %p9990, %s24, 0
        %s9992 = smul.addr %s9989, 32
        %s9993 = sadd.s32 %s9991, %s9992
        %s9994 = smul.addr %s9993, 8
        %s9995 = scalar_lea.vmem %s6, %s9994
      $region60: #{unet_up_apply.1} parent=55 // pred_fallthru
        _
    $region56: #{unet_up_apply.1} parent=5 // pred_fallthru
      _
  $region6: #{unet_up_apply.1} parent=0 // loop_footer
    %s16 = sadd.s32 1, %s12
  $region7: #{unet_up_apply.1} parent=0 // loop_footer_branch
    %11 = sbr.rel target = $region3
  $region8: #{unet_up_apply.1} parent=0 // loop_exit
    _

</llo_original>
